<compile_context>
chip_gen: v7x
topology: tpu7x:2x2x1
jax: 0.10.0
libtpu: 0.0.40
codegen_flags: <defaults>
</compile_context>

<pallas_src>
import jax
import jax.numpy as jnp
from jax.experimental import pallas as pl
from jax.experimental.pallas import tpu as pltpu

# ---------------- configuration (matches the reference __init__) ----------------
NUM_SEPARATE_NORMS = 4      # the `input_channels` argument of the PyTorch module
CONV_INPUT_CHANNELS = 1     # the module rewires conv input_channels -> 1
N_STAGES = 2
FEATURES = [16, 32]
KERNEL_SIZES = [3, 3]
STRIDES = [1, 2]
N_CONV_PER_STAGE = 2
NEG_SLOPE = 0.01            # LeakyReLU default negative_slope
EPS = 1e-5                  # InstanceNorm eps

# static sizes the fused kernel is specialized for
H = W = 16
C1, C2 = FEATURES
K = 3
P = K // 2
HO, WO = H // STRIDES[1], W // STRIDES[1]     # 8, 8
T1 = H * W                                    # 256 tokens (stage 1)
T2 = HO * WO                                  # 64 tokens  (stage 2)

assert N_CONV_PER_STAGE == 2 and N_STAGES == 2 and STRIDES == [1, 2]
assert KERNEL_SIZES == [3, 3]

# TODO(synk): the pool='max'/'avg' pre-pooling and dropout_op branches of the
# reference __init__ are not exercised by this configuration (pool='conv',
# dropout_op=None) and are not implemented; the fused kernel is specialized to
# n_stages=2, 2 convs/stage, k=3, strides=[1,2].


# ---------------- in-kernel helper (traced inside the Pallas kernel) ----------------
def _inorm_lrelu(y, g, b):
    """InstanceNorm (two-pass biased variance over tokens) + affine + LeakyReLU.

    y: (T, C) float32, g/b: (1, C) float32 (the norm_idx-selected affine bank).
    """
    inv_t = 1.0 / y.shape[0]
    mean = jnp.sum(y, axis=0, keepdims=True) * inv_t
    d = y - mean
    var = jnp.sum(d * d, axis=0, keepdims=True) * inv_t
    yn = d * jax.lax.rsqrt(var + EPS)
    yn = yn * g + b
    return jnp.where(yn >= 0.0, yn, NEG_SLOPE * yn)


# ---------------- fused 2-stage encoder kernel (one sample per grid step) ----------------
def _fused_encoder_kernel(idx_ref,                         # (1,) int32 scalar prefetch (SMEM)
                          xpad_ref,                        # (H+2, W+2, 1) f32 padded input
                          w11_ref, w12_ref, w21_ref, w22_ref,
                          g11_ref, b11_ref, g12_ref, b12_ref,
                          g21_ref, b21_ref, g22_ref, b22_ref,
                          out_ref,                         # (HO, WO*C2) f32, lane-dense
                          pad1_ref, cola_ref, pad2_ref, col22_ref):
    f32 = jnp.float32
    bf16 = jnp.bfloat16
    del idx_ref  # norm-bank selection happens in the index_maps

    # ---- stage 1 / conv 1: (H,W,1) -> (H,W,C1), stride 1 -----------------------
    # cin == 1: f32 rank-1 VPU taps (no K=1 MXU matmuls; v5e has no bf16 VPU).
    y = jnp.zeros((T1, C1), f32)
    for di in range(K):
        for dj in range(K):
            t = di * K + dj
            xt = xpad_ref[di:di + H, dj:dj + W, :].reshape(T1, 1)
            y = y + xt * w11_ref[t:t + 1, :]
    a = _inorm_lrelu(y, g11_ref[...], b11_ref[...])                       # (T1, C1)

    # zero only the 1-px halo of pad1 (interior is fully overwritten each step)
    pad1_ref[0:P, :, :] = jnp.zeros((P, W + 2 * P, C1), f32)
    pad1_ref[P + H:, :, :] = jnp.zeros((P, W + 2 * P, C1), f32)
    pad1_ref[:, 0:P, :] = jnp.zeros((H + 2 * P, P, C1), f32)
    pad1_ref[:, P + W:, :] = jnp.zeros((H + 2 * P, P, C1), f32)
    pad1_ref[P:P + H, P:P + W, :] = a.reshape(H, W, C1)

    # ---- stage 1 / conv 2: (H,W,C1) -> (H,W,C1), ONE K=k*k*C1 MXU matmul -------
    for di in range(K):
        for dj in range(K):
            t = di * K + dj
            cola_ref[:, :, t * C1:(t + 1) * C1] = pad1_ref[di:di + H, dj:dj + W, :]
    y = jnp.dot(cola_ref[...].reshape(T1, K * K * C1).astype(bf16), w12_ref[...],
                preferred_element_type=f32)                               # (T1, C1)
    a = _inorm_lrelu(y, g12_ref[...], b12_ref[...])

    # reuse pad1 (halo is already zero; interior fully overwritten)
    pad1_ref[P:P + H, P:P + W, :] = a.reshape(H, W, C1)

    # ---- stage 2 / conv 1: (H,W,C1) -> (HO,WO,C2), stride 2 --------------------
    for di in range(K):
        for dj in range(K):
            t = di * K + dj
            cola_ref[:, :, t * C1:(t + 1) * C1] = pad1_ref[di:di + H, dj:dj + W, :]
    y = jnp.dot(cola_ref[...].reshape(T1, K * K * C1).astype(bf16), w21_ref[...],
                preferred_element_type=f32)                               # (T1, C2) full-res
    # exact stride-2 subsample (keep even columns, then even rows) using only
    # lane-preserving reshapes + plain slices (no strided indexing, no sel matmul)
    y = y.reshape(H, WO, 2, C2)[:, :, 0:1, :].reshape(H, WO, C2)
    y = y.reshape(HO, 2, WO, C2)[:, 0:1, :, :].reshape(HO, WO, C2)
    y = y.reshape(T2, C2)
    a = _inorm_lrelu(y, g21_ref[...], b21_ref[...])                       # (T2, C2)

    pad2_ref[0:P, :, :] = jnp.zeros((P, WO + 2 * P, C2), f32)
    pad2_ref[P + HO:, :, :] = jnp.zeros((P, WO + 2 * P, C2), f32)
    pad2_ref[:, 0:P, :] = jnp.zeros((HO + 2 * P, P, C2), f32)
    pad2_ref[:, P + WO:, :] = jnp.zeros((HO + 2 * P, P, C2), f32)
    pad2_ref[P:P + HO, P:P + WO, :] = a.reshape(HO, WO, C2)

    # ---- stage 2 / conv 2: (HO,WO,C2) -> (HO,WO,C2), ONE K=k*k*C2 MXU matmul ---
    for di in range(K):
        for dj in range(K):
            t = di * K + dj
            col22_ref[:, :, t * C2:(t + 1) * C2] = pad2_ref[di:di + HO, dj:dj + WO, :]
    y = jnp.dot(col22_ref[...].reshape(T2, K * K * C2).astype(bf16), w22_ref[...],
                preferred_element_type=f32)                               # (T2, C2)
    a = _inorm_lrelu(y, g22_ref[...], b22_ref[...])

    # lane-dense output store: block is (HO, WO*C2) = (8, 256)
    a3 = a.reshape(HO, WO, C2)
    for j in range(WO):
        out_ref[:, j * C2:(j + 1) * C2] = a3[:, j:j + 1, :].reshape(HO, C2)


# ---------------- wrapper around pallas_call ----------------
def encoder_forward(x_nchw, norm_idx, params):
    """Pallas forward of PlainConvEncoderSeparateNorm (return_skips=False)."""
    n, cin, h, w = x_nchw.shape
    assert cin == CONV_INPUT_CHANNELS and h == H and w == W, (x_nchw.shape,)

    x = jnp.transpose(x_nchw, (0, 2, 3, 1)).astype(jnp.float32)          # NCHW -> NHWC
    xpad = jnp.pad(x, ((0, 0), (P, P), (P, P), (0, 0)))                  # (N, H+2, W+2, 1)
    idx = jnp.asarray(norm_idx, jnp.int32).reshape((1,))                 # scalar prefetch

    sp1, sp2 = params["stages"]

    def bank(a):  # (NUM, C) -> (NUM, 1, C) so a (1, C) row is selected via index_map
        return a[:, None, :]

    rep2 = lambda i, nidx: (0, 0)                   # replicated full-array blocks
    sel1 = lambda i, nidx: (nidx[0], 0, 0)          # norm-bank row selected by norm_idx

    out_flat = pl.pallas_call(
        _fused_encoder_kernel,
        out_shape=jax.ShapeDtypeStruct((n, HO, WO * C2), jnp.float32),
        grid_spec=pltpu.PrefetchScalarGridSpec(
            num_scalar_prefetch=1,
            grid=(n,),
            in_specs=[
                pl.BlockSpec((None, H + 2 * P, W + 2 * P, 1),
                             lambda i, nidx: (i, 0, 0, 0)),
                pl.BlockSpec((K * K * 1, C1), rep2),     # w11 (f32, rank-1 path)
                pl.BlockSpec((K * K * C1, C1), rep2),    # w12 (bf16)
                pl.BlockSpec((K * K * C1, C2), rep2),    # w21 (bf16)
                pl.BlockSpec((K * K * C2, C2), rep2),    # w22 (bf16)
                pl.BlockSpec((None, 1, C1), sel1),       # g11
                pl.BlockSpec((None, 1, C1), sel1),       # b11
                pl.BlockSpec((None, 1, C1), sel1),       # g12
                pl.BlockSpec((None, 1, C1), sel1),       # b12
                pl.BlockSpec((None, 1, C2), sel1),       # g21
                pl.BlockSpec((None, 1, C2), sel1),       # b21
                pl.BlockSpec((None, 1, C2), sel1),       # g22
                pl.BlockSpec((None, 1, C2), sel1),       # b22
            ],
            out_specs=pl.BlockSpec((None, HO, WO * C2), lambda i, nidx: (i, 0, 0)),
            scratch_shapes=[
                pltpu.VMEM((H + 2 * P, W + 2 * P, C1), jnp.float32),      # pad1
                pltpu.VMEM((H, W, K * K * C1), jnp.float32),              # im2col (reused)
                pltpu.VMEM((HO + 2 * P, WO + 2 * P, C2), jnp.float32),    # pad2
                pltpu.VMEM((HO, WO, K * K * C2), jnp.float32),            # im2col stage2/conv2
            ],
        ),
        compiler_params=pltpu.CompilerParams(
            # batch axis is embarrassingly parallel -> v7x shards it across its
            # two TensorCores; no-op on single-TC v5e/v6e.
            dimension_semantics=("parallel",),
        ),
    )(idx, xpad,
      sp1["w1"], sp1["w2"], sp2["w1"], sp2["w2"],
      bank(sp1["g1"]), bank(sp1["b1"]), bank(sp1["g2"]), bank(sp1["b2"]),
      bank(sp2["g1"]), bank(sp2["b1"]), bank(sp2["g2"]), bank(sp2["b2"]))

    out = out_flat.reshape(n, HO, WO, C2)
    # return_skips=False -> only the last stage output; NHWC -> NCHW left to XLA.
    return jnp.transpose(out, (0, 3, 1, 2))


# ---------------- pure-JAX (XLA) float32 reference, for sanity checking ----------------
def reference_forward(x_nchw, norm_idx, params):
    x = jnp.transpose(x_nchw, (0, 2, 3, 1)).astype(jnp.float32)
    for s, sp in enumerate(params["stages"]):
        k, stride = KERNEL_SIZES[s], STRIDES[s]
        c = sp["w1"].shape[1]
        blocks = [(sp["w1"], sp["g1"], sp["b1"]), (sp["w2"], sp["g2"], sp["b2"])]
        for ci, (wm, gk, bk) in enumerate(blocks):
            st = stride if ci == 0 else 1
            cin_i = x.shape[-1]
            wk = wm.astype(jnp.float32).reshape(k, k, cin_i, c)          # HWIO
            y = jax.lax.conv_general_dilated(
                x, wk, window_strides=(st, st),
                padding=[(k // 2, k // 2)] * 2,
                dimension_numbers=("NHWC", "HWIO", "NHWC"))
            mean = jnp.mean(y, axis=(1, 2), keepdims=True)
            var = jnp.mean((y - mean) ** 2, axis=(1, 2), keepdims=True)
            g = jnp.take(gk, norm_idx, axis=0)
            b = jnp.take(bk, norm_idx, axis=0)
            y = (y - mean) * jax.lax.rsqrt(var + EPS) * g + b
            x = jnp.where(y >= 0.0, y, NEG_SLOPE * y)
    return jnp.transpose(x, (0, 3, 1, 2))


# ---------------- deterministic parameter init ----------------
def init_params(key):
    params = {"stages": []}
    cin = CONV_INPUT_CHANNELS
    for s in range(N_STAGES):
        c = FEATURES[s]
        k = KERNEL_SIZES[s]
        key, k1, k2, k3, k4, k5, k6 = jax.random.split(key, 7)
        # conv weight matrices with rows ordered (tap-major, in-channel-minor):
        # row = (di*k + dj)*cin + ci  <->  torch weight[o, ci, di, dj]
        w1 = jax.random.normal(k1, (k * k * cin, c), jnp.float32) * 0.1
        w2 = jax.random.normal(k2, (k * k * c, c), jnp.float32) * 0.1
        stage = {
            # stage-1 conv1 runs on the f32 VPU rank-1 path; the others are bf16
            # MXU operands with f32 accumulation.
            "w1": w1 if s == 0 else w1.astype(jnp.bfloat16),
            "w2": w2.astype(jnp.bfloat16),
            # one InstanceNorm affine bank per norm_idx (perturbed so selecting a
            # specific bank is actually exercised by the check below)
            "g1": 1.0 + 0.05 * jax.random.normal(k3, (NUM_SEPARATE_NORMS, c), jnp.float32),
            "b1": 0.05 * jax.random.normal(k4, (NUM_SEPARATE_NORMS, c), jnp.float32),
            "g2": 1.0 + 0.05 * jax.random.normal(k5, (NUM_SEPARATE_NORMS, c), jnp.float32),
            "b2": 0.05 * jax.random.normal(k6, (NUM_SEPARATE_NORMS, c), jnp.float32),
        }
        params["stages"].append(stage)
        cin = c
    return params


if __name__ == "__main__":
    key = jax.random.PRNGKey(0)
    kp, kx = jax.random.split(key)
    params = init_params(kp)

    # The module maps its `input_channels` argument (4) to num_separate_norms and
    # runs the conv path on SINGLE-channel input, so forward(x, norm_idx) takes
    # x of shape (N, 1, H, W) plus the norm-bank index.
    x = jax.random.normal(kx, (2, CONV_INPUT_CHANNELS, H, W), jnp.float32)
    norm_idx = jnp.array(2, jnp.int32)

    fwd = jax.jit(encoder_forward)
    out = jax.block_until_ready(fwd(x, norm_idx, params))

    expected = (2, FEATURES[-1], H // STRIDES[1], W // STRIDES[1])
    assert out.shape == expected, (out.shape, expected)
    assert bool(jnp.all(jnp.isfinite(out)))

    # Sanity check against a pure-XLA float32 reference (tolerance reflects the
    # bf16 matmul operands / f32 accumulation used by the Pallas kernel).
    ref = reference_forward(x, norm_idx, params)
    max_err = float(jnp.max(jnp.abs(out - ref)))
    assert max_err < 0.3, f"max abs err vs reference: {max_err}"

    print("KERNEL_OK")
</pallas_src>

<mosaic_0001>
module attributes {stable_mosaic.version = 11 : i64} {
  func.func @_fused_encoder_kernel(%arg0: i32, %arg1: memref<1xi32, #tpu.memory_space<smem>>, %arg2: memref<1x18x18x1xf32, #tpu.memory_space<vmem>>, %arg3: memref<9x16xf32, #tpu.memory_space<vmem>>, %arg4: memref<144x16xbf16, #tpu.memory_space<vmem>>, %arg5: memref<144x32xbf16, #tpu.memory_space<vmem>>, %arg6: memref<288x32xbf16, #tpu.memory_space<vmem>>, %arg7: memref<1x1x16xf32, #tpu.memory_space<vmem>>, %arg8: memref<1x1x16xf32, #tpu.memory_space<vmem>>, %arg9: memref<1x1x16xf32, #tpu.memory_space<vmem>>, %arg10: memref<1x1x16xf32, #tpu.memory_space<vmem>>, %arg11: memref<1x1x32xf32, #tpu.memory_space<vmem>>, %arg12: memref<1x1x32xf32, #tpu.memory_space<vmem>>, %arg13: memref<1x1x32xf32, #tpu.memory_space<vmem>>, %arg14: memref<1x1x32xf32, #tpu.memory_space<vmem>>, %arg15: memref<1x8x256xf32, #tpu.memory_space<vmem>>, %arg16: memref<18x18x16xf32, #tpu.memory_space<vmem>>, %arg17: memref<16x16x144xf32, #tpu.memory_space<vmem>>, %arg18: memref<10x10x32xf32, #tpu.memory_space<vmem>>, %arg19: memref<8x8x288xf32, #tpu.memory_space<vmem>>) attributes {dimension_semantics = [#tpu.dimension_semantics<parallel>], iteration_bounds = array<i64: 2>, scalar_prefetch = 1 : i64, scratch_operands = 4 : i64, tpu.core_type = #tpu.core_type<tc>, window_params = [{transform_indices = @transform_0, window_bounds = array<i64: 1, 18, 18, 1>}, {pipeline_mode = #tpu.pipeline_mode<synchronous>, transform_indices = @transform_1, window_bounds = array<i64: 9, 16>}, {pipeline_mode = #tpu.pipeline_mode<synchronous>, transform_indices = @transform_2, window_bounds = array<i64: 144, 16>}, {pipeline_mode = #tpu.pipeline_mode<synchronous>, transform_indices = @transform_3, window_bounds = array<i64: 144, 32>}, {pipeline_mode = #tpu.pipeline_mode<synchronous>, transform_indices = @transform_4, window_bounds = array<i64: 288, 32>}, {transform_indices = @transform_5, window_bounds = array<i64: 1, 1, 16>}, {transform_indices = @transform_6, window_bounds = array<i64: 1, 1, 16>}, {transform_indices = @transform_7, window_bounds = array<i64: 1, 1, 16>}, {transform_indices = @transform_8, window_bounds = array<i64: 1, 1, 16>}, {transform_indices = @transform_9, window_bounds = array<i64: 1, 1, 32>}, {transform_indices = @transform_10, window_bounds = array<i64: 1, 1, 32>}, {transform_indices = @transform_11, window_bounds = array<i64: 1, 1, 32>}, {transform_indices = @transform_12, window_bounds = array<i64: 1, 1, 32>}, {transform_indices = @transform_13, window_bounds = array<i64: 1, 8, 256>}]} {
    %cst = arith.constant 0.000000e+00 : f32
    %0 = vector.broadcast %cst : f32 to vector<256x16xf32>
    %c0 = arith.constant 0 : index
    %c0_0 = arith.constant 0 : index
    %c0_1 = arith.constant 0 : index
    %c0_2 = arith.constant 0 : index
    %1 = vector.load %arg2[%c0, %c0_0, %c0_1, %c0_2] : memref<1x18x18x1xf32, #tpu.memory_space<vmem>>, vector<1x16x16x1xf32>
    %2 = vector.shape_cast %1 : vector<1x16x16x1xf32> to vector<16x16x1xf32>
    %3 = vector.shape_cast %2 : vector<16x16x1xf32> to vector<256x1xf32>
    %c0_3 = arith.constant 0 : index
    %c0_4 = arith.constant 0 : index
    %4 = vector.load %arg3[%c0_3, %c0_4] : memref<9x16xf32, #tpu.memory_space<vmem>>, vector<1x16xf32>
    %5 = vector.broadcast %3 : vector<256x1xf32> to vector<256x16xf32>
    %6 = vector.broadcast %4 : vector<1x16xf32> to vector<256x16xf32>
    %7 = arith.mulf %5, %6 : vector<256x16xf32>
    %8 = arith.addf %0, %7 : vector<256x16xf32>
    %c0_5 = arith.constant 0 : index
    %c0_6 = arith.constant 0 : index
    %c1 = arith.constant 1 : index
    %c0_7 = arith.constant 0 : index
    %9 = vector.load %arg2[%c0_5, %c0_6, %c1, %c0_7] : memref<1x18x18x1xf32, #tpu.memory_space<vmem>>, vector<1x16x16x1xf32>
    %10 = vector.shape_cast %9 : vector<1x16x16x1xf32> to vector<16x16x1xf32>
    %11 = vector.shape_cast %10 : vector<16x16x1xf32> to vector<256x1xf32>
    %c1_8 = arith.constant 1 : index
    %c0_9 = arith.constant 0 : index
    %12 = vector.load %arg3[%c1_8, %c0_9] : memref<9x16xf32, #tpu.memory_space<vmem>>, vector<1x16xf32>
    %13 = vector.broadcast %11 : vector<256x1xf32> to vector<256x16xf32>
    %14 = vector.broadcast %12 : vector<1x16xf32> to vector<256x16xf32>
    %15 = arith.mulf %13, %14 : vector<256x16xf32>
    %16 = arith.addf %8, %15 : vector<256x16xf32>
    %c0_10 = arith.constant 0 : index
    %c0_11 = arith.constant 0 : index
    %c2 = arith.constant 2 : index
    %c0_12 = arith.constant 0 : index
    %17 = vector.load %arg2[%c0_10, %c0_11, %c2, %c0_12] : memref<1x18x18x1xf32, #tpu.memory_space<vmem>>, vector<1x16x16x1xf32>
    %18 = vector.shape_cast %17 : vector<1x16x16x1xf32> to vector<16x16x1xf32>
    %19 = vector.shape_cast %18 : vector<16x16x1xf32> to vector<256x1xf32>
    %c2_13 = arith.constant 2 : index
    %c0_14 = arith.constant 0 : index
    %20 = vector.load %arg3[%c2_13, %c0_14] : memref<9x16xf32, #tpu.memory_space<vmem>>, vector<1x16xf32>
    %21 = vector.broadcast %19 : vector<256x1xf32> to vector<256x16xf32>
    %22 = vector.broadcast %20 : vector<1x16xf32> to vector<256x16xf32>
    %23 = arith.mulf %21, %22 : vector<256x16xf32>
    %24 = arith.addf %16, %23 : vector<256x16xf32>
    %c0_15 = arith.constant 0 : index
    %c1_16 = arith.constant 1 : index
    %c0_17 = arith.constant 0 : index
    %c0_18 = arith.constant 0 : index
    %25 = vector.load %arg2[%c0_15, %c1_16, %c0_17, %c0_18] : memref<1x18x18x1xf32, #tpu.memory_space<vmem>>, vector<1x16x16x1xf32>
    %26 = vector.shape_cast %25 : vector<1x16x16x1xf32> to vector<16x16x1xf32>
    %27 = vector.shape_cast %26 : vector<16x16x1xf32> to vector<256x1xf32>
    %c3 = arith.constant 3 : index
    %c0_19 = arith.constant 0 : index
    %28 = vector.load %arg3[%c3, %c0_19] : memref<9x16xf32, #tpu.memory_space<vmem>>, vector<1x16xf32>
    %29 = vector.broadcast %27 : vector<256x1xf32> to vector<256x16xf32>
    %30 = vector.broadcast %28 : vector<1x16xf32> to vector<256x16xf32>
    %31 = arith.mulf %29, %30 : vector<256x16xf32>
    %32 = arith.addf %24, %31 : vector<256x16xf32>
    %c0_20 = arith.constant 0 : index
    %c1_21 = arith.constant 1 : index
    %c1_22 = arith.constant 1 : index
    %c0_23 = arith.constant 0 : index
    %33 = vector.load %arg2[%c0_20, %c1_21, %c1_22, %c0_23] : memref<1x18x18x1xf32, #tpu.memory_space<vmem>>, vector<1x16x16x1xf32>
    %34 = vector.shape_cast %33 : vector<1x16x16x1xf32> to vector<16x16x1xf32>
    %35 = vector.shape_cast %34 : vector<16x16x1xf32> to vector<256x1xf32>
    %c4 = arith.constant 4 : index
    %c0_24 = arith.constant 0 : index
    %36 = vector.load %arg3[%c4, %c0_24] : memref<9x16xf32, #tpu.memory_space<vmem>>, vector<1x16xf32>
    %37 = vector.broadcast %35 : vector<256x1xf32> to vector<256x16xf32>
    %38 = vector.broadcast %36 : vector<1x16xf32> to vector<256x16xf32>
    %39 = arith.mulf %37, %38 : vector<256x16xf32>
    %40 = arith.addf %32, %39 : vector<256x16xf32>
    %c0_25 = arith.constant 0 : index
    %c1_26 = arith.constant 1 : index
    %c2_27 = arith.constant 2 : index
    %c0_28 = arith.constant 0 : index
    %41 = vector.load %arg2[%c0_25, %c1_26, %c2_27, %c0_28] : memref<1x18x18x1xf32, #tpu.memory_space<vmem>>, vector<1x16x16x1xf32>
    %42 = vector.shape_cast %41 : vector<1x16x16x1xf32> to vector<16x16x1xf32>
    %43 = vector.shape_cast %42 : vector<16x16x1xf32> to vector<256x1xf32>
    %c5 = arith.constant 5 : index
    %c0_29 = arith.constant 0 : index
    %44 = vector.load %arg3[%c5, %c0_29] : memref<9x16xf32, #tpu.memory_space<vmem>>, vector<1x16xf32>
    %45 = vector.broadcast %43 : vector<256x1xf32> to vector<256x16xf32>
    %46 = vector.broadcast %44 : vector<1x16xf32> to vector<256x16xf32>
    %47 = arith.mulf %45, %46 : vector<256x16xf32>
    %48 = arith.addf %40, %47 : vector<256x16xf32>
    %c0_30 = arith.constant 0 : index
    %c2_31 = arith.constant 2 : index
    %c0_32 = arith.constant 0 : index
    %c0_33 = arith.constant 0 : index
    %49 = vector.load %arg2[%c0_30, %c2_31, %c0_32, %c0_33] : memref<1x18x18x1xf32, #tpu.memory_space<vmem>>, vector<1x16x16x1xf32>
    %50 = vector.shape_cast %49 : vector<1x16x16x1xf32> to vector<16x16x1xf32>
    %51 = vector.shape_cast %50 : vector<16x16x1xf32> to vector<256x1xf32>
    %c6 = arith.constant 6 : index
    %c0_34 = arith.constant 0 : index
    %52 = vector.load %arg3[%c6, %c0_34] : memref<9x16xf32, #tpu.memory_space<vmem>>, vector<1x16xf32>
    %53 = vector.broadcast %51 : vector<256x1xf32> to vector<256x16xf32>
    %54 = vector.broadcast %52 : vector<1x16xf32> to vector<256x16xf32>
    %55 = arith.mulf %53, %54 : vector<256x16xf32>
    %56 = arith.addf %48, %55 : vector<256x16xf32>
    %c0_35 = arith.constant 0 : index
    %c2_36 = arith.constant 2 : index
    %c1_37 = arith.constant 1 : index
    %c0_38 = arith.constant 0 : index
    %57 = vector.load %arg2[%c0_35, %c2_36, %c1_37, %c0_38] : memref<1x18x18x1xf32, #tpu.memory_space<vmem>>, vector<1x16x16x1xf32>
    %58 = vector.shape_cast %57 : vector<1x16x16x1xf32> to vector<16x16x1xf32>
    %59 = vector.shape_cast %58 : vector<16x16x1xf32> to vector<256x1xf32>
    %c7 = arith.constant 7 : index
    %c0_39 = arith.constant 0 : index
    %60 = vector.load %arg3[%c7, %c0_39] : memref<9x16xf32, #tpu.memory_space<vmem>>, vector<1x16xf32>
    %61 = vector.broadcast %59 : vector<256x1xf32> to vector<256x16xf32>
    %62 = vector.broadcast %60 : vector<1x16xf32> to vector<256x16xf32>
    %63 = arith.mulf %61, %62 : vector<256x16xf32>
    %64 = arith.addf %56, %63 : vector<256x16xf32>
    %c0_40 = arith.constant 0 : index
    %c2_41 = arith.constant 2 : index
    %c2_42 = arith.constant 2 : index
    %c0_43 = arith.constant 0 : index
    %65 = vector.load %arg2[%c0_40, %c2_41, %c2_42, %c0_43] : memref<1x18x18x1xf32, #tpu.memory_space<vmem>>, vector<1x16x16x1xf32>
    %66 = vector.shape_cast %65 : vector<1x16x16x1xf32> to vector<16x16x1xf32>
    %67 = vector.shape_cast %66 : vector<16x16x1xf32> to vector<256x1xf32>
    %c8 = arith.constant 8 : index
    %c0_44 = arith.constant 0 : index
    %68 = vector.load %arg3[%c8, %c0_44] : memref<9x16xf32, #tpu.memory_space<vmem>>, vector<1x16xf32>
    %69 = vector.broadcast %67 : vector<256x1xf32> to vector<256x16xf32>
    %70 = vector.broadcast %68 : vector<1x16xf32> to vector<256x16xf32>
    %71 = arith.mulf %69, %70 : vector<256x16xf32>
    %72 = arith.addf %64, %71 : vector<256x16xf32>
    %c0_45 = arith.constant 0 : index
    %c0_46 = arith.constant 0 : index
    %c0_47 = arith.constant 0 : index
    %73 = vector.load %arg7[%c0_45, %c0_46, %c0_47] : memref<1x1x16xf32, #tpu.memory_space<vmem>>, vector<1x1x16xf32>
    %74 = vector.shape_cast %73 : vector<1x1x16xf32> to vector<1x16xf32>
    %c0_48 = arith.constant 0 : index
    %c0_49 = arith.constant 0 : index
    %c0_50 = arith.constant 0 : index
    %75 = vector.load %arg8[%c0_48, %c0_49, %c0_50] : memref<1x1x16xf32, #tpu.memory_space<vmem>>, vector<1x1x16xf32>
    %76 = vector.shape_cast %75 : vector<1x1x16xf32> to vector<1x16xf32>
    %cst_51 = arith.constant dense<0.000000e+00> : vector<16xf32>
    %77 = vector.multi_reduction <add>, %72, %cst_51 [0] : vector<256x16xf32> to vector<16xf32>
    %78 = vector.shape_cast %77 : vector<16xf32> to vector<1x16xf32>
    %cst_52 = arith.constant 3.906250e-03 : f32
    %79 = vector.broadcast %cst_52 : f32 to vector<1x16xf32>
    %80 = arith.mulf %78, %79 : vector<1x16xf32>
    %81 = vector.broadcast %80 : vector<1x16xf32> to vector<256x16xf32>
    %82 = arith.subf %72, %81 : vector<256x16xf32>
    %83 = arith.mulf %82, %82 : vector<256x16xf32>
    %cst_53 = arith.constant dense<0.000000e+00> : vector<16xf32>
    %84 = vector.multi_reduction <add>, %83, %cst_53 [0] : vector<256x16xf32> to vector<16xf32>
    %85 = vector.shape_cast %84 : vector<16xf32> to vector<1x16xf32>
    %cst_54 = arith.constant 3.906250e-03 : f32
    %86 = vector.broadcast %cst_54 : f32 to vector<1x16xf32>
    %87 = arith.mulf %85, %86 : vector<1x16xf32>
    %cst_55 = arith.constant 9.99999974E-6 : f32
    %88 = vector.broadcast %cst_55 : f32 to vector<1x16xf32>
    %89 = arith.addf %87, %88 : vector<1x16xf32>
    %90 = math.rsqrt %89 : vector<1x16xf32>
    %91 = vector.broadcast %90 : vector<1x16xf32> to vector<256x16xf32>
    %92 = arith.mulf %82, %91 : vector<256x16xf32>
    %93 = vector.broadcast %74 : vector<1x16xf32> to vector<256x16xf32>
    %94 = arith.mulf %92, %93 : vector<256x16xf32>
    %95 = vector.broadcast %76 : vector<1x16xf32> to vector<256x16xf32>
    %96 = arith.addf %94, %95 : vector<256x16xf32>
    %cst_56 = arith.constant 0.000000e+00 : f32
    %97 = vector.broadcast %cst_56 : f32 to vector<256x16xf32>
    %98 = arith.cmpf oge, %96, %97 : vector<256x16xf32>
    %cst_57 = arith.constant 0.00999999977 : f32
    %99 = vector.broadcast %cst_57 : f32 to vector<256x16xf32>
    %100 = arith.mulf %99, %96 : vector<256x16xf32>
    %101 = arith.select %98, %96, %100 : vector<256x16xi1>, vector<256x16xf32>
    %cst_58 = arith.constant 0.000000e+00 : f32
    %102 = vector.broadcast %cst_58 : f32 to vector<1x18x16xf32>
    %c0_59 = arith.constant 0 : index
    %c0_60 = arith.constant 0 : index
    %c0_61 = arith.constant 0 : index
    %103 = vector.load %arg16[%c0_59, %c0_60, %c0_61] : memref<18x18x16xf32, #tpu.memory_space<vmem>>, vector<1x18x16xf32>
    tpu.vector_store %arg16[%c0_59, %c0_60, %c0_61], %102 {strides = array<i32>} : memref<18x18x16xf32, #tpu.memory_space<vmem>>, vector<1x18x16xf32>,
    %cst_62 = arith.constant 0.000000e+00 : f32
    %104 = vector.broadcast %cst_62 : f32 to vector<1x18x16xf32>
    %c17 = arith.constant 17 : index
    %c0_63 = arith.constant 0 : index
    %c0_64 = arith.constant 0 : index
    %105 = vector.load %arg16[%c17, %c0_63, %c0_64] : memref<18x18x16xf32, #tpu.memory_space<vmem>>, vector<1x18x16xf32>
    tpu.vector_store %arg16[%c17, %c0_63, %c0_64], %104 {strides = array<i32>} : memref<18x18x16xf32, #tpu.memory_space<vmem>>, vector<1x18x16xf32>,
    %cst_65 = arith.constant 0.000000e+00 : f32
    %106 = vector.broadcast %cst_65 : f32 to vector<18x1x16xf32>
    %c0_66 = arith.constant 0 : index
    %c0_67 = arith.constant 0 : index
    %c0_68 = arith.constant 0 : index
    %107 = vector.load %arg16[%c0_66, %c0_67, %c0_68] : memref<18x18x16xf32, #tpu.memory_space<vmem>>, vector<18x1x16xf32>
    tpu.vector_store %arg16[%c0_66, %c0_67, %c0_68], %106 {strides = array<i32>} : memref<18x18x16xf32, #tpu.memory_space<vmem>>, vector<18x1x16xf32>,
    %cst_69 = arith.constant 0.000000e+00 : f32
    %108 = vector.broadcast %cst_69 : f32 to vector<18x1x16xf32>
    %c0_70 = arith.constant 0 : index
    %c17_71 = arith.constant 17 : index
    %c0_72 = arith.constant 0 : index
    %109 = vector.load %arg16[%c0_70, %c17_71, %c0_72] : memref<18x18x16xf32, #tpu.memory_space<vmem>>, vector<18x1x16xf32>
    tpu.vector_store %arg16[%c0_70, %c17_71, %c0_72], %108 {strides = array<i32>} : memref<18x18x16xf32, #tpu.memory_space<vmem>>, vector<18x1x16xf32>,
    %110 = vector.shape_cast %101 : vector<256x16xf32> to vector<16x16x16xf32>
    %c1_73 = arith.constant 1 : index
    %c1_74 = arith.constant 1 : index
    %c0_75 = arith.constant 0 : index
    %111 = vector.load %arg16[%c1_73, %c1_74, %c0_75] : memref<18x18x16xf32, #tpu.memory_space<vmem>>, vector<16x16x16xf32>
    tpu.vector_store %arg16[%c1_73, %c1_74, %c0_75], %110 {strides = array<i32>} : memref<18x18x16xf32, #tpu.memory_space<vmem>>, vector<16x16x16xf32>,
    %c0_76 = arith.constant 0 : index
    %c0_77 = arith.constant 0 : index
    %c0_78 = arith.constant 0 : index
    %112 = vector.load %arg16[%c0_76, %c0_77, %c0_78] : memref<18x18x16xf32, #tpu.memory_space<vmem>>, vector<16x16x16xf32>
    %c0_79 = arith.constant 0 : index
    %c0_80 = arith.constant 0 : index
    %c0_81 = arith.constant 0 : index
    %113 = vector.load %arg17[%c0_79, %c0_80, %c0_81] : memref<16x16x144xf32, #tpu.memory_space<vmem>>, vector<16x16x16xf32>
    tpu.vector_store %arg17[%c0_79, %c0_80, %c0_81], %112 {strides = array<i32>} : memref<16x16x144xf32, #tpu.memory_space<vmem>>, vector<16x16x16xf32>,
    %c0_82 = arith.constant 0 : index
    %c1_83 = arith.constant 1 : index
    %c0_84 = arith.constant 0 : index
    %114 = vector.load %arg16[%c0_82, %c1_83, %c0_84] : memref<18x18x16xf32, #tpu.memory_space<vmem>>, vector<16x16x16xf32>
    %c0_85 = arith.constant 0 : index
    %c0_86 = arith.constant 0 : index
    %c16 = arith.constant 16 : index
    %115 = vector.load %arg17[%c0_85, %c0_86, %c16] : memref<16x16x144xf32, #tpu.memory_space<vmem>>, vector<16x16x16xf32>
    tpu.vector_store %arg17[%c0_85, %c0_86, %c16], %114 {strides = array<i32>} : memref<16x16x144xf32, #tpu.memory_space<vmem>>, vector<16x16x16xf32>,
    %c0_87 = arith.constant 0 : index
    %c2_88 = arith.constant 2 : index
    %c0_89 = arith.constant 0 : index
    %116 = vector.load %arg16[%c0_87, %c2_88, %c0_89] : memref<18x18x16xf32, #tpu.memory_space<vmem>>, vector<16x16x16xf32>
    %c0_90 = arith.constant 0 : index
    %c0_91 = arith.constant 0 : index
    %c32 = arith.constant 32 : index
    %117 = vector.load %arg17[%c0_90, %c0_91, %c32] : memref<16x16x144xf32, #tpu.memory_space<vmem>>, vector<16x16x16xf32>
    tpu.vector_store %arg17[%c0_90, %c0_91, %c32], %116 {strides = array<i32>} : memref<16x16x144xf32, #tpu.memory_space<vmem>>, vector<16x16x16xf32>,
    %c1_92 = arith.constant 1 : index
    %c0_93 = arith.constant 0 : index
    %c0_94 = arith.constant 0 : index
    %118 = vector.load %arg16[%c1_92, %c0_93, %c0_94] : memref<18x18x16xf32, #tpu.memory_space<vmem>>, vector<16x16x16xf32>
    %c0_95 = arith.constant 0 : index
    %c0_96 = arith.constant 0 : index
    %c48 = arith.constant 48 : index
    %119 = vector.load %arg17[%c0_95, %c0_96, %c48] : memref<16x16x144xf32, #tpu.memory_space<vmem>>, vector<16x16x16xf32>
    tpu.vector_store %arg17[%c0_95, %c0_96, %c48], %118 {strides = array<i32>} : memref<16x16x144xf32, #tpu.memory_space<vmem>>, vector<16x16x16xf32>,
    %c1_97 = arith.constant 1 : index
    %c1_98 = arith.constant 1 : index
    %c0_99 = arith.constant 0 : index
    %120 = vector.load %arg16[%c1_97, %c1_98, %c0_99] : memref<18x18x16xf32, #tpu.memory_space<vmem>>, vector<16x16x16xf32>
    %c0_100 = arith.constant 0 : index
    %c0_101 = arith.constant 0 : index
    %c64 = arith.constant 64 : index
    %121 = vector.load %arg17[%c0_100, %c0_101, %c64] : memref<16x16x144xf32, #tpu.memory_space<vmem>>, vector<16x16x16xf32>
    tpu.vector_store %arg17[%c0_100, %c0_101, %c64], %120 {strides = array<i32>} : memref<16x16x144xf32, #tpu.memory_space<vmem>>, vector<16x16x16xf32>,
    %c1_102 = arith.constant 1 : index
    %c2_103 = arith.constant 2 : index
    %c0_104 = arith.constant 0 : index
    %122 = vector.load %arg16[%c1_102, %c2_103, %c0_104] : memref<18x18x16xf32, #tpu.memory_space<vmem>>, vector<16x16x16xf32>
    %c0_105 = arith.constant 0 : index
    %c0_106 = arith.constant 0 : index
    %c80 = arith.constant 80 : index
    %123 = vector.load %arg17[%c0_105, %c0_106, %c80] : memref<16x16x144xf32, #tpu.memory_space<vmem>>, vector<16x16x16xf32>
    tpu.vector_store %arg17[%c0_105, %c0_106, %c80], %122 {strides = array<i32>} : memref<16x16x144xf32, #tpu.memory_space<vmem>>, vector<16x16x16xf32>,
    %c2_107 = arith.constant 2 : index
    %c0_108 = arith.constant 0 : index
    %c0_109 = arith.constant 0 : index
    %124 = vector.load %arg16[%c2_107, %c0_108, %c0_109] : memref<18x18x16xf32, #tpu.memory_space<vmem>>, vector<16x16x16xf32>
    %c0_110 = arith.constant 0 : index
    %c0_111 = arith.constant 0 : index
    %c96 = arith.constant 96 : index
    %125 = vector.load %arg17[%c0_110, %c0_111, %c96] : memref<16x16x144xf32, #tpu.memory_space<vmem>>, vector<16x16x16xf32>
    tpu.vector_store %arg17[%c0_110, %c0_111, %c96], %124 {strides = array<i32>} : memref<16x16x144xf32, #tpu.memory_space<vmem>>, vector<16x16x16xf32>,
    %c2_112 = arith.constant 2 : index
    %c1_113 = arith.constant 1 : index
    %c0_114 = arith.constant 0 : index
    %126 = vector.load %arg16[%c2_112, %c1_113, %c0_114] : memref<18x18x16xf32, #tpu.memory_space<vmem>>, vector<16x16x16xf32>
    %c0_115 = arith.constant 0 : index
    %c0_116 = arith.constant 0 : index
    %c112 = arith.constant 112 : index
    %127 = vector.load %arg17[%c0_115, %c0_116, %c112] : memref<16x16x144xf32, #tpu.memory_space<vmem>>, vector<16x16x16xf32>
    tpu.vector_store %arg17[%c0_115, %c0_116, %c112], %126 {strides = array<i32>} : memref<16x16x144xf32, #tpu.memory_space<vmem>>, vector<16x16x16xf32>,
    %c2_117 = arith.constant 2 : index
    %c2_118 = arith.constant 2 : index
    %c0_119 = arith.constant 0 : index
    %128 = vector.load %arg16[%c2_117, %c2_118, %c0_119] : memref<18x18x16xf32, #tpu.memory_space<vmem>>, vector<16x16x16xf32>
    %c0_120 = arith.constant 0 : index
    %c0_121 = arith.constant 0 : index
    %c128 = arith.constant 128 : index
    %129 = vector.load %arg17[%c0_120, %c0_121, %c128] : memref<16x16x144xf32, #tpu.memory_space<vmem>>, vector<16x16x16xf32>
    tpu.vector_store %arg17[%c0_120, %c0_121, %c128], %128 {strides = array<i32>} : memref<16x16x144xf32, #tpu.memory_space<vmem>>, vector<16x16x16xf32>,
    %c0_122 = arith.constant 0 : index
    %c0_123 = arith.constant 0 : index
    %c0_124 = arith.constant 0 : index
    %130 = vector.load %arg17[%c0_122, %c0_123, %c0_124] : memref<16x16x144xf32, #tpu.memory_space<vmem>>, vector<16x16x144xf32>
    %131 = vector.shape_cast %130 : vector<16x16x144xf32> to vector<256x144xf32>
    %132 = arith.truncf %131 : vector<256x144xf32> to vector<256x144xbf16>
    %c0_125 = arith.constant 0 : index
    %c0_126 = arith.constant 0 : index
    %133 = vector.load %arg4[%c0_125, %c0_126] : memref<144x16xbf16, #tpu.memory_space<vmem>>, vector<144x16xbf16>
    %cst_127 = arith.constant dense<0.000000e+00> : vector<256x16xf32>
    %134 = tpu.matmul %132, %133, %cst_127 {dimension_numbers = #tpu.dot_dimension_numbers<[1], [0], [0], [1], [0, 0, 1, 1], [], []>} : vector<256x144xbf16>, vector<144x16xbf16>, vector<256x16xf32> -> vector<256x16xf32>
    %c0_128 = arith.constant 0 : index
    %c0_129 = arith.constant 0 : index
    %c0_130 = arith.constant 0 : index
    %135 = vector.load %arg9[%c0_128, %c0_129, %c0_130] : memref<1x1x16xf32, #tpu.memory_space<vmem>>, vector<1x1x16xf32>
    %136 = vector.shape_cast %135 : vector<1x1x16xf32> to vector<1x16xf32>
    %c0_131 = arith.constant 0 : index
    %c0_132 = arith.constant 0 : index
    %c0_133 = arith.constant 0 : index
    %137 = vector.load %arg10[%c0_131, %c0_132, %c0_133] : memref<1x1x16xf32, #tpu.memory_space<vmem>>, vector<1x1x16xf32>
    %138 = vector.shape_cast %137 : vector<1x1x16xf32> to vector<1x16xf32>
    %cst_134 = arith.constant dense<0.000000e+00> : vector<16xf32>
    %139 = vector.multi_reduction <add>, %134, %cst_134 [0] : vector<256x16xf32> to vector<16xf32>
    %140 = vector.shape_cast %139 : vector<16xf32> to vector<1x16xf32>
    %cst_135 = arith.constant 3.906250e-03 : f32
    %141 = vector.broadcast %cst_135 : f32 to vector<1x16xf32>
    %142 = arith.mulf %140, %141 : vector<1x16xf32>
    %143 = vector.broadcast %142 : vector<1x16xf32> to vector<256x16xf32>
    %144 = arith.subf %134, %143 : vector<256x16xf32>
    %145 = arith.mulf %144, %144 : vector<256x16xf32>
    %cst_136 = arith.constant dense<0.000000e+00> : vector<16xf32>
    %146 = vector.multi_reduction <add>, %145, %cst_136 [0] : vector<256x16xf32> to vector<16xf32>
    %147 = vector.shape_cast %146 : vector<16xf32> to vector<1x16xf32>
    %cst_137 = arith.constant 3.906250e-03 : f32
    %148 = vector.broadcast %cst_137 : f32 to vector<1x16xf32>
    %149 = arith.mulf %147, %148 : vector<1x16xf32>
    %cst_138 = arith.constant 9.99999974E-6 : f32
    %150 = vector.broadcast %cst_138 : f32 to vector<1x16xf32>
    %151 = arith.addf %149, %150 : vector<1x16xf32>
    %152 = math.rsqrt %151 : vector<1x16xf32>
    %153 = vector.broadcast %152 : vector<1x16xf32> to vector<256x16xf32>
    %154 = arith.mulf %144, %153 : vector<256x16xf32>
    %155 = vector.broadcast %136 : vector<1x16xf32> to vector<256x16xf32>
    %156 = arith.mulf %154, %155 : vector<256x16xf32>
    %157 = vector.broadcast %138 : vector<1x16xf32> to vector<256x16xf32>
    %158 = arith.addf %156, %157 : vector<256x16xf32>
    %cst_139 = arith.constant 0.000000e+00 : f32
    %159 = vector.broadcast %cst_139 : f32 to vector<256x16xf32>
    %160 = arith.cmpf oge, %158, %159 : vector<256x16xf32>
    %cst_140 = arith.constant 0.00999999977 : f32
    %161 = vector.broadcast %cst_140 : f32 to vector<256x16xf32>
    %162 = arith.mulf %161, %158 : vector<256x16xf32>
    %163 = arith.select %160, %158, %162 : vector<256x16xi1>, vector<256x16xf32>
    %164 = vector.shape_cast %163 : vector<256x16xf32> to vector<16x16x16xf32>
    %c1_141 = arith.constant 1 : index
    %c1_142 = arith.constant 1 : index
    %c0_143 = arith.constant 0 : index
    %165 = vector.load %arg16[%c1_141, %c1_142, %c0_143] : memref<18x18x16xf32, #tpu.memory_space<vmem>>, vector<16x16x16xf32>
    tpu.vector_store %arg16[%c1_141, %c1_142, %c0_143], %164 {strides = array<i32>} : memref<18x18x16xf32, #tpu.memory_space<vmem>>, vector<16x16x16xf32>,
    %c0_144 = arith.constant 0 : index
    %c0_145 = arith.constant 0 : index
    %c0_146 = arith.constant 0 : index
    %166 = vector.load %arg16[%c0_144, %c0_145, %c0_146] : memref<18x18x16xf32, #tpu.memory_space<vmem>>, vector<16x16x16xf32>
    %c0_147 = arith.constant 0 : index
    %c0_148 = arith.constant 0 : index
    %c0_149 = arith.constant 0 : index
    %167 = vector.load %arg17[%c0_147, %c0_148, %c0_149] : memref<16x16x144xf32, #tpu.memory_space<vmem>>, vector<16x16x16xf32>
    tpu.vector_store %arg17[%c0_147, %c0_148, %c0_149], %166 {strides = array<i32>} : memref<16x16x144xf32, #tpu.memory_space<vmem>>, vector<16x16x16xf32>,
    %c0_150 = arith.constant 0 : index
    %c1_151 = arith.constant 1 : index
    %c0_152 = arith.constant 0 : index
    %168 = vector.load %arg16[%c0_150, %c1_151, %c0_152] : memref<18x18x16xf32, #tpu.memory_space<vmem>>, vector<16x16x16xf32>
    %c0_153 = arith.constant 0 : index
    %c0_154 = arith.constant 0 : index
    %c16_155 = arith.constant 16 : index
    %169 = vector.load %arg17[%c0_153, %c0_154, %c16_155] : memref<16x16x144xf32, #tpu.memory_space<vmem>>, vector<16x16x16xf32>
    tpu.vector_store %arg17[%c0_153, %c0_154, %c16_155], %168 {strides = array<i32>} : memref<16x16x144xf32, #tpu.memory_space<vmem>>, vector<16x16x16xf32>,
    %c0_156 = arith.constant 0 : index
    %c2_157 = arith.constant 2 : index
    %c0_158 = arith.constant 0 : index
    %170 = vector.load %arg16[%c0_156, %c2_157, %c0_158] : memref<18x18x16xf32, #tpu.memory_space<vmem>>, vector<16x16x16xf32>
    %c0_159 = arith.constant 0 : index
    %c0_160 = arith.constant 0 : index
    %c32_161 = arith.constant 32 : index
    %171 = vector.load %arg17[%c0_159, %c0_160, %c32_161] : memref<16x16x144xf32, #tpu.memory_space<vmem>>, vector<16x16x16xf32>
    tpu.vector_store %arg17[%c0_159, %c0_160, %c32_161], %170 {strides = array<i32>} : memref<16x16x144xf32, #tpu.memory_space<vmem>>, vector<16x16x16xf32>,
    %c1_162 = arith.constant 1 : index
    %c0_163 = arith.constant 0 : index
    %c0_164 = arith.constant 0 : index
    %172 = vector.load %arg16[%c1_162, %c0_163, %c0_164] : memref<18x18x16xf32, #tpu.memory_space<vmem>>, vector<16x16x16xf32>
    %c0_165 = arith.constant 0 : index
    %c0_166 = arith.constant 0 : index
    %c48_167 = arith.constant 48 : index
    %173 = vector.load %arg17[%c0_165, %c0_166, %c48_167] : memref<16x16x144xf32, #tpu.memory_space<vmem>>, vector<16x16x16xf32>
    tpu.vector_store %arg17[%c0_165, %c0_166, %c48_167], %172 {strides = array<i32>} : memref<16x16x144xf32, #tpu.memory_space<vmem>>, vector<16x16x16xf32>,
    %c1_168 = arith.constant 1 : index
    %c1_169 = arith.constant 1 : index
    %c0_170 = arith.constant 0 : index
    %174 = vector.load %arg16[%c1_168, %c1_169, %c0_170] : memref<18x18x16xf32, #tpu.memory_space<vmem>>, vector<16x16x16xf32>
    %c0_171 = arith.constant 0 : index
    %c0_172 = arith.constant 0 : index
    %c64_173 = arith.constant 64 : index
    %175 = vector.load %arg17[%c0_171, %c0_172, %c64_173] : memref<16x16x144xf32, #tpu.memory_space<vmem>>, vector<16x16x16xf32>
    tpu.vector_store %arg17[%c0_171, %c0_172, %c64_173], %174 {strides = array<i32>} : memref<16x16x144xf32, #tpu.memory_space<vmem>>, vector<16x16x16xf32>,
    %c1_174 = arith.constant 1 : index
    %c2_175 = arith.constant 2 : index
    %c0_176 = arith.constant 0 : index
    %176 = vector.load %arg16[%c1_174, %c2_175, %c0_176] : memref<18x18x16xf32, #tpu.memory_space<vmem>>, vector<16x16x16xf32>
    %c0_177 = arith.constant 0 : index
    %c0_178 = arith.constant 0 : index
    %c80_179 = arith.constant 80 : index
    %177 = vector.load %arg17[%c0_177, %c0_178, %c80_179] : memref<16x16x144xf32, #tpu.memory_space<vmem>>, vector<16x16x16xf32>
    tpu.vector_store %arg17[%c0_177, %c0_178, %c80_179], %176 {strides = array<i32>} : memref<16x16x144xf32, #tpu.memory_space<vmem>>, vector<16x16x16xf32>,
    %c2_180 = arith.constant 2 : index
    %c0_181 = arith.constant 0 : index
    %c0_182 = arith.constant 0 : index
    %178 = vector.load %arg16[%c2_180, %c0_181, %c0_182] : memref<18x18x16xf32, #tpu.memory_space<vmem>>, vector<16x16x16xf32>
    %c0_183 = arith.constant 0 : index
    %c0_184 = arith.constant 0 : index
    %c96_185 = arith.constant 96 : index
    %179 = vector.load %arg17[%c0_183, %c0_184, %c96_185] : memref<16x16x144xf32, #tpu.memory_space<vmem>>, vector<16x16x16xf32>
    tpu.vector_store %arg17[%c0_183, %c0_184, %c96_185], %178 {strides = array<i32>} : memref<16x16x144xf32, #tpu.memory_space<vmem>>, vector<16x16x16xf32>,
    %c2_186 = arith.constant 2 : index
    %c1_187 = arith.constant 1 : index
    %c0_188 = arith.constant 0 : index
    %180 = vector.load %arg16[%c2_186, %c1_187, %c0_188] : memref<18x18x16xf32, #tpu.memory_space<vmem>>, vector<16x16x16xf32>
    %c0_189 = arith.constant 0 : index
    %c0_190 = arith.constant 0 : index
    %c112_191 = arith.constant 112 : index
    %181 = vector.load %arg17[%c0_189, %c0_190, %c112_191] : memref<16x16x144xf32, #tpu.memory_space<vmem>>, vector<16x16x16xf32>
    tpu.vector_store %arg17[%c0_189, %c0_190, %c112_191], %180 {strides = array<i32>} : memref<16x16x144xf32, #tpu.memory_space<vmem>>, vector<16x16x16xf32>,
    %c2_192 = arith.constant 2 : index
    %c2_193 = arith.constant 2 : index
    %c0_194 = arith.constant 0 : index
    %182 = vector.load %arg16[%c2_192, %c2_193, %c0_194] : memref<18x18x16xf32, #tpu.memory_space<vmem>>, vector<16x16x16xf32>
    %c0_195 = arith.constant 0 : index
    %c0_196 = arith.constant 0 : index
    %c128_197 = arith.constant 128 : index
    %183 = vector.load %arg17[%c0_195, %c0_196, %c128_197] : memref<16x16x144xf32, #tpu.memory_space<vmem>>, vector<16x16x16xf32>
    tpu.vector_store %arg17[%c0_195, %c0_196, %c128_197], %182 {strides = array<i32>} : memref<16x16x144xf32, #tpu.memory_space<vmem>>, vector<16x16x16xf32>,
    %c0_198 = arith.constant 0 : index
    %c0_199 = arith.constant 0 : index
    %c0_200 = arith.constant 0 : index
    %184 = vector.load %arg17[%c0_198, %c0_199, %c0_200] : memref<16x16x144xf32, #tpu.memory_space<vmem>>, vector<16x16x144xf32>
    %185 = vector.shape_cast %184 : vector<16x16x144xf32> to vector<256x144xf32>
    %186 = arith.truncf %185 : vector<256x144xf32> to vector<256x144xbf16>
    %c0_201 = arith.constant 0 : index
    %c0_202 = arith.constant 0 : index
    %187 = vector.load %arg5[%c0_201, %c0_202] : memref<144x32xbf16, #tpu.memory_space<vmem>>, vector<144x32xbf16>
    %cst_203 = arith.constant dense<0.000000e+00> : vector<256x32xf32>
    %188 = tpu.matmul %186, %187, %cst_203 {dimension_numbers = #tpu.dot_dimension_numbers<[1], [0], [0], [1], [0, 0, 1, 1], [], []>} : vector<256x144xbf16>, vector<144x32xbf16>, vector<256x32xf32> -> vector<256x32xf32>
    %189 = vector.shape_cast %188 : vector<256x32xf32> to vector<16x8x2x32xf32>
    %190 = vector.extract_strided_slice %189 {offsets = [0, 0, 0, 0], sizes = [16, 8, 1, 32], strides = [1, 1, 1, 1]} : vector<16x8x2x32xf32> to vector<16x8x1x32xf32>
    %191 = vector.shape_cast %190 : vector<16x8x1x32xf32> to vector<16x8x32xf32>
    %192 = vector.shape_cast %191 : vector<16x8x32xf32> to vector<8x2x8x32xf32>
    %193 = vector.extract_strided_slice %192 {offsets = [0, 0, 0, 0], sizes = [8, 1, 8, 32], strides = [1, 1, 1, 1]} : vector<8x2x8x32xf32> to vector<8x1x8x32xf32>
    %194 = vector.shape_cast %193 : vector<8x1x8x32xf32> to vector<8x8x32xf32>
    %195 = vector.shape_cast %194 : vector<8x8x32xf32> to vector<64x32xf32>
    %c0_204 = arith.constant 0 : index
    %c0_205 = arith.constant 0 : index
    %c0_206 = arith.constant 0 : index
    %196 = vector.load %arg11[%c0_204, %c0_205, %c0_206] : memref<1x1x32xf32, #tpu.memory_space<vmem>>, vector<1x1x32xf32>
    %197 = vector.shape_cast %196 : vector<1x1x32xf32> to vector<1x32xf32>
    %c0_207 = arith.constant 0 : index
    %c0_208 = arith.constant 0 : index
    %c0_209 = arith.constant 0 : index
    %198 = vector.load %arg12[%c0_207, %c0_208, %c0_209] : memref<1x1x32xf32, #tpu.memory_space<vmem>>, vector<1x1x32xf32>
    %199 = vector.shape_cast %198 : vector<1x1x32xf32> to vector<1x32xf32>
    %cst_210 = arith.constant dense<0.000000e+00> : vector<32xf32>
    %200 = vector.multi_reduction <add>, %195, %cst_210 [0] : vector<64x32xf32> to vector<32xf32>
    %201 = vector.shape_cast %200 : vector<32xf32> to vector<1x32xf32>
    %cst_211 = arith.constant 1.562500e-02 : f32
    %202 = vector.broadcast %cst_211 : f32 to vector<1x32xf32>
    %203 = arith.mulf %201, %202 : vector<1x32xf32>
    %204 = vector.broadcast %203 : vector<1x32xf32> to vector<64x32xf32>
    %205 = arith.subf %195, %204 : vector<64x32xf32>
    %206 = arith.mulf %205, %205 : vector<64x32xf32>
    %cst_212 = arith.constant dense<0.000000e+00> : vector<32xf32>
    %207 = vector.multi_reduction <add>, %206, %cst_212 [0] : vector<64x32xf32> to vector<32xf32>
    %208 = vector.shape_cast %207 : vector<32xf32> to vector<1x32xf32>
    %cst_213 = arith.constant 1.562500e-02 : f32
    %209 = vector.broadcast %cst_213 : f32 to vector<1x32xf32>
    %210 = arith.mulf %208, %209 : vector<1x32xf32>
    %cst_214 = arith.constant 9.99999974E-6 : f32
    %211 = vector.broadcast %cst_214 : f32 to vector<1x32xf32>
    %212 = arith.addf %210, %211 : vector<1x32xf32>
    %213 = math.rsqrt %212 : vector<1x32xf32>
    %214 = vector.broadcast %213 : vector<1x32xf32> to vector<64x32xf32>
    %215 = arith.mulf %205, %214 : vector<64x32xf32>
    %216 = vector.broadcast %197 : vector<1x32xf32> to vector<64x32xf32>
    %217 = arith.mulf %215, %216 : vector<64x32xf32>
    %218 = vector.broadcast %199 : vector<1x32xf32> to vector<64x32xf32>
    %219 = arith.addf %217, %218 : vector<64x32xf32>
    %cst_215 = arith.constant 0.000000e+00 : f32
    %220 = vector.broadcast %cst_215 : f32 to vector<64x32xf32>
    %221 = arith.cmpf oge, %219, %220 : vector<64x32xf32>
    %cst_216 = arith.constant 0.00999999977 : f32
    %222 = vector.broadcast %cst_216 : f32 to vector<64x32xf32>
    %223 = arith.mulf %222, %219 : vector<64x32xf32>
    %224 = arith.select %221, %219, %223 : vector<64x32xi1>, vector<64x32xf32>
    %cst_217 = arith.constant 0.000000e+00 : f32
    %225 = vector.broadcast %cst_217 : f32 to vector<1x10x32xf32>
    %c0_218 = arith.constant 0 : index
    %c0_219 = arith.constant 0 : index
    %c0_220 = arith.constant 0 : index
    %226 = vector.load %arg18[%c0_218, %c0_219, %c0_220] : memref<10x10x32xf32, #tpu.memory_space<vmem>>, vector<1x10x32xf32>
    tpu.vector_store %arg18[%c0_218, %c0_219, %c0_220], %225 {strides = array<i32>} : memref<10x10x32xf32, #tpu.memory_space<vmem>>, vector<1x10x32xf32>,
    %cst_221 = arith.constant 0.000000e+00 : f32
    %227 = vector.broadcast %cst_221 : f32 to vector<1x10x32xf32>
    %c9 = arith.constant 9 : index
    %c0_222 = arith.constant 0 : index
    %c0_223 = arith.constant 0 : index
    %228 = vector.load %arg18[%c9, %c0_222, %c0_223] : memref<10x10x32xf32, #tpu.memory_space<vmem>>, vector<1x10x32xf32>
    tpu.vector_store %arg18[%c9, %c0_222, %c0_223], %227 {strides = array<i32>} : memref<10x10x32xf32, #tpu.memory_space<vmem>>, vector<1x10x32xf32>,
    %cst_224 = arith.constant 0.000000e+00 : f32
    %229 = vector.broadcast %cst_224 : f32 to vector<10x1x32xf32>
    %c0_225 = arith.constant 0 : index
    %c0_226 = arith.constant 0 : index
    %c0_227 = arith.constant 0 : index
    %230 = vector.load %arg18[%c0_225, %c0_226, %c0_227] : memref<10x10x32xf32, #tpu.memory_space<vmem>>, vector<10x1x32xf32>
    tpu.vector_store %arg18[%c0_225, %c0_226, %c0_227], %229 {strides = array<i32>} : memref<10x10x32xf32, #tpu.memory_space<vmem>>, vector<10x1x32xf32>,
    %cst_228 = arith.constant 0.000000e+00 : f32
    %231 = vector.broadcast %cst_228 : f32 to vector<10x1x32xf32>
    %c0_229 = arith.constant 0 : index
    %c9_230 = arith.constant 9 : index
    %c0_231 = arith.constant 0 : index
    %232 = vector.load %arg18[%c0_229, %c9_230, %c0_231] : memref<10x10x32xf32, #tpu.memory_space<vmem>>, vector<10x1x32xf32>
    tpu.vector_store %arg18[%c0_229, %c9_230, %c0_231], %231 {strides = array<i32>} : memref<10x10x32xf32, #tpu.memory_space<vmem>>, vector<10x1x32xf32>,
    %233 = vector.shape_cast %224 : vector<64x32xf32> to vector<8x8x32xf32>
    %c1_232 = arith.constant 1 : index
    %c1_233 = arith.constant 1 : index
    %c0_234 = arith.constant 0 : index
    %234 = vector.load %arg18[%c1_232, %c1_233, %c0_234] : memref<10x10x32xf32, #tpu.memory_space<vmem>>, vector<8x8x32xf32>
    tpu.vector_store %arg18[%c1_232, %c1_233, %c0_234], %233 {strides = array<i32>} : memref<10x10x32xf32, #tpu.memory_space<vmem>>, vector<8x8x32xf32>,
    %c0_235 = arith.constant 0 : index
    %c0_236 = arith.constant 0 : index
    %c0_237 = arith.constant 0 : index
    %235 = vector.load %arg18[%c0_235, %c0_236, %c0_237] : memref<10x10x32xf32, #tpu.memory_space<vmem>>, vector<8x8x32xf32>
    %c0_238 = arith.constant 0 : index
    %c0_239 = arith.constant 0 : index
    %c0_240 = arith.constant 0 : index
    %236 = vector.load %arg19[%c0_238, %c0_239, %c0_240] : memref<8x8x288xf32, #tpu.memory_space<vmem>>, vector<8x8x32xf32>
    tpu.vector_store %arg19[%c0_238, %c0_239, %c0_240], %235 {strides = array<i32>} : memref<8x8x288xf32, #tpu.memory_space<vmem>>, vector<8x8x32xf32>,
    %c0_241 = arith.constant 0 : index
    %c1_242 = arith.constant 1 : index
    %c0_243 = arith.constant 0 : index
    %237 = vector.load %arg18[%c0_241, %c1_242, %c0_243] : memref<10x10x32xf32, #tpu.memory_space<vmem>>, vector<8x8x32xf32>
    %c0_244 = arith.constant 0 : index
    %c0_245 = arith.constant 0 : index
    %c32_246 = arith.constant 32 : index
    %238 = vector.load %arg19[%c0_244, %c0_245, %c32_246] : memref<8x8x288xf32, #tpu.memory_space<vmem>>, vector<8x8x32xf32>
    tpu.vector_store %arg19[%c0_244, %c0_245, %c32_246], %237 {strides = array<i32>} : memref<8x8x288xf32, #tpu.memory_space<vmem>>, vector<8x8x32xf32>,
    %c0_247 = arith.constant 0 : index
    %c2_248 = arith.constant 2 : index
    %c0_249 = arith.constant 0 : index
    %239 = vector.load %arg18[%c0_247, %c2_248, %c0_249] : memref<10x10x32xf32, #tpu.memory_space<vmem>>, vector<8x8x32xf32>
    %c0_250 = arith.constant 0 : index
    %c0_251 = arith.constant 0 : index
    %c64_252 = arith.constant 64 : index
    %240 = vector.load %arg19[%c0_250, %c0_251, %c64_252] : memref<8x8x288xf32, #tpu.memory_space<vmem>>, vector<8x8x32xf32>
    tpu.vector_store %arg19[%c0_250, %c0_251, %c64_252], %239 {strides = array<i32>} : memref<8x8x288xf32, #tpu.memory_space<vmem>>, vector<8x8x32xf32>,
    %c1_253 = arith.constant 1 : index
    %c0_254 = arith.constant 0 : index
    %c0_255 = arith.constant 0 : index
    %241 = vector.load %arg18[%c1_253, %c0_254, %c0_255] : memref<10x10x32xf32, #tpu.memory_space<vmem>>, vector<8x8x32xf32>
    %c0_256 = arith.constant 0 : index
    %c0_257 = arith.constant 0 : index
    %c96_258 = arith.constant 96 : index
    %242 = vector.load %arg19[%c0_256, %c0_257, %c96_258] : memref<8x8x288xf32, #tpu.memory_space<vmem>>, vector<8x8x32xf32>
    tpu.vector_store %arg19[%c0_256, %c0_257, %c96_258], %241 {strides = array<i32>} : memref<8x8x288xf32, #tpu.memory_space<vmem>>, vector<8x8x32xf32>,
    %c1_259 = arith.constant 1 : index
    %c1_260 = arith.constant 1 : index
    %c0_261 = arith.constant 0 : index
    %243 = vector.load %arg18[%c1_259, %c1_260, %c0_261] : memref<10x10x32xf32, #tpu.memory_space<vmem>>, vector<8x8x32xf32>
    %c0_262 = arith.constant 0 : index
    %c0_263 = arith.constant 0 : index
    %c128_264 = arith.constant 128 : index
    %244 = vector.load %arg19[%c0_262, %c0_263, %c128_264] : memref<8x8x288xf32, #tpu.memory_space<vmem>>, vector<8x8x32xf32>
    tpu.vector_store %arg19[%c0_262, %c0_263, %c128_264], %243 {strides = array<i32>} : memref<8x8x288xf32, #tpu.memory_space<vmem>>, vector<8x8x32xf32>,
    %c1_265 = arith.constant 1 : index
    %c2_266 = arith.constant 2 : index
    %c0_267 = arith.constant 0 : index
    %245 = vector.load %arg18[%c1_265, %c2_266, %c0_267] : memref<10x10x32xf32, #tpu.memory_space<vmem>>, vector<8x8x32xf32>
    %c0_268 = arith.constant 0 : index
    %c0_269 = arith.constant 0 : index
    %c160 = arith.constant 160 : index
    %246 = vector.load %arg19[%c0_268, %c0_269, %c160] : memref<8x8x288xf32, #tpu.memory_space<vmem>>, vector<8x8x32xf32>
    tpu.vector_store %arg19[%c0_268, %c0_269, %c160], %245 {strides = array<i32>} : memref<8x8x288xf32, #tpu.memory_space<vmem>>, vector<8x8x32xf32>,
    %c2_270 = arith.constant 2 : index
    %c0_271 = arith.constant 0 : index
    %c0_272 = arith.constant 0 : index
    %247 = vector.load %arg18[%c2_270, %c0_271, %c0_272] : memref<10x10x32xf32, #tpu.memory_space<vmem>>, vector<8x8x32xf32>
    %c0_273 = arith.constant 0 : index
    %c0_274 = arith.constant 0 : index
    %c192 = arith.constant 192 : index
    %248 = vector.load %arg19[%c0_273, %c0_274, %c192] : memref<8x8x288xf32, #tpu.memory_space<vmem>>, vector<8x8x32xf32>
    tpu.vector_store %arg19[%c0_273, %c0_274, %c192], %247 {strides = array<i32>} : memref<8x8x288xf32, #tpu.memory_space<vmem>>, vector<8x8x32xf32>,
    %c2_275 = arith.constant 2 : index
    %c1_276 = arith.constant 1 : index
    %c0_277 = arith.constant 0 : index
    %249 = vector.load %arg18[%c2_275, %c1_276, %c0_277] : memref<10x10x32xf32, #tpu.memory_space<vmem>>, vector<8x8x32xf32>
    %c0_278 = arith.constant 0 : index
    %c0_279 = arith.constant 0 : index
    %c224 = arith.constant 224 : index
    %250 = vector.load %arg19[%c0_278, %c0_279, %c224] : memref<8x8x288xf32, #tpu.memory_space<vmem>>, vector<8x8x32xf32>
    tpu.vector_store %arg19[%c0_278, %c0_279, %c224], %249 {strides = array<i32>} : memref<8x8x288xf32, #tpu.memory_space<vmem>>, vector<8x8x32xf32>,
    %c2_280 = arith.constant 2 : index
    %c2_281 = arith.constant 2 : index
    %c0_282 = arith.constant 0 : index
    %251 = vector.load %arg18[%c2_280, %c2_281, %c0_282] : memref<10x10x32xf32, #tpu.memory_space<vmem>>, vector<8x8x32xf32>
    %c0_283 = arith.constant 0 : index
    %c0_284 = arith.constant 0 : index
    %c256 = arith.constant 256 : index
    %252 = vector.load %arg19[%c0_283, %c0_284, %c256] : memref<8x8x288xf32, #tpu.memory_space<vmem>>, vector<8x8x32xf32>
    tpu.vector_store %arg19[%c0_283, %c0_284, %c256], %251 {strides = array<i32>} : memref<8x8x288xf32, #tpu.memory_space<vmem>>, vector<8x8x32xf32>,
    %c0_285 = arith.constant 0 : index
    %c0_286 = arith.constant 0 : index
    %c0_287 = arith.constant 0 : index
    %253 = vector.load %arg19[%c0_285, %c0_286, %c0_287] : memref<8x8x288xf32, #tpu.memory_space<vmem>>, vector<8x8x288xf32>
    %254 = vector.shape_cast %253 : vector<8x8x288xf32> to vector<64x288xf32>
    %255 = arith.truncf %254 : vector<64x288xf32> to vector<64x288xbf16>
    %c0_288 = arith.constant 0 : index
    %c0_289 = arith.constant 0 : index
    %256 = vector.load %arg6[%c0_288, %c0_289] : memref<288x32xbf16, #tpu.memory_space<vmem>>, vector<288x32xbf16>
    %cst_290 = arith.constant dense<0.000000e+00> : vector<64x32xf32>
    %257 = tpu.matmul %255, %256, %cst_290 {dimension_numbers = #tpu.dot_dimension_numbers<[1], [0], [0], [1], [0, 0, 1, 1], [], []>} : vector<64x288xbf16>, vector<288x32xbf16>, vector<64x32xf32> -> vector<64x32xf32>
    %c0_291 = arith.constant 0 : index
    %c0_292 = arith.constant 0 : index
    %c0_293 = arith.constant 0 : index
    %258 = vector.load %arg13[%c0_291, %c0_292, %c0_293] : memref<1x1x32xf32, #tpu.memory_space<vmem>>, vector<1x1x32xf32>
    %259 = vector.shape_cast %258 : vector<1x1x32xf32> to vector<1x32xf32>
    %c0_294 = arith.constant 0 : index
    %c0_295 = arith.constant 0 : index
    %c0_296 = arith.constant 0 : index
    %260 = vector.load %arg14[%c0_294, %c0_295, %c0_296] : memref<1x1x32xf32, #tpu.memory_space<vmem>>, vector<1x1x32xf32>
    %261 = vector.shape_cast %260 : vector<1x1x32xf32> to vector<1x32xf32>
    %cst_297 = arith.constant dense<0.000000e+00> : vector<32xf32>
    %262 = vector.multi_reduction <add>, %257, %cst_297 [0] : vector<64x32xf32> to vector<32xf32>
    %263 = vector.shape_cast %262 : vector<32xf32> to vector<1x32xf32>
    %cst_298 = arith.constant 1.562500e-02 : f32
    %264 = vector.broadcast %cst_298 : f32 to vector<1x32xf32>
    %265 = arith.mulf %263, %264 : vector<1x32xf32>
    %266 = vector.broadcast %265 : vector<1x32xf32> to vector<64x32xf32>
    %267 = arith.subf %257, %266 : vector<64x32xf32>
    %268 = arith.mulf %267, %267 : vector<64x32xf32>
    %cst_299 = arith.constant dense<0.000000e+00> : vector<32xf32>
    %269 = vector.multi_reduction <add>, %268, %cst_299 [0] : vector<64x32xf32> to vector<32xf32>
    %270 = vector.shape_cast %269 : vector<32xf32> to vector<1x32xf32>
    %cst_300 = arith.constant 1.562500e-02 : f32
    %271 = vector.broadcast %cst_300 : f32 to vector<1x32xf32>
    %272 = arith.mulf %270, %271 : vector<1x32xf32>
    %cst_301 = arith.constant 9.99999974E-6 : f32
    %273 = vector.broadcast %cst_301 : f32 to vector<1x32xf32>
    %274 = arith.addf %272, %273 : vector<1x32xf32>
    %275 = math.rsqrt %274 : vector<1x32xf32>
    %276 = vector.broadcast %275 : vector<1x32xf32> to vector<64x32xf32>
    %277 = arith.mulf %267, %276 : vector<64x32xf32>
    %278 = vector.broadcast %259 : vector<1x32xf32> to vector<64x32xf32>
    %279 = arith.mulf %277, %278 : vector<64x32xf32>
    %280 = vector.broadcast %261 : vector<1x32xf32> to vector<64x32xf32>
    %281 = arith.addf %279, %280 : vector<64x32xf32>
    %cst_302 = arith.constant 0.000000e+00 : f32
    %282 = vector.broadcast %cst_302 : f32 to vector<64x32xf32>
    %283 = arith.cmpf oge, %281, %282 : vector<64x32xf32>
    %cst_303 = arith.constant 0.00999999977 : f32
    %284 = vector.broadcast %cst_303 : f32 to vector<64x32xf32>
    %285 = arith.mulf %284, %281 : vector<64x32xf32>
    %286 = arith.select %283, %281, %285 : vector<64x32xi1>, vector<64x32xf32>
    %287 = vector.shape_cast %286 : vector<64x32xf32> to vector<8x8x32xf32>
    %288 = vector.extract_strided_slice %287 {offsets = [0, 0, 0], sizes = [8, 1, 32], strides = [1, 1, 1]} : vector<8x8x32xf32> to vector<8x1x32xf32>
    %289 = vector.shape_cast %288 : vector<8x1x32xf32> to vector<8x32xf32>
    %c0_304 = arith.constant 0 : index
    %c0_305 = arith.constant 0 : index
    %c0_306 = arith.constant 0 : index
    %290 = vector.load %arg15[%c0_304, %c0_305, %c0_306] : memref<1x8x256xf32, #tpu.memory_space<vmem>>, vector<1x8x32xf32>
    %291 = vector.shape_cast %290 : vector<1x8x32xf32> to vector<8x32xf32>
    %292 = vector.shape_cast %289 : vector<8x32xf32> to vector<1x8x32xf32>
    tpu.vector_store %arg15[%c0_304, %c0_305, %c0_306], %292 {strides = array<i32>} : memref<1x8x256xf32, #tpu.memory_space<vmem>>, vector<1x8x32xf32>,
    %293 = vector.extract_strided_slice %287 {offsets = [0, 1, 0], sizes = [8, 1, 32], strides = [1, 1, 1]} : vector<8x8x32xf32> to vector<8x1x32xf32>
    %294 = vector.shape_cast %293 : vector<8x1x32xf32> to vector<8x32xf32>
    %c0_307 = arith.constant 0 : index
    %c0_308 = arith.constant 0 : index
    %c32_309 = arith.constant 32 : index
    %295 = vector.load %arg15[%c0_307, %c0_308, %c32_309] : memref<1x8x256xf32, #tpu.memory_space<vmem>>, vector<1x8x32xf32>
    %296 = vector.shape_cast %295 : vector<1x8x32xf32> to vector<8x32xf32>
    %297 = vector.shape_cast %294 : vector<8x32xf32> to vector<1x8x32xf32>
    tpu.vector_store %arg15[%c0_307, %c0_308, %c32_309], %297 {strides = array<i32>} : memref<1x8x256xf32, #tpu.memory_space<vmem>>, vector<1x8x32xf32>,
    %298 = vector.extract_strided_slice %287 {offsets = [0, 2, 0], sizes = [8, 1, 32], strides = [1, 1, 1]} : vector<8x8x32xf32> to vector<8x1x32xf32>
    %299 = vector.shape_cast %298 : vector<8x1x32xf32> to vector<8x32xf32>
    %c0_310 = arith.constant 0 : index
    %c0_311 = arith.constant 0 : index
    %c64_312 = arith.constant 64 : index
    %300 = vector.load %arg15[%c0_310, %c0_311, %c64_312] : memref<1x8x256xf32, #tpu.memory_space<vmem>>, vector<1x8x32xf32>
    %301 = vector.shape_cast %300 : vector<1x8x32xf32> to vector<8x32xf32>
    %302 = vector.shape_cast %299 : vector<8x32xf32> to vector<1x8x32xf32>
    tpu.vector_store %arg15[%c0_310, %c0_311, %c64_312], %302 {strides = array<i32>} : memref<1x8x256xf32, #tpu.memory_space<vmem>>, vector<1x8x32xf32>,
    %303 = vector.extract_strided_slice %287 {offsets = [0, 3, 0], sizes = [8, 1, 32], strides = [1, 1, 1]} : vector<8x8x32xf32> to vector<8x1x32xf32>
    %304 = vector.shape_cast %303 : vector<8x1x32xf32> to vector<8x32xf32>
    %c0_313 = arith.constant 0 : index
    %c0_314 = arith.constant 0 : index
    %c96_315 = arith.constant 96 : index
    %305 = vector.load %arg15[%c0_313, %c0_314, %c96_315] : memref<1x8x256xf32, #tpu.memory_space<vmem>>, vector<1x8x32xf32>
    %306 = vector.shape_cast %305 : vector<1x8x32xf32> to vector<8x32xf32>
    %307 = vector.shape_cast %304 : vector<8x32xf32> to vector<1x8x32xf32>
    tpu.vector_store %arg15[%c0_313, %c0_314, %c96_315], %307 {strides = array<i32>} : memref<1x8x256xf32, #tpu.memory_space<vmem>>, vector<1x8x32xf32>,
    %308 = vector.extract_strided_slice %287 {offsets = [0, 4, 0], sizes = [8, 1, 32], strides = [1, 1, 1]} : vector<8x8x32xf32> to vector<8x1x32xf32>
    %309 = vector.shape_cast %308 : vector<8x1x32xf32> to vector<8x32xf32>
    %c0_316 = arith.constant 0 : index
    %c0_317 = arith.constant 0 : index
    %c128_318 = arith.constant 128 : index
    %310 = vector.load %arg15[%c0_316, %c0_317, %c128_318] : memref<1x8x256xf32, #tpu.memory_space<vmem>>, vector<1x8x32xf32>
    %311 = vector.shape_cast %310 : vector<1x8x32xf32> to vector<8x32xf32>
    %312 = vector.shape_cast %309 : vector<8x32xf32> to vector<1x8x32xf32>
    tpu.vector_store %arg15[%c0_316, %c0_317, %c128_318], %312 {strides = array<i32>} : memref<1x8x256xf32, #tpu.memory_space<vmem>>, vector<1x8x32xf32>,
    %313 = vector.extract_strided_slice %287 {offsets = [0, 5, 0], sizes = [8, 1, 32], strides = [1, 1, 1]} : vector<8x8x32xf32> to vector<8x1x32xf32>
    %314 = vector.shape_cast %313 : vector<8x1x32xf32> to vector<8x32xf32>
    %c0_319 = arith.constant 0 : index
    %c0_320 = arith.constant 0 : index
    %c160_321 = arith.constant 160 : index
    %315 = vector.load %arg15[%c0_319, %c0_320, %c160_321] : memref<1x8x256xf32, #tpu.memory_space<vmem>>, vector<1x8x32xf32>
    %316 = vector.shape_cast %315 : vector<1x8x32xf32> to vector<8x32xf32>
    %317 = vector.shape_cast %314 : vector<8x32xf32> to vector<1x8x32xf32>
    tpu.vector_store %arg15[%c0_319, %c0_320, %c160_321], %317 {strides = array<i32>} : memref<1x8x256xf32, #tpu.memory_space<vmem>>, vector<1x8x32xf32>,
    %318 = vector.extract_strided_slice %287 {offsets = [0, 6, 0], sizes = [8, 1, 32], strides = [1, 1, 1]} : vector<8x8x32xf32> to vector<8x1x32xf32>
    %319 = vector.shape_cast %318 : vector<8x1x32xf32> to vector<8x32xf32>
    %c0_322 = arith.constant 0 : index
    %c0_323 = arith.constant 0 : index
    %c192_324 = arith.constant 192 : index
    %320 = vector.load %arg15[%c0_322, %c0_323, %c192_324] : memref<1x8x256xf32, #tpu.memory_space<vmem>>, vector<1x8x32xf32>
    %321 = vector.shape_cast %320 : vector<1x8x32xf32> to vector<8x32xf32>
    %322 = vector.shape_cast %319 : vector<8x32xf32> to vector<1x8x32xf32>
    tpu.vector_store %arg15[%c0_322, %c0_323, %c192_324], %322 {strides = array<i32>} : memref<1x8x256xf32, #tpu.memory_space<vmem>>, vector<1x8x32xf32>,
    %323 = vector.extract_strided_slice %287 {offsets = [0, 7, 0], sizes = [8, 1, 32], strides = [1, 1, 1]} : vector<8x8x32xf32> to vector<8x1x32xf32>
    %324 = vector.shape_cast %323 : vector<8x1x32xf32> to vector<8x32xf32>
    %c0_325 = arith.constant 0 : index
    %c0_326 = arith.constant 0 : index
    %c224_327 = arith.constant 224 : index
    %325 = vector.load %arg15[%c0_325, %c0_326, %c224_327] : memref<1x8x256xf32, #tpu.memory_space<vmem>>, vector<1x8x32xf32>
    %326 = vector.shape_cast %325 : vector<1x8x32xf32> to vector<8x32xf32>
    %327 = vector.shape_cast %324 : vector<8x32xf32> to vector<1x8x32xf32>
    tpu.vector_store %arg15[%c0_325, %c0_326, %c224_327], %327 {strides = array<i32>} : memref<1x8x256xf32, #tpu.memory_space<vmem>>, vector<1x8x32xf32>,
    return
  }
  func.func @transform_0(%arg0: i32, %arg1: memref<1xi32, #tpu.memory_space<smem>>) -> (i32, i32, i32, i32) {
    %c0_i32 = arith.constant 0 : i32
    %c0_i32_0 = arith.constant 0 : i32
    %c0_i32_1 = arith.constant 0 : i32
    %c0_i32_2 = arith.constant 0 : i32
    return %arg0, %c0_i32, %c0_i32_0, %c0_i32_1 : i32, i32, i32, i32
  }
  func.func @transform_1(%arg0: i32, %arg1: memref<1xi32, #tpu.memory_space<smem>>) -> (i32, i32) {
    %c0_i32 = arith.constant 0 : i32
    %c0_i32_0 = arith.constant 0 : i32
    %c0_i32_1 = arith.constant 0 : i32
    return %c0_i32, %c0_i32_0 : i32, i32
  }
  func.func @transform_2(%arg0: i32, %arg1: memref<1xi32, #tpu.memory_space<smem>>) -> (i32, i32) {
    %c0_i32 = arith.constant 0 : i32
    %c0_i32_0 = arith.constant 0 : i32
    %c0_i32_1 = arith.constant 0 : i32
    return %c0_i32, %c0_i32_0 : i32, i32
  }
  func.func @transform_3(%arg0: i32, %arg1: memref<1xi32, #tpu.memory_space<smem>>) -> (i32, i32) {
    %c0_i32 = arith.constant 0 : i32
    %c0_i32_0 = arith.constant 0 : i32
    %c0_i32_1 = arith.constant 0 : i32
    return %c0_i32, %c0_i32_0 : i32, i32
  }
  func.func @transform_4(%arg0: i32, %arg1: memref<1xi32, #tpu.memory_space<smem>>) -> (i32, i32) {
    %c0_i32 = arith.constant 0 : i32
    %c0_i32_0 = arith.constant 0 : i32
    %c0_i32_1 = arith.constant 0 : i32
    return %c0_i32, %c0_i32_0 : i32, i32
  }
  func.func @transform_5(%arg0: i32, %arg1: memref<1xi32, #tpu.memory_space<smem>>) -> (i32, i32, i32) {
    %c0 = arith.constant 0 : index
    %0 = memref.load %arg1[%c0] : memref<1xi32, #tpu.memory_space<smem>>
    %c0_i32 = arith.constant 0 : i32
    %c0_i32_0 = arith.constant 0 : i32
    %c0_i32_1 = arith.constant 0 : i32
    return %0, %c0_i32, %c0_i32_0 : i32, i32, i32
  }
  func.func @transform_6(%arg0: i32, %arg1: memref<1xi32, #tpu.memory_space<smem>>) -> (i32, i32, i32) {
    %c0 = arith.constant 0 : index
    %0 = memref.load %arg1[%c0] : memref<1xi32, #tpu.memory_space<smem>>
    %c0_i32 = arith.constant 0 : i32
    %c0_i32_0 = arith.constant 0 : i32
    %c0_i32_1 = arith.constant 0 : i32
    return %0, %c0_i32, %c0_i32_0 : i32, i32, i32
  }
  func.func @transform_7(%arg0: i32, %arg1: memref<1xi32, #tpu.memory_space<smem>>) -> (i32, i32, i32) {
    %c0 = arith.constant 0 : index
    %0 = memref.load %arg1[%c0] : memref<1xi32, #tpu.memory_space<smem>>
    %c0_i32 = arith.constant 0 : i32
    %c0_i32_0 = arith.constant 0 : i32
    %c0_i32_1 = arith.constant 0 : i32
    return %0, %c0_i32, %c0_i32_0 : i32, i32, i32
  }
  func.func @transform_8(%arg0: i32, %arg1: memref<1xi32, #tpu.memory_space<smem>>) -> (i32, i32, i32) {
    %c0 = arith.constant 0 : index
    %0 = memref.load %arg1[%c0] : memref<1xi32, #tpu.memory_space<smem>>
    %c0_i32 = arith.constant 0 : i32
    %c0_i32_0 = arith.constant 0 : i32
    %c0_i32_1 = arith.constant 0 : i32
    return %0, %c0_i32, %c0_i32_0 : i32, i32, i32
  }
  func.func @transform_9(%arg0: i32, %arg1: memref<1xi32, #tpu.memory_space<smem>>) -> (i32, i32, i32) {
    %c0 = arith.constant 0 : index
    %0 = memref.load %arg1[%c0] : memref<1xi32, #tpu.memory_space<smem>>
    %c0_i32 = arith.constant 0 : i32
    %c0_i32_0 = arith.constant 0 : i32
    %c0_i32_1 = arith.constant 0 : i32
    return %0, %c0_i32, %c0_i32_0 : i32, i32, i32
  }
  func.func @transform_10(%arg0: i32, %arg1: memref<1xi32, #tpu.memory_space<smem>>) -> (i32, i32, i32) {
    %c0 = arith.constant 0 : index
    %0 = memref.load %arg1[%c0] : memref<1xi32, #tpu.memory_space<smem>>
    %c0_i32 = arith.constant 0 : i32
    %c0_i32_0 = arith.constant 0 : i32
    %c0_i32_1 = arith.constant 0 : i32
    return %0, %c0_i32, %c0_i32_0 : i32, i32, i32
  }
  func.func @transform_11(%arg0: i32, %arg1: memref<1xi32, #tpu.memory_space<smem>>) -> (i32, i32, i32) {
    %c0 = arith.constant 0 : index
    %0 = memref.load %arg1[%c0] : memref<1xi32, #tpu.memory_space<smem>>
    %c0_i32 = arith.constant 0 : i32
    %c0_i32_0 = arith.constant 0 : i32
    %c0_i32_1 = arith.constant 0 : i32
    return %0, %c0_i32, %c0_i32_0 : i32, i32, i32
  }
  func.func @transform_12(%arg0: i32, %arg1: memref<1xi32, #tpu.memory_space<smem>>) -> (i32, i32, i32) {
    %c0 = arith.constant 0 : index
    %0 = memref.load %arg1[%c0] : memref<1xi32, #tpu.memory_space<smem>>
    %c0_i32 = arith.constant 0 : i32
    %c0_i32_0 = arith.constant 0 : i32
    %c0_i32_1 = arith.constant 0 : i32
    return %0, %c0_i32, %c0_i32_0 : i32, i32, i32
  }
  func.func @transform_13(%arg0: i32, %arg1: memref<1xi32, #tpu.memory_space<smem>>) -> (i32, i32, i32) {
    %c0_i32 = arith.constant 0 : i32
    %c0_i32_0 = arith.constant 0 : i32
    %c0_i32_1 = arith.constant 0 : i32
    return %arg0, %c0_i32, %c0_i32_0 : i32, i32, i32
  }
}

</mosaic_0001>

<llo_original>
// kernel: encoder_forward.1
$region0: #{encoder_forward.1}
  #allocation0 [shape = 'u32[]', space=smem, size = 0x4, offset = 0x4, fixed_abs, tag = 'smem constant byte address 0x4 - core index']
  #allocation1 [shape = 'u32[144,128]{1,0:T(1,128)}', space=vmem, size = 0x12000, scoped, tag = 'internal scratch']
  #allocation2 [shape = 'f32[18,18,16]{2,1,0:T(8,128)}', space=vmem, size = 0x36000, scoped, tag = 'scratch operand']
  #allocation3 [shape = 'f32[16,16,144]{2,1,0:T(8,128)}', space=vmem, size = 0x40000, scoped, tag = 'scratch operand']
  #allocation4 [shape = 'f32[10,10,32]{2,1,0:T(8,128)}', space=vmem, size = 0x14000, scoped, tag = 'scratch operand']
  #allocation5 [shape = 'f32[8,8,288]{2,1,0:T(8,128)}', space=vmem, size = 0x18000, scoped, tag = 'scratch operand']
  #allocation6 [shape = 's32[1]{0}', space=sflag, size = 0x4, scoped, tag = 'scoped memory for encoder_forward.1']
  #allocation7 [shape = 's32[1]{0:T(128)S(6)}', space=smem, size = 0x200, scoped, tag = 'prefetched SMEM operand 0']
  %s0 = inlined_call_operand.<no memory space> [shape: s32[1], index: 0, kind: input, shape index: {}]
  %s1 = inlined_call_operand.vmem [shape: f32[2,18,18,1], index: 1, kind: input, shape index: {}]
  %s2 = inlined_call_operand.vmem [shape: f32[9,16], index: 2, kind: input, shape index: {}]
  %s3 = inlined_call_operand.vmem [shape: bf16[144,16], index: 3, kind: input, shape index: {}]
  %s4 = inlined_call_operand.vmem [shape: bf16[144,32], index: 4, kind: input, shape index: {}]
  %s5 = inlined_call_operand.vmem [shape: bf16[288,32], index: 5, kind: input, shape index: {}]
  %s6 = inlined_call_operand.vmem [shape: f32[4,1,16], index: 6, kind: input, shape index: {}]
  %s7 = inlined_call_operand.vmem [shape: f32[4,1,16], index: 7, kind: input, shape index: {}]
  %s8 = inlined_call_operand.vmem [shape: f32[4,1,16], index: 8, kind: input, shape index: {}]
  %s9 = inlined_call_operand.vmem [shape: f32[4,1,16], index: 9, kind: input, shape index: {}]
  %s10 = inlined_call_operand.vmem [shape: f32[4,1,32], index: 10, kind: input, shape index: {}]
  %s11 = inlined_call_operand.vmem [shape: f32[4,1,32], index: 11, kind: input, shape index: {}]
  %s12 = inlined_call_operand.vmem [shape: f32[4,1,32], index: 12, kind: input, shape index: {}]
  %s13 = inlined_call_operand.vmem [shape: f32[4,1,32], index: 13, kind: input, shape index: {}]
  %s14 = inlined_call_operand.vmem [shape: f32[2,8,256], index: 14, kind: output, shape index: {}]
  %s15 = sld [smem:[#allocation0]]
  $region85: #{encoder_forward.1} parent=0
    _
  %s17 = ssub.s32 1, %s15
  %s18 = scalar_select 0, %s17, %s15
  %19 = sst [smem:[#allocation7]] %s0
  loop: start=0, step=1, limit=4
  $region2: #{encoder_forward.1} parent=0 // loop_pre_header
    _
  $region3: #{encoder_forward.1} parent=0 // loop_header
    %s21 = sphi 0, %s25
    %p22 = scmp.ge.s32.totalorder %s21, 4
    %s31 = sphi 0, %s33
    %s34 = sphi 0, %s31
    %s35 = sphi 0, %s34
    %s51 = sphi 0, %s35
    %s55 = sphi 0, %s55
    %s57 = sphi 0, %s55
    %s58 = sphi 0, %s57
    %s72 = sphi 0, %s58
    %s76 = sphi 0, %s76
    %s78 = sphi 0, %s76
    %s79 = sphi 0, %s78
    %s93 = sphi 0, %s79
    %s97 = sphi 0, %s97
    %s99 = sphi 0, %s97
    %s100 = sphi 0, %s99
    %s114 = sphi 0, %s100
    %s118 = sphi 0, %s118
    %s120 = sphi 0, %s118
    %s121 = sphi 0, %s120
    %s135 = sphi 0, %s121
    %s143 = sphi 0, %s145
    %s146 = sphi 0, %s143
    %s147 = sphi 0, %s146
    %s163 = sphi 0, %s147
    %s171 = sphi 0, %s173
    %s174 = sphi 0, %s171
    %s175 = sphi 0, %s174
    %s191 = sphi 0, %s175
    %s199 = sphi 0, %s201
    %s202 = sphi 0, %s199
    %s203 = sphi 0, %s202
    %s219 = sphi 0, %s203
    %s227 = sphi 0, %s229
    %s230 = sphi 0, %s227
    %s231 = sphi 0, %s230
    %s247 = sphi 0, %s231
    %s255 = sphi 0, %s257
    %s258 = sphi 0, %s255
    %s259 = sphi 0, %s258
    %s275 = sphi 0, %s259
    %s283 = sphi 0, %s285
    %s286 = sphi 0, %s283
    %s287 = sphi 0, %s286
    %s303 = sphi 0, %s287
    %s311 = sphi 0, %s313
    %s314 = sphi 0, %s311
    %s315 = sphi 0, %s314
    %s331 = sphi 0, %s315
    %s339 = sphi 0, %s341
    %s342 = sphi 0, %s339
    %s343 = sphi 0, %s342
    %s359 = sphi 0, %s343
    %s365 = sphi 0, %s367
    %s368 = sphi 0, %s365
    %s369 = sphi 0, %s368
    %s385 = sphi 0, %s369
  $region4: #{encoder_forward.1} parent=0 // loop_header_branch
    %24 = sbr.rel (%p22) target = $region8
  $region5: #{encoder_forward.1} parent=0 // loop_body
    %s26 = ssub.s32 %s21, 1
    %s27 = ssub.s32 %s21, 2
    %s28 = sadd.s32 %s21, 1
    %s29 = ssub.s32 %s21, %s28
    %p30 = scmp.eq.s32.totalorder %s29, 0
    %s32 = sadd.s32 %s31, 1
    %s33 = scalar_select %p30, %s31, %s32
    %p36 = pneg %p30
    %p37 = scmp.eq.s32.totalorder %s21, 1
    %p38 = por %p36, %p37
    %p39 = scmp.ne.s32.totalorder %s31, %s34
    %p40 = scmp.eq.s32.totalorder %s21, 0
    %p41 = por %p39, %p40
    %p42 = scmp.ne.s32.totalorder %s31, %s34
    %p43 = scmp.eq.s32.totalorder %s26, 1
    %p44 = por %p42, %p43
    %p45 = scmp.ne.s32.totalorder %s34, %s35
    %p46 = scmp.eq.s32.totalorder %s26, 0
    %p47 = por %p45, %p46
    %p48 = scmp.ne.s32.totalorder %s34, %s35
    %p49 = scmp.eq.s32.totalorder %s27, 1
    %p50 = por %p48, %p49
    %p52 = scmp.ne.s32.totalorder %s35, %s51
    %p53 = scmp.eq.s32.totalorder %s27, 0
    %p54 = por %p52, %p53
    %s56 = sadd.s32 %s55, 1
    %p59 = scmp.eq.s32.totalorder %s21, 1
    %p60 = scmp.ne.s32.totalorder %s55, %s57
    %p61 = scmp.eq.s32.totalorder %s21, 0
    %p62 = por %p60, %p61
    %p63 = scmp.ne.s32.totalorder %s55, %s57
    %p64 = scmp.eq.s32.totalorder %s26, 1
    %p65 = por %p63, %p64
    %p66 = scmp.ne.s32.totalorder %s57, %s58
    %p67 = scmp.eq.s32.totalorder %s26, 0
    %p68 = por %p66, %p67
    %p69 = scmp.ne.s32.totalorder %s57, %s58
    %p70 = scmp.eq.s32.totalorder %s27, 1
    %p71 = por %p69, %p70
    %p73 = scmp.ne.s32.totalorder %s58, %s72
    %p74 = scmp.eq.s32.totalorder %s27, 0
    %p75 = por %p73, %p74
    %s77 = sadd.s32 %s76, 1
    %p80 = scmp.eq.s32.totalorder %s21, 1
    %p81 = scmp.ne.s32.totalorder %s76, %s78
    %p82 = scmp.eq.s32.totalorder %s21, 0
    %p83 = por %p81, %p82
    %p84 = scmp.ne.s32.totalorder %s76, %s78
    %p85 = scmp.eq.s32.totalorder %s26, 1
    %p86 = por %p84, %p85
    %p87 = scmp.ne.s32.totalorder %s78, %s79
    %p88 = scmp.eq.s32.totalorder %s26, 0
    %p89 = por %p87, %p88
    %p90 = scmp.ne.s32.totalorder %s78, %s79
    %p91 = scmp.eq.s32.totalorder %s27, 1
    %p92 = por %p90, %p91
    %p94 = scmp.ne.s32.totalorder %s79, %s93
    %p95 = scmp.eq.s32.totalorder %s27, 0
    %p96 = por %p94, %p95
    %s98 = sadd.s32 %s97, 1
    %p101 = scmp.eq.s32.totalorder %s21, 1
    %p102 = scmp.ne.s32.totalorder %s97, %s99
    %p103 = scmp.eq.s32.totalorder %s21, 0
    %p104 = por %p102, %p103
    %p105 = scmp.ne.s32.totalorder %s97, %s99
    %p106 = scmp.eq.s32.totalorder %s26, 1
    %p107 = por %p105, %p106
    %p108 = scmp.ne.s32.totalorder %s99, %s100
    %p109 = scmp.eq.s32.totalorder %s26, 0
    %p110 = por %p108, %p109
    %p111 = scmp.ne.s32.totalorder %s99, %s100
    %p112 = scmp.eq.s32.totalorder %s27, 1
    %p113 = por %p111, %p112
    %p115 = scmp.ne.s32.totalorder %s100, %s114
    %p116 = scmp.eq.s32.totalorder %s27, 0
    %p117 = por %p115, %p116
    %s119 = sadd.s32 %s118, 1
    %p122 = scmp.eq.s32.totalorder %s21, 1
    %p123 = scmp.ne.s32.totalorder %s118, %s120
    %p124 = scmp.eq.s32.totalorder %s21, 0
    %p125 = por %p123, %p124
    %p126 = scmp.ne.s32.totalorder %s118, %s120
    %p127 = scmp.eq.s32.totalorder %s26, 1
    %p128 = por %p126, %p127
    %p129 = scmp.ne.s32.totalorder %s120, %s121
    %p130 = scmp.eq.s32.totalorder %s26, 0
    %p131 = por %p129, %p130
    %p132 = scmp.ne.s32.totalorder %s120, %s121
    %p133 = scmp.eq.s32.totalorder %s27, 1
    %p134 = por %p132, %p133
    %p136 = scmp.ne.s32.totalorder %s121, %s135
    %p137 = scmp.eq.s32.totalorder %s27, 0
    %p138 = por %p136, %p137
    %s139 = sld [smem:[#allocation7]]
    %s140 = sld [smem:[#allocation7]]
    %s141 = ssub.s32 %s139, %s140
    %p142 = scmp.eq.s32.totalorder %s141, 0
    %s144 = sadd.s32 %s143, 1
    %s145 = scalar_select %p142, %s143, %s144
    %p148 = pneg %p142
    %p149 = scmp.eq.s32.totalorder %s21, 1
    %p150 = por %p148, %p149
    %p151 = scmp.ne.s32.totalorder %s143, %s146
    %p152 = scmp.eq.s32.totalorder %s21, 0
    %p153 = por %p151, %p152
    %p154 = scmp.ne.s32.totalorder %s143, %s146
    %p155 = scmp.eq.s32.totalorder %s26, 1
    %p156 = por %p154, %p155
    %p157 = scmp.ne.s32.totalorder %s146, %s147
    %p158 = scmp.eq.s32.totalorder %s26, 0
    %p159 = por %p157, %p158
    %p160 = scmp.ne.s32.totalorder %s146, %s147
    %p161 = scmp.eq.s32.totalorder %s27, 1
    %p162 = por %p160, %p161
    %p164 = scmp.ne.s32.totalorder %s147, %s163
    %p165 = scmp.eq.s32.totalorder %s27, 0
    %p166 = por %p164, %p165
    %s167 = sld [smem:[#allocation7]]
    %s168 = sld [smem:[#allocation7]]
    %s169 = ssub.s32 %s167, %s168
    %p170 = scmp.eq.s32.totalorder %s169, 0
    %s172 = sadd.s32 %s171, 1
    %s173 = scalar_select %p170, %s171, %s172
    %p176 = pneg %p170
    %p177 = scmp.eq.s32.totalorder %s21, 1
    %p178 = por %p176, %p177
    %p179 = scmp.ne.s32.totalorder %s171, %s174
    %p180 = scmp.eq.s32.totalorder %s21, 0
    %p181 = por %p179, %p180
    %p182 = scmp.ne.s32.totalorder %s171, %s174
    %p183 = scmp.eq.s32.totalorder %s26, 1
    %p184 = por %p182, %p183
    %p185 = scmp.ne.s32.totalorder %s174, %s175
    %p186 = scmp.eq.s32.totalorder %s26, 0
    %p187 = por %p185, %p186
    %p188 = scmp.ne.s32.totalorder %s174, %s175
    %p189 = scmp.eq.s32.totalorder %s27, 1
    %p190 = por %p188, %p189
    %p192 = scmp.ne.s32.totalorder %s175, %s191
    %p193 = scmp.eq.s32.totalorder %s27, 0
    %p194 = por %p192, %p193
    %s195 = sld [smem:[#allocation7]]
    %s196 = sld [smem:[#allocation7]]
    %s197 = ssub.s32 %s195, %s196
    %p198 = scmp.eq.s32.totalorder %s197, 0
    %s200 = sadd.s32 %s199, 1
    %s201 = scalar_select %p198, %s199, %s200
    %p204 = pneg %p198
    %p205 = scmp.eq.s32.totalorder %s21, 1
    %p206 = por %p204, %p205
    %p207 = scmp.ne.s32.totalorder %s199, %s202
    %p208 = scmp.eq.s32.totalorder %s21, 0
    %p209 = por %p207, %p208
    %p210 = scmp.ne.s32.totalorder %s199, %s202
    %p211 = scmp.eq.s32.totalorder %s26, 1
    %p212 = por %p210, %p211
    %p213 = scmp.ne.s32.totalorder %s202, %s203
    %p214 = scmp.eq.s32.totalorder %s26, 0
    %p215 = por %p213, %p214
    %p216 = scmp.ne.s32.totalorder %s202, %s203
    %p217 = scmp.eq.s32.totalorder %s27, 1
    %p218 = por %p216, %p217
    %p220 = scmp.ne.s32.totalorder %s203, %s219
    %p221 = scmp.eq.s32.totalorder %s27, 0
    %p222 = por %p220, %p221
    %s223 = sld [smem:[#allocation7]]
    %s224 = sld [smem:[#allocation7]]
    %s225 = ssub.s32 %s223, %s224
    %p226 = scmp.eq.s32.totalorder %s225, 0
    %s228 = sadd.s32 %s227, 1
    %s229 = scalar_select %p226, %s227, %s228
    %p232 = pneg %p226
    %p233 = scmp.eq.s32.totalorder %s21, 1
    %p234 = por %p232, %p233
    %p235 = scmp.ne.s32.totalorder %s227, %s230
    %p236 = scmp.eq.s32.totalorder %s21, 0
    %p237 = por %p235, %p236
    %p238 = scmp.ne.s32.totalorder %s227, %s230
    %p239 = scmp.eq.s32.totalorder %s26, 1
    %p240 = por %p238, %p239
    %p241 = scmp.ne.s32.totalorder %s230, %s231
    %p242 = scmp.eq.s32.totalorder %s26, 0
    %p243 = por %p241, %p242
    %p244 = scmp.ne.s32.totalorder %s230, %s231
    %p245 = scmp.eq.s32.totalorder %s27, 1
    %p246 = por %p244, %p245
    %p248 = scmp.ne.s32.totalorder %s231, %s247
    %p249 = scmp.eq.s32.totalorder %s27, 0
    %p250 = por %p248, %p249
    %s251 = sld [smem:[#allocation7]]
    %s252 = sld [smem:[#allocation7]]
    %s253 = ssub.s32 %s251, %s252
    %p254 = scmp.eq.s32.totalorder %s253, 0
    %s256 = sadd.s32 %s255, 1
    %s257 = scalar_select %p254, %s255, %s256
    %p260 = pneg %p254
    %p261 = scmp.eq.s32.totalorder %s21, 1
    %p262 = por %p260, %p261
    %p263 = scmp.ne.s32.totalorder %s255, %s258
    %p264 = scmp.eq.s32.totalorder %s21, 0
    %p265 = por %p263, %p264
    %p266 = scmp.ne.s32.totalorder %s255, %s258
    %p267 = scmp.eq.s32.totalorder %s26, 1
    %p268 = por %p266, %p267
    %p269 = scmp.ne.s32.totalorder %s258, %s259
    %p270 = scmp.eq.s32.totalorder %s26, 0
    %p271 = por %p269, %p270
    %p272 = scmp.ne.s32.totalorder %s258, %s259
    %p273 = scmp.eq.s32.totalorder %s27, 1
    %p274 = por %p272, %p273
    %p276 = scmp.ne.s32.totalorder %s259, %s275
    %p277 = scmp.eq.s32.totalorder %s27, 0
    %p278 = por %p276, %p277
    %s279 = sld [smem:[#allocation7]]
    %s280 = sld [smem:[#allocation7]]
    %s281 = ssub.s32 %s279, %s280
    %p282 = scmp.eq.s32.totalorder %s281, 0
    %s284 = sadd.s32 %s283, 1
    %s285 = scalar_select %p282, %s283, %s284
    %p288 = pneg %p282
    %p289 = scmp.eq.s32.totalorder %s21, 1
    %p290 = por %p288, %p289
    %p291 = scmp.ne.s32.totalorder %s283, %s286
    %p292 = scmp.eq.s32.totalorder %s21, 0
    %p293 = por %p291, %p292
    %p294 = scmp.ne.s32.totalorder %s283, %s286
    %p295 = scmp.eq.s32.totalorder %s26, 1
    %p296 = por %p294, %p295
    %p297 = scmp.ne.s32.totalorder %s286, %s287
    %p298 = scmp.eq.s32.totalorder %s26, 0
    %p299 = por %p297, %p298
    %p300 = scmp.ne.s32.totalorder %s286, %s287
    %p301 = scmp.eq.s32.totalorder %s27, 1
    %p302 = por %p300, %p301
    %p304 = scmp.ne.s32.totalorder %s287, %s303
    %p305 = scmp.eq.s32.totalorder %s27, 0
    %p306 = por %p304, %p305
    %s307 = sld [smem:[#allocation7]]
    %s308 = sld [smem:[#allocation7]]
    %s309 = ssub.s32 %s307, %s308
    %p310 = scmp.eq.s32.totalorder %s309, 0
    %s312 = sadd.s32 %s311, 1
    %s313 = scalar_select %p310, %s311, %s312
    %p316 = pneg %p310
    %p317 = scmp.eq.s32.totalorder %s21, 1
    %p318 = por %p316, %p317
    %p319 = scmp.ne.s32.totalorder %s311, %s314
    %p320 = scmp.eq.s32.totalorder %s21, 0
    %p321 = por %p319, %p320
    %p322 = scmp.ne.s32.totalorder %s311, %s314
    %p323 = scmp.eq.s32.totalorder %s26, 1
    %p324 = por %p322, %p323
    %p325 = scmp.ne.s32.totalorder %s314, %s315
    %p326 = scmp.eq.s32.totalorder %s26, 0
    %p327 = por %p325, %p326
    %p328 = scmp.ne.s32.totalorder %s314, %s315
    %p329 = scmp.eq.s32.totalorder %s27, 1
    %p330 = por %p328, %p329
    %p332 = scmp.ne.s32.totalorder %s315, %s331
    %p333 = scmp.eq.s32.totalorder %s27, 0
    %p334 = por %p332, %p333
    %s335 = sld [smem:[#allocation7]]
    %s336 = sld [smem:[#allocation7]]
    %s337 = ssub.s32 %s335, %s336
    %p338 = scmp.eq.s32.totalorder %s337, 0
    %s340 = sadd.s32 %s339, 1
    %s341 = scalar_select %p338, %s339, %s340
    %p344 = pneg %p338
    %p345 = scmp.eq.s32.totalorder %s21, 1
    %p346 = por %p344, %p345
    %p347 = scmp.ne.s32.totalorder %s339, %s342
    %p348 = scmp.eq.s32.totalorder %s21, 0
    %p349 = por %p347, %p348
    %p350 = scmp.ne.s32.totalorder %s339, %s342
    %p351 = scmp.eq.s32.totalorder %s26, 1
    %p352 = por %p350, %p351
    %p353 = scmp.ne.s32.totalorder %s342, %s343
    %p354 = scmp.eq.s32.totalorder %s26, 0
    %p355 = por %p353, %p354
    %p356 = scmp.ne.s32.totalorder %s342, %s343
    %p357 = scmp.eq.s32.totalorder %s27, 1
    %p358 = por %p356, %p357
    %p360 = scmp.ne.s32.totalorder %s343, %s359
    %p361 = scmp.eq.s32.totalorder %s27, 0
    %p362 = por %p360, %p361
    %s363 = ssub.s32 %s21, %s28
    %p364 = scmp.eq.s32.totalorder %s363, 0
    %s366 = sadd.s32 %s365, 1
    %s367 = scalar_select %p364, %s365, %s366
    %p370 = pneg %p364
    %p371 = scmp.eq.s32.totalorder %s21, 1
    %p372 = por %p370, %p371
    %p373 = scmp.ne.s32.totalorder %s365, %s368
    %p374 = scmp.eq.s32.totalorder %s21, 0
    %p375 = por %p373, %p374
    %p376 = scmp.ne.s32.totalorder %s365, %s368
    %p377 = scmp.eq.s32.totalorder %s26, 1
    %p378 = por %p376, %p377
    %p379 = scmp.ne.s32.totalorder %s368, %s369
    %p380 = scmp.eq.s32.totalorder %s26, 0
    %p381 = por %p379, %p380
    %p382 = scmp.ne.s32.totalorder %s368, %s369
    %p383 = scmp.eq.s32.totalorder %s27, 1
    %p384 = por %p382, %p383
    %p386 = scmp.ne.s32.totalorder %s369, %s385
    %p387 = scmp.eq.s32.totalorder %s27, 0
    %p388 = por %p386, %p387
    %p389 = scmp.le.s32.totalorder 1, %s21
    %p390 = scmp.lt.s32.totalorder %s21, 3
    %p391 = pnand %p389, %p390
    %p392 = pneg %p391
    // Predicated region
    $region9: #{encoder_forward.1} parent=5 // pred_check
      _
    $region10: #{encoder_forward.1} parent=5 // pred_check_branch
      %394 = sbr.rel (%p391) target = $region12
    $region11: #{encoder_forward.1} parent=5 // pred_region
      %s395 = ssub.s32 %s21, 1
      // Predicated region
      $region13: #{encoder_forward.1} parent=11 // pred_check
        %p396 = pneg %p68
      $region14: #{encoder_forward.1} parent=11 // pred_check_branch
        %398 = sbr.rel (%p396) target = $region16
      $region15: #{encoder_forward.1} parent=11 // pred_region
        _
      $region16: #{encoder_forward.1} parent=11 // pred_fallthru
        _
      // Predicated region
      $region17: #{encoder_forward.1} parent=11 // pred_check
        %p399 = pneg %p89
      $region18: #{encoder_forward.1} parent=11 // pred_check_branch
        %401 = sbr.rel (%p399) target = $region20
      $region19: #{encoder_forward.1} parent=11 // pred_region
        _
      $region20: #{encoder_forward.1} parent=11 // pred_fallthru
        _
      // Predicated region
      $region21: #{encoder_forward.1} parent=11 // pred_check
        %p402 = pneg %p110
      $region22: #{encoder_forward.1} parent=11 // pred_check_branch
        %404 = sbr.rel (%p402) target = $region24
      $region23: #{encoder_forward.1} parent=11 // pred_region
        _
      $region24: #{encoder_forward.1} parent=11 // pred_fallthru
        _
      // Predicated region
      $region25: #{encoder_forward.1} parent=11 // pred_check
        %p405 = pneg %p131
      $region26: #{encoder_forward.1} parent=11 // pred_check_branch
        %407 = sbr.rel (%p405) target = $region28
      $region27: #{encoder_forward.1} parent=11 // pred_region
        _
      $region28: #{encoder_forward.1} parent=11 // pred_fallthru
        _
      // Predicated region
      $region29: #{encoder_forward.1} parent=11 // pred_check
        %p408 = pneg %p159
      $region30: #{encoder_forward.1} parent=11 // pred_check_branch
        %410 = sbr.rel (%p408) target = $region32
      $region31: #{encoder_forward.1} parent=11 // pred_region
        %s411 = sld [smem:[#allocation7]]
        %p412 = scmp.lt.s32.totalorder %s411, 3
        %s413 = scalar_select %p412, %s411, 3
        %s414 = scalar_lea.vmem %s6, %s413
        %s415 = sld [smem:[#allocation7]]
      $region32: #{encoder_forward.1} parent=11 // pred_fallthru
        _
      // Predicated region
      $region33: #{encoder_forward.1} parent=11 // pred_check
        %p416 = pneg %p187
      $region34: #{encoder_forward.1} parent=11 // pred_check_branch
        %418 = sbr.rel (%p416) target = $region36
      $region35: #{encoder_forward.1} parent=11 // pred_region
        %s419 = sld [smem:[#allocation7]]
        %p420 = scmp.lt.s32.totalorder %s419, 3
        %s421 = scalar_select %p420, %s419, 3
        %s422 = scalar_lea.vmem %s7, %s421
        %s423 = sld [smem:[#allocation7]]
      $region36: #{encoder_forward.1} parent=11 // pred_fallthru
        _
      // Predicated region
      $region37: #{encoder_forward.1} parent=11 // pred_check
        %p424 = pneg %p215
      $region38: #{encoder_forward.1} parent=11 // pred_check_branch
        %426 = sbr.rel (%p424) target = $region40
      $region39: #{encoder_forward.1} parent=11 // pred_region
        %s427 = sld [smem:[#allocation7]]
        %p428 = scmp.lt.s32.totalorder %s427, 3
        %s429 = scalar_select %p428, %s427, 3
        %s430 = scalar_lea.vmem %s8, %s429
        %s431 = sld [smem:[#allocation7]]
      $region40: #{encoder_forward.1} parent=11 // pred_fallthru
        _
      // Predicated region
      $region41: #{encoder_forward.1} parent=11 // pred_check
        %p432 = pneg %p243
      $region42: #{encoder_forward.1} parent=11 // pred_check_branch
        %434 = sbr.rel (%p432) target = $region44
      $region43: #{encoder_forward.1} parent=11 // pred_region
        %s435 = sld [smem:[#allocation7]]
        %p436 = scmp.lt.s32.totalorder %s435, 3
        %s437 = scalar_select %p436, %s435, 3
        %s438 = scalar_lea.vmem %s9, %s437
        %s439 = sld [smem:[#allocation7]]
      $region44: #{encoder_forward.1} parent=11 // pred_fallthru
        _
      // Predicated region
      $region45: #{encoder_forward.1} parent=11 // pred_check
        %p440 = pneg %p271
      $region46: #{encoder_forward.1} parent=11 // pred_check_branch
        %442 = sbr.rel (%p440) target = $region48
      $region47: #{encoder_forward.1} parent=11 // pred_region
        %s443 = sld [smem:[#allocation7]]
        %p444 = scmp.lt.s32.totalorder %s443, 3
        %s445 = scalar_select %p444, %s443, 3
        %s446 = scalar_lea.vmem %s10, %s445
        %s447 = sld [smem:[#allocation7]]
      $region48: #{encoder_forward.1} parent=11 // pred_fallthru
        _
      // Predicated region
      $region49: #{encoder_forward.1} parent=11 // pred_check
        %p448 = pneg %p299
      $region50: #{encoder_forward.1} parent=11 // pred_check_branch
        %450 = sbr.rel (%p448) target = $region52
      $region51: #{encoder_forward.1} parent=11 // pred_region
        %s451 = sld [smem:[#allocation7]]
        %p452 = scmp.lt.s32.totalorder %s451, 3
        %s453 = scalar_select %p452, %s451, 3
        %s454 = scalar_lea.vmem %s11, %s453
        %s455 = sld [smem:[#allocation7]]
      $region52: #{encoder_forward.1} parent=11 // pred_fallthru
        _
      // Predicated region
      $region53: #{encoder_forward.1} parent=11 // pred_check
        %p456 = pneg %p327
      $region54: #{encoder_forward.1} parent=11 // pred_check_branch
        %458 = sbr.rel (%p456) target = $region56
      $region55: #{encoder_forward.1} parent=11 // pred_region
        %s459 = sld [smem:[#allocation7]]
        %p460 = scmp.lt.s32.totalorder %s459, 3
        %s461 = scalar_select %p460, %s459, 3
        %s462 = scalar_lea.vmem %s12, %s461
        %s463 = sld [smem:[#allocation7]]
      $region56: #{encoder_forward.1} parent=11 // pred_fallthru
        _
      // Predicated region
      $region57: #{encoder_forward.1} parent=11 // pred_check
        %p464 = pneg %p355
      $region58: #{encoder_forward.1} parent=11 // pred_check_branch
        %466 = sbr.rel (%p464) target = $region60
      $region59: #{encoder_forward.1} parent=11 // pred_region
        %s467 = sld [smem:[#allocation7]]
        %p468 = scmp.lt.s32.totalorder %s467, 3
        %s469 = scalar_select %p468, %s467, 3
        %s470 = scalar_lea.vmem %s13, %s469
        %s471 = sld [smem:[#allocation7]]
      $region60: #{encoder_forward.1} parent=11 // pred_fallthru
        _
    $region12: #{encoder_forward.1} parent=5 // pred_fallthru
      _
    %p472 = scmp.lt.s32.totalorder %s21, 2
    // Predicated region
    $region61: #{encoder_forward.1} parent=5 // pred_check
      %p473 = pneg %p472
    $region62: #{encoder_forward.1} parent=5 // pred_check_branch
      %475 = sbr.rel (%p473) target = $region64
    $region63: #{encoder_forward.1} parent=5 // pred_region
      // Predicated region
      $region65: #{encoder_forward.1} parent=63 // pred_check
        %p476 = pneg %p41
      $region66: #{encoder_forward.1} parent=63 // pred_check_branch
        %478 = sbr.rel (%p476) target = $region68
      $region67: #{encoder_forward.1} parent=63 // pred_region
        %p479 = scmp.lt.s32.totalorder %s21, 1
        %s480 = scalar_select %p479, %s21, 1
        %s481 = smul.addr %s480, 54
        %s482 = smul.addr %s481, 8
        %s483 = scalar_lea.vmem %s1, %s482
      $region68: #{encoder_forward.1} parent=63 // pred_fallthru
        _
    $region64: #{encoder_forward.1} parent=5 // pred_fallthru
      _
    %p484 = scmp.le.s32.totalorder 1, %s21
    %p485 = scmp.lt.s32.totalorder %s21, 3
    %p486 = pnand %p484, %p485
    %p487 = pneg %p486
    // Predicated region
    $region69: #{encoder_forward.1} parent=5 // pred_check
      _
    $region70: #{encoder_forward.1} parent=5 // pred_check_branch
      %489 = sbr.rel (%p486) target = $region72
    $region71: #{encoder_forward.1} parent=5 // pred_region
      %s490 = ssub.s32 %s21, 1
      %p491 = scmp.lt.s32.totalorder %s26, 1
      %s492 = scalar_select %p491, %s26, 1
      %s493 = smul.addr %s492, 54
      %s494 = smul.addr %s493, 8
      %s495 = scalar_lea.vmem %s1, %s494
      %p496 = pneg %p47
      %p497 = pneg %p44
      %p498 = pneg %p68
      %p499 = pneg %p65
      %p500 = pneg %p89
      %p501 = pneg %p86
      %p502 = pneg %p110
      %p503 = pneg %p107
      %p504 = pneg %p131
      %p505 = pneg %p128
      %s506 = sld [smem:[#allocation7]]
      %p507 = scmp.lt.s32.totalorder %s506, 3
      %s508 = scalar_select %p507, %s506, 3
      %s509 = scalar_lea.vmem %s6, %s508
      %p510 = pneg %p159
      %p511 = pneg %p156
      %s512 = sld [smem:[#allocation7]]
      %p513 = scmp.lt.s32.totalorder %s512, 3
      %s514 = scalar_select %p513, %s512, 3
      %s515 = scalar_lea.vmem %s7, %s514
      %p516 = pneg %p187
      %p517 = pneg %p184
      %s518 = sld [smem:[#allocation7]]
      %p519 = scmp.lt.s32.totalorder %s518, 3
      %s520 = scalar_select %p519, %s518, 3
      %s521 = scalar_lea.vmem %s8, %s520
      %p522 = pneg %p215
      %p523 = pneg %p212
      %s524 = sld [smem:[#allocation7]]
      %p525 = scmp.lt.s32.totalorder %s524, 3
      %s526 = scalar_select %p525, %s524, 3
      %s527 = scalar_lea.vmem %s9, %s526
      %p528 = pneg %p243
      %p529 = pneg %p240
      %s530 = sld [smem:[#allocation7]]
      %p531 = scmp.lt.s32.totalorder %s530, 3
      %s532 = scalar_select %p531, %s530, 3
      %s533 = scalar_lea.vmem %s10, %s532
      %p534 = pneg %p271
      %p535 = pneg %p268
      %s536 = sld [smem:[#allocation7]]
      %p537 = scmp.lt.s32.totalorder %s536, 3
      %s538 = scalar_select %p537, %s536, 3
      %s539 = scalar_lea.vmem %s11, %s538
      %p540 = pneg %p299
      %p541 = pneg %p296
      %s542 = sld [smem:[#allocation7]]
      %p543 = scmp.lt.s32.totalorder %s542, 3
      %s544 = scalar_select %p543, %s542, 3
      %s545 = scalar_lea.vmem %s12, %s544
      %p546 = pneg %p327
      %p547 = pneg %p324
      %s548 = sld [smem:[#allocation7]]
      %p549 = scmp.lt.s32.totalorder %s548, 3
      %s550 = scalar_select %p549, %s548, 3
      %s551 = scalar_lea.vmem %s13, %s550
      %p552 = pneg %p355
      %p553 = pneg %p352
      %p554 = pneg %p381
      %p555 = pneg %p378
      %p556 = scmp.lt.s32.totalorder %s26, 1
      %s557 = scalar_select %p556, %s26, 1
      %s558 = smul.addr %s557, 2
      %s559 = smul.addr %s558, 8
      %s560 = scalar_lea.vmem %s14, %s559
      %p561 = scmp.lt.s32.totalorder %s26, 1
      %s562 = scalar_select %p561, %s26, 1
      %s563 = smul.addr %s562, 54
      %s564 = smul.addr %s563, 8
      %s565 = scalar_lea.vmem %s1, %s564
      %s566 = sld [smem:[#allocation7]]
      %p567 = scmp.lt.s32.totalorder %s566, 3
      %s568 = scalar_select %p567, %s566, 3
      %s569 = scalar_lea.vmem %s6, %s568
      %s570 = sld [smem:[#allocation7]]
      %s571 = sld [smem:[#allocation7]]
      %p572 = scmp.lt.s32.totalorder %s571, 3
      %s573 = scalar_select %p572, %s571, 3
      %s574 = scalar_lea.vmem %s7, %s573
      %s575 = sld [smem:[#allocation7]]
      %s576 = sld [smem:[#allocation7]]
      %p577 = scmp.lt.s32.totalorder %s576, 3
      %s578 = scalar_select %p577, %s576, 3
      %s579 = scalar_lea.vmem %s8, %s578
      %s580 = sld [smem:[#allocation7]]
      %s581 = sld [smem:[#allocation7]]
      %p582 = scmp.lt.s32.totalorder %s581, 3
      %s583 = scalar_select %p582, %s581, 3
      %s584 = scalar_lea.vmem %s9, %s583
      %s585 = sld [smem:[#allocation7]]
      %s586 = sld [smem:[#allocation7]]
      %p587 = scmp.lt.s32.totalorder %s586, 3
      %s588 = scalar_select %p587, %s586, 3
      %s589 = scalar_lea.vmem %s10, %s588
      %s590 = sld [smem:[#allocation7]]
      %s591 = sld [smem:[#allocation7]]
      %p592 = scmp.lt.s32.totalorder %s591, 3
      %s593 = scalar_select %p592, %s591, 3
      %s594 = scalar_lea.vmem %s11, %s593
      %s595 = sld [smem:[#allocation7]]
      %s596 = sld [smem:[#allocation7]]
      %p597 = scmp.lt.s32.totalorder %s596, 3
      %s598 = scalar_select %p597, %s596, 3
      %s599 = scalar_lea.vmem %s12, %s598
      %s600 = sld [smem:[#allocation7]]
      %s601 = sld [smem:[#allocation7]]
      %p602 = scmp.lt.s32.totalorder %s601, 3
      %s603 = scalar_select %p602, %s601, 3
      %s604 = scalar_lea.vmem %s13, %s603
      %s605 = sld [smem:[#allocation7]]
      %p606 = scmp.lt.s32.totalorder %s26, 1
      %s607 = scalar_select %p606, %s26, 1
      %s608 = smul.addr %s607, 2
      %s609 = smul.addr %s608, 8
      %s610 = scalar_lea.vmem %s14, %s609
      %v612 = vld [vmem:[%s565] sm:$0xff]
      %v613 = vld [vmem:[%s565 + $0x8] sm:$0xff]
      %v614 = vld [vmem:[%s565 + $0x18] sm:$0xff]
      %v615 = vld [vmem:[%s565 + $0x20] sm:$0xff]
      %v616 = vld [vmem:[%s565 + $0x30] sm:$0xff]
      %v617 = vld [vmem:[%s565 + $0x38] sm:$0xff]
      %v618 = vld [vmem:[%s565 + $0x48] sm:$0xff]
      %v619 = vld [vmem:[%s565 + $0x50] sm:$0xff]
      %v620 = vld [vmem:[%s565 + $0x60] sm:$0xff]
      %v621 = vld [vmem:[%s565 + $0x68] sm:$0xff]
      %v622 = vld [vmem:[%s565 + $0x78] sm:$0xff]
      %v623 = vld [vmem:[%s565 + $0x80] sm:$0xff]
      %v624 = vld [vmem:[%s565 + $0x90] sm:$0xff]
      %v625 = vld [vmem:[%s565 + $0x98] sm:$0xff]
      %v626 = vld [vmem:[%s565 + $0xa8] sm:$0xff]
      %v627 = vld [vmem:[%s565 + $0xb0] sm:$0xff]
      %v628 = vld [vmem:[%s565 + $0xc0] sm:$0xff]
      %v629 = vld [vmem:[%s565 + $0xc8] sm:$0xff]
      %v630 = vld [vmem:[%s565 + $0xd8] sm:$0xff]
      %v631 = vld [vmem:[%s565 + $0xe0] sm:$0xff]
      %v632 = vld [vmem:[%s565 + $0xf0] sm:$0xff]
      %v633 = vld [vmem:[%s565 + $0xf8] sm:$0xff]
      %v634 = vld [vmem:[%s565 + $0x108] sm:$0xff]
      %v635 = vld [vmem:[%s565 + $0x110] sm:$0xff]
      %v636 = vld [vmem:[%s565 + $0x120] sm:$0xff]
      %v637 = vld [vmem:[%s565 + $0x128] sm:$0xff]
      %v638 = vld [vmem:[%s565 + $0x138] sm:$0xff]
      %v639 = vld [vmem:[%s565 + $0x140] sm:$0xff]
      %v640 = vld [vmem:[%s565 + $0x150] sm:$0xff]
      %v641 = vld [vmem:[%s565 + $0x158] sm:$0xff]
      %v642 = vld [vmem:[%s565 + $0x168] sm:$0xff]
      %v643 = vld [vmem:[%s565 + $0x170] sm:$0xff]
      %v644 = vld [vmem:[%s2] sm:$0x1]
      %646 = vset.pattern.permute.xlu0 0
      %647 = vperm.xlu0 %646, %v612
      %v648 = vpop.permute.xlu0 %647
      %651 = vset.pattern.permute.xlu0 0
      %652 = vperm.xlu0 %651, %v613
      %v653 = vpop.permute.xlu0 %652
      %656 = vset.pattern.permute.xlu0 0
      %657 = vperm.xlu0 %656, %v614
      %v658 = vpop.permute.xlu0 %657
      %661 = vset.pattern.permute.xlu0 0
      %662 = vperm.xlu0 %661, %v615
      %v663 = vpop.permute.xlu0 %662
      %666 = vset.pattern.permute.xlu0 0
      %667 = vperm.xlu0 %666, %v616
      %v668 = vpop.permute.xlu0 %667
      %671 = vset.pattern.permute.xlu0 0
      %672 = vperm.xlu0 %671, %v617
      %v673 = vpop.permute.xlu0 %672
      %676 = vset.pattern.permute.xlu0 0
      %677 = vperm.xlu0 %676, %v618
      %v678 = vpop.permute.xlu0 %677
      %681 = vset.pattern.permute.xlu0 0
      %682 = vperm.xlu0 %681, %v619
      %v683 = vpop.permute.xlu0 %682
      %686 = vset.pattern.permute.xlu0 0
      %687 = vperm.xlu0 %686, %v620
      %v688 = vpop.permute.xlu0 %687
      %691 = vset.pattern.permute.xlu0 0
      %692 = vperm.xlu0 %691, %v621
      %v693 = vpop.permute.xlu0 %692
      %696 = vset.pattern.permute.xlu0 0
      %697 = vperm.xlu0 %696, %v622
      %v698 = vpop.permute.xlu0 %697
      %701 = vset.pattern.permute.xlu0 0
      %702 = vperm.xlu0 %701, %v623
      %v703 = vpop.permute.xlu0 %702
      %706 = vset.pattern.permute.xlu0 0
      %707 = vperm.xlu0 %706, %v624
      %v708 = vpop.permute.xlu0 %707
      %711 = vset.pattern.permute.xlu0 0
      %712 = vperm.xlu0 %711, %v625
      %v713 = vpop.permute.xlu0 %712
      %716 = vset.pattern.permute.xlu0 0
      %717 = vperm.xlu0 %716, %v626
      %v718 = vpop.permute.xlu0 %717
      %721 = vset.pattern.permute.xlu0 0
      %722 = vperm.xlu0 %721, %v627
      %v723 = vpop.permute.xlu0 %722
      %726 = vset.pattern.permute.xlu0 0
      %727 = vperm.xlu0 %726, %v628
      %v728 = vpop.permute.xlu0 %727
      %731 = vset.pattern.permute.xlu0 0
      %732 = vperm.xlu0 %731, %v629
      %v733 = vpop.permute.xlu0 %732
      %736 = vset.pattern.permute.xlu0 0
      %737 = vperm.xlu0 %736, %v630
      %v738 = vpop.permute.xlu0 %737
      %741 = vset.pattern.permute.xlu0 0
      %742 = vperm.xlu0 %741, %v631
      %v743 = vpop.permute.xlu0 %742
      %746 = vset.pattern.permute.xlu0 0
      %747 = vperm.xlu0 %746, %v632
      %v748 = vpop.permute.xlu0 %747
      %751 = vset.pattern.permute.xlu0 0
      %752 = vperm.xlu0 %751, %v633
      %v753 = vpop.permute.xlu0 %752
      %756 = vset.pattern.permute.xlu0 0
      %757 = vperm.xlu0 %756, %v634
      %v758 = vpop.permute.xlu0 %757
      %761 = vset.pattern.permute.xlu0 0
      %762 = vperm.xlu0 %761, %v635
      %v763 = vpop.permute.xlu0 %762
      %766 = vset.pattern.permute.xlu0 0
      %767 = vperm.xlu0 %766, %v636
      %v768 = vpop.permute.xlu0 %767
      %771 = vset.pattern.permute.xlu0 0
      %772 = vperm.xlu0 %771, %v637
      %v773 = vpop.permute.xlu0 %772
      %776 = vset.pattern.permute.xlu0 0
      %777 = vperm.xlu0 %776, %v638
      %v778 = vpop.permute.xlu0 %777
      %781 = vset.pattern.permute.xlu0 0
      %782 = vperm.xlu0 %781, %v639
      %v783 = vpop.permute.xlu0 %782
      %786 = vset.pattern.permute.xlu0 0
      %787 = vperm.xlu0 %786, %v640
      %v788 = vpop.permute.xlu0 %787
      %791 = vset.pattern.permute.xlu0 0
      %792 = vperm.xlu0 %791, %v641
      %v793 = vpop.permute.xlu0 %792
      %796 = vset.pattern.permute.xlu0 0
      %797 = vperm.xlu0 %796, %v642
      %v798 = vpop.permute.xlu0 %797
      %801 = vset.pattern.permute.xlu0 0
      %802 = vperm.xlu0 %801, %v643
      %v803 = vpop.permute.xlu0 %802
      %v805 = vlaneseq
      %v806 = vshrl.u32 %v805, 7
      %v807 = vsub.s32 0, %v806
      %v808 = vrot.slane %v644, %v807
      %v809 = vmul.f32 %v648, %v808
      %v810 = vmul.f32 %v653, %v808
      %v811 = vmul.f32 %v658, %v808
      %v812 = vmul.f32 %v663, %v808
      %v813 = vmul.f32 %v668, %v808
      %v814 = vmul.f32 %v673, %v808
      %v815 = vmul.f32 %v678, %v808
      %v816 = vmul.f32 %v683, %v808
      %v817 = vmul.f32 %v688, %v808
      %v818 = vmul.f32 %v693, %v808
      %v819 = vmul.f32 %v698, %v808
      %v820 = vmul.f32 %v703, %v808
      %v821 = vmul.f32 %v708, %v808
      %v822 = vmul.f32 %v713, %v808
      %v823 = vmul.f32 %v718, %v808
      %v824 = vmul.f32 %v723, %v808
      %v825 = vmul.f32 %v728, %v808
      %v826 = vmul.f32 %v733, %v808
      %v827 = vmul.f32 %v738, %v808
      %v828 = vmul.f32 %v743, %v808
      %v829 = vmul.f32 %v748, %v808
      %v830 = vmul.f32 %v753, %v808
      %v831 = vmul.f32 %v758, %v808
      %v832 = vmul.f32 %v763, %v808
      %v833 = vmul.f32 %v768, %v808
      %v834 = vmul.f32 %v773, %v808
      %v835 = vmul.f32 %v778, %v808
      %v836 = vmul.f32 %v783, %v808
      %v837 = vmul.f32 %v788, %v808
      %v838 = vmul.f32 %v793, %v808
      %v839 = vmul.f32 %v798, %v808
      %v840 = vmul.f32 %v803, %v808
      %v841 = vadd.f32 %v809, 0.0
      %v842 = vadd.f32 %v810, 0.0
      %v843 = vadd.f32 %v811, 0.0
      %v844 = vadd.f32 %v812, 0.0
      %v845 = vadd.f32 %v813, 0.0
      %v846 = vadd.f32 %v814, 0.0
      %v847 = vadd.f32 %v815, 0.0
      %v848 = vadd.f32 %v816, 0.0
      %v849 = vadd.f32 %v817, 0.0
      %v850 = vadd.f32 %v818, 0.0
      %v851 = vadd.f32 %v819, 0.0
      %v852 = vadd.f32 %v820, 0.0
      %v853 = vadd.f32 %v821, 0.0
      %v854 = vadd.f32 %v822, 0.0
      %v855 = vadd.f32 %v823, 0.0
      %v856 = vadd.f32 %v824, 0.0
      %v857 = vadd.f32 %v825, 0.0
      %v858 = vadd.f32 %v826, 0.0
      %v859 = vadd.f32 %v827, 0.0
      %v860 = vadd.f32 %v828, 0.0
      %v861 = vadd.f32 %v829, 0.0
      %v862 = vadd.f32 %v830, 0.0
      %v863 = vadd.f32 %v831, 0.0
      %v864 = vadd.f32 %v832, 0.0
      %v865 = vadd.f32 %v833, 0.0
      %v866 = vadd.f32 %v834, 0.0
      %v867 = vadd.f32 %v835, 0.0
      %v868 = vadd.f32 %v836, 0.0
      %v869 = vadd.f32 %v837, 0.0
      %v870 = vadd.f32 %v838, 0.0
      %v871 = vadd.f32 %v839, 0.0
      %v872 = vadd.f32 %v840, 0.0
      %v873 = vld [vmem:[%s565 + $0x1] sm:$0xff]
      %v874 = vld [vmem:[%s565 + $0x9] sm:$0xff]
      %v875 = vld [vmem:[%s565 + $0x19] sm:$0xff]
      %v876 = vld [vmem:[%s565 + $0x21] sm:$0xff]
      %v877 = vld [vmem:[%s565 + $0x31] sm:$0xff]
      %v878 = vld [vmem:[%s565 + $0x39] sm:$0xff]
      %v879 = vld [vmem:[%s565 + $0x49] sm:$0xff]
      %v880 = vld [vmem:[%s565 + $0x51] sm:$0xff]
      %v881 = vld [vmem:[%s565 + $0x61] sm:$0xff]
      %v882 = vld [vmem:[%s565 + $0x69] sm:$0xff]
      %v883 = vld [vmem:[%s565 + $0x79] sm:$0xff]
      %v884 = vld [vmem:[%s565 + $0x81] sm:$0xff]
      %v885 = vld [vmem:[%s565 + $0x91] sm:$0xff]
      %v886 = vld [vmem:[%s565 + $0x99] sm:$0xff]
      %v887 = vld [vmem:[%s565 + $0xa9] sm:$0xff]
      %v888 = vld [vmem:[%s565 + $0xb1] sm:$0xff]
      %v889 = vld [vmem:[%s565 + $0xc1] sm:$0xff]
      %v890 = vld [vmem:[%s565 + $0xc9] sm:$0xff]
      %v891 = vld [vmem:[%s565 + $0xd9] sm:$0xff]
      %v892 = vld [vmem:[%s565 + $0xe1] sm:$0xff]
      %v893 = vld [vmem:[%s565 + $0xf1] sm:$0xff]
      %v894 = vld [vmem:[%s565 + $0xf9] sm:$0xff]
      %v895 = vld [vmem:[%s565 + $0x109] sm:$0xff]
      %v896 = vld [vmem:[%s565 + $0x111] sm:$0xff]
      %v897 = vld [vmem:[%s565 + $0x121] sm:$0xff]
      %v898 = vld [vmem:[%s565 + $0x129] sm:$0xff]
      %v899 = vld [vmem:[%s565 + $0x139] sm:$0xff]
      %v900 = vld [vmem:[%s565 + $0x141] sm:$0xff]
      %v901 = vld [vmem:[%s565 + $0x151] sm:$0xff]
      %v902 = vld [vmem:[%s565 + $0x159] sm:$0xff]
      %v903 = vld [vmem:[%s565 + $0x169] sm:$0xff]
      %v904 = vld [vmem:[%s565 + $0x171] sm:$0xff]
      %v905 = vld [vmem:[%s2 + $0x1] sm:$0x1]
      %907 = vset.pattern.permute.xlu0 0
      %908 = vperm.xlu0 %907, %v873
      %v909 = vpop.permute.xlu0 %908
      %912 = vset.pattern.permute.xlu0 0
      %913 = vperm.xlu0 %912, %v874
      %v914 = vpop.permute.xlu0 %913
      %917 = vset.pattern.permute.xlu0 0
      %918 = vperm.xlu0 %917, %v875
      %v919 = vpop.permute.xlu0 %918
      %922 = vset.pattern.permute.xlu0 0
      %923 = vperm.xlu0 %922, %v876
      %v924 = vpop.permute.xlu0 %923
      %927 = vset.pattern.permute.xlu0 0
      %928 = vperm.xlu0 %927, %v877
      %v929 = vpop.permute.xlu0 %928
      %932 = vset.pattern.permute.xlu0 0
      %933 = vperm.xlu0 %932, %v878
      %v934 = vpop.permute.xlu0 %933
      %937 = vset.pattern.permute.xlu0 0
      %938 = vperm.xlu0 %937, %v879
      %v939 = vpop.permute.xlu0 %938
      %942 = vset.pattern.permute.xlu0 0
      %943 = vperm.xlu0 %942, %v880
      %v944 = vpop.permute.xlu0 %943
      %947 = vset.pattern.permute.xlu0 0
      %948 = vperm.xlu0 %947, %v881
      %v949 = vpop.permute.xlu0 %948
      %952 = vset.pattern.permute.xlu0 0
      %953 = vperm.xlu0 %952, %v882
      %v954 = vpop.permute.xlu0 %953
      %957 = vset.pattern.permute.xlu0 0
      %958 = vperm.xlu0 %957, %v883
      %v959 = vpop.permute.xlu0 %958
      %962 = vset.pattern.permute.xlu0 0
      %963 = vperm.xlu0 %962, %v884
      %v964 = vpop.permute.xlu0 %963
      %967 = vset.pattern.permute.xlu0 0
      %968 = vperm.xlu0 %967, %v885
      %v969 = vpop.permute.xlu0 %968
      %972 = vset.pattern.permute.xlu0 0
      %973 = vperm.xlu0 %972, %v886
      %v974 = vpop.permute.xlu0 %973
      %977 = vset.pattern.permute.xlu0 0
      %978 = vperm.xlu0 %977, %v887
      %v979 = vpop.permute.xlu0 %978
      %982 = vset.pattern.permute.xlu0 0
      %983 = vperm.xlu0 %982, %v888
      %v984 = vpop.permute.xlu0 %983
      %987 = vset.pattern.permute.xlu0 0
      %988 = vperm.xlu0 %987, %v889
      %v989 = vpop.permute.xlu0 %988
      %992 = vset.pattern.permute.xlu0 0
      %993 = vperm.xlu0 %992, %v890
      %v994 = vpop.permute.xlu0 %993
      %997 = vset.pattern.permute.xlu0 0
      %998 = vperm.xlu0 %997, %v891
      %v999 = vpop.permute.xlu0 %998
      %1002 = vset.pattern.permute.xlu0 0
      %1003 = vperm.xlu0 %1002, %v892
      %v1004 = vpop.permute.xlu0 %1003
      %1007 = vset.pattern.permute.xlu0 0
      %1008 = vperm.xlu0 %1007, %v893
      %v1009 = vpop.permute.xlu0 %1008
      %1012 = vset.pattern.permute.xlu0 0
      %1013 = vperm.xlu0 %1012, %v894
      %v1014 = vpop.permute.xlu0 %1013
      %1017 = vset.pattern.permute.xlu0 0
      %1018 = vperm.xlu0 %1017, %v895
      %v1019 = vpop.permute.xlu0 %1018
      %1022 = vset.pattern.permute.xlu0 0
      %1023 = vperm.xlu0 %1022, %v896
      %v1024 = vpop.permute.xlu0 %1023
      %1027 = vset.pattern.permute.xlu0 0
      %1028 = vperm.xlu0 %1027, %v897
      %v1029 = vpop.permute.xlu0 %1028
      %1032 = vset.pattern.permute.xlu0 0
      %1033 = vperm.xlu0 %1032, %v898
      %v1034 = vpop.permute.xlu0 %1033
      %1037 = vset.pattern.permute.xlu0 0
      %1038 = vperm.xlu0 %1037, %v899
      %v1039 = vpop.permute.xlu0 %1038
      %1042 = vset.pattern.permute.xlu0 0
      %1043 = vperm.xlu0 %1042, %v900
      %v1044 = vpop.permute.xlu0 %1043
      %1047 = vset.pattern.permute.xlu0 0
      %1048 = vperm.xlu0 %1047, %v901
      %v1049 = vpop.permute.xlu0 %1048
      %1052 = vset.pattern.permute.xlu0 0
      %1053 = vperm.xlu0 %1052, %v902
      %v1054 = vpop.permute.xlu0 %1053
      %1057 = vset.pattern.permute.xlu0 0
      %1058 = vperm.xlu0 %1057, %v903
      %v1059 = vpop.permute.xlu0 %1058
      %1062 = vset.pattern.permute.xlu0 0
      %1063 = vperm.xlu0 %1062, %v904
      %v1064 = vpop.permute.xlu0 %1063
      %v1066 = vlaneseq
      %v1067 = vshrl.u32 %v1066, 7
      %v1068 = vsub.s32 0, %v1067
      %v1069 = vrot.slane %v905, %v1068
      %v1070 = vmul.f32 %v909, %v1069
      %v1071 = vmul.f32 %v914, %v1069
      %v1072 = vmul.f32 %v919, %v1069
      %v1073 = vmul.f32 %v924, %v1069
      %v1074 = vmul.f32 %v929, %v1069
      %v1075 = vmul.f32 %v934, %v1069
      %v1076 = vmul.f32 %v939, %v1069
      %v1077 = vmul.f32 %v944, %v1069
      %v1078 = vmul.f32 %v949, %v1069
      %v1079 = vmul.f32 %v954, %v1069
      %v1080 = vmul.f32 %v959, %v1069
      %v1081 = vmul.f32 %v964, %v1069
      %v1082 = vmul.f32 %v969, %v1069
      %v1083 = vmul.f32 %v974, %v1069
      %v1084 = vmul.f32 %v979, %v1069
      %v1085 = vmul.f32 %v984, %v1069
      %v1086 = vmul.f32 %v989, %v1069
      %v1087 = vmul.f32 %v994, %v1069
      %v1088 = vmul.f32 %v999, %v1069
      %v1089 = vmul.f32 %v1004, %v1069
      %v1090 = vmul.f32 %v1009, %v1069
      %v1091 = vmul.f32 %v1014, %v1069
      %v1092 = vmul.f32 %v1019, %v1069
      %v1093 = vmul.f32 %v1024, %v1069
      %v1094 = vmul.f32 %v1029, %v1069
      %v1095 = vmul.f32 %v1034, %v1069
      %v1096 = vmul.f32 %v1039, %v1069
      %v1097 = vmul.f32 %v1044, %v1069
      %v1098 = vmul.f32 %v1049, %v1069
      %v1099 = vmul.f32 %v1054, %v1069
      %v1100 = vmul.f32 %v1059, %v1069
      %v1101 = vmul.f32 %v1064, %v1069
      %v1102 = vadd.f32 %v841, %v1070
      %v1103 = vadd.f32 %v842, %v1071
      %v1104 = vadd.f32 %v843, %v1072
      %v1105 = vadd.f32 %v844, %v1073
      %v1106 = vadd.f32 %v845, %v1074
      %v1107 = vadd.f32 %v846, %v1075
      %v1108 = vadd.f32 %v847, %v1076
      %v1109 = vadd.f32 %v848, %v1077
      %v1110 = vadd.f32 %v849, %v1078
      %v1111 = vadd.f32 %v850, %v1079
      %v1112 = vadd.f32 %v851, %v1080
      %v1113 = vadd.f32 %v852, %v1081
      %v1114 = vadd.f32 %v853, %v1082
      %v1115 = vadd.f32 %v854, %v1083
      %v1116 = vadd.f32 %v855, %v1084
      %v1117 = vadd.f32 %v856, %v1085
      %v1118 = vadd.f32 %v857, %v1086
      %v1119 = vadd.f32 %v858, %v1087
      %v1120 = vadd.f32 %v859, %v1088
      %v1121 = vadd.f32 %v860, %v1089
      %v1122 = vadd.f32 %v861, %v1090
      %v1123 = vadd.f32 %v862, %v1091
      %v1124 = vadd.f32 %v863, %v1092
      %v1125 = vadd.f32 %v864, %v1093
      %v1126 = vadd.f32 %v865, %v1094
      %v1127 = vadd.f32 %v866, %v1095
      %v1128 = vadd.f32 %v867, %v1096
      %v1129 = vadd.f32 %v868, %v1097
      %v1130 = vadd.f32 %v869, %v1098
      %v1131 = vadd.f32 %v870, %v1099
      %v1132 = vadd.f32 %v871, %v1100
      %v1133 = vadd.f32 %v872, %v1101
      %v1134 = vld [vmem:[%s565 + $0x2] sm:$0xff]
      %v1135 = vld [vmem:[%s565 + $0xa] sm:$0xff]
      %v1136 = vld [vmem:[%s565 + $0x1a] sm:$0xff]
      %v1137 = vld [vmem:[%s565 + $0x22] sm:$0xff]
      %v1138 = vld [vmem:[%s565 + $0x32] sm:$0xff]
      %v1139 = vld [vmem:[%s565 + $0x3a] sm:$0xff]
      %v1140 = vld [vmem:[%s565 + $0x4a] sm:$0xff]
      %v1141 = vld [vmem:[%s565 + $0x52] sm:$0xff]
      %v1142 = vld [vmem:[%s565 + $0x62] sm:$0xff]
      %v1143 = vld [vmem:[%s565 + $0x6a] sm:$0xff]
      %v1144 = vld [vmem:[%s565 + $0x7a] sm:$0xff]
      %v1145 = vld [vmem:[%s565 + $0x82] sm:$0xff]
      %v1146 = vld [vmem:[%s565 + $0x92] sm:$0xff]
      %v1147 = vld [vmem:[%s565 + $0x9a] sm:$0xff]
      %v1148 = vld [vmem:[%s565 + $0xaa] sm:$0xff]
      %v1149 = vld [vmem:[%s565 + $0xb2] sm:$0xff]
      %v1150 = vld [vmem:[%s565 + $0xc2] sm:$0xff]
      %v1151 = vld [vmem:[%s565 + $0xca] sm:$0xff]
      %v1152 = vld [vmem:[%s565 + $0xda] sm:$0xff]
      %v1153 = vld [vmem:[%s565 + $0xe2] sm:$0xff]
      %v1154 = vld [vmem:[%s565 + $0xf2] sm:$0xff]
      %v1155 = vld [vmem:[%s565 + $0xfa] sm:$0xff]
      %v1156 = vld [vmem:[%s565 + $0x10a] sm:$0xff]
      %v1157 = vld [vmem:[%s565 + $0x112] sm:$0xff]
      %v1158 = vld [vmem:[%s565 + $0x122] sm:$0xff]
      %v1159 = vld [vmem:[%s565 + $0x12a] sm:$0xff]
      %v1160 = vld [vmem:[%s565 + $0x13a] sm:$0xff]
      %v1161 = vld [vmem:[%s565 + $0x142] sm:$0xff]
      %v1162 = vld [vmem:[%s565 + $0x152] sm:$0xff]
      %v1163 = vld [vmem:[%s565 + $0x15a] sm:$0xff]
      %v1164 = vld [vmem:[%s565 + $0x16a] sm:$0xff]
      %v1165 = vld [vmem:[%s565 + $0x172] sm:$0xff]
      %v1166 = vld [vmem:[%s2 + $0x2] sm:$0x1]
      %1168 = vset.pattern.permute.xlu0 0
      %1169 = vperm.xlu0 %1168, %v1134
      %v1170 = vpop.permute.xlu0 %1169
      %1173 = vset.pattern.permute.xlu0 0
      %1174 = vperm.xlu0 %1173, %v1135
      %v1175 = vpop.permute.xlu0 %1174
      %1178 = vset.pattern.permute.xlu0 0
      %1179 = vperm.xlu0 %1178, %v1136
      %v1180 = vpop.permute.xlu0 %1179
      %1183 = vset.pattern.permute.xlu0 0
      %1184 = vperm.xlu0 %1183, %v1137
      %v1185 = vpop.permute.xlu0 %1184
      %1188 = vset.pattern.permute.xlu0 0
      %1189 = vperm.xlu0 %1188, %v1138
      %v1190 = vpop.permute.xlu0 %1189
      %1193 = vset.pattern.permute.xlu0 0
      %1194 = vperm.xlu0 %1193, %v1139
      %v1195 = vpop.permute.xlu0 %1194
      %1198 = vset.pattern.permute.xlu0 0
      %1199 = vperm.xlu0 %1198, %v1140
      %v1200 = vpop.permute.xlu0 %1199
      %1203 = vset.pattern.permute.xlu0 0
      %1204 = vperm.xlu0 %1203, %v1141
      %v1205 = vpop.permute.xlu0 %1204
      %1208 = vset.pattern.permute.xlu0 0
      %1209 = vperm.xlu0 %1208, %v1142
      %v1210 = vpop.permute.xlu0 %1209
      %1213 = vset.pattern.permute.xlu0 0
      %1214 = vperm.xlu0 %1213, %v1143
      %v1215 = vpop.permute.xlu0 %1214
      %1218 = vset.pattern.permute.xlu0 0
      %1219 = vperm.xlu0 %1218, %v1144
      %v1220 = vpop.permute.xlu0 %1219
      %1223 = vset.pattern.permute.xlu0 0
      %1224 = vperm.xlu0 %1223, %v1145
      %v1225 = vpop.permute.xlu0 %1224
      %1228 = vset.pattern.permute.xlu0 0
      %1229 = vperm.xlu0 %1228, %v1146
      %v1230 = vpop.permute.xlu0 %1229
      %1233 = vset.pattern.permute.xlu0 0
      %1234 = vperm.xlu0 %1233, %v1147
      %v1235 = vpop.permute.xlu0 %1234
      %1238 = vset.pattern.permute.xlu0 0
      %1239 = vperm.xlu0 %1238, %v1148
      %v1240 = vpop.permute.xlu0 %1239
      %1243 = vset.pattern.permute.xlu0 0
      %1244 = vperm.xlu0 %1243, %v1149
      %v1245 = vpop.permute.xlu0 %1244
      %1248 = vset.pattern.permute.xlu0 0
      %1249 = vperm.xlu0 %1248, %v1150
      %v1250 = vpop.permute.xlu0 %1249
      %1253 = vset.pattern.permute.xlu0 0
      %1254 = vperm.xlu0 %1253, %v1151
      %v1255 = vpop.permute.xlu0 %1254
      %1258 = vset.pattern.permute.xlu0 0
      %1259 = vperm.xlu0 %1258, %v1152
      %v1260 = vpop.permute.xlu0 %1259
      %1263 = vset.pattern.permute.xlu0 0
      %1264 = vperm.xlu0 %1263, %v1153
      %v1265 = vpop.permute.xlu0 %1264
      %1268 = vset.pattern.permute.xlu0 0
      %1269 = vperm.xlu0 %1268, %v1154
      %v1270 = vpop.permute.xlu0 %1269
      %1273 = vset.pattern.permute.xlu0 0
      %1274 = vperm.xlu0 %1273, %v1155
      %v1275 = vpop.permute.xlu0 %1274
      %1278 = vset.pattern.permute.xlu0 0
      %1279 = vperm.xlu0 %1278, %v1156
      %v1280 = vpop.permute.xlu0 %1279
      %1283 = vset.pattern.permute.xlu0 0
      %1284 = vperm.xlu0 %1283, %v1157
      %v1285 = vpop.permute.xlu0 %1284
      %1288 = vset.pattern.permute.xlu0 0
      %1289 = vperm.xlu0 %1288, %v1158
      %v1290 = vpop.permute.xlu0 %1289
      %1293 = vset.pattern.permute.xlu0 0
      %1294 = vperm.xlu0 %1293, %v1159
      %v1295 = vpop.permute.xlu0 %1294
      %1298 = vset.pattern.permute.xlu0 0
      %1299 = vperm.xlu0 %1298, %v1160
      %v1300 = vpop.permute.xlu0 %1299
      %1303 = vset.pattern.permute.xlu0 0
      %1304 = vperm.xlu0 %1303, %v1161
      %v1305 = vpop.permute.xlu0 %1304
      %1308 = vset.pattern.permute.xlu0 0
      %1309 = vperm.xlu0 %1308, %v1162
      %v1310 = vpop.permute.xlu0 %1309
      %1313 = vset.pattern.permute.xlu0 0
      %1314 = vperm.xlu0 %1313, %v1163
      %v1315 = vpop.permute.xlu0 %1314
      %1318 = vset.pattern.permute.xlu0 0
      %1319 = vperm.xlu0 %1318, %v1164
      %v1320 = vpop.permute.xlu0 %1319
      %1323 = vset.pattern.permute.xlu0 0
      %1324 = vperm.xlu0 %1323, %v1165
      %v1325 = vpop.permute.xlu0 %1324
      %v1327 = vlaneseq
      %v1328 = vshrl.u32 %v1327, 7
      %v1329 = vsub.s32 0, %v1328
      %v1330 = vrot.slane %v1166, %v1329
      %v1331 = vmul.f32 %v1170, %v1330
      %v1332 = vmul.f32 %v1175, %v1330
      %v1333 = vmul.f32 %v1180, %v1330
      %v1334 = vmul.f32 %v1185, %v1330
      %v1335 = vmul.f32 %v1190, %v1330
      %v1336 = vmul.f32 %v1195, %v1330
      %v1337 = vmul.f32 %v1200, %v1330
      %v1338 = vmul.f32 %v1205, %v1330
      %v1339 = vmul.f32 %v1210, %v1330
      %v1340 = vmul.f32 %v1215, %v1330
      %v1341 = vmul.f32 %v1220, %v1330
      %v1342 = vmul.f32 %v1225, %v1330
      %v1343 = vmul.f32 %v1230, %v1330
      %v1344 = vmul.f32 %v1235, %v1330
      %v1345 = vmul.f32 %v1240, %v1330
      %v1346 = vmul.f32 %v1245, %v1330
      %v1347 = vmul.f32 %v1250, %v1330
      %v1348 = vmul.f32 %v1255, %v1330
      %v1349 = vmul.f32 %v1260, %v1330
      %v1350 = vmul.f32 %v1265, %v1330
      %v1351 = vmul.f32 %v1270, %v1330
      %v1352 = vmul.f32 %v1275, %v1330
      %v1353 = vmul.f32 %v1280, %v1330
      %v1354 = vmul.f32 %v1285, %v1330
      %v1355 = vmul.f32 %v1290, %v1330
      %v1356 = vmul.f32 %v1295, %v1330
      %v1357 = vmul.f32 %v1300, %v1330
      %v1358 = vmul.f32 %v1305, %v1330
      %v1359 = vmul.f32 %v1310, %v1330
      %v1360 = vmul.f32 %v1315, %v1330
      %v1361 = vmul.f32 %v1320, %v1330
      %v1362 = vmul.f32 %v1325, %v1330
      %v1363 = vadd.f32 %v1102, %v1331
      %v1364 = vadd.f32 %v1103, %v1332
      %v1365 = vadd.f32 %v1104, %v1333
      %v1366 = vadd.f32 %v1105, %v1334
      %v1367 = vadd.f32 %v1106, %v1335
      %v1368 = vadd.f32 %v1107, %v1336
      %v1369 = vadd.f32 %v1108, %v1337
      %v1370 = vadd.f32 %v1109, %v1338
      %v1371 = vadd.f32 %v1110, %v1339
      %v1372 = vadd.f32 %v1111, %v1340
      %v1373 = vadd.f32 %v1112, %v1341
      %v1374 = vadd.f32 %v1113, %v1342
      %v1375 = vadd.f32 %v1114, %v1343
      %v1376 = vadd.f32 %v1115, %v1344
      %v1377 = vadd.f32 %v1116, %v1345
      %v1378 = vadd.f32 %v1117, %v1346
      %v1379 = vadd.f32 %v1118, %v1347
      %v1380 = vadd.f32 %v1119, %v1348
      %v1381 = vadd.f32 %v1120, %v1349
      %v1382 = vadd.f32 %v1121, %v1350
      %v1383 = vadd.f32 %v1122, %v1351
      %v1384 = vadd.f32 %v1123, %v1352
      %v1385 = vadd.f32 %v1124, %v1353
      %v1386 = vadd.f32 %v1125, %v1354
      %v1387 = vadd.f32 %v1126, %v1355
      %v1388 = vadd.f32 %v1127, %v1356
      %v1389 = vadd.f32 %v1128, %v1357
      %v1390 = vadd.f32 %v1129, %v1358
      %v1391 = vadd.f32 %v1130, %v1359
      %v1392 = vadd.f32 %v1131, %v1360
      %v1393 = vadd.f32 %v1132, %v1361
      %v1394 = vadd.f32 %v1133, %v1362
      %s1395 = scalar_lea.vmem %s565, 24
      %v1396 = vld [vmem:[%s1395] sm:$0xff]
      %v1397 = vld [vmem:[%s1395 + $0x8] sm:$0xff]
      %v1398 = vld [vmem:[%s1395 + $0x18] sm:$0xff]
      %v1399 = vld [vmem:[%s1395 + $0x20] sm:$0xff]
      %v1400 = vld [vmem:[%s1395 + $0x30] sm:$0xff]
      %v1401 = vld [vmem:[%s1395 + $0x38] sm:$0xff]
      %v1402 = vld [vmem:[%s1395 + $0x48] sm:$0xff]
      %v1403 = vld [vmem:[%s1395 + $0x50] sm:$0xff]
      %v1404 = vld [vmem:[%s1395 + $0x60] sm:$0xff]
      %v1405 = vld [vmem:[%s1395 + $0x68] sm:$0xff]
      %v1406 = vld [vmem:[%s1395 + $0x78] sm:$0xff]
      %v1407 = vld [vmem:[%s1395 + $0x80] sm:$0xff]
      %v1408 = vld [vmem:[%s1395 + $0x90] sm:$0xff]
      %v1409 = vld [vmem:[%s1395 + $0x98] sm:$0xff]
      %v1410 = vld [vmem:[%s1395 + $0xa8] sm:$0xff]
      %v1411 = vld [vmem:[%s1395 + $0xb0] sm:$0xff]
      %v1412 = vld [vmem:[%s1395 + $0xc0] sm:$0xff]
      %v1413 = vld [vmem:[%s1395 + $0xc8] sm:$0xff]
      %v1414 = vld [vmem:[%s1395 + $0xd8] sm:$0xff]
      %v1415 = vld [vmem:[%s1395 + $0xe0] sm:$0xff]
      %v1416 = vld [vmem:[%s1395 + $0xf0] sm:$0xff]
      %v1417 = vld [vmem:[%s1395 + $0xf8] sm:$0xff]
      %v1418 = vld [vmem:[%s1395 + $0x108] sm:$0xff]
      %v1419 = vld [vmem:[%s1395 + $0x110] sm:$0xff]
      %v1420 = vld [vmem:[%s1395 + $0x120] sm:$0xff]
      %v1421 = vld [vmem:[%s1395 + $0x128] sm:$0xff]
      %v1422 = vld [vmem:[%s1395 + $0x138] sm:$0xff]
      %v1423 = vld [vmem:[%s1395 + $0x140] sm:$0xff]
      %v1424 = vld [vmem:[%s1395 + $0x150] sm:$0xff]
      %v1425 = vld [vmem:[%s1395 + $0x158] sm:$0xff]
      %v1426 = vld [vmem:[%s1395 + $0x168] sm:$0xff]
      %v1427 = vld [vmem:[%s1395 + $0x170] sm:$0xff]
      %v1428 = vld [vmem:[%s2 + $0x3] sm:$0x1]
      %1430 = vset.pattern.permute.xlu0 0
      %1431 = vperm.xlu0 %1430, %v1396
      %v1432 = vpop.permute.xlu0 %1431
      %1435 = vset.pattern.permute.xlu0 0
      %1436 = vperm.xlu0 %1435, %v1397
      %v1437 = vpop.permute.xlu0 %1436
      %1440 = vset.pattern.permute.xlu0 0
      %1441 = vperm.xlu0 %1440, %v1398
      %v1442 = vpop.permute.xlu0 %1441
      %1445 = vset.pattern.permute.xlu0 0
      %1446 = vperm.xlu0 %1445, %v1399
      %v1447 = vpop.permute.xlu0 %1446
      %1450 = vset.pattern.permute.xlu0 0
      %1451 = vperm.xlu0 %1450, %v1400
      %v1452 = vpop.permute.xlu0 %1451
      %1455 = vset.pattern.permute.xlu0 0
      %1456 = vperm.xlu0 %1455, %v1401
      %v1457 = vpop.permute.xlu0 %1456
      %1460 = vset.pattern.permute.xlu0 0
      %1461 = vperm.xlu0 %1460, %v1402
      %v1462 = vpop.permute.xlu0 %1461
      %1465 = vset.pattern.permute.xlu0 0
      %1466 = vperm.xlu0 %1465, %v1403
      %v1467 = vpop.permute.xlu0 %1466
      %1470 = vset.pattern.permute.xlu0 0
      %1471 = vperm.xlu0 %1470, %v1404
      %v1472 = vpop.permute.xlu0 %1471
      %1475 = vset.pattern.permute.xlu0 0
      %1476 = vperm.xlu0 %1475, %v1405
      %v1477 = vpop.permute.xlu0 %1476
      %1480 = vset.pattern.permute.xlu0 0
      %1481 = vperm.xlu0 %1480, %v1406
      %v1482 = vpop.permute.xlu0 %1481
      %1485 = vset.pattern.permute.xlu0 0
      %1486 = vperm.xlu0 %1485, %v1407
      %v1487 = vpop.permute.xlu0 %1486
      %1490 = vset.pattern.permute.xlu0 0
      %1491 = vperm.xlu0 %1490, %v1408
      %v1492 = vpop.permute.xlu0 %1491
      %1495 = vset.pattern.permute.xlu0 0
      %1496 = vperm.xlu0 %1495, %v1409
      %v1497 = vpop.permute.xlu0 %1496
      %1500 = vset.pattern.permute.xlu0 0
      %1501 = vperm.xlu0 %1500, %v1410
      %v1502 = vpop.permute.xlu0 %1501
      %1505 = vset.pattern.permute.xlu0 0
      %1506 = vperm.xlu0 %1505, %v1411
      %v1507 = vpop.permute.xlu0 %1506
      %1510 = vset.pattern.permute.xlu0 0
      %1511 = vperm.xlu0 %1510, %v1412
      %v1512 = vpop.permute.xlu0 %1511
      %1515 = vset.pattern.permute.xlu0 0
      %1516 = vperm.xlu0 %1515, %v1413
      %v1517 = vpop.permute.xlu0 %1516
      %1520 = vset.pattern.permute.xlu0 0
      %1521 = vperm.xlu0 %1520, %v1414
      %v1522 = vpop.permute.xlu0 %1521
      %1525 = vset.pattern.permute.xlu0 0
      %1526 = vperm.xlu0 %1525, %v1415
      %v1527 = vpop.permute.xlu0 %1526
      %1530 = vset.pattern.permute.xlu0 0
      %1531 = vperm.xlu0 %1530, %v1416
      %v1532 = vpop.permute.xlu0 %1531
      %1535 = vset.pattern.permute.xlu0 0
      %1536 = vperm.xlu0 %1535, %v1417
      %v1537 = vpop.permute.xlu0 %1536
      %1540 = vset.pattern.permute.xlu0 0
      %1541 = vperm.xlu0 %1540, %v1418
      %v1542 = vpop.permute.xlu0 %1541
      %1545 = vset.pattern.permute.xlu0 0
      %1546 = vperm.xlu0 %1545, %v1419
      %v1547 = vpop.permute.xlu0 %1546
      %1550 = vset.pattern.permute.xlu0 0
      %1551 = vperm.xlu0 %1550, %v1420
      %v1552 = vpop.permute.xlu0 %1551
      %1555 = vset.pattern.permute.xlu0 0
      %1556 = vperm.xlu0 %1555, %v1421
      %v1557 = vpop.permute.xlu0 %1556
      %1560 = vset.pattern.permute.xlu0 0
      %1561 = vperm.xlu0 %1560, %v1422
      %v1562 = vpop.permute.xlu0 %1561
      %1565 = vset.pattern.permute.xlu0 0
      %1566 = vperm.xlu0 %1565, %v1423
      %v1567 = vpop.permute.xlu0 %1566
      %1570 = vset.pattern.permute.xlu0 0
      %1571 = vperm.xlu0 %1570, %v1424
      %v1572 = vpop.permute.xlu0 %1571
      %1575 = vset.pattern.permute.xlu0 0
      %1576 = vperm.xlu0 %1575, %v1425
      %v1577 = vpop.permute.xlu0 %1576
      %1580 = vset.pattern.permute.xlu0 0
      %1581 = vperm.xlu0 %1580, %v1426
      %v1582 = vpop.permute.xlu0 %1581
      %1585 = vset.pattern.permute.xlu0 0
      %1586 = vperm.xlu0 %1585, %v1427
      %v1587 = vpop.permute.xlu0 %1586
      %v1589 = vlaneseq
      %v1590 = vshrl.u32 %v1589, 7
      %v1591 = vsub.s32 0, %v1590
      %v1592 = vrot.slane %v1428, %v1591
      %v1593 = vmul.f32 %v1432, %v1592
      %v1594 = vmul.f32 %v1437, %v1592
      %v1595 = vmul.f32 %v1442, %v1592
      %v1596 = vmul.f32 %v1447, %v1592
      %v1597 = vmul.f32 %v1452, %v1592
      %v1598 = vmul.f32 %v1457, %v1592
      %v1599 = vmul.f32 %v1462, %v1592
      %v1600 = vmul.f32 %v1467, %v1592
      %v1601 = vmul.f32 %v1472, %v1592
      %v1602 = vmul.f32 %v1477, %v1592
      %v1603 = vmul.f32 %v1482, %v1592
      %v1604 = vmul.f32 %v1487, %v1592
      %v1605 = vmul.f32 %v1492, %v1592
      %v1606 = vmul.f32 %v1497, %v1592
      %v1607 = vmul.f32 %v1502, %v1592
      %v1608 = vmul.f32 %v1507, %v1592
      %v1609 = vmul.f32 %v1512, %v1592
      %v1610 = vmul.f32 %v1517, %v1592
      %v1611 = vmul.f32 %v1522, %v1592
      %v1612 = vmul.f32 %v1527, %v1592
      %v1613 = vmul.f32 %v1532, %v1592
      %v1614 = vmul.f32 %v1537, %v1592
      %v1615 = vmul.f32 %v1542, %v1592
      %v1616 = vmul.f32 %v1547, %v1592
      %v1617 = vmul.f32 %v1552, %v1592
      %v1618 = vmul.f32 %v1557, %v1592
      %v1619 = vmul.f32 %v1562, %v1592
      %v1620 = vmul.f32 %v1567, %v1592
      %v1621 = vmul.f32 %v1572, %v1592
      %v1622 = vmul.f32 %v1577, %v1592
      %v1623 = vmul.f32 %v1582, %v1592
      %v1624 = vmul.f32 %v1587, %v1592
      %v1625 = vadd.f32 %v1363, %v1593
      %v1626 = vadd.f32 %v1364, %v1594
      %v1627 = vadd.f32 %v1365, %v1595
      %v1628 = vadd.f32 %v1366, %v1596
      %v1629 = vadd.f32 %v1367, %v1597
      %v1630 = vadd.f32 %v1368, %v1598
      %v1631 = vadd.f32 %v1369, %v1599
      %v1632 = vadd.f32 %v1370, %v1600
      %v1633 = vadd.f32 %v1371, %v1601
      %v1634 = vadd.f32 %v1372, %v1602
      %v1635 = vadd.f32 %v1373, %v1603
      %v1636 = vadd.f32 %v1374, %v1604
      %v1637 = vadd.f32 %v1375, %v1605
      %v1638 = vadd.f32 %v1376, %v1606
      %v1639 = vadd.f32 %v1377, %v1607
      %v1640 = vadd.f32 %v1378, %v1608
      %v1641 = vadd.f32 %v1379, %v1609
      %v1642 = vadd.f32 %v1380, %v1610
      %v1643 = vadd.f32 %v1381, %v1611
      %v1644 = vadd.f32 %v1382, %v1612
      %v1645 = vadd.f32 %v1383, %v1613
      %v1646 = vadd.f32 %v1384, %v1614
      %v1647 = vadd.f32 %v1385, %v1615
      %v1648 = vadd.f32 %v1386, %v1616
      %v1649 = vadd.f32 %v1387, %v1617
      %v1650 = vadd.f32 %v1388, %v1618
      %v1651 = vadd.f32 %v1389, %v1619
      %v1652 = vadd.f32 %v1390, %v1620
      %v1653 = vadd.f32 %v1391, %v1621
      %v1654 = vadd.f32 %v1392, %v1622
      %v1655 = vadd.f32 %v1393, %v1623
      %v1656 = vadd.f32 %v1394, %v1624
      %v1657 = vld [vmem:[%s1395 + $0x1] sm:$0xff]
      %v1658 = vld [vmem:[%s1395 + $0x9] sm:$0xff]
      %v1659 = vld [vmem:[%s1395 + $0x19] sm:$0xff]
      %v1660 = vld [vmem:[%s1395 + $0x21] sm:$0xff]
      %v1661 = vld [vmem:[%s1395 + $0x31] sm:$0xff]
      %v1662 = vld [vmem:[%s1395 + $0x39] sm:$0xff]
      %v1663 = vld [vmem:[%s1395 + $0x49] sm:$0xff]
      %v1664 = vld [vmem:[%s1395 + $0x51] sm:$0xff]
      %v1665 = vld [vmem:[%s1395 + $0x61] sm:$0xff]
      %v1666 = vld [vmem:[%s1395 + $0x69] sm:$0xff]
      %v1667 = vld [vmem:[%s1395 + $0x79] sm:$0xff]
      %v1668 = vld [vmem:[%s1395 + $0x81] sm:$0xff]
      %v1669 = vld [vmem:[%s1395 + $0x91] sm:$0xff]
      %v1670 = vld [vmem:[%s1395 + $0x99] sm:$0xff]
      %v1671 = vld [vmem:[%s1395 + $0xa9] sm:$0xff]
      %v1672 = vld [vmem:[%s1395 + $0xb1] sm:$0xff]
      %v1673 = vld [vmem:[%s1395 + $0xc1] sm:$0xff]
      %v1674 = vld [vmem:[%s1395 + $0xc9] sm:$0xff]
      %v1675 = vld [vmem:[%s1395 + $0xd9] sm:$0xff]
      %v1676 = vld [vmem:[%s1395 + $0xe1] sm:$0xff]
      %v1677 = vld [vmem:[%s1395 + $0xf1] sm:$0xff]
      %v1678 = vld [vmem:[%s1395 + $0xf9] sm:$0xff]
      %v1679 = vld [vmem:[%s1395 + $0x109] sm:$0xff]
      %v1680 = vld [vmem:[%s1395 + $0x111] sm:$0xff]
      %v1681 = vld [vmem:[%s1395 + $0x121] sm:$0xff]
      %v1682 = vld [vmem:[%s1395 + $0x129] sm:$0xff]
      %v1683 = vld [vmem:[%s1395 + $0x139] sm:$0xff]
      %v1684 = vld [vmem:[%s1395 + $0x141] sm:$0xff]
      %v1685 = vld [vmem:[%s1395 + $0x151] sm:$0xff]
      %v1686 = vld [vmem:[%s1395 + $0x159] sm:$0xff]
      %v1687 = vld [vmem:[%s1395 + $0x169] sm:$0xff]
      %v1688 = vld [vmem:[%s1395 + $0x171] sm:$0xff]
      %v1689 = vld [vmem:[%s2 + $0x4] sm:$0x1]
      %1691 = vset.pattern.permute.xlu0 0
      %1692 = vperm.xlu0 %1691, %v1657
      %v1693 = vpop.permute.xlu0 %1692
      %1696 = vset.pattern.permute.xlu0 0
      %1697 = vperm.xlu0 %1696, %v1658
      %v1698 = vpop.permute.xlu0 %1697
      %1701 = vset.pattern.permute.xlu0 0
      %1702 = vperm.xlu0 %1701, %v1659
      %v1703 = vpop.permute.xlu0 %1702
      %1706 = vset.pattern.permute.xlu0 0
      %1707 = vperm.xlu0 %1706, %v1660
      %v1708 = vpop.permute.xlu0 %1707
      %1711 = vset.pattern.permute.xlu0 0
      %1712 = vperm.xlu0 %1711, %v1661
      %v1713 = vpop.permute.xlu0 %1712
      %1716 = vset.pattern.permute.xlu0 0
      %1717 = vperm.xlu0 %1716, %v1662
      %v1718 = vpop.permute.xlu0 %1717
      %1721 = vset.pattern.permute.xlu0 0
      %1722 = vperm.xlu0 %1721, %v1663
      %v1723 = vpop.permute.xlu0 %1722
      %1726 = vset.pattern.permute.xlu0 0
      %1727 = vperm.xlu0 %1726, %v1664
      %v1728 = vpop.permute.xlu0 %1727
      %1731 = vset.pattern.permute.xlu0 0
      %1732 = vperm.xlu0 %1731, %v1665
      %v1733 = vpop.permute.xlu0 %1732
      %1736 = vset.pattern.permute.xlu0 0
      %1737 = vperm.xlu0 %1736, %v1666
      %v1738 = vpop.permute.xlu0 %1737
      %1741 = vset.pattern.permute.xlu0 0
      %1742 = vperm.xlu0 %1741, %v1667
      %v1743 = vpop.permute.xlu0 %1742
      %1746 = vset.pattern.permute.xlu0 0
      %1747 = vperm.xlu0 %1746, %v1668
      %v1748 = vpop.permute.xlu0 %1747
      %1751 = vset.pattern.permute.xlu0 0
      %1752 = vperm.xlu0 %1751, %v1669
      %v1753 = vpop.permute.xlu0 %1752
      %1756 = vset.pattern.permute.xlu0 0
      %1757 = vperm.xlu0 %1756, %v1670
      %v1758 = vpop.permute.xlu0 %1757
      %1761 = vset.pattern.permute.xlu0 0
      %1762 = vperm.xlu0 %1761, %v1671
      %v1763 = vpop.permute.xlu0 %1762
      %1766 = vset.pattern.permute.xlu0 0
      %1767 = vperm.xlu0 %1766, %v1672
      %v1768 = vpop.permute.xlu0 %1767
      %1771 = vset.pattern.permute.xlu0 0
      %1772 = vperm.xlu0 %1771, %v1673
      %v1773 = vpop.permute.xlu0 %1772
      %1776 = vset.pattern.permute.xlu0 0
      %1777 = vperm.xlu0 %1776, %v1674
      %v1778 = vpop.permute.xlu0 %1777
      %1781 = vset.pattern.permute.xlu0 0
      %1782 = vperm.xlu0 %1781, %v1675
      %v1783 = vpop.permute.xlu0 %1782
      %1786 = vset.pattern.permute.xlu0 0
      %1787 = vperm.xlu0 %1786, %v1676
      %v1788 = vpop.permute.xlu0 %1787
      %1791 = vset.pattern.permute.xlu0 0
      %1792 = vperm.xlu0 %1791, %v1677
      %v1793 = vpop.permute.xlu0 %1792
      %1796 = vset.pattern.permute.xlu0 0
      %1797 = vperm.xlu0 %1796, %v1678
      %v1798 = vpop.permute.xlu0 %1797
      %1801 = vset.pattern.permute.xlu0 0
      %1802 = vperm.xlu0 %1801, %v1679
      %v1803 = vpop.permute.xlu0 %1802
      %1806 = vset.pattern.permute.xlu0 0
      %1807 = vperm.xlu0 %1806, %v1680
      %v1808 = vpop.permute.xlu0 %1807
      %1811 = vset.pattern.permute.xlu0 0
      %1812 = vperm.xlu0 %1811, %v1681
      %v1813 = vpop.permute.xlu0 %1812
      %1816 = vset.pattern.permute.xlu0 0
      %1817 = vperm.xlu0 %1816, %v1682
      %v1818 = vpop.permute.xlu0 %1817
      %1821 = vset.pattern.permute.xlu0 0
      %1822 = vperm.xlu0 %1821, %v1683
      %v1823 = vpop.permute.xlu0 %1822
      %1826 = vset.pattern.permute.xlu0 0
      %1827 = vperm.xlu0 %1826, %v1684
      %v1828 = vpop.permute.xlu0 %1827
      %1831 = vset.pattern.permute.xlu0 0
      %1832 = vperm.xlu0 %1831, %v1685
      %v1833 = vpop.permute.xlu0 %1832
      %1836 = vset.pattern.permute.xlu0 0
      %1837 = vperm.xlu0 %1836, %v1686
      %v1838 = vpop.permute.xlu0 %1837
      %1841 = vset.pattern.permute.xlu0 0
      %1842 = vperm.xlu0 %1841, %v1687
      %v1843 = vpop.permute.xlu0 %1842
      %1846 = vset.pattern.permute.xlu0 0
      %1847 = vperm.xlu0 %1846, %v1688
      %v1848 = vpop.permute.xlu0 %1847
      %v1850 = vlaneseq
      %v1851 = vshrl.u32 %v1850, 7
      %v1852 = vsub.s32 0, %v1851
      %v1853 = vrot.slane %v1689, %v1852
      %v1854 = vmul.f32 %v1693, %v1853
      %v1855 = vmul.f32 %v1698, %v1853
      %v1856 = vmul.f32 %v1703, %v1853
      %v1857 = vmul.f32 %v1708, %v1853
      %v1858 = vmul.f32 %v1713, %v1853
      %v1859 = vmul.f32 %v1718, %v1853
      %v1860 = vmul.f32 %v1723, %v1853
      %v1861 = vmul.f32 %v1728, %v1853
      %v1862 = vmul.f32 %v1733, %v1853
      %v1863 = vmul.f32 %v1738, %v1853
      %v1864 = vmul.f32 %v1743, %v1853
      %v1865 = vmul.f32 %v1748, %v1853
      %v1866 = vmul.f32 %v1753, %v1853
      %v1867 = vmul.f32 %v1758, %v1853
      %v1868 = vmul.f32 %v1763, %v1853
      %v1869 = vmul.f32 %v1768, %v1853
      %v1870 = vmul.f32 %v1773, %v1853
      %v1871 = vmul.f32 %v1778, %v1853
      %v1872 = vmul.f32 %v1783, %v1853
      %v1873 = vmul.f32 %v1788, %v1853
      %v1874 = vmul.f32 %v1793, %v1853
      %v1875 = vmul.f32 %v1798, %v1853
      %v1876 = vmul.f32 %v1803, %v1853
      %v1877 = vmul.f32 %v1808, %v1853
      %v1878 = vmul.f32 %v1813, %v1853
      %v1879 = vmul.f32 %v1818, %v1853
      %v1880 = vmul.f32 %v1823, %v1853
      %v1881 = vmul.f32 %v1828, %v1853
      %v1882 = vmul.f32 %v1833, %v1853
      %v1883 = vmul.f32 %v1838, %v1853
      %v1884 = vmul.f32 %v1843, %v1853
      %v1885 = vmul.f32 %v1848, %v1853
      %v1886 = vadd.f32 %v1625, %v1854
      %v1887 = vadd.f32 %v1626, %v1855
      %v1888 = vadd.f32 %v1627, %v1856
      %v1889 = vadd.f32 %v1628, %v1857
      %v1890 = vadd.f32 %v1629, %v1858
      %v1891 = vadd.f32 %v1630, %v1859
      %v1892 = vadd.f32 %v1631, %v1860
      %v1893 = vadd.f32 %v1632, %v1861
      %v1894 = vadd.f32 %v1633, %v1862
      %v1895 = vadd.f32 %v1634, %v1863
      %v1896 = vadd.f32 %v1635, %v1864
      %v1897 = vadd.f32 %v1636, %v1865
      %v1898 = vadd.f32 %v1637, %v1866
      %v1899 = vadd.f32 %v1638, %v1867
      %v1900 = vadd.f32 %v1639, %v1868
      %v1901 = vadd.f32 %v1640, %v1869
      %v1902 = vadd.f32 %v1641, %v1870
      %v1903 = vadd.f32 %v1642, %v1871
      %v1904 = vadd.f32 %v1643, %v1872
      %v1905 = vadd.f32 %v1644, %v1873
      %v1906 = vadd.f32 %v1645, %v1874
      %v1907 = vadd.f32 %v1646, %v1875
      %v1908 = vadd.f32 %v1647, %v1876
      %v1909 = vadd.f32 %v1648, %v1877
      %v1910 = vadd.f32 %v1649, %v1878
      %v1911 = vadd.f32 %v1650, %v1879
      %v1912 = vadd.f32 %v1651, %v1880
      %v1913 = vadd.f32 %v1652, %v1881
      %v1914 = vadd.f32 %v1653, %v1882
      %v1915 = vadd.f32 %v1654, %v1883
      %v1916 = vadd.f32 %v1655, %v1884
      %v1917 = vadd.f32 %v1656, %v1885
      %v1918 = vld [vmem:[%s1395 + $0x2] sm:$0xff]
      %v1919 = vld [vmem:[%s1395 + $0xa] sm:$0xff]
      %v1920 = vld [vmem:[%s1395 + $0x1a] sm:$0xff]
      %v1921 = vld [vmem:[%s1395 + $0x22] sm:$0xff]
      %v1922 = vld [vmem:[%s1395 + $0x32] sm:$0xff]
      %v1923 = vld [vmem:[%s1395 + $0x3a] sm:$0xff]
      %v1924 = vld [vmem:[%s1395 + $0x4a] sm:$0xff]
      %v1925 = vld [vmem:[%s1395 + $0x52] sm:$0xff]
      %v1926 = vld [vmem:[%s1395 + $0x62] sm:$0xff]
      %v1927 = vld [vmem:[%s1395 + $0x6a] sm:$0xff]
      %v1928 = vld [vmem:[%s1395 + $0x7a] sm:$0xff]
      %v1929 = vld [vmem:[%s1395 + $0x82] sm:$0xff]
      %v1930 = vld [vmem:[%s1395 + $0x92] sm:$0xff]
      %v1931 = vld [vmem:[%s1395 + $0x9a] sm:$0xff]
      %v1932 = vld [vmem:[%s1395 + $0xaa] sm:$0xff]
      %v1933 = vld [vmem:[%s1395 + $0xb2] sm:$0xff]
      %v1934 = vld [vmem:[%s1395 + $0xc2] sm:$0xff]
      %v1935 = vld [vmem:[%s1395 + $0xca] sm:$0xff]
      %v1936 = vld [vmem:[%s1395 + $0xda] sm:$0xff]
      %v1937 = vld [vmem:[%s1395 + $0xe2] sm:$0xff]
      %v1938 = vld [vmem:[%s1395 + $0xf2] sm:$0xff]
      %v1939 = vld [vmem:[%s1395 + $0xfa] sm:$0xff]
      %v1940 = vld [vmem:[%s1395 + $0x10a] sm:$0xff]
      %v1941 = vld [vmem:[%s1395 + $0x112] sm:$0xff]
      %v1942 = vld [vmem:[%s1395 + $0x122] sm:$0xff]
      %v1943 = vld [vmem:[%s1395 + $0x12a] sm:$0xff]
      %v1944 = vld [vmem:[%s1395 + $0x13a] sm:$0xff]
      %v1945 = vld [vmem:[%s1395 + $0x142] sm:$0xff]
      %v1946 = vld [vmem:[%s1395 + $0x152] sm:$0xff]
      %v1947 = vld [vmem:[%s1395 + $0x15a] sm:$0xff]
      %v1948 = vld [vmem:[%s1395 + $0x16a] sm:$0xff]
      %v1949 = vld [vmem:[%s1395 + $0x172] sm:$0xff]
      %v1950 = vld [vmem:[%s2 + $0x5] sm:$0x1]
      %1952 = vset.pattern.permute.xlu0 0
      %1953 = vperm.xlu0 %1952, %v1918
      %v1954 = vpop.permute.xlu0 %1953
      %1957 = vset.pattern.permute.xlu0 0
      %1958 = vperm.xlu0 %1957, %v1919
      %v1959 = vpop.permute.xlu0 %1958
      %1962 = vset.pattern.permute.xlu0 0
      %1963 = vperm.xlu0 %1962, %v1920
      %v1964 = vpop.permute.xlu0 %1963
      %1967 = vset.pattern.permute.xlu0 0
      %1968 = vperm.xlu0 %1967, %v1921
      %v1969 = vpop.permute.xlu0 %1968
      %1972 = vset.pattern.permute.xlu0 0
      %1973 = vperm.xlu0 %1972, %v1922
      %v1974 = vpop.permute.xlu0 %1973
      %1977 = vset.pattern.permute.xlu0 0
      %1978 = vperm.xlu0 %1977, %v1923
      %v1979 = vpop.permute.xlu0 %1978
      %1982 = vset.pattern.permute.xlu0 0
      %1983 = vperm.xlu0 %1982, %v1924
      %v1984 = vpop.permute.xlu0 %1983
      %1987 = vset.pattern.permute.xlu0 0
      %1988 = vperm.xlu0 %1987, %v1925
      %v1989 = vpop.permute.xlu0 %1988
      %1992 = vset.pattern.permute.xlu0 0
      %1993 = vperm.xlu0 %1992, %v1926
      %v1994 = vpop.permute.xlu0 %1993
      %1997 = vset.pattern.permute.xlu0 0
      %1998 = vperm.xlu0 %1997, %v1927
      %v1999 = vpop.permute.xlu0 %1998
      %2002 = vset.pattern.permute.xlu0 0
      %2003 = vperm.xlu0 %2002, %v1928
      %v2004 = vpop.permute.xlu0 %2003
      %2007 = vset.pattern.permute.xlu0 0
      %2008 = vperm.xlu0 %2007, %v1929
      %v2009 = vpop.permute.xlu0 %2008
      %2012 = vset.pattern.permute.xlu0 0
      %2013 = vperm.xlu0 %2012, %v1930
      %v2014 = vpop.permute.xlu0 %2013
      %2017 = vset.pattern.permute.xlu0 0
      %2018 = vperm.xlu0 %2017, %v1931
      %v2019 = vpop.permute.xlu0 %2018
      %2022 = vset.pattern.permute.xlu0 0
      %2023 = vperm.xlu0 %2022, %v1932
      %v2024 = vpop.permute.xlu0 %2023
      %2027 = vset.pattern.permute.xlu0 0
      %2028 = vperm.xlu0 %2027, %v1933
      %v2029 = vpop.permute.xlu0 %2028
      %2032 = vset.pattern.permute.xlu0 0
      %2033 = vperm.xlu0 %2032, %v1934
      %v2034 = vpop.permute.xlu0 %2033
      %2037 = vset.pattern.permute.xlu0 0
      %2038 = vperm.xlu0 %2037, %v1935
      %v2039 = vpop.permute.xlu0 %2038
      %2042 = vset.pattern.permute.xlu0 0
      %2043 = vperm.xlu0 %2042, %v1936
      %v2044 = vpop.permute.xlu0 %2043
      %2047 = vset.pattern.permute.xlu0 0
      %2048 = vperm.xlu0 %2047, %v1937
      %v2049 = vpop.permute.xlu0 %2048
      %2052 = vset.pattern.permute.xlu0 0
      %2053 = vperm.xlu0 %2052, %v1938
      %v2054 = vpop.permute.xlu0 %2053
      %2057 = vset.pattern.permute.xlu0 0
      %2058 = vperm.xlu0 %2057, %v1939
      %v2059 = vpop.permute.xlu0 %2058
      %2062 = vset.pattern.permute.xlu0 0
      %2063 = vperm.xlu0 %2062, %v1940
      %v2064 = vpop.permute.xlu0 %2063
      %2067 = vset.pattern.permute.xlu0 0
      %2068 = vperm.xlu0 %2067, %v1941
      %v2069 = vpop.permute.xlu0 %2068
      %2072 = vset.pattern.permute.xlu0 0
      %2073 = vperm.xlu0 %2072, %v1942
      %v2074 = vpop.permute.xlu0 %2073
      %2077 = vset.pattern.permute.xlu0 0
      %2078 = vperm.xlu0 %2077, %v1943
      %v2079 = vpop.permute.xlu0 %2078
      %2082 = vset.pattern.permute.xlu0 0
      %2083 = vperm.xlu0 %2082, %v1944
      %v2084 = vpop.permute.xlu0 %2083
      %2087 = vset.pattern.permute.xlu0 0
      %2088 = vperm.xlu0 %2087, %v1945
      %v2089 = vpop.permute.xlu0 %2088
      %2092 = vset.pattern.permute.xlu0 0
      %2093 = vperm.xlu0 %2092, %v1946
      %v2094 = vpop.permute.xlu0 %2093
      %2097 = vset.pattern.permute.xlu0 0
      %2098 = vperm.xlu0 %2097, %v1947
      %v2099 = vpop.permute.xlu0 %2098
      %2102 = vset.pattern.permute.xlu0 0
      %2103 = vperm.xlu0 %2102, %v1948
      %v2104 = vpop.permute.xlu0 %2103
      %2107 = vset.pattern.permute.xlu0 0
      %2108 = vperm.xlu0 %2107, %v1949
      %v2109 = vpop.permute.xlu0 %2108
      %v2111 = vlaneseq
      %v2112 = vshrl.u32 %v2111, 7
      %v2113 = vsub.s32 0, %v2112
      %v2114 = vrot.slane %v1950, %v2113
      %v2115 = vmul.f32 %v1954, %v2114
      %v2116 = vmul.f32 %v1959, %v2114
      %v2117 = vmul.f32 %v1964, %v2114
      %v2118 = vmul.f32 %v1969, %v2114
      %v2119 = vmul.f32 %v1974, %v2114
      %v2120 = vmul.f32 %v1979, %v2114
      %v2121 = vmul.f32 %v1984, %v2114
      %v2122 = vmul.f32 %v1989, %v2114
      %v2123 = vmul.f32 %v1994, %v2114
      %v2124 = vmul.f32 %v1999, %v2114
      %v2125 = vmul.f32 %v2004, %v2114
      %v2126 = vmul.f32 %v2009, %v2114
      %v2127 = vmul.f32 %v2014, %v2114
      %v2128 = vmul.f32 %v2019, %v2114
      %v2129 = vmul.f32 %v2024, %v2114
      %v2130 = vmul.f32 %v2029, %v2114
      %v2131 = vmul.f32 %v2034, %v2114
      %v2132 = vmul.f32 %v2039, %v2114
      %v2133 = vmul.f32 %v2044, %v2114
      %v2134 = vmul.f32 %v2049, %v2114
      %v2135 = vmul.f32 %v2054, %v2114
      %v2136 = vmul.f32 %v2059, %v2114
      %v2137 = vmul.f32 %v2064, %v2114
      %v2138 = vmul.f32 %v2069, %v2114
      %v2139 = vmul.f32 %v2074, %v2114
      %v2140 = vmul.f32 %v2079, %v2114
      %v2141 = vmul.f32 %v2084, %v2114
      %v2142 = vmul.f32 %v2089, %v2114
      %v2143 = vmul.f32 %v2094, %v2114
      %v2144 = vmul.f32 %v2099, %v2114
      %v2145 = vmul.f32 %v2104, %v2114
      %v2146 = vmul.f32 %v2109, %v2114
      %v2147 = vadd.f32 %v1886, %v2115
      %v2148 = vadd.f32 %v1887, %v2116
      %v2149 = vadd.f32 %v1888, %v2117
      %v2150 = vadd.f32 %v1889, %v2118
      %v2151 = vadd.f32 %v1890, %v2119
      %v2152 = vadd.f32 %v1891, %v2120
      %v2153 = vadd.f32 %v1892, %v2121
      %v2154 = vadd.f32 %v1893, %v2122
      %v2155 = vadd.f32 %v1894, %v2123
      %v2156 = vadd.f32 %v1895, %v2124
      %v2157 = vadd.f32 %v1896, %v2125
      %v2158 = vadd.f32 %v1897, %v2126
      %v2159 = vadd.f32 %v1898, %v2127
      %v2160 = vadd.f32 %v1899, %v2128
      %v2161 = vadd.f32 %v1900, %v2129
      %v2162 = vadd.f32 %v1901, %v2130
      %v2163 = vadd.f32 %v1902, %v2131
      %v2164 = vadd.f32 %v1903, %v2132
      %v2165 = vadd.f32 %v1904, %v2133
      %v2166 = vadd.f32 %v1905, %v2134
      %v2167 = vadd.f32 %v1906, %v2135
      %v2168 = vadd.f32 %v1907, %v2136
      %v2169 = vadd.f32 %v1908, %v2137
      %v2170 = vadd.f32 %v1909, %v2138
      %v2171 = vadd.f32 %v1910, %v2139
      %v2172 = vadd.f32 %v1911, %v2140
      %v2173 = vadd.f32 %v1912, %v2141
      %v2174 = vadd.f32 %v1913, %v2142
      %v2175 = vadd.f32 %v1914, %v2143
      %v2176 = vadd.f32 %v1915, %v2144
      %v2177 = vadd.f32 %v1916, %v2145
      %v2178 = vadd.f32 %v1917, %v2146
      %s2179 = scalar_lea.vmem %s565, 48
      %v2180 = vld [vmem:[%s2179] sm:$0xff]
      %v2181 = vld [vmem:[%s2179 + $0x8] sm:$0xff]
      %v2182 = vld [vmem:[%s2179 + $0x18] sm:$0xff]
      %v2183 = vld [vmem:[%s2179 + $0x20] sm:$0xff]
      %v2184 = vld [vmem:[%s2179 + $0x30] sm:$0xff]
      %v2185 = vld [vmem:[%s2179 + $0x38] sm:$0xff]
      %v2186 = vld [vmem:[%s2179 + $0x48] sm:$0xff]
      %v2187 = vld [vmem:[%s2179 + $0x50] sm:$0xff]
      %v2188 = vld [vmem:[%s2179 + $0x60] sm:$0xff]
      %v2189 = vld [vmem:[%s2179 + $0x68] sm:$0xff]
      %v2190 = vld [vmem:[%s2179 + $0x78] sm:$0xff]
      %v2191 = vld [vmem:[%s2179 + $0x80] sm:$0xff]
      %v2192 = vld [vmem:[%s2179 + $0x90] sm:$0xff]
      %v2193 = vld [vmem:[%s2179 + $0x98] sm:$0xff]
      %v2194 = vld [vmem:[%s2179 + $0xa8] sm:$0xff]
      %v2195 = vld [vmem:[%s2179 + $0xb0] sm:$0xff]
      %v2196 = vld [vmem:[%s2179 + $0xc0] sm:$0xff]
      %v2197 = vld [vmem:[%s2179 + $0xc8] sm:$0xff]
      %v2198 = vld [vmem:[%s2179 + $0xd8] sm:$0xff]
      %v2199 = vld [vmem:[%s2179 + $0xe0] sm:$0xff]
      %v2200 = vld [vmem:[%s2179 + $0xf0] sm:$0xff]
      %v2201 = vld [vmem:[%s2179 + $0xf8] sm:$0xff]
      %v2202 = vld [vmem:[%s2179 + $0x108] sm:$0xff]
      %v2203 = vld [vmem:[%s2179 + $0x110] sm:$0xff]
      %v2204 = vld [vmem:[%s2179 + $0x120] sm:$0xff]
      %v2205 = vld [vmem:[%s2179 + $0x128] sm:$0xff]
      %v2206 = vld [vmem:[%s2179 + $0x138] sm:$0xff]
      %v2207 = vld [vmem:[%s2179 + $0x140] sm:$0xff]
      %v2208 = vld [vmem:[%s2179 + $0x150] sm:$0xff]
      %v2209 = vld [vmem:[%s2179 + $0x158] sm:$0xff]
      %v2210 = vld [vmem:[%s2179 + $0x168] sm:$0xff]
      %v2211 = vld [vmem:[%s2179 + $0x170] sm:$0xff]
      %v2212 = vld [vmem:[%s2 + $0x6] sm:$0x1]
      %2214 = vset.pattern.permute.xlu0 0
      %2215 = vperm.xlu0 %2214, %v2180
      %v2216 = vpop.permute.xlu0 %2215
      %2219 = vset.pattern.permute.xlu0 0
      %2220 = vperm.xlu0 %2219, %v2181
      %v2221 = vpop.permute.xlu0 %2220
      %2224 = vset.pattern.permute.xlu0 0
      %2225 = vperm.xlu0 %2224, %v2182
      %v2226 = vpop.permute.xlu0 %2225
      %2229 = vset.pattern.permute.xlu0 0
      %2230 = vperm.xlu0 %2229, %v2183
      %v2231 = vpop.permute.xlu0 %2230
      %2234 = vset.pattern.permute.xlu0 0
      %2235 = vperm.xlu0 %2234, %v2184
      %v2236 = vpop.permute.xlu0 %2235
      %2239 = vset.pattern.permute.xlu0 0
      %2240 = vperm.xlu0 %2239, %v2185
      %v2241 = vpop.permute.xlu0 %2240
      %2244 = vset.pattern.permute.xlu0 0
      %2245 = vperm.xlu0 %2244, %v2186
      %v2246 = vpop.permute.xlu0 %2245
      %2249 = vset.pattern.permute.xlu0 0
      %2250 = vperm.xlu0 %2249, %v2187
      %v2251 = vpop.permute.xlu0 %2250
      %2254 = vset.pattern.permute.xlu0 0
      %2255 = vperm.xlu0 %2254, %v2188
      %v2256 = vpop.permute.xlu0 %2255
      %2259 = vset.pattern.permute.xlu0 0
      %2260 = vperm.xlu0 %2259, %v2189
      %v2261 = vpop.permute.xlu0 %2260
      %2264 = vset.pattern.permute.xlu0 0
      %2265 = vperm.xlu0 %2264, %v2190
      %v2266 = vpop.permute.xlu0 %2265
      %2269 = vset.pattern.permute.xlu0 0
      %2270 = vperm.xlu0 %2269, %v2191
      %v2271 = vpop.permute.xlu0 %2270
      %2274 = vset.pattern.permute.xlu0 0
      %2275 = vperm.xlu0 %2274, %v2192
      %v2276 = vpop.permute.xlu0 %2275
      %2279 = vset.pattern.permute.xlu0 0
      %2280 = vperm.xlu0 %2279, %v2193
      %v2281 = vpop.permute.xlu0 %2280
      %2284 = vset.pattern.permute.xlu0 0
      %2285 = vperm.xlu0 %2284, %v2194
      %v2286 = vpop.permute.xlu0 %2285
      %2289 = vset.pattern.permute.xlu0 0
      %2290 = vperm.xlu0 %2289, %v2195
      %v2291 = vpop.permute.xlu0 %2290
      %2294 = vset.pattern.permute.xlu0 0
      %2295 = vperm.xlu0 %2294, %v2196
      %v2296 = vpop.permute.xlu0 %2295
      %2299 = vset.pattern.permute.xlu0 0
      %2300 = vperm.xlu0 %2299, %v2197
      %v2301 = vpop.permute.xlu0 %2300
      %2304 = vset.pattern.permute.xlu0 0
      %2305 = vperm.xlu0 %2304, %v2198
      %v2306 = vpop.permute.xlu0 %2305
      %2309 = vset.pattern.permute.xlu0 0
      %2310 = vperm.xlu0 %2309, %v2199
      %v2311 = vpop.permute.xlu0 %2310
      %2314 = vset.pattern.permute.xlu0 0
      %2315 = vperm.xlu0 %2314, %v2200
      %v2316 = vpop.permute.xlu0 %2315
      %2319 = vset.pattern.permute.xlu0 0
      %2320 = vperm.xlu0 %2319, %v2201
      %v2321 = vpop.permute.xlu0 %2320
      %2324 = vset.pattern.permute.xlu0 0
      %2325 = vperm.xlu0 %2324, %v2202
      %v2326 = vpop.permute.xlu0 %2325
      %2329 = vset.pattern.permute.xlu0 0
      %2330 = vperm.xlu0 %2329, %v2203
      %v2331 = vpop.permute.xlu0 %2330
      %2334 = vset.pattern.permute.xlu0 0
      %2335 = vperm.xlu0 %2334, %v2204
      %v2336 = vpop.permute.xlu0 %2335
      %2339 = vset.pattern.permute.xlu0 0
      %2340 = vperm.xlu0 %2339, %v2205
      %v2341 = vpop.permute.xlu0 %2340
      %2344 = vset.pattern.permute.xlu0 0
      %2345 = vperm.xlu0 %2344, %v2206
      %v2346 = vpop.permute.xlu0 %2345
      %2349 = vset.pattern.permute.xlu0 0
      %2350 = vperm.xlu0 %2349, %v2207
      %v2351 = vpop.permute.xlu0 %2350
      %2354 = vset.pattern.permute.xlu0 0
      %2355 = vperm.xlu0 %2354, %v2208
      %v2356 = vpop.permute.xlu0 %2355
      %2359 = vset.pattern.permute.xlu0 0
      %2360 = vperm.xlu0 %2359, %v2209
      %v2361 = vpop.permute.xlu0 %2360
      %2364 = vset.pattern.permute.xlu0 0
      %2365 = vperm.xlu0 %2364, %v2210
      %v2366 = vpop.permute.xlu0 %2365
      %2369 = vset.pattern.permute.xlu0 0
      %2370 = vperm.xlu0 %2369, %v2211
      %v2371 = vpop.permute.xlu0 %2370
      %v2373 = vlaneseq
      %v2374 = vshrl.u32 %v2373, 7
      %v2375 = vsub.s32 0, %v2374
      %v2376 = vrot.slane %v2212, %v2375
      %v2377 = vmul.f32 %v2216, %v2376
      %v2378 = vmul.f32 %v2221, %v2376
      %v2379 = vmul.f32 %v2226, %v2376
      %v2380 = vmul.f32 %v2231, %v2376
      %v2381 = vmul.f32 %v2236, %v2376
      %v2382 = vmul.f32 %v2241, %v2376
      %v2383 = vmul.f32 %v2246, %v2376
      %v2384 = vmul.f32 %v2251, %v2376
      %v2385 = vmul.f32 %v2256, %v2376
      %v2386 = vmul.f32 %v2261, %v2376
      %v2387 = vmul.f32 %v2266, %v2376
      %v2388 = vmul.f32 %v2271, %v2376
      %v2389 = vmul.f32 %v2276, %v2376
      %v2390 = vmul.f32 %v2281, %v2376
      %v2391 = vmul.f32 %v2286, %v2376
      %v2392 = vmul.f32 %v2291, %v2376
      %v2393 = vmul.f32 %v2296, %v2376
      %v2394 = vmul.f32 %v2301, %v2376
      %v2395 = vmul.f32 %v2306, %v2376
      %v2396 = vmul.f32 %v2311, %v2376
      %v2397 = vmul.f32 %v2316, %v2376
      %v2398 = vmul.f32 %v2321, %v2376
      %v2399 = vmul.f32 %v2326, %v2376
      %v2400 = vmul.f32 %v2331, %v2376
      %v2401 = vmul.f32 %v2336, %v2376
      %v2402 = vmul.f32 %v2341, %v2376
      %v2403 = vmul.f32 %v2346, %v2376
      %v2404 = vmul.f32 %v2351, %v2376
      %v2405 = vmul.f32 %v2356, %v2376
      %v2406 = vmul.f32 %v2361, %v2376
      %v2407 = vmul.f32 %v2366, %v2376
      %v2408 = vmul.f32 %v2371, %v2376
      %v2409 = vadd.f32 %v2147, %v2377
      %v2410 = vadd.f32 %v2148, %v2378
      %v2411 = vadd.f32 %v2149, %v2379
      %v2412 = vadd.f32 %v2150, %v2380
      %v2413 = vadd.f32 %v2151, %v2381
      %v2414 = vadd.f32 %v2152, %v2382
      %v2415 = vadd.f32 %v2153, %v2383
      %v2416 = vadd.f32 %v2154, %v2384
      %v2417 = vadd.f32 %v2155, %v2385
      %v2418 = vadd.f32 %v2156, %v2386
      %v2419 = vadd.f32 %v2157, %v2387
      %v2420 = vadd.f32 %v2158, %v2388
      %v2421 = vadd.f32 %v2159, %v2389
      %v2422 = vadd.f32 %v2160, %v2390
      %v2423 = vadd.f32 %v2161, %v2391
      %v2424 = vadd.f32 %v2162, %v2392
      %v2425 = vadd.f32 %v2163, %v2393
      %v2426 = vadd.f32 %v2164, %v2394
      %v2427 = vadd.f32 %v2165, %v2395
      %v2428 = vadd.f32 %v2166, %v2396
      %v2429 = vadd.f32 %v2167, %v2397
      %v2430 = vadd.f32 %v2168, %v2398
      %v2431 = vadd.f32 %v2169, %v2399
      %v2432 = vadd.f32 %v2170, %v2400
      %v2433 = vadd.f32 %v2171, %v2401
      %v2434 = vadd.f32 %v2172, %v2402
      %v2435 = vadd.f32 %v2173, %v2403
      %v2436 = vadd.f32 %v2174, %v2404
      %v2437 = vadd.f32 %v2175, %v2405
      %v2438 = vadd.f32 %v2176, %v2406
      %v2439 = vadd.f32 %v2177, %v2407
      %v2440 = vadd.f32 %v2178, %v2408
      %v2441 = vld [vmem:[%s2179 + $0x1] sm:$0xff]
      %v2442 = vld [vmem:[%s2179 + $0x9] sm:$0xff]
      %v2443 = vld [vmem:[%s2179 + $0x19] sm:$0xff]
      %v2444 = vld [vmem:[%s2179 + $0x21] sm:$0xff]
      %v2445 = vld [vmem:[%s2179 + $0x31] sm:$0xff]
      %v2446 = vld [vmem:[%s2179 + $0x39] sm:$0xff]
      %v2447 = vld [vmem:[%s2179 + $0x49] sm:$0xff]
      %v2448 = vld [vmem:[%s2179 + $0x51] sm:$0xff]
      %v2449 = vld [vmem:[%s2179 + $0x61] sm:$0xff]
      %v2450 = vld [vmem:[%s2179 + $0x69] sm:$0xff]
      %v2451 = vld [vmem:[%s2179 + $0x79] sm:$0xff]
      %v2452 = vld [vmem:[%s2179 + $0x81] sm:$0xff]
      %v2453 = vld [vmem:[%s2179 + $0x91] sm:$0xff]
      %v2454 = vld [vmem:[%s2179 + $0x99] sm:$0xff]
      %v2455 = vld [vmem:[%s2179 + $0xa9] sm:$0xff]
      %v2456 = vld [vmem:[%s2179 + $0xb1] sm:$0xff]
      %v2457 = vld [vmem:[%s2179 + $0xc1] sm:$0xff]
      %v2458 = vld [vmem:[%s2179 + $0xc9] sm:$0xff]
      %v2459 = vld [vmem:[%s2179 + $0xd9] sm:$0xff]
      %v2460 = vld [vmem:[%s2179 + $0xe1] sm:$0xff]
      %v2461 = vld [vmem:[%s2179 + $0xf1] sm:$0xff]
      %v2462 = vld [vmem:[%s2179 + $0xf9] sm:$0xff]
      %v2463 = vld [vmem:[%s2179 + $0x109] sm:$0xff]
      %v2464 = vld [vmem:[%s2179 + $0x111] sm:$0xff]
      %v2465 = vld [vmem:[%s2179 + $0x121] sm:$0xff]
      %v2466 = vld [vmem:[%s2179 + $0x129] sm:$0xff]
      %v2467 = vld [vmem:[%s2179 + $0x139] sm:$0xff]
      %v2468 = vld [vmem:[%s2179 + $0x141] sm:$0xff]
      %v2469 = vld [vmem:[%s2179 + $0x151] sm:$0xff]
      %v2470 = vld [vmem:[%s2179 + $0x159] sm:$0xff]
      %v2471 = vld [vmem:[%s2179 + $0x169] sm:$0xff]
      %v2472 = vld [vmem:[%s2179 + $0x171] sm:$0xff]
      %v2473 = vld [vmem:[%s2 + $0x7] sm:$0x1]
      %2475 = vset.pattern.permute.xlu0 0
      %2476 = vperm.xlu0 %2475, %v2441
      %v2477 = vpop.permute.xlu0 %2476
      %2480 = vset.pattern.permute.xlu0 0
      %2481 = vperm.xlu0 %2480, %v2442
      %v2482 = vpop.permute.xlu0 %2481
      %2485 = vset.pattern.permute.xlu0 0
      %2486 = vperm.xlu0 %2485, %v2443
      %v2487 = vpop.permute.xlu0 %2486
      %2490 = vset.pattern.permute.xlu0 0
      %2491 = vperm.xlu0 %2490, %v2444
      %v2492 = vpop.permute.xlu0 %2491
      %2495 = vset.pattern.permute.xlu0 0
      %2496 = vperm.xlu0 %2495, %v2445
      %v2497 = vpop.permute.xlu0 %2496
      %2500 = vset.pattern.permute.xlu0 0
      %2501 = vperm.xlu0 %2500, %v2446
      %v2502 = vpop.permute.xlu0 %2501
      %2505 = vset.pattern.permute.xlu0 0
      %2506 = vperm.xlu0 %2505, %v2447
      %v2507 = vpop.permute.xlu0 %2506
      %2510 = vset.pattern.permute.xlu0 0
      %2511 = vperm.xlu0 %2510, %v2448
      %v2512 = vpop.permute.xlu0 %2511
      %2515 = vset.pattern.permute.xlu0 0
      %2516 = vperm.xlu0 %2515, %v2449
      %v2517 = vpop.permute.xlu0 %2516
      %2520 = vset.pattern.permute.xlu0 0
      %2521 = vperm.xlu0 %2520, %v2450
      %v2522 = vpop.permute.xlu0 %2521
      %2525 = vset.pattern.permute.xlu0 0
      %2526 = vperm.xlu0 %2525, %v2451
      %v2527 = vpop.permute.xlu0 %2526
      %2530 = vset.pattern.permute.xlu0 0
      %2531 = vperm.xlu0 %2530, %v2452
      %v2532 = vpop.permute.xlu0 %2531
      %2535 = vset.pattern.permute.xlu0 0
      %2536 = vperm.xlu0 %2535, %v2453
      %v2537 = vpop.permute.xlu0 %2536
      %2540 = vset.pattern.permute.xlu0 0
      %2541 = vperm.xlu0 %2540, %v2454
      %v2542 = vpop.permute.xlu0 %2541
      %2545 = vset.pattern.permute.xlu0 0
      %2546 = vperm.xlu0 %2545, %v2455
      %v2547 = vpop.permute.xlu0 %2546
      %2550 = vset.pattern.permute.xlu0 0
      %2551 = vperm.xlu0 %2550, %v2456
      %v2552 = vpop.permute.xlu0 %2551
      %2555 = vset.pattern.permute.xlu0 0
      %2556 = vperm.xlu0 %2555, %v2457
      %v2557 = vpop.permute.xlu0 %2556
      %2560 = vset.pattern.permute.xlu0 0
      %2561 = vperm.xlu0 %2560, %v2458
      %v2562 = vpop.permute.xlu0 %2561
      %2565 = vset.pattern.permute.xlu0 0
      %2566 = vperm.xlu0 %2565, %v2459
      %v2567 = vpop.permute.xlu0 %2566
      %2570 = vset.pattern.permute.xlu0 0
      %2571 = vperm.xlu0 %2570, %v2460
      %v2572 = vpop.permute.xlu0 %2571
      %2575 = vset.pattern.permute.xlu0 0
      %2576 = vperm.xlu0 %2575, %v2461
      %v2577 = vpop.permute.xlu0 %2576
      %2580 = vset.pattern.permute.xlu0 0
      %2581 = vperm.xlu0 %2580, %v2462
      %v2582 = vpop.permute.xlu0 %2581
      %2585 = vset.pattern.permute.xlu0 0
      %2586 = vperm.xlu0 %2585, %v2463
      %v2587 = vpop.permute.xlu0 %2586
      %2590 = vset.pattern.permute.xlu0 0
      %2591 = vperm.xlu0 %2590, %v2464
      %v2592 = vpop.permute.xlu0 %2591
      %2595 = vset.pattern.permute.xlu0 0
      %2596 = vperm.xlu0 %2595, %v2465
      %v2597 = vpop.permute.xlu0 %2596
      %2600 = vset.pattern.permute.xlu0 0
      %2601 = vperm.xlu0 %2600, %v2466
      %v2602 = vpop.permute.xlu0 %2601
      %2605 = vset.pattern.permute.xlu0 0
      %2606 = vperm.xlu0 %2605, %v2467
      %v2607 = vpop.permute.xlu0 %2606
      %2610 = vset.pattern.permute.xlu0 0
      %2611 = vperm.xlu0 %2610, %v2468
      %v2612 = vpop.permute.xlu0 %2611
      %2615 = vset.pattern.permute.xlu0 0
      %2616 = vperm.xlu0 %2615, %v2469
      %v2617 = vpop.permute.xlu0 %2616
      %2620 = vset.pattern.permute.xlu0 0
      %2621 = vperm.xlu0 %2620, %v2470
      %v2622 = vpop.permute.xlu0 %2621
      %2625 = vset.pattern.permute.xlu0 0
      %2626 = vperm.xlu0 %2625, %v2471
      %v2627 = vpop.permute.xlu0 %2626
      %2630 = vset.pattern.permute.xlu0 0
      %2631 = vperm.xlu0 %2630, %v2472
      %v2632 = vpop.permute.xlu0 %2631
      %v2634 = vlaneseq
      %v2635 = vshrl.u32 %v2634, 7
      %v2636 = vsub.s32 0, %v2635
      %v2637 = vrot.slane %v2473, %v2636
      %v2638 = vmul.f32 %v2477, %v2637
      %v2639 = vmul.f32 %v2482, %v2637
      %v2640 = vmul.f32 %v2487, %v2637
      %v2641 = vmul.f32 %v2492, %v2637
      %v2642 = vmul.f32 %v2497, %v2637
      %v2643 = vmul.f32 %v2502, %v2637
      %v2644 = vmul.f32 %v2507, %v2637
      %v2645 = vmul.f32 %v2512, %v2637
      %v2646 = vmul.f32 %v2517, %v2637
      %v2647 = vmul.f32 %v2522, %v2637
      %v2648 = vmul.f32 %v2527, %v2637
      %v2649 = vmul.f32 %v2532, %v2637
      %v2650 = vmul.f32 %v2537, %v2637
      %v2651 = vmul.f32 %v2542, %v2637
      %v2652 = vmul.f32 %v2547, %v2637
      %v2653 = vmul.f32 %v2552, %v2637
      %v2654 = vmul.f32 %v2557, %v2637
      %v2655 = vmul.f32 %v2562, %v2637
      %v2656 = vmul.f32 %v2567, %v2637
      %v2657 = vmul.f32 %v2572, %v2637
      %v2658 = vmul.f32 %v2577, %v2637
      %v2659 = vmul.f32 %v2582, %v2637
      %v2660 = vmul.f32 %v2587, %v2637
      %v2661 = vmul.f32 %v2592, %v2637
      %v2662 = vmul.f32 %v2597, %v2637
      %v2663 = vmul.f32 %v2602, %v2637
      %v2664 = vmul.f32 %v2607, %v2637
      %v2665 = vmul.f32 %v2612, %v2637
      %v2666 = vmul.f32 %v2617, %v2637
      %v2667 = vmul.f32 %v2622, %v2637
      %v2668 = vmul.f32 %v2627, %v2637
      %v2669 = vmul.f32 %v2632, %v2637
      %v2670 = vadd.f32 %v2409, %v2638
      %v2671 = vadd.f32 %v2410, %v2639
      %v2672 = vadd.f32 %v2411, %v2640
      %v2673 = vadd.f32 %v2412, %v2641
      %v2674 = vadd.f32 %v2413, %v2642
      %v2675 = vadd.f32 %v2414, %v2643
      %v2676 = vadd.f32 %v2415, %v2644
      %v2677 = vadd.f32 %v2416, %v2645
      %v2678 = vadd.f32 %v2417, %v2646
      %v2679 = vadd.f32 %v2418, %v2647
      %v2680 = vadd.f32 %v2419, %v2648
      %v2681 = vadd.f32 %v2420, %v2649
      %v2682 = vadd.f32 %v2421, %v2650
      %v2683 = vadd.f32 %v2422, %v2651
      %v2684 = vadd.f32 %v2423, %v2652
      %v2685 = vadd.f32 %v2424, %v2653
      %v2686 = vadd.f32 %v2425, %v2654
      %v2687 = vadd.f32 %v2426, %v2655
      %v2688 = vadd.f32 %v2427, %v2656
      %v2689 = vadd.f32 %v2428, %v2657
      %v2690 = vadd.f32 %v2429, %v2658
      %v2691 = vadd.f32 %v2430, %v2659
      %v2692 = vadd.f32 %v2431, %v2660
      %v2693 = vadd.f32 %v2432, %v2661
      %v2694 = vadd.f32 %v2433, %v2662
      %v2695 = vadd.f32 %v2434, %v2663
      %v2696 = vadd.f32 %v2435, %v2664
      %v2697 = vadd.f32 %v2436, %v2665
      %v2698 = vadd.f32 %v2437, %v2666
      %v2699 = vadd.f32 %v2438, %v2667
      %v2700 = vadd.f32 %v2439, %v2668
      %v2701 = vadd.f32 %v2440, %v2669
      %v2702 = vld [vmem:[%s2179 + $0x2] sm:$0xff]
      %v2703 = vld [vmem:[%s2179 + $0xa] sm:$0xff]
      %v2704 = vld [vmem:[%s2179 + $0x1a] sm:$0xff]
      %v2705 = vld [vmem:[%s2179 + $0x22] sm:$0xff]
      %v2706 = vld [vmem:[%s2179 + $0x32] sm:$0xff]
      %v2707 = vld [vmem:[%s2179 + $0x3a] sm:$0xff]
      %v2708 = vld [vmem:[%s2179 + $0x4a] sm:$0xff]
      %v2709 = vld [vmem:[%s2179 + $0x52] sm:$0xff]
      %v2710 = vld [vmem:[%s2179 + $0x62] sm:$0xff]
      %v2711 = vld [vmem:[%s2179 + $0x6a] sm:$0xff]
      %v2712 = vld [vmem:[%s2179 + $0x7a] sm:$0xff]
      %v2713 = vld [vmem:[%s2179 + $0x82] sm:$0xff]
      %v2714 = vld [vmem:[%s2179 + $0x92] sm:$0xff]
      %v2715 = vld [vmem:[%s2179 + $0x9a] sm:$0xff]
      %v2716 = vld [vmem:[%s2179 + $0xaa] sm:$0xff]
      %v2717 = vld [vmem:[%s2179 + $0xb2] sm:$0xff]
      %v2718 = vld [vmem:[%s2179 + $0xc2] sm:$0xff]
      %v2719 = vld [vmem:[%s2179 + $0xca] sm:$0xff]
      %v2720 = vld [vmem:[%s2179 + $0xda] sm:$0xff]
      %v2721 = vld [vmem:[%s2179 + $0xe2] sm:$0xff]
      %v2722 = vld [vmem:[%s2179 + $0xf2] sm:$0xff]
      %v2723 = vld [vmem:[%s2179 + $0xfa] sm:$0xff]
      %v2724 = vld [vmem:[%s2179 + $0x10a] sm:$0xff]
      %v2725 = vld [vmem:[%s2179 + $0x112] sm:$0xff]
      %v2726 = vld [vmem:[%s2179 + $0x122] sm:$0xff]
      %v2727 = vld [vmem:[%s2179 + $0x12a] sm:$0xff]
      %v2728 = vld [vmem:[%s2179 + $0x13a] sm:$0xff]
      %v2729 = vld [vmem:[%s2179 + $0x142] sm:$0xff]
      %v2730 = vld [vmem:[%s2179 + $0x152] sm:$0xff]
      %v2731 = vld [vmem:[%s2179 + $0x15a] sm:$0xff]
      %v2732 = vld [vmem:[%s2179 + $0x16a] sm:$0xff]
      %v2733 = vld [vmem:[%s2179 + $0x172] sm:$0xff]
      %v2734 = vld [vmem:[%s2 + $0x8] sm:$0x1]
      %2736 = vset.pattern.permute.xlu0 0
      %2737 = vperm.xlu0 %2736, %v2702
      %v2738 = vpop.permute.xlu0 %2737
      %2741 = vset.pattern.permute.xlu0 0
      %2742 = vperm.xlu0 %2741, %v2703
      %v2743 = vpop.permute.xlu0 %2742
      %2746 = vset.pattern.permute.xlu0 0
      %2747 = vperm.xlu0 %2746, %v2704
      %v2748 = vpop.permute.xlu0 %2747
      %2751 = vset.pattern.permute.xlu0 0
      %2752 = vperm.xlu0 %2751, %v2705
      %v2753 = vpop.permute.xlu0 %2752
      %2756 = vset.pattern.permute.xlu0 0
      %2757 = vperm.xlu0 %2756, %v2706
      %v2758 = vpop.permute.xlu0 %2757
      %2761 = vset.pattern.permute.xlu0 0
      %2762 = vperm.xlu0 %2761, %v2707
      %v2763 = vpop.permute.xlu0 %2762
      %2766 = vset.pattern.permute.xlu0 0
      %2767 = vperm.xlu0 %2766, %v2708
      %v2768 = vpop.permute.xlu0 %2767
      %2771 = vset.pattern.permute.xlu0 0
      %2772 = vperm.xlu0 %2771, %v2709
      %v2773 = vpop.permute.xlu0 %2772
      %2776 = vset.pattern.permute.xlu0 0
      %2777 = vperm.xlu0 %2776, %v2710
      %v2778 = vpop.permute.xlu0 %2777
      %2781 = vset.pattern.permute.xlu0 0
      %2782 = vperm.xlu0 %2781, %v2711
      %v2783 = vpop.permute.xlu0 %2782
      %2786 = vset.pattern.permute.xlu0 0
      %2787 = vperm.xlu0 %2786, %v2712
      %v2788 = vpop.permute.xlu0 %2787
      %2791 = vset.pattern.permute.xlu0 0
      %2792 = vperm.xlu0 %2791, %v2713
      %v2793 = vpop.permute.xlu0 %2792
      %2796 = vset.pattern.permute.xlu0 0
      %2797 = vperm.xlu0 %2796, %v2714
      %v2798 = vpop.permute.xlu0 %2797
      %2801 = vset.pattern.permute.xlu0 0
      %2802 = vperm.xlu0 %2801, %v2715
      %v2803 = vpop.permute.xlu0 %2802
      %2806 = vset.pattern.permute.xlu0 0
      %2807 = vperm.xlu0 %2806, %v2716
      %v2808 = vpop.permute.xlu0 %2807
      %2811 = vset.pattern.permute.xlu0 0
      %2812 = vperm.xlu0 %2811, %v2717
      %v2813 = vpop.permute.xlu0 %2812
      %2816 = vset.pattern.permute.xlu0 0
      %2817 = vperm.xlu0 %2816, %v2718
      %v2818 = vpop.permute.xlu0 %2817
      %2821 = vset.pattern.permute.xlu0 0
      %2822 = vperm.xlu0 %2821, %v2719
      %v2823 = vpop.permute.xlu0 %2822
      %2826 = vset.pattern.permute.xlu0 0
      %2827 = vperm.xlu0 %2826, %v2720
      %v2828 = vpop.permute.xlu0 %2827
      %2831 = vset.pattern.permute.xlu0 0
      %2832 = vperm.xlu0 %2831, %v2721
      %v2833 = vpop.permute.xlu0 %2832
      %2836 = vset.pattern.permute.xlu0 0
      %2837 = vperm.xlu0 %2836, %v2722
      %v2838 = vpop.permute.xlu0 %2837
      %2841 = vset.pattern.permute.xlu0 0
      %2842 = vperm.xlu0 %2841, %v2723
      %v2843 = vpop.permute.xlu0 %2842
      %2846 = vset.pattern.permute.xlu0 0
      %2847 = vperm.xlu0 %2846, %v2724
      %v2848 = vpop.permute.xlu0 %2847
      %2851 = vset.pattern.permute.xlu0 0
      %2852 = vperm.xlu0 %2851, %v2725
      %v2853 = vpop.permute.xlu0 %2852
      %2856 = vset.pattern.permute.xlu0 0
      %2857 = vperm.xlu0 %2856, %v2726
      %v2858 = vpop.permute.xlu0 %2857
      %2861 = vset.pattern.permute.xlu0 0
      %2862 = vperm.xlu0 %2861, %v2727
      %v2863 = vpop.permute.xlu0 %2862
      %2866 = vset.pattern.permute.xlu0 0
      %2867 = vperm.xlu0 %2866, %v2728
      %v2868 = vpop.permute.xlu0 %2867
      %2871 = vset.pattern.permute.xlu0 0
      %2872 = vperm.xlu0 %2871, %v2729
      %v2873 = vpop.permute.xlu0 %2872
      %2876 = vset.pattern.permute.xlu0 0
      %2877 = vperm.xlu0 %2876, %v2730
      %v2878 = vpop.permute.xlu0 %2877
      %2881 = vset.pattern.permute.xlu0 0
      %2882 = vperm.xlu0 %2881, %v2731
      %v2883 = vpop.permute.xlu0 %2882
      %2886 = vset.pattern.permute.xlu0 0
      %2887 = vperm.xlu0 %2886, %v2732
      %v2888 = vpop.permute.xlu0 %2887
      %2891 = vset.pattern.permute.xlu0 0
      %2892 = vperm.xlu0 %2891, %v2733
      %v2893 = vpop.permute.xlu0 %2892
      %v2895 = vlaneseq
      %v2896 = vshrl.u32 %v2895, 7
      %v2897 = vsub.s32 0, %v2896
      %v2898 = vrot.slane %v2734, %v2897
      %v2899 = vmul.f32 %v2738, %v2898
      %v2900 = vmul.f32 %v2743, %v2898
      %v2901 = vmul.f32 %v2748, %v2898
      %v2902 = vmul.f32 %v2753, %v2898
      %v2903 = vmul.f32 %v2758, %v2898
      %v2904 = vmul.f32 %v2763, %v2898
      %v2905 = vmul.f32 %v2768, %v2898
      %v2906 = vmul.f32 %v2773, %v2898
      %v2907 = vmul.f32 %v2778, %v2898
      %v2908 = vmul.f32 %v2783, %v2898
      %v2909 = vmul.f32 %v2788, %v2898
      %v2910 = vmul.f32 %v2793, %v2898
      %v2911 = vmul.f32 %v2798, %v2898
      %v2912 = vmul.f32 %v2803, %v2898
      %v2913 = vmul.f32 %v2808, %v2898
      %v2914 = vmul.f32 %v2813, %v2898
      %v2915 = vmul.f32 %v2818, %v2898
      %v2916 = vmul.f32 %v2823, %v2898
      %v2917 = vmul.f32 %v2828, %v2898
      %v2918 = vmul.f32 %v2833, %v2898
      %v2919 = vmul.f32 %v2838, %v2898
      %v2920 = vmul.f32 %v2843, %v2898
      %v2921 = vmul.f32 %v2848, %v2898
      %v2922 = vmul.f32 %v2853, %v2898
      %v2923 = vmul.f32 %v2858, %v2898
      %v2924 = vmul.f32 %v2863, %v2898
      %v2925 = vmul.f32 %v2868, %v2898
      %v2926 = vmul.f32 %v2873, %v2898
      %v2927 = vmul.f32 %v2878, %v2898
      %v2928 = vmul.f32 %v2883, %v2898
      %v2929 = vmul.f32 %v2888, %v2898
      %v2930 = vmul.f32 %v2893, %v2898
      %v2931 = vadd.f32 %v2670, %v2899
      %v2932 = vadd.f32 %v2671, %v2900
      %v2933 = vadd.f32 %v2672, %v2901
      %v2934 = vadd.f32 %v2673, %v2902
      %v2935 = vadd.f32 %v2674, %v2903
      %v2936 = vadd.f32 %v2675, %v2904
      %v2937 = vadd.f32 %v2676, %v2905
      %v2938 = vadd.f32 %v2677, %v2906
      %v2939 = vadd.f32 %v2678, %v2907
      %v2940 = vadd.f32 %v2679, %v2908
      %v2941 = vadd.f32 %v2680, %v2909
      %v2942 = vadd.f32 %v2681, %v2910
      %v2943 = vadd.f32 %v2682, %v2911
      %v2944 = vadd.f32 %v2683, %v2912
      %v2945 = vadd.f32 %v2684, %v2913
      %v2946 = vadd.f32 %v2685, %v2914
      %v2947 = vadd.f32 %v2686, %v2915
      %v2948 = vadd.f32 %v2687, %v2916
      %v2949 = vadd.f32 %v2688, %v2917
      %v2950 = vadd.f32 %v2689, %v2918
      %v2951 = vadd.f32 %v2690, %v2919
      %v2952 = vadd.f32 %v2691, %v2920
      %v2953 = vadd.f32 %v2692, %v2921
      %v2954 = vadd.f32 %v2693, %v2922
      %v2955 = vadd.f32 %v2694, %v2923
      %v2956 = vadd.f32 %v2695, %v2924
      %v2957 = vadd.f32 %v2696, %v2925
      %v2958 = vadd.f32 %v2697, %v2926
      %v2959 = vadd.f32 %v2698, %v2927
      %v2960 = vadd.f32 %v2699, %v2928
      %v2961 = vadd.f32 %v2700, %v2929
      %v2962 = vadd.f32 %v2701, %v2930
      %v2963 = vld [vmem:[%s569] sm:$0x1]
      %v2964 = vld [vmem:[%s574] sm:$0x1]
      %vm2965 = vcmask 130048
      %v2966 = vsel %vm2965, %v2931, 0.0
      %v2967 = vsel %vm2965, %v2932, 0.0
      %v2968 = vadd.f32 %v2966, %v2967
      %v2969 = vsel %vm2965, %v2933, 0.0
      %v2970 = vadd.f32 %v2968, %v2969
      %v2971 = vsel %vm2965, %v2934, 0.0
      %v2972 = vadd.f32 %v2970, %v2971
      %v2973 = vsel %vm2965, %v2935, 0.0
      %v2974 = vadd.f32 %v2972, %v2973
      %v2975 = vsel %vm2965, %v2936, 0.0
      %v2976 = vadd.f32 %v2974, %v2975
      %v2977 = vsel %vm2965, %v2937, 0.0
      %v2978 = vadd.f32 %v2976, %v2977
      %v2979 = vsel %vm2965, %v2938, 0.0
      %v2980 = vadd.f32 %v2978, %v2979
      %v2981 = vsel %vm2965, %v2939, 0.0
      %v2982 = vadd.f32 %v2980, %v2981
      %v2983 = vsel %vm2965, %v2940, 0.0
      %v2984 = vadd.f32 %v2982, %v2983
      %v2985 = vsel %vm2965, %v2941, 0.0
      %v2986 = vadd.f32 %v2984, %v2985
      %v2987 = vsel %vm2965, %v2942, 0.0
      %v2988 = vadd.f32 %v2986, %v2987
      %v2989 = vsel %vm2965, %v2943, 0.0
      %v2990 = vadd.f32 %v2988, %v2989
      %v2991 = vsel %vm2965, %v2944, 0.0
      %v2992 = vadd.f32 %v2990, %v2991
      %v2993 = vsel %vm2965, %v2945, 0.0
      %v2994 = vadd.f32 %v2992, %v2993
      %v2995 = vsel %vm2965, %v2946, 0.0
      %v2996 = vadd.f32 %v2994, %v2995
      %v2997 = vsel %vm2965, %v2947, 0.0
      %v2998 = vadd.f32 %v2996, %v2997
      %v2999 = vsel %vm2965, %v2948, 0.0
      %v3000 = vadd.f32 %v2998, %v2999
      %v3001 = vsel %vm2965, %v2949, 0.0
      %v3002 = vadd.f32 %v3000, %v3001
      %v3003 = vsel %vm2965, %v2950, 0.0
      %v3004 = vadd.f32 %v3002, %v3003
      %v3005 = vsel %vm2965, %v2951, 0.0
      %v3006 = vadd.f32 %v3004, %v3005
      %v3007 = vsel %vm2965, %v2952, 0.0
      %v3008 = vadd.f32 %v3006, %v3007
      %v3009 = vsel %vm2965, %v2953, 0.0
      %v3010 = vadd.f32 %v3008, %v3009
      %v3011 = vsel %vm2965, %v2954, 0.0
      %v3012 = vadd.f32 %v3010, %v3011
      %v3013 = vsel %vm2965, %v2955, 0.0
      %v3014 = vadd.f32 %v3012, %v3013
      %v3015 = vsel %vm2965, %v2956, 0.0
      %v3016 = vadd.f32 %v3014, %v3015
      %v3017 = vsel %vm2965, %v2957, 0.0
      %v3018 = vadd.f32 %v3016, %v3017
      %v3019 = vsel %vm2965, %v2958, 0.0
      %v3020 = vadd.f32 %v3018, %v3019
      %v3021 = vsel %vm2965, %v2959, 0.0
      %v3022 = vadd.f32 %v3020, %v3021
      %v3023 = vsel %vm2965, %v2960, 0.0
      %v3024 = vadd.f32 %v3022, %v3023
      %v3025 = vsel %vm2965, %v2961, 0.0
      %v3026 = vadd.f32 %v3024, %v3025
      %v3027 = vsel %vm2965, %v2962, 0.0
      %v3028 = vadd.f32 %v3026, %v3027
      %v3029 = vrot.slane %v3028, 4
      %v3030 = vadd.f32 %v3028, %v3029
      %v3031 = vrot.slane %v3030, 2
      %v3032 = vadd.f32 %v3030, %v3031
      %v3033 = vrot.slane %v3032, 1
      %v3034 = vadd.f32 %v3032, %v3033
      %v3035 = vmul.f32 %v3034, 0.00390625
      %v3036 = vsub.f32 %v2931, %v3035
      %v3037 = vsub.f32 %v2932, %v3035
      %v3038 = vsub.f32 %v2933, %v3035
      %v3039 = vsub.f32 %v2934, %v3035
      %v3040 = vsub.f32 %v2935, %v3035
      %v3041 = vsub.f32 %v2936, %v3035
      %v3042 = vsub.f32 %v2937, %v3035
      %v3043 = vsub.f32 %v2938, %v3035
      %v3044 = vsub.f32 %v2939, %v3035
      %v3045 = vsub.f32 %v2940, %v3035
      %v3046 = vsub.f32 %v2941, %v3035
      %v3047 = vsub.f32 %v2942, %v3035
      %v3048 = vsub.f32 %v2943, %v3035
      %v3049 = vsub.f32 %v2944, %v3035
      %v3050 = vsub.f32 %v2945, %v3035
      %v3051 = vsub.f32 %v2946, %v3035
      %v3052 = vsub.f32 %v2947, %v3035
      %v3053 = vsub.f32 %v2948, %v3035
      %v3054 = vsub.f32 %v2949, %v3035
      %v3055 = vsub.f32 %v2950, %v3035
      %v3056 = vsub.f32 %v2951, %v3035
      %v3057 = vsub.f32 %v2952, %v3035
      %v3058 = vsub.f32 %v2953, %v3035
      %v3059 = vsub.f32 %v2954, %v3035
      %v3060 = vsub.f32 %v2955, %v3035
      %v3061 = vsub.f32 %v2956, %v3035
      %v3062 = vsub.f32 %v2957, %v3035
      %v3063 = vsub.f32 %v2958, %v3035
      %v3064 = vsub.f32 %v2959, %v3035
      %v3065 = vsub.f32 %v2960, %v3035
      %v3066 = vsub.f32 %v2961, %v3035
      %v3067 = vsub.f32 %v2962, %v3035
      %v3068 = vmul.f32 %v3036, %v3036
      %v3069 = vmul.f32 %v3037, %v3037
      %v3070 = vmul.f32 %v3038, %v3038
      %v3071 = vmul.f32 %v3039, %v3039
      %v3072 = vmul.f32 %v3040, %v3040
      %v3073 = vmul.f32 %v3041, %v3041
      %v3074 = vmul.f32 %v3042, %v3042
      %v3075 = vmul.f32 %v3043, %v3043
      %v3076 = vmul.f32 %v3044, %v3044
      %v3077 = vmul.f32 %v3045, %v3045
      %v3078 = vmul.f32 %v3046, %v3046
      %v3079 = vmul.f32 %v3047, %v3047
      %v3080 = vmul.f32 %v3048, %v3048
      %v3081 = vmul.f32 %v3049, %v3049
      %v3082 = vmul.f32 %v3050, %v3050
      %v3083 = vmul.f32 %v3051, %v3051
      %v3084 = vmul.f32 %v3052, %v3052
      %v3085 = vmul.f32 %v3053, %v3053
      %v3086 = vmul.f32 %v3054, %v3054
      %v3087 = vmul.f32 %v3055, %v3055
      %v3088 = vmul.f32 %v3056, %v3056
      %v3089 = vmul.f32 %v3057, %v3057
      %v3090 = vmul.f32 %v3058, %v3058
      %v3091 = vmul.f32 %v3059, %v3059
      %v3092 = vmul.f32 %v3060, %v3060
      %v3093 = vmul.f32 %v3061, %v3061
      %v3094 = vmul.f32 %v3062, %v3062
      %v3095 = vmul.f32 %v3063, %v3063
      %v3096 = vmul.f32 %v3064, %v3064
      %v3097 = vmul.f32 %v3065, %v3065
      %v3098 = vmul.f32 %v3066, %v3066
      %v3099 = vmul.f32 %v3067, %v3067
      %v3100 = vsel %vm2965, %v3068, 0.0
      %v3101 = vsel %vm2965, %v3069, 0.0
      %v3102 = vadd.f32 %v3100, %v3101
      %v3103 = vsel %vm2965, %v3070, 0.0
      %v3104 = vadd.f32 %v3102, %v3103
      %v3105 = vsel %vm2965, %v3071, 0.0
      %v3106 = vadd.f32 %v3104, %v3105
      %v3107 = vsel %vm2965, %v3072, 0.0
      %v3108 = vadd.f32 %v3106, %v3107
      %v3109 = vsel %vm2965, %v3073, 0.0
      %v3110 = vadd.f32 %v3108, %v3109
      %v3111 = vsel %vm2965, %v3074, 0.0
      %v3112 = vadd.f32 %v3110, %v3111
      %v3113 = vsel %vm2965, %v3075, 0.0
      %v3114 = vadd.f32 %v3112, %v3113
      %v3115 = vsel %vm2965, %v3076, 0.0
      %v3116 = vadd.f32 %v3114, %v3115
      %v3117 = vsel %vm2965, %v3077, 0.0
      %v3118 = vadd.f32 %v3116, %v3117
      %v3119 = vsel %vm2965, %v3078, 0.0
      %v3120 = vadd.f32 %v3118, %v3119
      %v3121 = vsel %vm2965, %v3079, 0.0
      %v3122 = vadd.f32 %v3120, %v3121
      %v3123 = vsel %vm2965, %v3080, 0.0
      %v3124 = vadd.f32 %v3122, %v3123
      %v3125 = vsel %vm2965, %v3081, 0.0
      %v3126 = vadd.f32 %v3124, %v3125
      %v3127 = vsel %vm2965, %v3082, 0.0
      %v3128 = vadd.f32 %v3126, %v3127
      %v3129 = vsel %vm2965, %v3083, 0.0
      %v3130 = vadd.f32 %v3128, %v3129
      %v3131 = vsel %vm2965, %v3084, 0.0
      %v3132 = vadd.f32 %v3130, %v3131
      %v3133 = vsel %vm2965, %v3085, 0.0
      %v3134 = vadd.f32 %v3132, %v3133
      %v3135 = vsel %vm2965, %v3086, 0.0
      %v3136 = vadd.f32 %v3134, %v3135
      %v3137 = vsel %vm2965, %v3087, 0.0
      %v3138 = vadd.f32 %v3136, %v3137
      %v3139 = vsel %vm2965, %v3088, 0.0
      %v3140 = vadd.f32 %v3138, %v3139
      %v3141 = vsel %vm2965, %v3089, 0.0
      %v3142 = vadd.f32 %v3140, %v3141
      %v3143 = vsel %vm2965, %v3090, 0.0
      %v3144 = vadd.f32 %v3142, %v3143
      %v3145 = vsel %vm2965, %v3091, 0.0
      %v3146 = vadd.f32 %v3144, %v3145
      %v3147 = vsel %vm2965, %v3092, 0.0
      %v3148 = vadd.f32 %v3146, %v3147
      %v3149 = vsel %vm2965, %v3093, 0.0
      %v3150 = vadd.f32 %v3148, %v3149
      %v3151 = vsel %vm2965, %v3094, 0.0
      %v3152 = vadd.f32 %v3150, %v3151
      %v3153 = vsel %vm2965, %v3095, 0.0
      %v3154 = vadd.f32 %v3152, %v3153
      %v3155 = vsel %vm2965, %v3096, 0.0
      %v3156 = vadd.f32 %v3154, %v3155
      %v3157 = vsel %vm2965, %v3097, 0.0
      %v3158 = vadd.f32 %v3156, %v3157
      %v3159 = vsel %vm2965, %v3098, 0.0
      %v3160 = vadd.f32 %v3158, %v3159
      %v3161 = vsel %vm2965, %v3099, 0.0
      %v3162 = vadd.f32 %v3160, %v3161
      %v3163 = vrot.slane %v3162, 4
      %v3164 = vadd.f32 %v3162, %v3163
      %v3165 = vrot.slane %v3164, 2
      %v3166 = vadd.f32 %v3164, %v3165
      %v3167 = vrot.slane %v3166, 1
      %v3168 = vadd.f32 %v3166, %v3167
      %v3169 = vmul.f32 %v3168, 0.00390625
      %v3170 = vadd.f32 %v3169, 1e-05
      %v3171 = vrsqrt.pop %v3170
      %v3172 = vmul.f32 %v3036, %v3171
      %v3173 = vmul.f32 %v3037, %v3171
      %v3174 = vmul.f32 %v3038, %v3171
      %v3175 = vmul.f32 %v3039, %v3171
      %v3176 = vmul.f32 %v3040, %v3171
      %v3177 = vmul.f32 %v3041, %v3171
      %v3178 = vmul.f32 %v3042, %v3171
      %v3179 = vmul.f32 %v3043, %v3171
      %v3180 = vmul.f32 %v3044, %v3171
      %v3181 = vmul.f32 %v3045, %v3171
      %v3182 = vmul.f32 %v3046, %v3171
      %v3183 = vmul.f32 %v3047, %v3171
      %v3184 = vmul.f32 %v3048, %v3171
      %v3185 = vmul.f32 %v3049, %v3171
      %v3186 = vmul.f32 %v3050, %v3171
      %v3187 = vmul.f32 %v3051, %v3171
      %v3188 = vmul.f32 %v3052, %v3171
      %v3189 = vmul.f32 %v3053, %v3171
      %v3190 = vmul.f32 %v3054, %v3171
      %v3191 = vmul.f32 %v3055, %v3171
      %v3192 = vmul.f32 %v3056, %v3171
      %v3193 = vmul.f32 %v3057, %v3171
      %v3194 = vmul.f32 %v3058, %v3171
      %v3195 = vmul.f32 %v3059, %v3171
      %v3196 = vmul.f32 %v3060, %v3171
      %v3197 = vmul.f32 %v3061, %v3171
      %v3198 = vmul.f32 %v3062, %v3171
      %v3199 = vmul.f32 %v3063, %v3171
      %v3200 = vmul.f32 %v3064, %v3171
      %v3201 = vmul.f32 %v3065, %v3171
      %v3202 = vmul.f32 %v3066, %v3171
      %v3203 = vmul.f32 %v3067, %v3171
      %v3205 = vlaneseq
      %v3206 = vshrl.u32 %v3205, 7
      %v3207 = vsub.s32 0, %v3206
      %v3208 = vrot.slane %v2963, %v3207
      %v3210 = vmul.f32 %v3172, %v3208
      %v3211 = vmul.f32 %v3173, %v3208
      %v3212 = vmul.f32 %v3174, %v3208
      %v3213 = vmul.f32 %v3175, %v3208
      %v3214 = vmul.f32 %v3176, %v3208
      %v3215 = vmul.f32 %v3177, %v3208
      %v3216 = vmul.f32 %v3178, %v3208
      %v3217 = vmul.f32 %v3179, %v3208
      %v3218 = vmul.f32 %v3180, %v3208
      %v3219 = vmul.f32 %v3181, %v3208
      %v3220 = vmul.f32 %v3182, %v3208
      %v3221 = vmul.f32 %v3183, %v3208
      %v3222 = vmul.f32 %v3184, %v3208
      %v3223 = vmul.f32 %v3185, %v3208
      %v3224 = vmul.f32 %v3186, %v3208
      %v3225 = vmul.f32 %v3187, %v3208
      %v3226 = vmul.f32 %v3188, %v3208
      %v3227 = vmul.f32 %v3189, %v3208
      %v3228 = vmul.f32 %v3190, %v3208
      %v3229 = vmul.f32 %v3191, %v3208
      %v3230 = vmul.f32 %v3192, %v3208
      %v3231 = vmul.f32 %v3193, %v3208
      %v3232 = vmul.f32 %v3194, %v3208
      %v3233 = vmul.f32 %v3195, %v3208
      %v3234 = vmul.f32 %v3196, %v3208
      %v3235 = vmul.f32 %v3197, %v3208
      %v3236 = vmul.f32 %v3198, %v3208
      %v3237 = vmul.f32 %v3199, %v3208
      %v3238 = vmul.f32 %v3200, %v3208
      %v3239 = vmul.f32 %v3201, %v3208
      %v3240 = vmul.f32 %v3202, %v3208
      %v3241 = vmul.f32 %v3203, %v3208
      %v3243 = vlaneseq
      %v3244 = vshrl.u32 %v3243, 7
      %v3245 = vsub.s32 0, %v3244
      %v3246 = vrot.slane %v2964, %v3245
      %v3248 = vadd.f32 %v3210, %v3246
      %v3249 = vadd.f32 %v3211, %v3246
      %v3250 = vadd.f32 %v3212, %v3246
      %v3251 = vadd.f32 %v3213, %v3246
      %v3252 = vadd.f32 %v3214, %v3246
      %v3253 = vadd.f32 %v3215, %v3246
      %v3254 = vadd.f32 %v3216, %v3246
      %v3255 = vadd.f32 %v3217, %v3246
      %v3256 = vadd.f32 %v3218, %v3246
      %v3257 = vadd.f32 %v3219, %v3246
      %v3258 = vadd.f32 %v3220, %v3246
      %v3259 = vadd.f32 %v3221, %v3246
      %v3260 = vadd.f32 %v3222, %v3246
      %v3261 = vadd.f32 %v3223, %v3246
      %v3262 = vadd.f32 %v3224, %v3246
      %v3263 = vadd.f32 %v3225, %v3246
      %v3264 = vadd.f32 %v3226, %v3246
      %v3265 = vadd.f32 %v3227, %v3246
      %v3266 = vadd.f32 %v3228, %v3246
      %v3267 = vadd.f32 %v3229, %v3246
      %v3268 = vadd.f32 %v3230, %v3246
      %v3269 = vadd.f32 %v3231, %v3246
      %v3270 = vadd.f32 %v3232, %v3246
      %v3271 = vadd.f32 %v3233, %v3246
      %v3272 = vadd.f32 %v3234, %v3246
      %v3273 = vadd.f32 %v3235, %v3246
      %v3274 = vadd.f32 %v3236, %v3246
      %v3275 = vadd.f32 %v3237, %v3246
      %v3276 = vadd.f32 %v3238, %v3246
      %v3277 = vadd.f32 %v3239, %v3246
      %v3278 = vadd.f32 %v3240, %v3246
      %v3279 = vadd.f32 %v3241, %v3246
      %vm3280 = vcmp.ge.f32.partialorder %v3248, 0.0
      %vm3281 = vcmp.ge.f32.partialorder %v3249, 0.0
      %vm3282 = vcmp.ge.f32.partialorder %v3250, 0.0
      %vm3283 = vcmp.ge.f32.partialorder %v3251, 0.0
      %vm3284 = vcmp.ge.f32.partialorder %v3252, 0.0
      %vm3285 = vcmp.ge.f32.partialorder %v3253, 0.0
      %vm3286 = vcmp.ge.f32.partialorder %v3254, 0.0
      %vm3287 = vcmp.ge.f32.partialorder %v3255, 0.0
      %vm3288 = vcmp.ge.f32.partialorder %v3256, 0.0
      %vm3289 = vcmp.ge.f32.partialorder %v3257, 0.0
      %vm3290 = vcmp.ge.f32.partialorder %v3258, 0.0
      %vm3291 = vcmp.ge.f32.partialorder %v3259, 0.0
      %vm3292 = vcmp.ge.f32.partialorder %v3260, 0.0
      %vm3293 = vcmp.ge.f32.partialorder %v3261, 0.0
      %vm3294 = vcmp.ge.f32.partialorder %v3262, 0.0
      %vm3295 = vcmp.ge.f32.partialorder %v3263, 0.0
      %vm3296 = vcmp.ge.f32.partialorder %v3264, 0.0
      %vm3297 = vcmp.ge.f32.partialorder %v3265, 0.0
      %vm3298 = vcmp.ge.f32.partialorder %v3266, 0.0
      %vm3299 = vcmp.ge.f32.partialorder %v3267, 0.0
      %vm3300 = vcmp.ge.f32.partialorder %v3268, 0.0
      %vm3301 = vcmp.ge.f32.partialorder %v3269, 0.0
      %vm3302 = vcmp.ge.f32.partialorder %v3270, 0.0
      %vm3303 = vcmp.ge.f32.partialorder %v3271, 0.0
      %vm3304 = vcmp.ge.f32.partialorder %v3272, 0.0
      %vm3305 = vcmp.ge.f32.partialorder %v3273, 0.0
      %vm3306 = vcmp.ge.f32.partialorder %v3274, 0.0
      %vm3307 = vcmp.ge.f32.partialorder %v3275, 0.0
      %vm3308 = vcmp.ge.f32.partialorder %v3276, 0.0
      %vm3309 = vcmp.ge.f32.partialorder %v3277, 0.0
      %vm3310 = vcmp.ge.f32.partialorder %v3278, 0.0
      %vm3311 = vcmp.ge.f32.partialorder %v3279, 0.0
      %v3312 = vmul.f32 %v3248, 0.01
      %v3313 = vmul.f32 %v3249, 0.01
      %v3314 = vmul.f32 %v3250, 0.01
      %v3315 = vmul.f32 %v3251, 0.01
      %v3316 = vmul.f32 %v3252, 0.01
      %v3317 = vmul.f32 %v3253, 0.01
      %v3318 = vmul.f32 %v3254, 0.01
      %v3319 = vmul.f32 %v3255, 0.01
      %v3320 = vmul.f32 %v3256, 0.01
      %v3321 = vmul.f32 %v3257, 0.01
      %v3322 = vmul.f32 %v3258, 0.01
      %v3323 = vmul.f32 %v3259, 0.01
      %v3324 = vmul.f32 %v3260, 0.01
      %v3325 = vmul.f32 %v3261, 0.01
      %v3326 = vmul.f32 %v3262, 0.01
      %v3327 = vmul.f32 %v3263, 0.01
      %v3328 = vmul.f32 %v3264, 0.01
      %v3329 = vmul.f32 %v3265, 0.01
      %v3330 = vmul.f32 %v3266, 0.01
      %v3331 = vmul.f32 %v3267, 0.01
      %v3332 = vmul.f32 %v3268, 0.01
      %v3333 = vmul.f32 %v3269, 0.01
      %v3334 = vmul.f32 %v3270, 0.01
      %v3335 = vmul.f32 %v3271, 0.01
      %v3336 = vmul.f32 %v3272, 0.01
      %v3337 = vmul.f32 %v3273, 0.01
      %v3338 = vmul.f32 %v3274, 0.01
      %v3339 = vmul.f32 %v3275, 0.01
      %v3340 = vmul.f32 %v3276, 0.01
      %v3341 = vmul.f32 %v3277, 0.01
      %v3342 = vmul.f32 %v3278, 0.01
      %v3343 = vmul.f32 %v3279, 0.01
      %v3344 = vsel %vm3280, %v3248, %v3312
      %v3345 = vsel %vm3281, %v3249, %v3313
      %v3346 = vsel %vm3282, %v3250, %v3314
      %v3347 = vsel %vm3283, %v3251, %v3315
      %v3348 = vsel %vm3284, %v3252, %v3316
      %v3349 = vsel %vm3285, %v3253, %v3317
      %v3350 = vsel %vm3286, %v3254, %v3318
      %v3351 = vsel %vm3287, %v3255, %v3319
      %v3352 = vsel %vm3288, %v3256, %v3320
      %v3353 = vsel %vm3289, %v3257, %v3321
      %v3354 = vsel %vm3290, %v3258, %v3322
      %v3355 = vsel %vm3291, %v3259, %v3323
      %v3356 = vsel %vm3292, %v3260, %v3324
      %v3357 = vsel %vm3293, %v3261, %v3325
      %v3358 = vsel %vm3294, %v3262, %v3326
      %v3359 = vsel %vm3295, %v3263, %v3327
      %v3360 = vsel %vm3296, %v3264, %v3328
      %v3361 = vsel %vm3297, %v3265, %v3329
      %v3362 = vsel %vm3298, %v3266, %v3330
      %v3363 = vsel %vm3299, %v3267, %v3331
      %v3364 = vsel %vm3300, %v3268, %v3332
      %v3365 = vsel %vm3301, %v3269, %v3333
      %v3366 = vsel %vm3302, %v3270, %v3334
      %v3367 = vsel %vm3303, %v3271, %v3335
      %v3368 = vsel %vm3304, %v3272, %v3336
      %v3369 = vsel %vm3305, %v3273, %v3337
      %v3370 = vsel %vm3306, %v3274, %v3338
      %v3371 = vsel %vm3307, %v3275, %v3339
      %v3372 = vsel %vm3308, %v3276, %v3340
      %v3373 = vsel %vm3309, %v3277, %v3341
      %v3374 = vsel %vm3310, %v3278, %v3342
      %v3375 = vsel %vm3311, %v3279, %v3343
      %3376 = vst.msk [vmem:[#allocation2] sm:$0xff] %vm2965, 0.0
      %3377 = vst.msk [vmem:[#allocation2 + $0x8] sm:$0xff] %vm2965, 0.0
      %vm3378 = vcmask 123904
      %3379 = vst.msk [vmem:[#allocation2 + $0x10] sm:$0x3] %vm3378, 0.0
      %s3380 = scalar_lea.vmem [#allocation2], 408
      %3381 = vst.msk [vmem:[%s3380] sm:$0xff] %vm2965, 0.0
      %3382 = vst.msk [vmem:[%s3380 + $0x8] sm:$0xff] %vm2965, 0.0
      %3383 = vst.msk [vmem:[%s3380 + $0x10] sm:$0x3] %vm3378, 0.0
      %vm3384 = vcmask 122880
      %3385 = vst.msk [vmem:[#allocation2] sm:$0x1] %vm3384, 0.0
      %3386 = vst.msk [vmem:[#allocation2 + $0x18] sm:$0x1] %vm3384, 0.0
      %3387 = vst.msk [vmem:[#allocation2 + $0x30] sm:$0x1] %vm3384, 0.0
      %3388 = vst.msk [vmem:[#allocation2 + $0x48] sm:$0x1] %vm3384, 0.0
      %3389 = vst.msk [vmem:[#allocation2 + $0x60] sm:$0x1] %vm3384, 0.0
      %3390 = vst.msk [vmem:[#allocation2 + $0x78] sm:$0x1] %vm3384, 0.0
      %3391 = vst.msk [vmem:[#allocation2 + $0x90] sm:$0x1] %vm3384, 0.0
      %3392 = vst.msk [vmem:[#allocation2 + $0xa8] sm:$0x1] %vm3384, 0.0
      %3393 = vst.msk [vmem:[#allocation2 + $0xc0] sm:$0x1] %vm3384, 0.0
      %3394 = vst.msk [vmem:[#allocation2 + $0xd8] sm:$0x1] %vm3384, 0.0
      %3395 = vst.msk [vmem:[#allocation2 + $0xf0] sm:$0x1] %vm3384, 0.0
      %3396 = vst.msk [vmem:[#allocation2 + $0x108] sm:$0x1] %vm3384, 0.0
      %3397 = vst.msk [vmem:[#allocation2 + $0x120] sm:$0x1] %vm3384, 0.0
      %3398 = vst.msk [vmem:[#allocation2 + $0x138] sm:$0x1] %vm3384, 0.0
      %3399 = vst.msk [vmem:[#allocation2 + $0x150] sm:$0x1] %vm3384, 0.0
      %3400 = vst.msk [vmem:[#allocation2 + $0x168] sm:$0x1] %vm3384, 0.0
      %3401 = vst.msk [vmem:[#allocation2 + $0x180] sm:$0x1] %vm3384, 0.0
      %3402 = vst.msk [vmem:[#allocation2 + $0x198] sm:$0x1] %vm3384, 0.0
      %3403 = vst.msk [vmem:[#allocation2 + $0x11] sm:$0x1] %vm3384, 0.0
      %3404 = vst.msk [vmem:[#allocation2 + $0x29] sm:$0x1] %vm3384, 0.0
      %3405 = vst.msk [vmem:[#allocation2 + $0x41] sm:$0x1] %vm3384, 0.0
      %3406 = vst.msk [vmem:[#allocation2 + $0x59] sm:$0x1] %vm3384, 0.0
      %3407 = vst.msk [vmem:[#allocation2 + $0x71] sm:$0x1] %vm3384, 0.0
      %3408 = vst.msk [vmem:[#allocation2 + $0x89] sm:$0x1] %vm3384, 0.0
      %3409 = vst.msk [vmem:[#allocation2 + $0xa1] sm:$0x1] %vm3384, 0.0
      %3410 = vst.msk [vmem:[#allocation2 + $0xb9] sm:$0x1] %vm3384, 0.0
      %3411 = vst.msk [vmem:[#allocation2 + $0xd1] sm:$0x1] %vm3384, 0.0
      %3412 = vst.msk [vmem:[#allocation2 + $0xe9] sm:$0x1] %vm3384, 0.0
      %3413 = vst.msk [vmem:[#allocation2 + $0x101] sm:$0x1] %vm3384, 0.0
      %3414 = vst.msk [vmem:[#allocation2 + $0x119] sm:$0x1] %vm3384, 0.0
      %3415 = vst.msk [vmem:[#allocation2 + $0x131] sm:$0x1] %vm3384, 0.0
      %3416 = vst.msk [vmem:[#allocation2 + $0x149] sm:$0x1] %vm3384, 0.0
      %3417 = vst.msk [vmem:[#allocation2 + $0x161] sm:$0x1] %vm3384, 0.0
      %3418 = vst.msk [vmem:[#allocation2 + $0x179] sm:$0x1] %vm3384, 0.0
      %3419 = vst.msk [vmem:[#allocation2 + $0x191] sm:$0x1] %vm3384, 0.0
      %3420 = vst.msk [vmem:[#allocation2 + $0x1a9] sm:$0x1] %vm3384, 0.0
      %s3421 = scalar_lea.vmem [#allocation2], 24
      %3422 = vst.msk [vmem:[%s3421 + $0x1] sm:$0xff] %vm2965, %v3344
      %3423 = vst.msk [vmem:[%s3421 + $0x9] sm:$0xff] %vm2965, %v3345
      %3424 = vst.msk [vmem:[%s3421 + $0x19] sm:$0xff] %vm2965, %v3346
      %3425 = vst.msk [vmem:[%s3421 + $0x21] sm:$0xff] %vm2965, %v3347
      %3426 = vst.msk [vmem:[%s3421 + $0x31] sm:$0xff] %vm2965, %v3348
      %3427 = vst.msk [vmem:[%s3421 + $0x39] sm:$0xff] %vm2965, %v3349
      %3428 = vst.msk [vmem:[%s3421 + $0x49] sm:$0xff] %vm2965, %v3350
      %3429 = vst.msk [vmem:[%s3421 + $0x51] sm:$0xff] %vm2965, %v3351
      %3430 = vst.msk [vmem:[%s3421 + $0x61] sm:$0xff] %vm2965, %v3352
      %3431 = vst.msk [vmem:[%s3421 + $0x69] sm:$0xff] %vm2965, %v3353
      %3432 = vst.msk [vmem:[%s3421 + $0x79] sm:$0xff] %vm2965, %v3354
      %3433 = vst.msk [vmem:[%s3421 + $0x81] sm:$0xff] %vm2965, %v3355
      %3434 = vst.msk [vmem:[%s3421 + $0x91] sm:$0xff] %vm2965, %v3356
      %3435 = vst.msk [vmem:[%s3421 + $0x99] sm:$0xff] %vm2965, %v3357
      %3436 = vst.msk [vmem:[%s3421 + $0xa9] sm:$0xff] %vm2965, %v3358
      %3437 = vst.msk [vmem:[%s3421 + $0xb1] sm:$0xff] %vm2965, %v3359
      %3438 = vst.msk [vmem:[%s3421 + $0xc1] sm:$0xff] %vm2965, %v3360
      %3439 = vst.msk [vmem:[%s3421 + $0xc9] sm:$0xff] %vm2965, %v3361
      %3440 = vst.msk [vmem:[%s3421 + $0xd9] sm:$0xff] %vm2965, %v3362
      %3441 = vst.msk [vmem:[%s3421 + $0xe1] sm:$0xff] %vm2965, %v3363
      %3442 = vst.msk [vmem:[%s3421 + $0xf1] sm:$0xff] %vm2965, %v3364
      %3443 = vst.msk [vmem:[%s3421 + $0xf9] sm:$0xff] %vm2965, %v3365
      %3444 = vst.msk [vmem:[%s3421 + $0x109] sm:$0xff] %vm2965, %v3366
      %3445 = vst.msk [vmem:[%s3421 + $0x111] sm:$0xff] %vm2965, %v3367
      %3446 = vst.msk [vmem:[%s3421 + $0x121] sm:$0xff] %vm2965, %v3368
      %3447 = vst.msk [vmem:[%s3421 + $0x129] sm:$0xff] %vm2965, %v3369
      %3448 = vst.msk [vmem:[%s3421 + $0x139] sm:$0xff] %vm2965, %v3370
      %3449 = vst.msk [vmem:[%s3421 + $0x141] sm:$0xff] %vm2965, %v3371
      %3450 = vst.msk [vmem:[%s3421 + $0x151] sm:$0xff] %vm2965, %v3372
      %3451 = vst.msk [vmem:[%s3421 + $0x159] sm:$0xff] %vm2965, %v3373
      %3452 = vst.msk [vmem:[%s3421 + $0x169] sm:$0xff] %vm2965, %v3374
      %3453 = vst.msk [vmem:[%s3421 + $0x171] sm:$0xff] %vm2965, %v3375
      %v3454 = vld [vmem:[#allocation2] sm:$0xff]
      %v3455 = vld [vmem:[#allocation2 + $0x8] sm:$0xff]
      %v3456 = vld [vmem:[#allocation2 + $0x18] sm:$0xff]
      %v3457 = vld [vmem:[#allocation2 + $0x20] sm:$0xff]
      %v3458 = vld [vmem:[#allocation2 + $0x30] sm:$0xff]
      %v3459 = vld [vmem:[#allocation2 + $0x38] sm:$0xff]
      %v3460 = vld [vmem:[#allocation2 + $0x48] sm:$0xff]
      %v3461 = vld [vmem:[#allocation2 + $0x50] sm:$0xff]
      %v3462 = vld [vmem:[#allocation2 + $0x60] sm:$0xff]
      %v3463 = vld [vmem:[#allocation2 + $0x68] sm:$0xff]
      %v3464 = vld [vmem:[#allocation2 + $0x78] sm:$0xff]
      %v3465 = vld [vmem:[#allocation2 + $0x80] sm:$0xff]
      %v3466 = vld [vmem:[#allocation2 + $0x90] sm:$0xff]
      %v3467 = vld [vmem:[#allocation2 + $0x98] sm:$0xff]
      %v3468 = vld [vmem:[#allocation2 + $0xa8] sm:$0xff]
      %v3469 = vld [vmem:[#allocation2 + $0xb0] sm:$0xff]
      %v3470 = vld [vmem:[#allocation2 + $0xc0] sm:$0xff]
      %v3471 = vld [vmem:[#allocation2 + $0xc8] sm:$0xff]
      %v3472 = vld [vmem:[#allocation2 + $0xd8] sm:$0xff]
      %v3473 = vld [vmem:[#allocation2 + $0xe0] sm:$0xff]
      %v3474 = vld [vmem:[#allocation2 + $0xf0] sm:$0xff]
      %v3475 = vld [vmem:[#allocation2 + $0xf8] sm:$0xff]
      %v3476 = vld [vmem:[#allocation2 + $0x108] sm:$0xff]
      %v3477 = vld [vmem:[#allocation2 + $0x110] sm:$0xff]
      %v3478 = vld [vmem:[#allocation2 + $0x120] sm:$0xff]
      %v3479 = vld [vmem:[#allocation2 + $0x128] sm:$0xff]
      %v3480 = vld [vmem:[#allocation2 + $0x138] sm:$0xff]
      %v3481 = vld [vmem:[#allocation2 + $0x140] sm:$0xff]
      %v3482 = vld [vmem:[#allocation2 + $0x150] sm:$0xff]
      %v3483 = vld [vmem:[#allocation2 + $0x158] sm:$0xff]
      %v3484 = vld [vmem:[#allocation2 + $0x168] sm:$0xff]
      %v3485 = vld [vmem:[#allocation2 + $0x170] sm:$0xff]
      %3486 = vst.msk [vmem:[#allocation3] sm:$0xff] %vm2965, %v3454
      %3487 = vst.msk [vmem:[#allocation3 + $0x10] sm:$0xff] %vm2965, %v3455
      %3488 = vst.msk [vmem:[#allocation3 + $0x20] sm:$0xff] %vm2965, %v3456
      %3489 = vst.msk [vmem:[#allocation3 + $0x30] sm:$0xff] %vm2965, %v3457
      %3490 = vst.msk [vmem:[#allocation3 + $0x40] sm:$0xff] %vm2965, %v3458
      %3491 = vst.msk [vmem:[#allocation3 + $0x50] sm:$0xff] %vm2965, %v3459
      %3492 = vst.msk [vmem:[#allocation3 + $0x60] sm:$0xff] %vm2965, %v3460
      %3493 = vst.msk [vmem:[#allocation3 + $0x70] sm:$0xff] %vm2965, %v3461
      %3494 = vst.msk [vmem:[#allocation3 + $0x80] sm:$0xff] %vm2965, %v3462
      %3495 = vst.msk [vmem:[#allocation3 + $0x90] sm:$0xff] %vm2965, %v3463
      %3496 = vst.msk [vmem:[#allocation3 + $0xa0] sm:$0xff] %vm2965, %v3464
      %3497 = vst.msk [vmem:[#allocation3 + $0xb0] sm:$0xff] %vm2965, %v3465
      %3498 = vst.msk [vmem:[#allocation3 + $0xc0] sm:$0xff] %vm2965, %v3466
      %3499 = vst.msk [vmem:[#allocation3 + $0xd0] sm:$0xff] %vm2965, %v3467
      %3500 = vst.msk [vmem:[#allocation3 + $0xe0] sm:$0xff] %vm2965, %v3468
      %3501 = vst.msk [vmem:[#allocation3 + $0xf0] sm:$0xff] %vm2965, %v3469
      %3502 = vst.msk [vmem:[#allocation3 + $0x100] sm:$0xff] %vm2965, %v3470
      %3503 = vst.msk [vmem:[#allocation3 + $0x110] sm:$0xff] %vm2965, %v3471
      %3504 = vst.msk [vmem:[#allocation3 + $0x120] sm:$0xff] %vm2965, %v3472
      %3505 = vst.msk [vmem:[#allocation3 + $0x130] sm:$0xff] %vm2965, %v3473
      %3506 = vst.msk [vmem:[#allocation3 + $0x140] sm:$0xff] %vm2965, %v3474
      %3507 = vst.msk [vmem:[#allocation3 + $0x150] sm:$0xff] %vm2965, %v3475
      %3508 = vst.msk [vmem:[#allocation3 + $0x160] sm:$0xff] %vm2965, %v3476
      %3509 = vst.msk [vmem:[#allocation3 + $0x170] sm:$0xff] %vm2965, %v3477
      %3510 = vst.msk [vmem:[#allocation3 + $0x180] sm:$0xff] %vm2965, %v3478
      %3511 = vst.msk [vmem:[#allocation3 + $0x190] sm:$0xff] %vm2965, %v3479
      %3512 = vst.msk [vmem:[#allocation3 + $0x1a0] sm:$0xff] %vm2965, %v3480
      %3513 = vst.msk [vmem:[#allocation3 + $0x1b0] sm:$0xff] %vm2965, %v3481
      %3514 = vst.msk [vmem:[#allocation3 + $0x1c0] sm:$0xff] %vm2965, %v3482
      %3515 = vst.msk [vmem:[#allocation3 + $0x1d0] sm:$0xff] %vm2965, %v3483
      %3516 = vst.msk [vmem:[#allocation3 + $0x1e0] sm:$0xff] %vm2965, %v3484
      %3517 = vst.msk [vmem:[#allocation3 + $0x1f0] sm:$0xff] %vm2965, %v3485
      %v3518 = vld [vmem:[#allocation2 + $0x1] sm:$0xff]
      %v3519 = vld [vmem:[#allocation2 + $0x9] sm:$0xff]
      %v3520 = vld [vmem:[#allocation2 + $0x19] sm:$0xff]
      %v3521 = vld [vmem:[#allocation2 + $0x21] sm:$0xff]
      %v3522 = vld [vmem:[#allocation2 + $0x31] sm:$0xff]
      %v3523 = vld [vmem:[#allocation2 + $0x39] sm:$0xff]
      %v3524 = vld [vmem:[#allocation2 + $0x49] sm:$0xff]
      %v3525 = vld [vmem:[#allocation2 + $0x51] sm:$0xff]
      %v3526 = vld [vmem:[#allocation2 + $0x61] sm:$0xff]
      %v3527 = vld [vmem:[#allocation2 + $0x69] sm:$0xff]
      %v3528 = vld [vmem:[#allocation2 + $0x79] sm:$0xff]
      %v3529 = vld [vmem:[#allocation2 + $0x81] sm:$0xff]
      %v3530 = vld [vmem:[#allocation2 + $0x91] sm:$0xff]
      %v3531 = vld [vmem:[#allocation2 + $0x99] sm:$0xff]
      %v3532 = vld [vmem:[#allocation2 + $0xa9] sm:$0xff]
      %v3533 = vld [vmem:[#allocation2 + $0xb1] sm:$0xff]
      %v3534 = vld [vmem:[#allocation2 + $0xc1] sm:$0xff]
      %v3535 = vld [vmem:[#allocation2 + $0xc9] sm:$0xff]
      %v3536 = vld [vmem:[#allocation2 + $0xd9] sm:$0xff]
      %v3537 = vld [vmem:[#allocation2 + $0xe1] sm:$0xff]
      %v3538 = vld [vmem:[#allocation2 + $0xf1] sm:$0xff]
      %v3539 = vld [vmem:[#allocation2 + $0xf9] sm:$0xff]
      %v3540 = vld [vmem:[#allocation2 + $0x109] sm:$0xff]
      %v3541 = vld [vmem:[#allocation2 + $0x111] sm:$0xff]
      %v3542 = vld [vmem:[#allocation2 + $0x121] sm:$0xff]
      %v3543 = vld [vmem:[#allocation2 + $0x129] sm:$0xff]
      %v3544 = vld [vmem:[#allocation2 + $0x139] sm:$0xff]
      %v3545 = vld [vmem:[#allocation2 + $0x141] sm:$0xff]
      %v3546 = vld [vmem:[#allocation2 + $0x151] sm:$0xff]
      %v3547 = vld [vmem:[#allocation2 + $0x159] sm:$0xff]
      %v3548 = vld [vmem:[#allocation2 + $0x169] sm:$0xff]
      %v3549 = vld [vmem:[#allocation2 + $0x171] sm:$0xff]
      %3582 = vrot.lane.b32.xlu0 %v3518, 16
      %v3583 = vpop.permute.xlu0 %3582
      %3584 = vrot.lane.b32.xlu0 %v3519, 16
      %v3585 = vpop.permute.xlu0 %3584
      %3586 = vrot.lane.b32.xlu0 %v3520, 16
      %v3587 = vpop.permute.xlu0 %3586
      %3588 = vrot.lane.b32.xlu0 %v3521, 16
      %v3589 = vpop.permute.xlu0 %3588
      %3590 = vrot.lane.b32.xlu0 %v3522, 16
      %v3591 = vpop.permute.xlu0 %3590
      %3592 = vrot.lane.b32.xlu0 %v3523, 16
      %v3593 = vpop.permute.xlu0 %3592
      %3594 = vrot.lane.b32.xlu0 %v3524, 16
      %v3595 = vpop.permute.xlu0 %3594
      %3596 = vrot.lane.b32.xlu0 %v3525, 16
      %v3597 = vpop.permute.xlu0 %3596
      %3598 = vrot.lane.b32.xlu0 %v3526, 16
      %v3599 = vpop.permute.xlu0 %3598
      %3600 = vrot.lane.b32.xlu0 %v3527, 16
      %v3601 = vpop.permute.xlu0 %3600
      %3602 = vrot.lane.b32.xlu0 %v3528, 16
      %v3603 = vpop.permute.xlu0 %3602
      %3604 = vrot.lane.b32.xlu0 %v3529, 16
      %v3605 = vpop.permute.xlu0 %3604
      %3606 = vrot.lane.b32.xlu0 %v3530, 16
      %v3607 = vpop.permute.xlu0 %3606
      %3608 = vrot.lane.b32.xlu0 %v3531, 16
      %v3609 = vpop.permute.xlu0 %3608
      %3610 = vrot.lane.b32.xlu0 %v3532, 16
      %v3611 = vpop.permute.xlu0 %3610
      %3612 = vrot.lane.b32.xlu0 %v3533, 16
      %v3613 = vpop.permute.xlu0 %3612
      %3614 = vrot.lane.b32.xlu0 %v3534, 16
      %v3615 = vpop.permute.xlu0 %3614
      %3616 = vrot.lane.b32.xlu0 %v3535, 16
      %v3617 = vpop.permute.xlu0 %3616
      %3618 = vrot.lane.b32.xlu0 %v3536, 16
      %v3619 = vpop.permute.xlu0 %3618
      %3620 = vrot.lane.b32.xlu0 %v3537, 16
      %v3621 = vpop.permute.xlu0 %3620
      %3622 = vrot.lane.b32.xlu0 %v3538, 16
      %v3623 = vpop.permute.xlu0 %3622
      %3624 = vrot.lane.b32.xlu0 %v3539, 16
      %v3625 = vpop.permute.xlu0 %3624
      %3626 = vrot.lane.b32.xlu0 %v3540, 16
      %v3627 = vpop.permute.xlu0 %3626
      %3628 = vrot.lane.b32.xlu0 %v3541, 16
      %v3629 = vpop.permute.xlu0 %3628
      %3630 = vrot.lane.b32.xlu0 %v3542, 16
      %v3631 = vpop.permute.xlu0 %3630
      %3632 = vrot.lane.b32.xlu0 %v3543, 16
      %v3633 = vpop.permute.xlu0 %3632
      %3634 = vrot.lane.b32.xlu0 %v3544, 16
      %v3635 = vpop.permute.xlu0 %3634
      %3636 = vrot.lane.b32.xlu0 %v3545, 16
      %v3637 = vpop.permute.xlu0 %3636
      %3638 = vrot.lane.b32.xlu0 %v3546, 16
      %v3639 = vpop.permute.xlu0 %3638
      %3640 = vrot.lane.b32.xlu0 %v3547, 16
      %v3641 = vpop.permute.xlu0 %3640
      %3642 = vrot.lane.b32.xlu0 %v3548, 16
      %v3643 = vpop.permute.xlu0 %3642
      %3644 = vrot.lane.b32.xlu0 %v3549, 16
      %v3645 = vpop.permute.xlu0 %3644
      %vm3678 = vcmask 261248
      %3679 = vst.msk [vmem:[#allocation3] sm:$0xff] %vm3678, %v3583
      %3680 = vst.msk [vmem:[#allocation3 + $0x10] sm:$0xff] %vm3678, %v3585
      %3681 = vst.msk [vmem:[#allocation3 + $0x20] sm:$0xff] %vm3678, %v3587
      %3682 = vst.msk [vmem:[#allocation3 + $0x30] sm:$0xff] %vm3678, %v3589
      %3683 = vst.msk [vmem:[#allocation3 + $0x40] sm:$0xff] %vm3678, %v3591
      %3684 = vst.msk [vmem:[#allocation3 + $0x50] sm:$0xff] %vm3678, %v3593
      %3685 = vst.msk [vmem:[#allocation3 + $0x60] sm:$0xff] %vm3678, %v3595
      %3686 = vst.msk [vmem:[#allocation3 + $0x70] sm:$0xff] %vm3678, %v3597
      %3687 = vst.msk [vmem:[#allocation3 + $0x80] sm:$0xff] %vm3678, %v3599
      %3688 = vst.msk [vmem:[#allocation3 + $0x90] sm:$0xff] %vm3678, %v3601
      %3689 = vst.msk [vmem:[#allocation3 + $0xa0] sm:$0xff] %vm3678, %v3603
      %3690 = vst.msk [vmem:[#allocation3 + $0xb0] sm:$0xff] %vm3678, %v3605
      %3691 = vst.msk [vmem:[#allocation3 + $0xc0] sm:$0xff] %vm3678, %v3607
      %3692 = vst.msk [vmem:[#allocation3 + $0xd0] sm:$0xff] %vm3678, %v3609
      %3693 = vst.msk [vmem:[#allocation3 + $0xe0] sm:$0xff] %vm3678, %v3611
      %3694 = vst.msk [vmem:[#allocation3 + $0xf0] sm:$0xff] %vm3678, %v3613
      %3695 = vst.msk [vmem:[#allocation3 + $0x100] sm:$0xff] %vm3678, %v3615
      %3696 = vst.msk [vmem:[#allocation3 + $0x110] sm:$0xff] %vm3678, %v3617
      %3697 = vst.msk [vmem:[#allocation3 + $0x120] sm:$0xff] %vm3678, %v3619
      %3698 = vst.msk [vmem:[#allocation3 + $0x130] sm:$0xff] %vm3678, %v3621
      %3699 = vst.msk [vmem:[#allocation3 + $0x140] sm:$0xff] %vm3678, %v3623
      %3700 = vst.msk [vmem:[#allocation3 + $0x150] sm:$0xff] %vm3678, %v3625
      %3701 = vst.msk [vmem:[#allocation3 + $0x160] sm:$0xff] %vm3678, %v3627
      %3702 = vst.msk [vmem:[#allocation3 + $0x170] sm:$0xff] %vm3678, %v3629
      %3703 = vst.msk [vmem:[#allocation3 + $0x180] sm:$0xff] %vm3678, %v3631
      %3704 = vst.msk [vmem:[#allocation3 + $0x190] sm:$0xff] %vm3678, %v3633
      %3705 = vst.msk [vmem:[#allocation3 + $0x1a0] sm:$0xff] %vm3678, %v3635
      %3706 = vst.msk [vmem:[#allocation3 + $0x1b0] sm:$0xff] %vm3678, %v3637
      %3707 = vst.msk [vmem:[#allocation3 + $0x1c0] sm:$0xff] %vm3678, %v3639
      %3708 = vst.msk [vmem:[#allocation3 + $0x1d0] sm:$0xff] %vm3678, %v3641
      %3709 = vst.msk [vmem:[#allocation3 + $0x1e0] sm:$0xff] %vm3678, %v3643
      %3710 = vst.msk [vmem:[#allocation3 + $0x1f0] sm:$0xff] %vm3678, %v3645
      %v3711 = vld [vmem:[#allocation2 + $0x2] sm:$0xff]
      %v3712 = vld [vmem:[#allocation2 + $0xa] sm:$0xff]
      %v3713 = vld [vmem:[#allocation2 + $0x1a] sm:$0xff]
      %v3714 = vld [vmem:[#allocation2 + $0x22] sm:$0xff]
      %v3715 = vld [vmem:[#allocation2 + $0x32] sm:$0xff]
      %v3716 = vld [vmem:[#allocation2 + $0x3a] sm:$0xff]
      %v3717 = vld [vmem:[#allocation2 + $0x4a] sm:$0xff]
      %v3718 = vld [vmem:[#allocation2 + $0x52] sm:$0xff]
      %v3719 = vld [vmem:[#allocation2 + $0x62] sm:$0xff]
      %v3720 = vld [vmem:[#allocation2 + $0x6a] sm:$0xff]
      %v3721 = vld [vmem:[#allocation2 + $0x7a] sm:$0xff]
      %v3722 = vld [vmem:[#allocation2 + $0x82] sm:$0xff]
      %v3723 = vld [vmem:[#allocation2 + $0x92] sm:$0xff]
      %v3724 = vld [vmem:[#allocation2 + $0x9a] sm:$0xff]
      %v3725 = vld [vmem:[#allocation2 + $0xaa] sm:$0xff]
      %v3726 = vld [vmem:[#allocation2 + $0xb2] sm:$0xff]
      %v3727 = vld [vmem:[#allocation2 + $0xc2] sm:$0xff]
      %v3728 = vld [vmem:[#allocation2 + $0xca] sm:$0xff]
      %v3729 = vld [vmem:[#allocation2 + $0xda] sm:$0xff]
      %v3730 = vld [vmem:[#allocation2 + $0xe2] sm:$0xff]
      %v3731 = vld [vmem:[#allocation2 + $0xf2] sm:$0xff]
      %v3732 = vld [vmem:[#allocation2 + $0xfa] sm:$0xff]
      %v3733 = vld [vmem:[#allocation2 + $0x10a] sm:$0xff]
      %v3734 = vld [vmem:[#allocation2 + $0x112] sm:$0xff]
      %v3735 = vld [vmem:[#allocation2 + $0x122] sm:$0xff]
      %v3736 = vld [vmem:[#allocation2 + $0x12a] sm:$0xff]
      %v3737 = vld [vmem:[#allocation2 + $0x13a] sm:$0xff]
      %v3738 = vld [vmem:[#allocation2 + $0x142] sm:$0xff]
      %v3739 = vld [vmem:[#allocation2 + $0x152] sm:$0xff]
      %v3740 = vld [vmem:[#allocation2 + $0x15a] sm:$0xff]
      %v3741 = vld [vmem:[#allocation2 + $0x16a] sm:$0xff]
      %v3742 = vld [vmem:[#allocation2 + $0x172] sm:$0xff]
      %3775 = vrot.lane.b32.xlu0 %v3711, 32
      %v3776 = vpop.permute.xlu0 %3775
      %3777 = vrot.lane.b32.xlu0 %v3712, 32
      %v3778 = vpop.permute.xlu0 %3777
      %3779 = vrot.lane.b32.xlu0 %v3713, 32
      %v3780 = vpop.permute.xlu0 %3779
      %3781 = vrot.lane.b32.xlu0 %v3714, 32
      %v3782 = vpop.permute.xlu0 %3781
      %3783 = vrot.lane.b32.xlu0 %v3715, 32
      %v3784 = vpop.permute.xlu0 %3783
      %3785 = vrot.lane.b32.xlu0 %v3716, 32
      %v3786 = vpop.permute.xlu0 %3785
      %3787 = vrot.lane.b32.xlu0 %v3717, 32
      %v3788 = vpop.permute.xlu0 %3787
      %3789 = vrot.lane.b32.xlu0 %v3718, 32
      %v3790 = vpop.permute.xlu0 %3789
      %3791 = vrot.lane.b32.xlu0 %v3719, 32
      %v3792 = vpop.permute.xlu0 %3791
      %3793 = vrot.lane.b32.xlu0 %v3720, 32
      %v3794 = vpop.permute.xlu0 %3793
      %3795 = vrot.lane.b32.xlu0 %v3721, 32
      %v3796 = vpop.permute.xlu0 %3795
      %3797 = vrot.lane.b32.xlu0 %v3722, 32
      %v3798 = vpop.permute.xlu0 %3797
      %3799 = vrot.lane.b32.xlu0 %v3723, 32
      %v3800 = vpop.permute.xlu0 %3799
      %3801 = vrot.lane.b32.xlu0 %v3724, 32
      %v3802 = vpop.permute.xlu0 %3801
      %3803 = vrot.lane.b32.xlu0 %v3725, 32
      %v3804 = vpop.permute.xlu0 %3803
      %3805 = vrot.lane.b32.xlu0 %v3726, 32
      %v3806 = vpop.permute.xlu0 %3805
      %3807 = vrot.lane.b32.xlu0 %v3727, 32
      %v3808 = vpop.permute.xlu0 %3807
      %3809 = vrot.lane.b32.xlu0 %v3728, 32
      %v3810 = vpop.permute.xlu0 %3809
      %3811 = vrot.lane.b32.xlu0 %v3729, 32
      %v3812 = vpop.permute.xlu0 %3811
      %3813 = vrot.lane.b32.xlu0 %v3730, 32
      %v3814 = vpop.permute.xlu0 %3813
      %3815 = vrot.lane.b32.xlu0 %v3731, 32
      %v3816 = vpop.permute.xlu0 %3815
      %3817 = vrot.lane.b32.xlu0 %v3732, 32
      %v3818 = vpop.permute.xlu0 %3817
      %3819 = vrot.lane.b32.xlu0 %v3733, 32
      %v3820 = vpop.permute.xlu0 %3819
      %3821 = vrot.lane.b32.xlu0 %v3734, 32
      %v3822 = vpop.permute.xlu0 %3821
      %3823 = vrot.lane.b32.xlu0 %v3735, 32
      %v3824 = vpop.permute.xlu0 %3823
      %3825 = vrot.lane.b32.xlu0 %v3736, 32
      %v3826 = vpop.permute.xlu0 %3825
      %3827 = vrot.lane.b32.xlu0 %v3737, 32
      %v3828 = vpop.permute.xlu0 %3827
      %3829 = vrot.lane.b32.xlu0 %v3738, 32
      %v3830 = vpop.permute.xlu0 %3829
      %3831 = vrot.lane.b32.xlu0 %v3739, 32
      %v3832 = vpop.permute.xlu0 %3831
      %3833 = vrot.lane.b32.xlu0 %v3740, 32
      %v3834 = vpop.permute.xlu0 %3833
      %3835 = vrot.lane.b32.xlu0 %v3741, 32
      %v3836 = vpop.permute.xlu0 %3835
      %3837 = vrot.lane.b32.xlu0 %v3742, 32
      %v3838 = vpop.permute.xlu0 %3837
      %vm3871 = vcmask 392448
      %3872 = vst.msk [vmem:[#allocation3] sm:$0xff] %vm3871, %v3776
      %3873 = vst.msk [vmem:[#allocation3 + $0x10] sm:$0xff] %vm3871, %v3778
      %3874 = vst.msk [vmem:[#allocation3 + $0x20] sm:$0xff] %vm3871, %v3780
      %3875 = vst.msk [vmem:[#allocation3 + $0x30] sm:$0xff] %vm3871, %v3782
      %3876 = vst.msk [vmem:[#allocation3 + $0x40] sm:$0xff] %vm3871, %v3784
      %3877 = vst.msk [vmem:[#allocation3 + $0x50] sm:$0xff] %vm3871, %v3786
      %3878 = vst.msk [vmem:[#allocation3 + $0x60] sm:$0xff] %vm3871, %v3788
      %3879 = vst.msk [vmem:[#allocation3 + $0x70] sm:$0xff] %vm3871, %v3790
      %3880 = vst.msk [vmem:[#allocation3 + $0x80] sm:$0xff] %vm3871, %v3792
      %3881 = vst.msk [vmem:[#allocation3 + $0x90] sm:$0xff] %vm3871, %v3794
      %3882 = vst.msk [vmem:[#allocation3 + $0xa0] sm:$0xff] %vm3871, %v3796
      %3883 = vst.msk [vmem:[#allocation3 + $0xb0] sm:$0xff] %vm3871, %v3798
      %3884 = vst.msk [vmem:[#allocation3 + $0xc0] sm:$0xff] %vm3871, %v3800
      %3885 = vst.msk [vmem:[#allocation3 + $0xd0] sm:$0xff] %vm3871, %v3802
      %3886 = vst.msk [vmem:[#allocation3 + $0xe0] sm:$0xff] %vm3871, %v3804
      %3887 = vst.msk [vmem:[#allocation3 + $0xf0] sm:$0xff] %vm3871, %v3806
      %3888 = vst.msk [vmem:[#allocation3 + $0x100] sm:$0xff] %vm3871, %v3808
      %3889 = vst.msk [vmem:[#allocation3 + $0x110] sm:$0xff] %vm3871, %v3810
      %3890 = vst.msk [vmem:[#allocation3 + $0x120] sm:$0xff] %vm3871, %v3812
      %3891 = vst.msk [vmem:[#allocation3 + $0x130] sm:$0xff] %vm3871, %v3814
      %3892 = vst.msk [vmem:[#allocation3 + $0x140] sm:$0xff] %vm3871, %v3816
      %3893 = vst.msk [vmem:[#allocation3 + $0x150] sm:$0xff] %vm3871, %v3818
      %3894 = vst.msk [vmem:[#allocation3 + $0x160] sm:$0xff] %vm3871, %v3820
      %3895 = vst.msk [vmem:[#allocation3 + $0x170] sm:$0xff] %vm3871, %v3822
      %3896 = vst.msk [vmem:[#allocation3 + $0x180] sm:$0xff] %vm3871, %v3824
      %3897 = vst.msk [vmem:[#allocation3 + $0x190] sm:$0xff] %vm3871, %v3826
      %3898 = vst.msk [vmem:[#allocation3 + $0x1a0] sm:$0xff] %vm3871, %v3828
      %3899 = vst.msk [vmem:[#allocation3 + $0x1b0] sm:$0xff] %vm3871, %v3830
      %3900 = vst.msk [vmem:[#allocation3 + $0x1c0] sm:$0xff] %vm3871, %v3832
      %3901 = vst.msk [vmem:[#allocation3 + $0x1d0] sm:$0xff] %vm3871, %v3834
      %3902 = vst.msk [vmem:[#allocation3 + $0x1e0] sm:$0xff] %vm3871, %v3836
      %3903 = vst.msk [vmem:[#allocation3 + $0x1f0] sm:$0xff] %vm3871, %v3838
      %v3904 = vld [vmem:[%s3421] sm:$0xff]
      %v3905 = vld [vmem:[%s3421 + $0x8] sm:$0xff]
      %v3906 = vld [vmem:[%s3421 + $0x18] sm:$0xff]
      %v3907 = vld [vmem:[%s3421 + $0x20] sm:$0xff]
      %v3908 = vld [vmem:[%s3421 + $0x30] sm:$0xff]
      %v3909 = vld [vmem:[%s3421 + $0x38] sm:$0xff]
      %v3910 = vld [vmem:[%s3421 + $0x48] sm:$0xff]
      %v3911 = vld [vmem:[%s3421 + $0x50] sm:$0xff]
      %v3912 = vld [vmem:[%s3421 + $0x60] sm:$0xff]
      %v3913 = vld [vmem:[%s3421 + $0x68] sm:$0xff]
      %v3914 = vld [vmem:[%s3421 + $0x78] sm:$0xff]
      %v3915 = vld [vmem:[%s3421 + $0x80] sm:$0xff]
      %v3916 = vld [vmem:[%s3421 + $0x90] sm:$0xff]
      %v3917 = vld [vmem:[%s3421 + $0x98] sm:$0xff]
      %v3918 = vld [vmem:[%s3421 + $0xa8] sm:$0xff]
      %v3919 = vld [vmem:[%s3421 + $0xb0] sm:$0xff]
      %v3920 = vld [vmem:[%s3421 + $0xc0] sm:$0xff]
      %v3921 = vld [vmem:[%s3421 + $0xc8] sm:$0xff]
      %v3922 = vld [vmem:[%s3421 + $0xd8] sm:$0xff]
      %v3923 = vld [vmem:[%s3421 + $0xe0] sm:$0xff]
      %v3924 = vld [vmem:[%s3421 + $0xf0] sm:$0xff]
      %v3925 = vld [vmem:[%s3421 + $0xf8] sm:$0xff]
      %v3926 = vld [vmem:[%s3421 + $0x108] sm:$0xff]
      %v3927 = vld [vmem:[%s3421 + $0x110] sm:$0xff]
      %v3928 = vld [vmem:[%s3421 + $0x120] sm:$0xff]
      %v3929 = vld [vmem:[%s3421 + $0x128] sm:$0xff]
      %v3930 = vld [vmem:[%s3421 + $0x138] sm:$0xff]
      %v3931 = vld [vmem:[%s3421 + $0x140] sm:$0xff]
      %v3932 = vld [vmem:[%s3421 + $0x150] sm:$0xff]
      %v3933 = vld [vmem:[%s3421 + $0x158] sm:$0xff]
      %v3934 = vld [vmem:[%s3421 + $0x168] sm:$0xff]
      %v3935 = vld [vmem:[%s3421 + $0x170] sm:$0xff]
      %3968 = vrot.lane.b32.xlu0 %v3904, 48
      %v3969 = vpop.permute.xlu0 %3968
      %3970 = vrot.lane.b32.xlu0 %v3905, 48
      %v3971 = vpop.permute.xlu0 %3970
      %3972 = vrot.lane.b32.xlu0 %v3906, 48
      %v3973 = vpop.permute.xlu0 %3972
      %3974 = vrot.lane.b32.xlu0 %v3907, 48
      %v3975 = vpop.permute.xlu0 %3974
      %3976 = vrot.lane.b32.xlu0 %v3908, 48
      %v3977 = vpop.permute.xlu0 %3976
      %3978 = vrot.lane.b32.xlu0 %v3909, 48
      %v3979 = vpop.permute.xlu0 %3978
      %3980 = vrot.lane.b32.xlu0 %v3910, 48
      %v3981 = vpop.permute.xlu0 %3980
      %3982 = vrot.lane.b32.xlu0 %v3911, 48
      %v3983 = vpop.permute.xlu0 %3982
      %3984 = vrot.lane.b32.xlu0 %v3912, 48
      %v3985 = vpop.permute.xlu0 %3984
      %3986 = vrot.lane.b32.xlu0 %v3913, 48
      %v3987 = vpop.permute.xlu0 %3986
      %3988 = vrot.lane.b32.xlu0 %v3914, 48
      %v3989 = vpop.permute.xlu0 %3988
      %3990 = vrot.lane.b32.xlu0 %v3915, 48
      %v3991 = vpop.permute.xlu0 %3990
      %3992 = vrot.lane.b32.xlu0 %v3916, 48
      %v3993 = vpop.permute.xlu0 %3992
      %3994 = vrot.lane.b32.xlu0 %v3917, 48
      %v3995 = vpop.permute.xlu0 %3994
      %3996 = vrot.lane.b32.xlu0 %v3918, 48
      %v3997 = vpop.permute.xlu0 %3996
      %3998 = vrot.lane.b32.xlu0 %v3919, 48
      %v3999 = vpop.permute.xlu0 %3998
      %4000 = vrot.lane.b32.xlu0 %v3920, 48
      %v4001 = vpop.permute.xlu0 %4000
      %4002 = vrot.lane.b32.xlu0 %v3921, 48
      %v4003 = vpop.permute.xlu0 %4002
      %4004 = vrot.lane.b32.xlu0 %v3922, 48
      %v4005 = vpop.permute.xlu0 %4004
      %4006 = vrot.lane.b32.xlu0 %v3923, 48
      %v4007 = vpop.permute.xlu0 %4006
      %4008 = vrot.lane.b32.xlu0 %v3924, 48
      %v4009 = vpop.permute.xlu0 %4008
      %4010 = vrot.lane.b32.xlu0 %v3925, 48
      %v4011 = vpop.permute.xlu0 %4010
      %4012 = vrot.lane.b32.xlu0 %v3926, 48
      %v4013 = vpop.permute.xlu0 %4012
      %4014 = vrot.lane.b32.xlu0 %v3927, 48
      %v4015 = vpop.permute.xlu0 %4014
      %4016 = vrot.lane.b32.xlu0 %v3928, 48
      %v4017 = vpop.permute.xlu0 %4016
      %4018 = vrot.lane.b32.xlu0 %v3929, 48
      %v4019 = vpop.permute.xlu0 %4018
      %4020 = vrot.lane.b32.xlu0 %v3930, 48
      %v4021 = vpop.permute.xlu0 %4020
      %4022 = vrot.lane.b32.xlu0 %v3931, 48
      %v4023 = vpop.permute.xlu0 %4022
      %4024 = vrot.lane.b32.xlu0 %v3932, 48
      %v4025 = vpop.permute.xlu0 %4024
      %4026 = vrot.lane.b32.xlu0 %v3933, 48
      %v4027 = vpop.permute.xlu0 %4026
      %4028 = vrot.lane.b32.xlu0 %v3934, 48
      %v4029 = vpop.permute.xlu0 %4028
      %4030 = vrot.lane.b32.xlu0 %v3935, 48
      %v4031 = vpop.permute.xlu0 %4030
      %vm4064 = vcmask 523648
      %4065 = vst.msk [vmem:[#allocation3] sm:$0xff] %vm4064, %v3969
      %4066 = vst.msk [vmem:[#allocation3 + $0x10] sm:$0xff] %vm4064, %v3971
      %4067 = vst.msk [vmem:[#allocation3 + $0x20] sm:$0xff] %vm4064, %v3973
      %4068 = vst.msk [vmem:[#allocation3 + $0x30] sm:$0xff] %vm4064, %v3975
      %4069 = vst.msk [vmem:[#allocation3 + $0x40] sm:$0xff] %vm4064, %v3977
      %4070 = vst.msk [vmem:[#allocation3 + $0x50] sm:$0xff] %vm4064, %v3979
      %4071 = vst.msk [vmem:[#allocation3 + $0x60] sm:$0xff] %vm4064, %v3981
      %4072 = vst.msk [vmem:[#allocation3 + $0x70] sm:$0xff] %vm4064, %v3983
      %4073 = vst.msk [vmem:[#allocation3 + $0x80] sm:$0xff] %vm4064, %v3985
      %4074 = vst.msk [vmem:[#allocation3 + $0x90] sm:$0xff] %vm4064, %v3987
      %4075 = vst.msk [vmem:[#allocation3 + $0xa0] sm:$0xff] %vm4064, %v3989
      %4076 = vst.msk [vmem:[#allocation3 + $0xb0] sm:$0xff] %vm4064, %v3991
      %4077 = vst.msk [vmem:[#allocation3 + $0xc0] sm:$0xff] %vm4064, %v3993
      %4078 = vst.msk [vmem:[#allocation3 + $0xd0] sm:$0xff] %vm4064, %v3995
      %4079 = vst.msk [vmem:[#allocation3 + $0xe0] sm:$0xff] %vm4064, %v3997
      %4080 = vst.msk [vmem:[#allocation3 + $0xf0] sm:$0xff] %vm4064, %v3999
      %4081 = vst.msk [vmem:[#allocation3 + $0x100] sm:$0xff] %vm4064, %v4001
      %4082 = vst.msk [vmem:[#allocation3 + $0x110] sm:$0xff] %vm4064, %v4003
      %4083 = vst.msk [vmem:[#allocation3 + $0x120] sm:$0xff] %vm4064, %v4005
      %4084 = vst.msk [vmem:[#allocation3 + $0x130] sm:$0xff] %vm4064, %v4007
      %4085 = vst.msk [vmem:[#allocation3 + $0x140] sm:$0xff] %vm4064, %v4009
      %4086 = vst.msk [vmem:[#allocation3 + $0x150] sm:$0xff] %vm4064, %v4011
      %4087 = vst.msk [vmem:[#allocation3 + $0x160] sm:$0xff] %vm4064, %v4013
      %4088 = vst.msk [vmem:[#allocation3 + $0x170] sm:$0xff] %vm4064, %v4015
      %4089 = vst.msk [vmem:[#allocation3 + $0x180] sm:$0xff] %vm4064, %v4017
      %4090 = vst.msk [vmem:[#allocation3 + $0x190] sm:$0xff] %vm4064, %v4019
      %4091 = vst.msk [vmem:[#allocation3 + $0x1a0] sm:$0xff] %vm4064, %v4021
      %4092 = vst.msk [vmem:[#allocation3 + $0x1b0] sm:$0xff] %vm4064, %v4023
      %4093 = vst.msk [vmem:[#allocation3 + $0x1c0] sm:$0xff] %vm4064, %v4025
      %4094 = vst.msk [vmem:[#allocation3 + $0x1d0] sm:$0xff] %vm4064, %v4027
      %4095 = vst.msk [vmem:[#allocation3 + $0x1e0] sm:$0xff] %vm4064, %v4029
      %4096 = vst.msk [vmem:[#allocation3 + $0x1f0] sm:$0xff] %vm4064, %v4031
      %v4097 = vld [vmem:[%s3421 + $0x1] sm:$0xff]
      %v4098 = vld [vmem:[%s3421 + $0x9] sm:$0xff]
      %v4099 = vld [vmem:[%s3421 + $0x19] sm:$0xff]
      %v4100 = vld [vmem:[%s3421 + $0x21] sm:$0xff]
      %v4101 = vld [vmem:[%s3421 + $0x31] sm:$0xff]
      %v4102 = vld [vmem:[%s3421 + $0x39] sm:$0xff]
      %v4103 = vld [vmem:[%s3421 + $0x49] sm:$0xff]
      %v4104 = vld [vmem:[%s3421 + $0x51] sm:$0xff]
      %v4105 = vld [vmem:[%s3421 + $0x61] sm:$0xff]
      %v4106 = vld [vmem:[%s3421 + $0x69] sm:$0xff]
      %v4107 = vld [vmem:[%s3421 + $0x79] sm:$0xff]
      %v4108 = vld [vmem:[%s3421 + $0x81] sm:$0xff]
      %v4109 = vld [vmem:[%s3421 + $0x91] sm:$0xff]
      %v4110 = vld [vmem:[%s3421 + $0x99] sm:$0xff]
      %v4111 = vld [vmem:[%s3421 + $0xa9] sm:$0xff]
      %v4112 = vld [vmem:[%s3421 + $0xb1] sm:$0xff]
      %v4113 = vld [vmem:[%s3421 + $0xc1] sm:$0xff]
      %v4114 = vld [vmem:[%s3421 + $0xc9] sm:$0xff]
      %v4115 = vld [vmem:[%s3421 + $0xd9] sm:$0xff]
      %v4116 = vld [vmem:[%s3421 + $0xe1] sm:$0xff]
      %v4117 = vld [vmem:[%s3421 + $0xf1] sm:$0xff]
      %v4118 = vld [vmem:[%s3421 + $0xf9] sm:$0xff]
      %v4119 = vld [vmem:[%s3421 + $0x109] sm:$0xff]
      %v4120 = vld [vmem:[%s3421 + $0x111] sm:$0xff]
      %v4121 = vld [vmem:[%s3421 + $0x121] sm:$0xff]
      %v4122 = vld [vmem:[%s3421 + $0x129] sm:$0xff]
      %v4123 = vld [vmem:[%s3421 + $0x139] sm:$0xff]
      %v4124 = vld [vmem:[%s3421 + $0x141] sm:$0xff]
      %v4125 = vld [vmem:[%s3421 + $0x151] sm:$0xff]
      %v4126 = vld [vmem:[%s3421 + $0x159] sm:$0xff]
      %v4127 = vld [vmem:[%s3421 + $0x169] sm:$0xff]
      %v4128 = vld [vmem:[%s3421 + $0x171] sm:$0xff]
      %4161 = vrot.lane.b32.xlu0 %v4097, 64
      %v4162 = vpop.permute.xlu0 %4161
      %4163 = vrot.lane.b32.xlu0 %v4098, 64
      %v4164 = vpop.permute.xlu0 %4163
      %4165 = vrot.lane.b32.xlu0 %v4099, 64
      %v4166 = vpop.permute.xlu0 %4165
      %4167 = vrot.lane.b32.xlu0 %v4100, 64
      %v4168 = vpop.permute.xlu0 %4167
      %4169 = vrot.lane.b32.xlu0 %v4101, 64
      %v4170 = vpop.permute.xlu0 %4169
      %4171 = vrot.lane.b32.xlu0 %v4102, 64
      %v4172 = vpop.permute.xlu0 %4171
      %4173 = vrot.lane.b32.xlu0 %v4103, 64
      %v4174 = vpop.permute.xlu0 %4173
      %4175 = vrot.lane.b32.xlu0 %v4104, 64
      %v4176 = vpop.permute.xlu0 %4175
      %4177 = vrot.lane.b32.xlu0 %v4105, 64
      %v4178 = vpop.permute.xlu0 %4177
      %4179 = vrot.lane.b32.xlu0 %v4106, 64
      %v4180 = vpop.permute.xlu0 %4179
      %4181 = vrot.lane.b32.xlu0 %v4107, 64
      %v4182 = vpop.permute.xlu0 %4181
      %4183 = vrot.lane.b32.xlu0 %v4108, 64
      %v4184 = vpop.permute.xlu0 %4183
      %4185 = vrot.lane.b32.xlu0 %v4109, 64
      %v4186 = vpop.permute.xlu0 %4185
      %4187 = vrot.lane.b32.xlu0 %v4110, 64
      %v4188 = vpop.permute.xlu0 %4187
      %4189 = vrot.lane.b32.xlu0 %v4111, 64
      %v4190 = vpop.permute.xlu0 %4189
      %4191 = vrot.lane.b32.xlu0 %v4112, 64
      %v4192 = vpop.permute.xlu0 %4191
      %4193 = vrot.lane.b32.xlu0 %v4113, 64
      %v4194 = vpop.permute.xlu0 %4193
      %4195 = vrot.lane.b32.xlu0 %v4114, 64
      %v4196 = vpop.permute.xlu0 %4195
      %4197 = vrot.lane.b32.xlu0 %v4115, 64
      %v4198 = vpop.permute.xlu0 %4197
      %4199 = vrot.lane.b32.xlu0 %v4116, 64
      %v4200 = vpop.permute.xlu0 %4199
      %4201 = vrot.lane.b32.xlu0 %v4117, 64
      %v4202 = vpop.permute.xlu0 %4201
      %4203 = vrot.lane.b32.xlu0 %v4118, 64
      %v4204 = vpop.permute.xlu0 %4203
      %4205 = vrot.lane.b32.xlu0 %v4119, 64
      %v4206 = vpop.permute.xlu0 %4205
      %4207 = vrot.lane.b32.xlu0 %v4120, 64
      %v4208 = vpop.permute.xlu0 %4207
      %4209 = vrot.lane.b32.xlu0 %v4121, 64
      %v4210 = vpop.permute.xlu0 %4209
      %4211 = vrot.lane.b32.xlu0 %v4122, 64
      %v4212 = vpop.permute.xlu0 %4211
      %4213 = vrot.lane.b32.xlu0 %v4123, 64
      %v4214 = vpop.permute.xlu0 %4213
      %4215 = vrot.lane.b32.xlu0 %v4124, 64
      %v4216 = vpop.permute.xlu0 %4215
      %4217 = vrot.lane.b32.xlu0 %v4125, 64
      %v4218 = vpop.permute.xlu0 %4217
      %4219 = vrot.lane.b32.xlu0 %v4126, 64
      %v4220 = vpop.permute.xlu0 %4219
      %4221 = vrot.lane.b32.xlu0 %v4127, 64
      %v4222 = vpop.permute.xlu0 %4221
      %4223 = vrot.lane.b32.xlu0 %v4128, 64
      %v4224 = vpop.permute.xlu0 %4223
      %vm4257 = vcmask 654848
      %4258 = vst.msk [vmem:[#allocation3] sm:$0xff] %vm4257, %v4162
      %4259 = vst.msk [vmem:[#allocation3 + $0x10] sm:$0xff] %vm4257, %v4164
      %4260 = vst.msk [vmem:[#allocation3 + $0x20] sm:$0xff] %vm4257, %v4166
      %4261 = vst.msk [vmem:[#allocation3 + $0x30] sm:$0xff] %vm4257, %v4168
      %4262 = vst.msk [vmem:[#allocation3 + $0x40] sm:$0xff] %vm4257, %v4170
      %4263 = vst.msk [vmem:[#allocation3 + $0x50] sm:$0xff] %vm4257, %v4172
      %4264 = vst.msk [vmem:[#allocation3 + $0x60] sm:$0xff] %vm4257, %v4174
      %4265 = vst.msk [vmem:[#allocation3 + $0x70] sm:$0xff] %vm4257, %v4176
      %4266 = vst.msk [vmem:[#allocation3 + $0x80] sm:$0xff] %vm4257, %v4178
      %4267 = vst.msk [vmem:[#allocation3 + $0x90] sm:$0xff] %vm4257, %v4180
      %4268 = vst.msk [vmem:[#allocation3 + $0xa0] sm:$0xff] %vm4257, %v4182
      %4269 = vst.msk [vmem:[#allocation3 + $0xb0] sm:$0xff] %vm4257, %v4184
      %4270 = vst.msk [vmem:[#allocation3 + $0xc0] sm:$0xff] %vm4257, %v4186
      %4271 = vst.msk [vmem:[#allocation3 + $0xd0] sm:$0xff] %vm4257, %v4188
      %4272 = vst.msk [vmem:[#allocation3 + $0xe0] sm:$0xff] %vm4257, %v4190
      %4273 = vst.msk [vmem:[#allocation3 + $0xf0] sm:$0xff] %vm4257, %v4192
      %4274 = vst.msk [vmem:[#allocation3 + $0x100] sm:$0xff] %vm4257, %v4194
      %4275 = vst.msk [vmem:[#allocation3 + $0x110] sm:$0xff] %vm4257, %v4196
      %4276 = vst.msk [vmem:[#allocation3 + $0x120] sm:$0xff] %vm4257, %v4198
      %4277 = vst.msk [vmem:[#allocation3 + $0x130] sm:$0xff] %vm4257, %v4200
      %4278 = vst.msk [vmem:[#allocation3 + $0x140] sm:$0xff] %vm4257, %v4202
      %4279 = vst.msk [vmem:[#allocation3 + $0x150] sm:$0xff] %vm4257, %v4204
      %4280 = vst.msk [vmem:[#allocation3 + $0x160] sm:$0xff] %vm4257, %v4206
      %4281 = vst.msk [vmem:[#allocation3 + $0x170] sm:$0xff] %vm4257, %v4208
      %4282 = vst.msk [vmem:[#allocation3 + $0x180] sm:$0xff] %vm4257, %v4210
      %4283 = vst.msk [vmem:[#allocation3 + $0x190] sm:$0xff] %vm4257, %v4212
      %4284 = vst.msk [vmem:[#allocation3 + $0x1a0] sm:$0xff] %vm4257, %v4214
      %4285 = vst.msk [vmem:[#allocation3 + $0x1b0] sm:$0xff] %vm4257, %v4216
      %4286 = vst.msk [vmem:[#allocation3 + $0x1c0] sm:$0xff] %vm4257, %v4218
      %4287 = vst.msk [vmem:[#allocation3 + $0x1d0] sm:$0xff] %vm4257, %v4220
      %4288 = vst.msk [vmem:[#allocation3 + $0x1e0] sm:$0xff] %vm4257, %v4222
      %4289 = vst.msk [vmem:[#allocation3 + $0x1f0] sm:$0xff] %vm4257, %v4224
      %v4290 = vld [vmem:[%s3421 + $0x2] sm:$0xff]
      %v4291 = vld [vmem:[%s3421 + $0xa] sm:$0xff]
      %v4292 = vld [vmem:[%s3421 + $0x1a] sm:$0xff]
      %v4293 = vld [vmem:[%s3421 + $0x22] sm:$0xff]
      %v4294 = vld [vmem:[%s3421 + $0x32] sm:$0xff]
      %v4295 = vld [vmem:[%s3421 + $0x3a] sm:$0xff]
      %v4296 = vld [vmem:[%s3421 + $0x4a] sm:$0xff]
      %v4297 = vld [vmem:[%s3421 + $0x52] sm:$0xff]
      %v4298 = vld [vmem:[%s3421 + $0x62] sm:$0xff]
      %v4299 = vld [vmem:[%s3421 + $0x6a] sm:$0xff]
      %v4300 = vld [vmem:[%s3421 + $0x7a] sm:$0xff]
      %v4301 = vld [vmem:[%s3421 + $0x82] sm:$0xff]
      %v4302 = vld [vmem:[%s3421 + $0x92] sm:$0xff]
      %v4303 = vld [vmem:[%s3421 + $0x9a] sm:$0xff]
      %v4304 = vld [vmem:[%s3421 + $0xaa] sm:$0xff]
      %v4305 = vld [vmem:[%s3421 + $0xb2] sm:$0xff]
      %v4306 = vld [vmem:[%s3421 + $0xc2] sm:$0xff]
      %v4307 = vld [vmem:[%s3421 + $0xca] sm:$0xff]
      %v4308 = vld [vmem:[%s3421 + $0xda] sm:$0xff]
      %v4309 = vld [vmem:[%s3421 + $0xe2] sm:$0xff]
      %v4310 = vld [vmem:[%s3421 + $0xf2] sm:$0xff]
      %v4311 = vld [vmem:[%s3421 + $0xfa] sm:$0xff]
      %v4312 = vld [vmem:[%s3421 + $0x10a] sm:$0xff]
      %v4313 = vld [vmem:[%s3421 + $0x112] sm:$0xff]
      %v4314 = vld [vmem:[%s3421 + $0x122] sm:$0xff]
      %v4315 = vld [vmem:[%s3421 + $0x12a] sm:$0xff]
      %v4316 = vld [vmem:[%s3421 + $0x13a] sm:$0xff]
      %v4317 = vld [vmem:[%s3421 + $0x142] sm:$0xff]
      %v4318 = vld [vmem:[%s3421 + $0x152] sm:$0xff]
      %v4319 = vld [vmem:[%s3421 + $0x15a] sm:$0xff]
      %v4320 = vld [vmem:[%s3421 + $0x16a] sm:$0xff]
      %v4321 = vld [vmem:[%s3421 + $0x172] sm:$0xff]
      %4354 = vrot.lane.b32.xlu0 %v4290, 80
      %v4355 = vpop.permute.xlu0 %4354
      %4356 = vrot.lane.b32.xlu0 %v4291, 80
      %v4357 = vpop.permute.xlu0 %4356
      %4358 = vrot.lane.b32.xlu0 %v4292, 80
      %v4359 = vpop.permute.xlu0 %4358
      %4360 = vrot.lane.b32.xlu0 %v4293, 80
      %v4361 = vpop.permute.xlu0 %4360
      %4362 = vrot.lane.b32.xlu0 %v4294, 80
      %v4363 = vpop.permute.xlu0 %4362
      %4364 = vrot.lane.b32.xlu0 %v4295, 80
      %v4365 = vpop.permute.xlu0 %4364
      %4366 = vrot.lane.b32.xlu0 %v4296, 80
      %v4367 = vpop.permute.xlu0 %4366
      %4368 = vrot.lane.b32.xlu0 %v4297, 80
      %v4369 = vpop.permute.xlu0 %4368
      %4370 = vrot.lane.b32.xlu0 %v4298, 80
      %v4371 = vpop.permute.xlu0 %4370
      %4372 = vrot.lane.b32.xlu0 %v4299, 80
      %v4373 = vpop.permute.xlu0 %4372
      %4374 = vrot.lane.b32.xlu0 %v4300, 80
      %v4375 = vpop.permute.xlu0 %4374
      %4376 = vrot.lane.b32.xlu0 %v4301, 80
      %v4377 = vpop.permute.xlu0 %4376
      %4378 = vrot.lane.b32.xlu0 %v4302, 80
      %v4379 = vpop.permute.xlu0 %4378
      %4380 = vrot.lane.b32.xlu0 %v4303, 80
      %v4381 = vpop.permute.xlu0 %4380
      %4382 = vrot.lane.b32.xlu0 %v4304, 80
      %v4383 = vpop.permute.xlu0 %4382
      %4384 = vrot.lane.b32.xlu0 %v4305, 80
      %v4385 = vpop.permute.xlu0 %4384
      %4386 = vrot.lane.b32.xlu0 %v4306, 80
      %v4387 = vpop.permute.xlu0 %4386
      %4388 = vrot.lane.b32.xlu0 %v4307, 80
      %v4389 = vpop.permute.xlu0 %4388
      %4390 = vrot.lane.b32.xlu0 %v4308, 80
      %v4391 = vpop.permute.xlu0 %4390
      %4392 = vrot.lane.b32.xlu0 %v4309, 80
      %v4393 = vpop.permute.xlu0 %4392
      %4394 = vrot.lane.b32.xlu0 %v4310, 80
      %v4395 = vpop.permute.xlu0 %4394
      %4396 = vrot.lane.b32.xlu0 %v4311, 80
      %v4397 = vpop.permute.xlu0 %4396
      %4398 = vrot.lane.b32.xlu0 %v4312, 80
      %v4399 = vpop.permute.xlu0 %4398
      %4400 = vrot.lane.b32.xlu0 %v4313, 80
      %v4401 = vpop.permute.xlu0 %4400
      %4402 = vrot.lane.b32.xlu0 %v4314, 80
      %v4403 = vpop.permute.xlu0 %4402
      %4404 = vrot.lane.b32.xlu0 %v4315, 80
      %v4405 = vpop.permute.xlu0 %4404
      %4406 = vrot.lane.b32.xlu0 %v4316, 80
      %v4407 = vpop.permute.xlu0 %4406
      %4408 = vrot.lane.b32.xlu0 %v4317, 80
      %v4409 = vpop.permute.xlu0 %4408
      %4410 = vrot.lane.b32.xlu0 %v4318, 80
      %v4411 = vpop.permute.xlu0 %4410
      %4412 = vrot.lane.b32.xlu0 %v4319, 80
      %v4413 = vpop.permute.xlu0 %4412
      %4414 = vrot.lane.b32.xlu0 %v4320, 80
      %v4415 = vpop.permute.xlu0 %4414
      %4416 = vrot.lane.b32.xlu0 %v4321, 80
      %v4417 = vpop.permute.xlu0 %4416
      %vm4450 = vcmask 786048
      %4451 = vst.msk [vmem:[#allocation3] sm:$0xff] %vm4450, %v4355
      %4452 = vst.msk [vmem:[#allocation3 + $0x10] sm:$0xff] %vm4450, %v4357
      %4453 = vst.msk [vmem:[#allocation3 + $0x20] sm:$0xff] %vm4450, %v4359
      %4454 = vst.msk [vmem:[#allocation3 + $0x30] sm:$0xff] %vm4450, %v4361
      %4455 = vst.msk [vmem:[#allocation3 + $0x40] sm:$0xff] %vm4450, %v4363
      %4456 = vst.msk [vmem:[#allocation3 + $0x50] sm:$0xff] %vm4450, %v4365
      %4457 = vst.msk [vmem:[#allocation3 + $0x60] sm:$0xff] %vm4450, %v4367
      %4458 = vst.msk [vmem:[#allocation3 + $0x70] sm:$0xff] %vm4450, %v4369
      %4459 = vst.msk [vmem:[#allocation3 + $0x80] sm:$0xff] %vm4450, %v4371
      %4460 = vst.msk [vmem:[#allocation3 + $0x90] sm:$0xff] %vm4450, %v4373
      %4461 = vst.msk [vmem:[#allocation3 + $0xa0] sm:$0xff] %vm4450, %v4375
      %4462 = vst.msk [vmem:[#allocation3 + $0xb0] sm:$0xff] %vm4450, %v4377
      %4463 = vst.msk [vmem:[#allocation3 + $0xc0] sm:$0xff] %vm4450, %v4379
      %4464 = vst.msk [vmem:[#allocation3 + $0xd0] sm:$0xff] %vm4450, %v4381
      %4465 = vst.msk [vmem:[#allocation3 + $0xe0] sm:$0xff] %vm4450, %v4383
      %4466 = vst.msk [vmem:[#allocation3 + $0xf0] sm:$0xff] %vm4450, %v4385
      %4467 = vst.msk [vmem:[#allocation3 + $0x100] sm:$0xff] %vm4450, %v4387
      %4468 = vst.msk [vmem:[#allocation3 + $0x110] sm:$0xff] %vm4450, %v4389
      %4469 = vst.msk [vmem:[#allocation3 + $0x120] sm:$0xff] %vm4450, %v4391
      %4470 = vst.msk [vmem:[#allocation3 + $0x130] sm:$0xff] %vm4450, %v4393
      %4471 = vst.msk [vmem:[#allocation3 + $0x140] sm:$0xff] %vm4450, %v4395
      %4472 = vst.msk [vmem:[#allocation3 + $0x150] sm:$0xff] %vm4450, %v4397
      %4473 = vst.msk [vmem:[#allocation3 + $0x160] sm:$0xff] %vm4450, %v4399
      %4474 = vst.msk [vmem:[#allocation3 + $0x170] sm:$0xff] %vm4450, %v4401
      %4475 = vst.msk [vmem:[#allocation3 + $0x180] sm:$0xff] %vm4450, %v4403
      %4476 = vst.msk [vmem:[#allocation3 + $0x190] sm:$0xff] %vm4450, %v4405
      %4477 = vst.msk [vmem:[#allocation3 + $0x1a0] sm:$0xff] %vm4450, %v4407
      %4478 = vst.msk [vmem:[#allocation3 + $0x1b0] sm:$0xff] %vm4450, %v4409
      %4479 = vst.msk [vmem:[#allocation3 + $0x1c0] sm:$0xff] %vm4450, %v4411
      %4480 = vst.msk [vmem:[#allocation3 + $0x1d0] sm:$0xff] %vm4450, %v4413
      %4481 = vst.msk [vmem:[#allocation3 + $0x1e0] sm:$0xff] %vm4450, %v4415
      %4482 = vst.msk [vmem:[#allocation3 + $0x1f0] sm:$0xff] %vm4450, %v4417
      %s4483 = scalar_lea.vmem [#allocation2], 48
      %v4484 = vld [vmem:[%s4483] sm:$0xff]
      %v4485 = vld [vmem:[%s4483 + $0x8] sm:$0xff]
      %v4486 = vld [vmem:[%s4483 + $0x18] sm:$0xff]
      %v4487 = vld [vmem:[%s4483 + $0x20] sm:$0xff]
      %v4488 = vld [vmem:[%s4483 + $0x30] sm:$0xff]
      %v4489 = vld [vmem:[%s4483 + $0x38] sm:$0xff]
      %v4490 = vld [vmem:[%s4483 + $0x48] sm:$0xff]
      %v4491 = vld [vmem:[%s4483 + $0x50] sm:$0xff]
      %v4492 = vld [vmem:[%s4483 + $0x60] sm:$0xff]
      %v4493 = vld [vmem:[%s4483 + $0x68] sm:$0xff]
      %v4494 = vld [vmem:[%s4483 + $0x78] sm:$0xff]
      %v4495 = vld [vmem:[%s4483 + $0x80] sm:$0xff]
      %v4496 = vld [vmem:[%s4483 + $0x90] sm:$0xff]
      %v4497 = vld [vmem:[%s4483 + $0x98] sm:$0xff]
      %v4498 = vld [vmem:[%s4483 + $0xa8] sm:$0xff]
      %v4499 = vld [vmem:[%s4483 + $0xb0] sm:$0xff]
      %v4500 = vld [vmem:[%s4483 + $0xc0] sm:$0xff]
      %v4501 = vld [vmem:[%s4483 + $0xc8] sm:$0xff]
      %v4502 = vld [vmem:[%s4483 + $0xd8] sm:$0xff]
      %v4503 = vld [vmem:[%s4483 + $0xe0] sm:$0xff]
      %v4504 = vld [vmem:[%s4483 + $0xf0] sm:$0xff]
      %v4505 = vld [vmem:[%s4483 + $0xf8] sm:$0xff]
      %v4506 = vld [vmem:[%s4483 + $0x108] sm:$0xff]
      %v4507 = vld [vmem:[%s4483 + $0x110] sm:$0xff]
      %v4508 = vld [vmem:[%s4483 + $0x120] sm:$0xff]
      %v4509 = vld [vmem:[%s4483 + $0x128] sm:$0xff]
      %v4510 = vld [vmem:[%s4483 + $0x138] sm:$0xff]
      %v4511 = vld [vmem:[%s4483 + $0x140] sm:$0xff]
      %v4512 = vld [vmem:[%s4483 + $0x150] sm:$0xff]
      %v4513 = vld [vmem:[%s4483 + $0x158] sm:$0xff]
      %v4514 = vld [vmem:[%s4483 + $0x168] sm:$0xff]
      %v4515 = vld [vmem:[%s4483 + $0x170] sm:$0xff]
      %4548 = vrot.lane.b32.xlu0 %v4484, 96
      %v4549 = vpop.permute.xlu0 %4548
      %4550 = vrot.lane.b32.xlu0 %v4485, 96
      %v4551 = vpop.permute.xlu0 %4550
      %4552 = vrot.lane.b32.xlu0 %v4486, 96
      %v4553 = vpop.permute.xlu0 %4552
      %4554 = vrot.lane.b32.xlu0 %v4487, 96
      %v4555 = vpop.permute.xlu0 %4554
      %4556 = vrot.lane.b32.xlu0 %v4488, 96
      %v4557 = vpop.permute.xlu0 %4556
      %4558 = vrot.lane.b32.xlu0 %v4489, 96
      %v4559 = vpop.permute.xlu0 %4558
      %4560 = vrot.lane.b32.xlu0 %v4490, 96
      %v4561 = vpop.permute.xlu0 %4560
      %4562 = vrot.lane.b32.xlu0 %v4491, 96
      %v4563 = vpop.permute.xlu0 %4562
      %4564 = vrot.lane.b32.xlu0 %v4492, 96
      %v4565 = vpop.permute.xlu0 %4564
      %4566 = vrot.lane.b32.xlu0 %v4493, 96
      %v4567 = vpop.permute.xlu0 %4566
      %4568 = vrot.lane.b32.xlu0 %v4494, 96
      %v4569 = vpop.permute.xlu0 %4568
      %4570 = vrot.lane.b32.xlu0 %v4495, 96
      %v4571 = vpop.permute.xlu0 %4570
      %4572 = vrot.lane.b32.xlu0 %v4496, 96
      %v4573 = vpop.permute.xlu0 %4572
      %4574 = vrot.lane.b32.xlu0 %v4497, 96
      %v4575 = vpop.permute.xlu0 %4574
      %4576 = vrot.lane.b32.xlu0 %v4498, 96
      %v4577 = vpop.permute.xlu0 %4576
      %4578 = vrot.lane.b32.xlu0 %v4499, 96
      %v4579 = vpop.permute.xlu0 %4578
      %4580 = vrot.lane.b32.xlu0 %v4500, 96
      %v4581 = vpop.permute.xlu0 %4580
      %4582 = vrot.lane.b32.xlu0 %v4501, 96
      %v4583 = vpop.permute.xlu0 %4582
      %4584 = vrot.lane.b32.xlu0 %v4502, 96
      %v4585 = vpop.permute.xlu0 %4584
      %4586 = vrot.lane.b32.xlu0 %v4503, 96
      %v4587 = vpop.permute.xlu0 %4586
      %4588 = vrot.lane.b32.xlu0 %v4504, 96
      %v4589 = vpop.permute.xlu0 %4588
      %4590 = vrot.lane.b32.xlu0 %v4505, 96
      %v4591 = vpop.permute.xlu0 %4590
      %4592 = vrot.lane.b32.xlu0 %v4506, 96
      %v4593 = vpop.permute.xlu0 %4592
      %4594 = vrot.lane.b32.xlu0 %v4507, 96
      %v4595 = vpop.permute.xlu0 %4594
      %4596 = vrot.lane.b32.xlu0 %v4508, 96
      %v4597 = vpop.permute.xlu0 %4596
      %4598 = vrot.lane.b32.xlu0 %v4509, 96
      %v4599 = vpop.permute.xlu0 %4598
      %4600 = vrot.lane.b32.xlu0 %v4510, 96
      %v4601 = vpop.permute.xlu0 %4600
      %4602 = vrot.lane.b32.xlu0 %v4511, 96
      %v4603 = vpop.permute.xlu0 %4602
      %4604 = vrot.lane.b32.xlu0 %v4512, 96
      %v4605 = vpop.permute.xlu0 %4604
      %4606 = vrot.lane.b32.xlu0 %v4513, 96
      %v4607 = vpop.permute.xlu0 %4606
      %4608 = vrot.lane.b32.xlu0 %v4514, 96
      %v4609 = vpop.permute.xlu0 %4608
      %4610 = vrot.lane.b32.xlu0 %v4515, 96
      %v4611 = vpop.permute.xlu0 %4610
      %vm4644 = vcmask 917248
      %4645 = vst.msk [vmem:[#allocation3] sm:$0xff] %vm4644, %v4549
      %4646 = vst.msk [vmem:[#allocation3 + $0x10] sm:$0xff] %vm4644, %v4551
      %4647 = vst.msk [vmem:[#allocation3 + $0x20] sm:$0xff] %vm4644, %v4553
      %4648 = vst.msk [vmem:[#allocation3 + $0x30] sm:$0xff] %vm4644, %v4555
      %4649 = vst.msk [vmem:[#allocation3 + $0x40] sm:$0xff] %vm4644, %v4557
      %4650 = vst.msk [vmem:[#allocation3 + $0x50] sm:$0xff] %vm4644, %v4559
      %4651 = vst.msk [vmem:[#allocation3 + $0x60] sm:$0xff] %vm4644, %v4561
      %4652 = vst.msk [vmem:[#allocation3 + $0x70] sm:$0xff] %vm4644, %v4563
      %4653 = vst.msk [vmem:[#allocation3 + $0x80] sm:$0xff] %vm4644, %v4565
      %4654 = vst.msk [vmem:[#allocation3 + $0x90] sm:$0xff] %vm4644, %v4567
      %4655 = vst.msk [vmem:[#allocation3 + $0xa0] sm:$0xff] %vm4644, %v4569
      %4656 = vst.msk [vmem:[#allocation3 + $0xb0] sm:$0xff] %vm4644, %v4571
      %4657 = vst.msk [vmem:[#allocation3 + $0xc0] sm:$0xff] %vm4644, %v4573
      %4658 = vst.msk [vmem:[#allocation3 + $0xd0] sm:$0xff] %vm4644, %v4575
      %4659 = vst.msk [vmem:[#allocation3 + $0xe0] sm:$0xff] %vm4644, %v4577
      %4660 = vst.msk [vmem:[#allocation3 + $0xf0] sm:$0xff] %vm4644, %v4579
      %4661 = vst.msk [vmem:[#allocation3 + $0x100] sm:$0xff] %vm4644, %v4581
      %4662 = vst.msk [vmem:[#allocation3 + $0x110] sm:$0xff] %vm4644, %v4583
      %4663 = vst.msk [vmem:[#allocation3 + $0x120] sm:$0xff] %vm4644, %v4585
      %4664 = vst.msk [vmem:[#allocation3 + $0x130] sm:$0xff] %vm4644, %v4587
      %4665 = vst.msk [vmem:[#allocation3 + $0x140] sm:$0xff] %vm4644, %v4589
      %4666 = vst.msk [vmem:[#allocation3 + $0x150] sm:$0xff] %vm4644, %v4591
      %4667 = vst.msk [vmem:[#allocation3 + $0x160] sm:$0xff] %vm4644, %v4593
      %4668 = vst.msk [vmem:[#allocation3 + $0x170] sm:$0xff] %vm4644, %v4595
      %4669 = vst.msk [vmem:[#allocation3 + $0x180] sm:$0xff] %vm4644, %v4597
      %4670 = vst.msk [vmem:[#allocation3 + $0x190] sm:$0xff] %vm4644, %v4599
      %4671 = vst.msk [vmem:[#allocation3 + $0x1a0] sm:$0xff] %vm4644, %v4601
      %4672 = vst.msk [vmem:[#allocation3 + $0x1b0] sm:$0xff] %vm4644, %v4603
      %4673 = vst.msk [vmem:[#allocation3 + $0x1c0] sm:$0xff] %vm4644, %v4605
      %4674 = vst.msk [vmem:[#allocation3 + $0x1d0] sm:$0xff] %vm4644, %v4607
      %4675 = vst.msk [vmem:[#allocation3 + $0x1e0] sm:$0xff] %vm4644, %v4609
      %4676 = vst.msk [vmem:[#allocation3 + $0x1f0] sm:$0xff] %vm4644, %v4611
      %v4677 = vld [vmem:[%s4483 + $0x1] sm:$0xff]
      %v4678 = vld [vmem:[%s4483 + $0x9] sm:$0xff]
      %v4679 = vld [vmem:[%s4483 + $0x19] sm:$0xff]
      %v4680 = vld [vmem:[%s4483 + $0x21] sm:$0xff]
      %v4681 = vld [vmem:[%s4483 + $0x31] sm:$0xff]
      %v4682 = vld [vmem:[%s4483 + $0x39] sm:$0xff]
      %v4683 = vld [vmem:[%s4483 + $0x49] sm:$0xff]
      %v4684 = vld [vmem:[%s4483 + $0x51] sm:$0xff]
      %v4685 = vld [vmem:[%s4483 + $0x61] sm:$0xff]
      %v4686 = vld [vmem:[%s4483 + $0x69] sm:$0xff]
      %v4687 = vld [vmem:[%s4483 + $0x79] sm:$0xff]
      %v4688 = vld [vmem:[%s4483 + $0x81] sm:$0xff]
      %v4689 = vld [vmem:[%s4483 + $0x91] sm:$0xff]
      %v4690 = vld [vmem:[%s4483 + $0x99] sm:$0xff]
      %v4691 = vld [vmem:[%s4483 + $0xa9] sm:$0xff]
      %v4692 = vld [vmem:[%s4483 + $0xb1] sm:$0xff]
      %v4693 = vld [vmem:[%s4483 + $0xc1] sm:$0xff]
      %v4694 = vld [vmem:[%s4483 + $0xc9] sm:$0xff]
      %v4695 = vld [vmem:[%s4483 + $0xd9] sm:$0xff]
      %v4696 = vld [vmem:[%s4483 + $0xe1] sm:$0xff]
      %v4697 = vld [vmem:[%s4483 + $0xf1] sm:$0xff]
      %v4698 = vld [vmem:[%s4483 + $0xf9] sm:$0xff]
      %v4699 = vld [vmem:[%s4483 + $0x109] sm:$0xff]
      %v4700 = vld [vmem:[%s4483 + $0x111] sm:$0xff]
      %v4701 = vld [vmem:[%s4483 + $0x121] sm:$0xff]
      %v4702 = vld [vmem:[%s4483 + $0x129] sm:$0xff]
      %v4703 = vld [vmem:[%s4483 + $0x139] sm:$0xff]
      %v4704 = vld [vmem:[%s4483 + $0x141] sm:$0xff]
      %v4705 = vld [vmem:[%s4483 + $0x151] sm:$0xff]
      %v4706 = vld [vmem:[%s4483 + $0x159] sm:$0xff]
      %v4707 = vld [vmem:[%s4483 + $0x169] sm:$0xff]
      %v4708 = vld [vmem:[%s4483 + $0x171] sm:$0xff]
      %4741 = vrot.lane.b32.xlu0 %v4677, 112
      %v4742 = vpop.permute.xlu0 %4741
      %4743 = vrot.lane.b32.xlu0 %v4678, 112
      %v4744 = vpop.permute.xlu0 %4743
      %4745 = vrot.lane.b32.xlu0 %v4679, 112
      %v4746 = vpop.permute.xlu0 %4745
      %4747 = vrot.lane.b32.xlu0 %v4680, 112
      %v4748 = vpop.permute.xlu0 %4747
      %4749 = vrot.lane.b32.xlu0 %v4681, 112
      %v4750 = vpop.permute.xlu0 %4749
      %4751 = vrot.lane.b32.xlu0 %v4682, 112
      %v4752 = vpop.permute.xlu0 %4751
      %4753 = vrot.lane.b32.xlu0 %v4683, 112
      %v4754 = vpop.permute.xlu0 %4753
      %4755 = vrot.lane.b32.xlu0 %v4684, 112
      %v4756 = vpop.permute.xlu0 %4755
      %4757 = vrot.lane.b32.xlu0 %v4685, 112
      %v4758 = vpop.permute.xlu0 %4757
      %4759 = vrot.lane.b32.xlu0 %v4686, 112
      %v4760 = vpop.permute.xlu0 %4759
      %4761 = vrot.lane.b32.xlu0 %v4687, 112
      %v4762 = vpop.permute.xlu0 %4761
      %4763 = vrot.lane.b32.xlu0 %v4688, 112
      %v4764 = vpop.permute.xlu0 %4763
      %4765 = vrot.lane.b32.xlu0 %v4689, 112
      %v4766 = vpop.permute.xlu0 %4765
      %4767 = vrot.lane.b32.xlu0 %v4690, 112
      %v4768 = vpop.permute.xlu0 %4767
      %4769 = vrot.lane.b32.xlu0 %v4691, 112
      %v4770 = vpop.permute.xlu0 %4769
      %4771 = vrot.lane.b32.xlu0 %v4692, 112
      %v4772 = vpop.permute.xlu0 %4771
      %4773 = vrot.lane.b32.xlu0 %v4693, 112
      %v4774 = vpop.permute.xlu0 %4773
      %4775 = vrot.lane.b32.xlu0 %v4694, 112
      %v4776 = vpop.permute.xlu0 %4775
      %4777 = vrot.lane.b32.xlu0 %v4695, 112
      %v4778 = vpop.permute.xlu0 %4777
      %4779 = vrot.lane.b32.xlu0 %v4696, 112
      %v4780 = vpop.permute.xlu0 %4779
      %4781 = vrot.lane.b32.xlu0 %v4697, 112
      %v4782 = vpop.permute.xlu0 %4781
      %4783 = vrot.lane.b32.xlu0 %v4698, 112
      %v4784 = vpop.permute.xlu0 %4783
      %4785 = vrot.lane.b32.xlu0 %v4699, 112
      %v4786 = vpop.permute.xlu0 %4785
      %4787 = vrot.lane.b32.xlu0 %v4700, 112
      %v4788 = vpop.permute.xlu0 %4787
      %4789 = vrot.lane.b32.xlu0 %v4701, 112
      %v4790 = vpop.permute.xlu0 %4789
      %4791 = vrot.lane.b32.xlu0 %v4702, 112
      %v4792 = vpop.permute.xlu0 %4791
      %4793 = vrot.lane.b32.xlu0 %v4703, 112
      %v4794 = vpop.permute.xlu0 %4793
      %4795 = vrot.lane.b32.xlu0 %v4704, 112
      %v4796 = vpop.permute.xlu0 %4795
      %4797 = vrot.lane.b32.xlu0 %v4705, 112
      %v4798 = vpop.permute.xlu0 %4797
      %4799 = vrot.lane.b32.xlu0 %v4706, 112
      %v4800 = vpop.permute.xlu0 %4799
      %4801 = vrot.lane.b32.xlu0 %v4707, 112
      %v4802 = vpop.permute.xlu0 %4801
      %4803 = vrot.lane.b32.xlu0 %v4708, 112
      %v4804 = vpop.permute.xlu0 %4803
      %vm4837 = vcmask 1048448
      %4838 = vst.msk [vmem:[#allocation3] sm:$0xff] %vm4837, %v4742
      %4839 = vst.msk [vmem:[#allocation3 + $0x10] sm:$0xff] %vm4837, %v4744
      %4840 = vst.msk [vmem:[#allocation3 + $0x20] sm:$0xff] %vm4837, %v4746
      %4841 = vst.msk [vmem:[#allocation3 + $0x30] sm:$0xff] %vm4837, %v4748
      %4842 = vst.msk [vmem:[#allocation3 + $0x40] sm:$0xff] %vm4837, %v4750
      %4843 = vst.msk [vmem:[#allocation3 + $0x50] sm:$0xff] %vm4837, %v4752
      %4844 = vst.msk [vmem:[#allocation3 + $0x60] sm:$0xff] %vm4837, %v4754
      %4845 = vst.msk [vmem:[#allocation3 + $0x70] sm:$0xff] %vm4837, %v4756
      %4846 = vst.msk [vmem:[#allocation3 + $0x80] sm:$0xff] %vm4837, %v4758
      %4847 = vst.msk [vmem:[#allocation3 + $0x90] sm:$0xff] %vm4837, %v4760
      %4848 = vst.msk [vmem:[#allocation3 + $0xa0] sm:$0xff] %vm4837, %v4762
      %4849 = vst.msk [vmem:[#allocation3 + $0xb0] sm:$0xff] %vm4837, %v4764
      %4850 = vst.msk [vmem:[#allocation3 + $0xc0] sm:$0xff] %vm4837, %v4766
      %4851 = vst.msk [vmem:[#allocation3 + $0xd0] sm:$0xff] %vm4837, %v4768
      %4852 = vst.msk [vmem:[#allocation3 + $0xe0] sm:$0xff] %vm4837, %v4770
      %4853 = vst.msk [vmem:[#allocation3 + $0xf0] sm:$0xff] %vm4837, %v4772
      %4854 = vst.msk [vmem:[#allocation3 + $0x100] sm:$0xff] %vm4837, %v4774
      %4855 = vst.msk [vmem:[#allocation3 + $0x110] sm:$0xff] %vm4837, %v4776
      %4856 = vst.msk [vmem:[#allocation3 + $0x120] sm:$0xff] %vm4837, %v4778
      %4857 = vst.msk [vmem:[#allocation3 + $0x130] sm:$0xff] %vm4837, %v4780
      %4858 = vst.msk [vmem:[#allocation3 + $0x140] sm:$0xff] %vm4837, %v4782
      %4859 = vst.msk [vmem:[#allocation3 + $0x150] sm:$0xff] %vm4837, %v4784
      %4860 = vst.msk [vmem:[#allocation3 + $0x160] sm:$0xff] %vm4837, %v4786
      %4861 = vst.msk [vmem:[#allocation3 + $0x170] sm:$0xff] %vm4837, %v4788
      %4862 = vst.msk [vmem:[#allocation3 + $0x180] sm:$0xff] %vm4837, %v4790
      %4863 = vst.msk [vmem:[#allocation3 + $0x190] sm:$0xff] %vm4837, %v4792
      %4864 = vst.msk [vmem:[#allocation3 + $0x1a0] sm:$0xff] %vm4837, %v4794
      %4865 = vst.msk [vmem:[#allocation3 + $0x1b0] sm:$0xff] %vm4837, %v4796
      %4866 = vst.msk [vmem:[#allocation3 + $0x1c0] sm:$0xff] %vm4837, %v4798
      %4867 = vst.msk [vmem:[#allocation3 + $0x1d0] sm:$0xff] %vm4837, %v4800
      %4868 = vst.msk [vmem:[#allocation3 + $0x1e0] sm:$0xff] %vm4837, %v4802
      %4869 = vst.msk [vmem:[#allocation3 + $0x1f0] sm:$0xff] %vm4837, %v4804
      %v4870 = vld [vmem:[%s4483 + $0x2] sm:$0xff]
      %v4871 = vld [vmem:[%s4483 + $0xa] sm:$0xff]
      %v4872 = vld [vmem:[%s4483 + $0x1a] sm:$0xff]
      %v4873 = vld [vmem:[%s4483 + $0x22] sm:$0xff]
      %v4874 = vld [vmem:[%s4483 + $0x32] sm:$0xff]
      %v4875 = vld [vmem:[%s4483 + $0x3a] sm:$0xff]
      %v4876 = vld [vmem:[%s4483 + $0x4a] sm:$0xff]
      %v4877 = vld [vmem:[%s4483 + $0x52] sm:$0xff]
      %v4878 = vld [vmem:[%s4483 + $0x62] sm:$0xff]
      %v4879 = vld [vmem:[%s4483 + $0x6a] sm:$0xff]
      %v4880 = vld [vmem:[%s4483 + $0x7a] sm:$0xff]
      %v4881 = vld [vmem:[%s4483 + $0x82] sm:$0xff]
      %v4882 = vld [vmem:[%s4483 + $0x92] sm:$0xff]
      %v4883 = vld [vmem:[%s4483 + $0x9a] sm:$0xff]
      %v4884 = vld [vmem:[%s4483 + $0xaa] sm:$0xff]
      %v4885 = vld [vmem:[%s4483 + $0xb2] sm:$0xff]
      %v4886 = vld [vmem:[%s4483 + $0xc2] sm:$0xff]
      %v4887 = vld [vmem:[%s4483 + $0xca] sm:$0xff]
      %v4888 = vld [vmem:[%s4483 + $0xda] sm:$0xff]
      %v4889 = vld [vmem:[%s4483 + $0xe2] sm:$0xff]
      %v4890 = vld [vmem:[%s4483 + $0xf2] sm:$0xff]
      %v4891 = vld [vmem:[%s4483 + $0xfa] sm:$0xff]
      %v4892 = vld [vmem:[%s4483 + $0x10a] sm:$0xff]
      %v4893 = vld [vmem:[%s4483 + $0x112] sm:$0xff]
      %v4894 = vld [vmem:[%s4483 + $0x122] sm:$0xff]
      %v4895 = vld [vmem:[%s4483 + $0x12a] sm:$0xff]
      %v4896 = vld [vmem:[%s4483 + $0x13a] sm:$0xff]
      %v4897 = vld [vmem:[%s4483 + $0x142] sm:$0xff]
      %v4898 = vld [vmem:[%s4483 + $0x152] sm:$0xff]
      %v4899 = vld [vmem:[%s4483 + $0x15a] sm:$0xff]
      %v4900 = vld [vmem:[%s4483 + $0x16a] sm:$0xff]
      %v4901 = vld [vmem:[%s4483 + $0x172] sm:$0xff]
      %4902 = vst.msk [vmem:[#allocation3 + $0x8] sm:$0xff] %vm2965, %v4870
      %4903 = vst.msk [vmem:[#allocation3 + $0x18] sm:$0xff] %vm2965, %v4871
      %4904 = vst.msk [vmem:[#allocation3 + $0x28] sm:$0xff] %vm2965, %v4872
      %4905 = vst.msk [vmem:[#allocation3 + $0x38] sm:$0xff] %vm2965, %v4873
      %4906 = vst.msk [vmem:[#allocation3 + $0x48] sm:$0xff] %vm2965, %v4874
      %4907 = vst.msk [vmem:[#allocation3 + $0x58] sm:$0xff] %vm2965, %v4875
      %4908 = vst.msk [vmem:[#allocation3 + $0x68] sm:$0xff] %vm2965, %v4876
      %4909 = vst.msk [vmem:[#allocation3 + $0x78] sm:$0xff] %vm2965, %v4877
      %4910 = vst.msk [vmem:[#allocation3 + $0x88] sm:$0xff] %vm2965, %v4878
      %4911 = vst.msk [vmem:[#allocation3 + $0x98] sm:$0xff] %vm2965, %v4879
      %4912 = vst.msk [vmem:[#allocation3 + $0xa8] sm:$0xff] %vm2965, %v4880
      %4913 = vst.msk [vmem:[#allocation3 + $0xb8] sm:$0xff] %vm2965, %v4881
      %4914 = vst.msk [vmem:[#allocation3 + $0xc8] sm:$0xff] %vm2965, %v4882
      %4915 = vst.msk [vmem:[#allocation3 + $0xd8] sm:$0xff] %vm2965, %v4883
      %4916 = vst.msk [vmem:[#allocation3 + $0xe8] sm:$0xff] %vm2965, %v4884
      %4917 = vst.msk [vmem:[#allocation3 + $0xf8] sm:$0xff] %vm2965, %v4885
      %4918 = vst.msk [vmem:[#allocation3 + $0x108] sm:$0xff] %vm2965, %v4886
      %4919 = vst.msk [vmem:[#allocation3 + $0x118] sm:$0xff] %vm2965, %v4887
      %4920 = vst.msk [vmem:[#allocation3 + $0x128] sm:$0xff] %vm2965, %v4888
      %4921 = vst.msk [vmem:[#allocation3 + $0x138] sm:$0xff] %vm2965, %v4889
      %4922 = vst.msk [vmem:[#allocation3 + $0x148] sm:$0xff] %vm2965, %v4890
      %4923 = vst.msk [vmem:[#allocation3 + $0x158] sm:$0xff] %vm2965, %v4891
      %4924 = vst.msk [vmem:[#allocation3 + $0x168] sm:$0xff] %vm2965, %v4892
      %4925 = vst.msk [vmem:[#allocation3 + $0x178] sm:$0xff] %vm2965, %v4893
      %4926 = vst.msk [vmem:[#allocation3 + $0x188] sm:$0xff] %vm2965, %v4894
      %4927 = vst.msk [vmem:[#allocation3 + $0x198] sm:$0xff] %vm2965, %v4895
      %4928 = vst.msk [vmem:[#allocation3 + $0x1a8] sm:$0xff] %vm2965, %v4896
      %4929 = vst.msk [vmem:[#allocation3 + $0x1b8] sm:$0xff] %vm2965, %v4897
      %4930 = vst.msk [vmem:[#allocation3 + $0x1c8] sm:$0xff] %vm2965, %v4898
      %4931 = vst.msk [vmem:[#allocation3 + $0x1d8] sm:$0xff] %vm2965, %v4899
      %4932 = vst.msk [vmem:[#allocation3 + $0x1e8] sm:$0xff] %vm2965, %v4900
      %4933 = vst.msk [vmem:[#allocation3 + $0x1f8] sm:$0xff] %vm2965, %v4901
      %v4934 = vld [vmem:[#allocation3] sm:$0xff]
      %v4935 = vld [vmem:[#allocation3 + $0x8] sm:$0xff]
      %v4936 = vld [vmem:[#allocation3 + $0x10] sm:$0xff]
      %v4937 = vld [vmem:[#allocation3 + $0x18] sm:$0xff]
      %v4938 = vld [vmem:[#allocation3 + $0x20] sm:$0xff]
      %v4939 = vld [vmem:[#allocation3 + $0x28] sm:$0xff]
      %v4940 = vld [vmem:[#allocation3 + $0x30] sm:$0xff]
      %v4941 = vld [vmem:[#allocation3 + $0x38] sm:$0xff]
      %v4942 = vld [vmem:[#allocation3 + $0x40] sm:$0xff]
      %v4943 = vld [vmem:[#allocation3 + $0x48] sm:$0xff]
      %v4944 = vld [vmem:[#allocation3 + $0x50] sm:$0xff]
      %v4945 = vld [vmem:[#allocation3 + $0x58] sm:$0xff]
      %v4946 = vld [vmem:[#allocation3 + $0x60] sm:$0xff]
      %v4947 = vld [vmem:[#allocation3 + $0x68] sm:$0xff]
      %v4948 = vld [vmem:[#allocation3 + $0x70] sm:$0xff]
      %v4949 = vld [vmem:[#allocation3 + $0x78] sm:$0xff]
      %v4950 = vld [vmem:[#allocation3 + $0x80] sm:$0xff]
      %v4951 = vld [vmem:[#allocation3 + $0x88] sm:$0xff]
      %v4952 = vld [vmem:[#allocation3 + $0x90] sm:$0xff]
      %v4953 = vld [vmem:[#allocation3 + $0x98] sm:$0xff]
      %v4954 = vld [vmem:[#allocation3 + $0xa0] sm:$0xff]
      %v4955 = vld [vmem:[#allocation3 + $0xa8] sm:$0xff]
      %v4956 = vld [vmem:[#allocation3 + $0xb0] sm:$0xff]
      %v4957 = vld [vmem:[#allocation3 + $0xb8] sm:$0xff]
      %v4958 = vld [vmem:[#allocation3 + $0xc0] sm:$0xff]
      %v4959 = vld [vmem:[#allocation3 + $0xc8] sm:$0xff]
      %v4960 = vld [vmem:[#allocation3 + $0xd0] sm:$0xff]
      %v4961 = vld [vmem:[#allocation3 + $0xd8] sm:$0xff]
      %v4962 = vld [vmem:[#allocation3 + $0xe0] sm:$0xff]
      %v4963 = vld [vmem:[#allocation3 + $0xe8] sm:$0xff]
      %v4964 = vld [vmem:[#allocation3 + $0xf0] sm:$0xff]
      %v4965 = vld [vmem:[#allocation3 + $0xf8] sm:$0xff]
      %v4966 = vld [vmem:[#allocation3 + $0x100] sm:$0xff]
      %v4967 = vld [vmem:[#allocation3 + $0x108] sm:$0xff]
      %v4968 = vld [vmem:[#allocation3 + $0x110] sm:$0xff]
      %v4969 = vld [vmem:[#allocation3 + $0x118] sm:$0xff]
      %v4970 = vld [vmem:[#allocation3 + $0x120] sm:$0xff]
      %v4971 = vld [vmem:[#allocation3 + $0x128] sm:$0xff]
      %v4972 = vld [vmem:[#allocation3 + $0x130] sm:$0xff]
      %v4973 = vld [vmem:[#allocation3 + $0x138] sm:$0xff]
      %v4974 = vld [vmem:[#allocation3 + $0x140] sm:$0xff]
      %v4975 = vld [vmem:[#allocation3 + $0x148] sm:$0xff]
      %v4976 = vld [vmem:[#allocation3 + $0x150] sm:$0xff]
      %v4977 = vld [vmem:[#allocation3 + $0x158] sm:$0xff]
      %v4978 = vld [vmem:[#allocation3 + $0x160] sm:$0xff]
      %v4979 = vld [vmem:[#allocation3 + $0x168] sm:$0xff]
      %v4980 = vld [vmem:[#allocation3 + $0x170] sm:$0xff]
      %v4981 = vld [vmem:[#allocation3 + $0x178] sm:$0xff]
      %v4982 = vld [vmem:[#allocation3 + $0x180] sm:$0xff]
      %v4983 = vld [vmem:[#allocation3 + $0x188] sm:$0xff]
      %v4984 = vld [vmem:[#allocation3 + $0x190] sm:$0xff]
      %v4985 = vld [vmem:[#allocation3 + $0x198] sm:$0xff]
      %v4986 = vld [vmem:[#allocation3 + $0x1a0] sm:$0xff]
      %v4987 = vld [vmem:[#allocation3 + $0x1a8] sm:$0xff]
      %v4988 = vld [vmem:[#allocation3 + $0x1b0] sm:$0xff]
      %v4989 = vld [vmem:[#allocation3 + $0x1b8] sm:$0xff]
      %v4990 = vld [vmem:[#allocation3 + $0x1c0] sm:$0xff]
      %v4991 = vld [vmem:[#allocation3 + $0x1c8] sm:$0xff]
      %v4992 = vld [vmem:[#allocation3 + $0x1d0] sm:$0xff]
      %v4993 = vld [vmem:[#allocation3 + $0x1d8] sm:$0xff]
      %v4994 = vld [vmem:[#allocation3 + $0x1e0] sm:$0xff]
      %v4995 = vld [vmem:[#allocation3 + $0x1e8] sm:$0xff]
      %v4996 = vld [vmem:[#allocation3 + $0x1f0] sm:$0xff]
      %v4997 = vld [vmem:[#allocation3 + $0x1f8] sm:$0xff]
      %v4998 = vpack.c.bf16 %v4936, %v4934
      %v4999 = vpack.c.bf16 %v4937, %v4935
      %v5000 = vpack.c.bf16 %v4940, %v4938
      %v5001 = vpack.c.bf16 %v4941, %v4939
      %v5002 = vpack.c.bf16 %v4944, %v4942
      %v5003 = vpack.c.bf16 %v4945, %v4943
      %v5004 = vpack.c.bf16 %v4948, %v4946
      %v5005 = vpack.c.bf16 %v4949, %v4947
      %v5006 = vpack.c.bf16 %v4952, %v4950
      %v5007 = vpack.c.bf16 %v4953, %v4951
      %v5008 = vpack.c.bf16 %v4956, %v4954
      %v5009 = vpack.c.bf16 %v4957, %v4955
      %v5010 = vpack.c.bf16 %v4960, %v4958
      %v5011 = vpack.c.bf16 %v4961, %v4959
      %v5012 = vpack.c.bf16 %v4964, %v4962
      %v5013 = vpack.c.bf16 %v4965, %v4963
      %v5014 = vpack.c.bf16 %v4968, %v4966
      %v5015 = vpack.c.bf16 %v4969, %v4967
      %v5016 = vpack.c.bf16 %v4972, %v4970
      %v5017 = vpack.c.bf16 %v4973, %v4971
      %v5018 = vpack.c.bf16 %v4976, %v4974
      %v5019 = vpack.c.bf16 %v4977, %v4975
      %v5020 = vpack.c.bf16 %v4980, %v4978
      %v5021 = vpack.c.bf16 %v4981, %v4979
      %v5022 = vpack.c.bf16 %v4984, %v4982
      %v5023 = vpack.c.bf16 %v4985, %v4983
      %v5024 = vpack.c.bf16 %v4988, %v4986
      %v5025 = vpack.c.bf16 %v4989, %v4987
      %v5026 = vpack.c.bf16 %v4992, %v4990
      %v5027 = vpack.c.bf16 %v4993, %v4991
      %v5028 = vpack.c.bf16 %v4996, %v4994
      %v5029 = vpack.c.bf16 %v4997, %v4995
      %v5030 = vld [vmem:[%s3] sm:$0xf]
      %v5031 = vld [vmem:[%s3 + $0x4] sm:$0xf]
      %v5032 = vld [vmem:[%s3 + $0x8] sm:$0xf]
      %v5033 = vld [vmem:[%s3 + $0xc] sm:$0xf]
      %v5034 = vld [vmem:[%s3 + $0x10] sm:$0xf]
      %v5035 = vld [vmem:[%s3 + $0x14] sm:$0xf]
      %v5036 = vld [vmem:[%s3 + $0x18] sm:$0xf]
      %v5037 = vld [vmem:[%s3 + $0x1c] sm:$0xf]
      %v5038 = vld [vmem:[%s3 + $0x20] sm:$0xf]
      %v5039 = vld [vmem:[%s3 + $0x24] sm:$0xf]
      %v5040 = vld [vmem:[%s3 + $0x28] sm:$0xf]
      %v5041 = vld [vmem:[%s3 + $0x2c] sm:$0xf]
      %v5042 = vld [vmem:[%s3 + $0x30] sm:$0xf]
      %v5043 = vld [vmem:[%s3 + $0x34] sm:$0xf]
      %v5044 = vld [vmem:[%s3 + $0x38] sm:$0xf]
      %v5045 = vld [vmem:[%s3 + $0x3c] sm:$0xf]
      %v5046 = vld [vmem:[%s3 + $0x40] sm:$0xf]
      %v5047 = vld [vmem:[%s3 + $0x44] sm:$0xf]
      %v5066 = vunpack.c.l.b16 %v5030
      %v5067 = vunpack.c.l.b16 %v5031
      %v5068 = vunpack.c.l.b16 %v5032
      %v5069 = vunpack.c.l.b16 %v5033
      %v5070 = vunpack.c.l.b16 %v5034
      %v5071 = vunpack.c.l.b16 %v5035
      %v5072 = vunpack.c.l.b16 %v5036
      %v5073 = vunpack.c.l.b16 %v5037
      %v5074 = vunpack.c.l.b16 %v5038
      %v5075 = vunpack.c.l.b16 %v5039
      %v5076 = vunpack.c.l.b16 %v5040
      %v5077 = vunpack.c.l.b16 %v5041
      %v5078 = vunpack.c.l.b16 %v5042
      %v5079 = vunpack.c.l.b16 %v5043
      %v5080 = vunpack.c.l.b16 %v5044
      %v5081 = vunpack.c.l.b16 %v5045
      %v5082 = vunpack.c.l.b16 %v5046
      %v5083 = vunpack.c.l.b16 %v5047
      %v5084 = vpack.c.b16 %v5067, %v5066
      %v5085 = vpack.c.b16 %v5069, %v5068
      %v5086 = vpack.c.b16 %v5071, %v5070
      %v5087 = vpack.c.b16 %v5073, %v5072
      %v5088 = vpack.c.b16 %v5075, %v5074
      %v5089 = vpack.c.b16 %v5077, %v5076
      %v5090 = vpack.c.b16 %v5079, %v5078
      %v5091 = vpack.c.b16 %v5081, %v5080
      %v5092 = vpack.c.b16 %v5083, %v5082
      %v5103 = vsel %vm2965, %v4999, 0
      %v5106 = vsel %vm2965, %v5001, 0
      %v5109 = vsel %vm2965, %v5003, 0
      %v5112 = vsel %vm2965, %v5005, 0
      %v5115 = vsel %vm2965, %v5007, 0
      %v5118 = vsel %vm2965, %v5009, 0
      %v5121 = vsel %vm2965, %v5011, 0
      %v5124 = vsel %vm2965, %v5013, 0
      %v5127 = vsel %vm2965, %v5015, 0
      %v5130 = vsel %vm2965, %v5017, 0
      %v5133 = vsel %vm2965, %v5019, 0
      %v5136 = vsel %vm2965, %v5021, 0
      %v5139 = vsel %vm2965, %v5023, 0
      %v5142 = vsel %vm2965, %v5025, 0
      %v5145 = vsel %vm2965, %v5027, 0
      %v5148 = vsel %vm2965, %v5029, 0
      %5150 = vmatprep.subr.bf16.mxu0 0
      %5151 = vmatpush1.bf16.msra.mxu0 %v5084
      %5152 = vmatprep.subr.bf16.mxu0 0
      %5153 = vmatpush1.bf16.msra.mxu0 %v5085
      %5154 = vmatprep.subr.bf16.mxu0 0
      %5155 = vmatpush1.bf16.msra.mxu0 %v5086
      %5156 = vmatprep.subr.bf16.mxu0 0
      %5157 = vmatpush1.bf16.msra.mxu0 %v5087
      %5158 = vmatprep.subr.bf16.mxu0 0
      %5159 = vmatpush1.bf16.msra.mxu0 %v5088
      %5160 = vmatprep.subr.bf16.mxu0 0
      %5161 = vmatpush1.bf16.msra.mxu0 %v5089
      %5162 = vmatprep.subr.bf16.mxu0 0
      %5163 = vmatpush1.bf16.msra.mxu0 %v5090
      %5164 = vmatprep.subr.bf16.mxu0 0
      %5165 = vmatpush1.bf16.msra.mxu0 %v5091
      %5166 = vmatprep.subr.bf16.mxu0 0
      %5167 = vmatpush1.bf16.msra.mxu0 %v5092
      %5168 = vmatprep.subr.bf16.mxu0 0
      %5169 = vmatpush1.bf16.msra.mxu0 0
      %5170 = vmatprep.subr.bf16.mxu0 0
      %5171 = vmatpush1.bf16.msra.mxu0 0
      %5172 = vmatprep.subr.bf16.mxu0 0
      %5173 = vmatpush1.bf16.msra.mxu0 0
      %5174 = vmatprep.subr.bf16.mxu0 0
      %5175 = vmatpush1.bf16.msra.mxu0 0
      %5176 = vmatprep.subr.bf16.mxu0 0
      %5177 = vmatpush1.bf16.msra.mxu0 0
      %5178 = vmatprep.subr.bf16.mxu0 0
      %5179 = vmatpush1.bf16.msra.mxu0 0
      %5180 = vmatprep.subr.bf16.mxu0 0
      %5181 = vmatpush1.bf16.msra.mxu0 0
      %5182 = vmatprep.mubr.bf16.mxu0 %v5103
      %5183 = vmatmul.mubr.bf16.gmra.mrb[0].mxu0 %v4998
      %v5184 = vpop.f32.mrb[0].mxu0
      %v5185 = vadd.f32 0.0, %v5184
      %v5186 = vpop.f32.mrb[0].mxu0
      %v5187 = vpop.f32.mrb[0].mxu0
      %v5188 = vadd.f32 0.0, %v5187
      %v5189 = vpop.f32.mrb[0].mxu0
      %5190 = vmatprep.mubr.bf16.mxu0 %v5106
      %5191 = vmatmul.mubr.bf16.gmra.mrb[0].mxu0 %v5000
      %v5192 = vpop.f32.mrb[0].mxu0
      %v5193 = vadd.f32 0.0, %v5192
      %v5194 = vpop.f32.mrb[0].mxu0
      %v5195 = vpop.f32.mrb[0].mxu0
      %v5196 = vadd.f32 0.0, %v5195
      %v5197 = vpop.f32.mrb[0].mxu0
      %5198 = vmatprep.mubr.bf16.mxu0 %v5109
      %5199 = vmatmul.mubr.bf16.gmra.mrb[0].mxu0 %v5002
      %v5200 = vpop.f32.mrb[0].mxu0
      %v5201 = vadd.f32 0.0, %v5200
      %v5202 = vpop.f32.mrb[0].mxu0
      %v5203 = vpop.f32.mrb[0].mxu0
      %v5204 = vadd.f32 0.0, %v5203
      %v5205 = vpop.f32.mrb[0].mxu0
      %5206 = vmatprep.mubr.bf16.mxu0 %v5112
      %5207 = vmatmul.mubr.bf16.gmra.mrb[0].mxu0 %v5004
      %v5208 = vpop.f32.mrb[0].mxu0
      %v5209 = vadd.f32 0.0, %v5208
      %v5210 = vpop.f32.mrb[0].mxu0
      %v5211 = vpop.f32.mrb[0].mxu0
      %v5212 = vadd.f32 0.0, %v5211
      %v5213 = vpop.f32.mrb[0].mxu0
      %5214 = vmatprep.mubr.bf16.mxu0 %v5115
      %5215 = vmatmul.mubr.bf16.gmra.mrb[0].mxu0 %v5006
      %v5216 = vpop.f32.mrb[0].mxu0
      %v5217 = vadd.f32 0.0, %v5216
      %v5218 = vpop.f32.mrb[0].mxu0
      %v5219 = vpop.f32.mrb[0].mxu0
      %v5220 = vadd.f32 0.0, %v5219
      %v5221 = vpop.f32.mrb[0].mxu0
      %5222 = vmatprep.mubr.bf16.mxu0 %v5118
      %5223 = vmatmul.mubr.bf16.gmra.mrb[0].mxu0 %v5008
      %v5224 = vpop.f32.mrb[0].mxu0
      %v5225 = vadd.f32 0.0, %v5224
      %v5226 = vpop.f32.mrb[0].mxu0
      %v5227 = vpop.f32.mrb[0].mxu0
      %v5228 = vadd.f32 0.0, %v5227
      %v5229 = vpop.f32.mrb[0].mxu0
      %5230 = vmatprep.mubr.bf16.mxu0 %v5121
      %5231 = vmatmul.mubr.bf16.gmra.mrb[0].mxu0 %v5010
      %v5232 = vpop.f32.mrb[0].mxu0
      %v5233 = vadd.f32 0.0, %v5232
      %v5234 = vpop.f32.mrb[0].mxu0
      %v5235 = vpop.f32.mrb[0].mxu0
      %v5236 = vadd.f32 0.0, %v5235
      %v5237 = vpop.f32.mrb[0].mxu0
      %5238 = vmatprep.mubr.bf16.mxu0 %v5124
      %5239 = vmatmul.mubr.bf16.gmra.mrb[0].mxu0 %v5012
      %v5240 = vpop.f32.mrb[0].mxu0
      %v5241 = vadd.f32 0.0, %v5240
      %v5242 = vpop.f32.mrb[0].mxu0
      %v5243 = vpop.f32.mrb[0].mxu0
      %v5244 = vadd.f32 0.0, %v5243
      %v5245 = vpop.f32.mrb[0].mxu0
      %5246 = vmatprep.mubr.bf16.mxu0 %v5127
      %5247 = vmatmul.mubr.bf16.gmra.mrb[0].mxu0 %v5014
      %v5248 = vpop.f32.mrb[0].mxu0
      %v5249 = vadd.f32 0.0, %v5248
      %v5250 = vpop.f32.mrb[0].mxu0
      %v5251 = vpop.f32.mrb[0].mxu0
      %v5252 = vadd.f32 0.0, %v5251
      %v5253 = vpop.f32.mrb[0].mxu0
      %5254 = vmatprep.mubr.bf16.mxu0 %v5130
      %5255 = vmatmul.mubr.bf16.gmra.mrb[0].mxu0 %v5016
      %v5256 = vpop.f32.mrb[0].mxu0
      %v5257 = vadd.f32 0.0, %v5256
      %v5258 = vpop.f32.mrb[0].mxu0
      %v5259 = vpop.f32.mrb[0].mxu0
      %v5260 = vadd.f32 0.0, %v5259
      %v5261 = vpop.f32.mrb[0].mxu0
      %5262 = vmatprep.mubr.bf16.mxu0 %v5133
      %5263 = vmatmul.mubr.bf16.gmra.mrb[0].mxu0 %v5018
      %v5264 = vpop.f32.mrb[0].mxu0
      %v5265 = vadd.f32 0.0, %v5264
      %v5266 = vpop.f32.mrb[0].mxu0
      %v5267 = vpop.f32.mrb[0].mxu0
      %v5268 = vadd.f32 0.0, %v5267
      %v5269 = vpop.f32.mrb[0].mxu0
      %5270 = vmatprep.mubr.bf16.mxu0 %v5136
      %5271 = vmatmul.mubr.bf16.gmra.mrb[0].mxu0 %v5020
      %v5272 = vpop.f32.mrb[0].mxu0
      %v5273 = vadd.f32 0.0, %v5272
      %v5274 = vpop.f32.mrb[0].mxu0
      %v5275 = vpop.f32.mrb[0].mxu0
      %v5276 = vadd.f32 0.0, %v5275
      %v5277 = vpop.f32.mrb[0].mxu0
      %5278 = vmatprep.mubr.bf16.mxu0 %v5139
      %5279 = vmatmul.mubr.bf16.gmra.mrb[0].mxu0 %v5022
      %v5280 = vpop.f32.mrb[0].mxu0
      %v5281 = vadd.f32 0.0, %v5280
      %v5282 = vpop.f32.mrb[0].mxu0
      %v5283 = vpop.f32.mrb[0].mxu0
      %v5284 = vadd.f32 0.0, %v5283
      %v5285 = vpop.f32.mrb[0].mxu0
      %5286 = vmatprep.mubr.bf16.mxu0 %v5142
      %5287 = vmatmul.mubr.bf16.gmra.mrb[0].mxu0 %v5024
      %v5288 = vpop.f32.mrb[0].mxu0
      %v5289 = vadd.f32 0.0, %v5288
      %v5290 = vpop.f32.mrb[0].mxu0
      %v5291 = vpop.f32.mrb[0].mxu0
      %v5292 = vadd.f32 0.0, %v5291
      %v5293 = vpop.f32.mrb[0].mxu0
      %5294 = vmatprep.mubr.bf16.mxu0 %v5145
      %5295 = vmatmul.mubr.bf16.gmra.mrb[0].mxu0 %v5026
      %v5296 = vpop.f32.mrb[0].mxu0
      %v5297 = vadd.f32 0.0, %v5296
      %v5298 = vpop.f32.mrb[0].mxu0
      %v5299 = vpop.f32.mrb[0].mxu0
      %v5300 = vadd.f32 0.0, %v5299
      %v5301 = vpop.f32.mrb[0].mxu0
      %5302 = vmatprep.mubr.bf16.mxu0 %v5148
      %5303 = vmatmul.mubr.bf16.gmra.mrb[0].mxu0 %v5028
      %v5304 = vpop.f32.mrb[0].mxu0
      %v5305 = vadd.f32 0.0, %v5304
      %v5306 = vpop.f32.mrb[0].mxu0
      %v5307 = vpop.f32.mrb[0].mxu0
      %v5308 = vadd.f32 0.0, %v5307
      %v5309 = vpop.f32.mrb[0].mxu0
      %5310 = vdwg.mxu0
      %v5311 = vld [vmem:[%s579] sm:$0x1]
      %v5312 = vld [vmem:[%s584] sm:$0x1]
      %v5313 = vsel %vm2965, %v5185, 0.0
      %v5314 = vsel %vm2965, %v5188, 0.0
      %v5315 = vadd.f32 %v5313, %v5314
      %v5316 = vsel %vm2965, %v5193, 0.0
      %v5317 = vadd.f32 %v5315, %v5316
      %v5318 = vsel %vm2965, %v5196, 0.0
      %v5319 = vadd.f32 %v5317, %v5318
      %v5320 = vsel %vm2965, %v5201, 0.0
      %v5321 = vadd.f32 %v5319, %v5320
      %v5322 = vsel %vm2965, %v5204, 0.0
      %v5323 = vadd.f32 %v5321, %v5322
      %v5324 = vsel %vm2965, %v5209, 0.0
      %v5325 = vadd.f32 %v5323, %v5324
      %v5326 = vsel %vm2965, %v5212, 0.0
      %v5327 = vadd.f32 %v5325, %v5326
      %v5328 = vsel %vm2965, %v5217, 0.0
      %v5329 = vadd.f32 %v5327, %v5328
      %v5330 = vsel %vm2965, %v5220, 0.0
      %v5331 = vadd.f32 %v5329, %v5330
      %v5332 = vsel %vm2965, %v5225, 0.0
      %v5333 = vadd.f32 %v5331, %v5332
      %v5334 = vsel %vm2965, %v5228, 0.0
      %v5335 = vadd.f32 %v5333, %v5334
      %v5336 = vsel %vm2965, %v5233, 0.0
      %v5337 = vadd.f32 %v5335, %v5336
      %v5338 = vsel %vm2965, %v5236, 0.0
      %v5339 = vadd.f32 %v5337, %v5338
      %v5340 = vsel %vm2965, %v5241, 0.0
      %v5341 = vadd.f32 %v5339, %v5340
      %v5342 = vsel %vm2965, %v5244, 0.0
      %v5343 = vadd.f32 %v5341, %v5342
      %v5344 = vsel %vm2965, %v5249, 0.0
      %v5345 = vadd.f32 %v5343, %v5344
      %v5346 = vsel %vm2965, %v5252, 0.0
      %v5347 = vadd.f32 %v5345, %v5346
      %v5348 = vsel %vm2965, %v5257, 0.0
      %v5349 = vadd.f32 %v5347, %v5348
      %v5350 = vsel %vm2965, %v5260, 0.0
      %v5351 = vadd.f32 %v5349, %v5350
      %v5352 = vsel %vm2965, %v5265, 0.0
      %v5353 = vadd.f32 %v5351, %v5352
      %v5354 = vsel %vm2965, %v5268, 0.0
      %v5355 = vadd.f32 %v5353, %v5354
      %v5356 = vsel %vm2965, %v5273, 0.0
      %v5357 = vadd.f32 %v5355, %v5356
      %v5358 = vsel %vm2965, %v5276, 0.0
      %v5359 = vadd.f32 %v5357, %v5358
      %v5360 = vsel %vm2965, %v5281, 0.0
      %v5361 = vadd.f32 %v5359, %v5360
      %v5362 = vsel %vm2965, %v5284, 0.0
      %v5363 = vadd.f32 %v5361, %v5362
      %v5364 = vsel %vm2965, %v5289, 0.0
      %v5365 = vadd.f32 %v5363, %v5364
      %v5366 = vsel %vm2965, %v5292, 0.0
      %v5367 = vadd.f32 %v5365, %v5366
      %v5368 = vsel %vm2965, %v5297, 0.0
      %v5369 = vadd.f32 %v5367, %v5368
      %v5370 = vsel %vm2965, %v5300, 0.0
      %v5371 = vadd.f32 %v5369, %v5370
      %v5372 = vsel %vm2965, %v5305, 0.0
      %v5373 = vadd.f32 %v5371, %v5372
      %v5374 = vsel %vm2965, %v5308, 0.0
      %v5375 = vadd.f32 %v5373, %v5374
      %v5376 = vrot.slane %v5375, 4
      %v5377 = vadd.f32 %v5375, %v5376
      %v5378 = vrot.slane %v5377, 2
      %v5379 = vadd.f32 %v5377, %v5378
      %v5380 = vrot.slane %v5379, 1
      %v5381 = vadd.f32 %v5379, %v5380
      %v5382 = vmul.f32 %v5381, 0.00390625
      %v5383 = vsub.f32 %v5185, %v5382
      %v5384 = vsub.f32 %v5188, %v5382
      %v5385 = vsub.f32 %v5193, %v5382
      %v5386 = vsub.f32 %v5196, %v5382
      %v5387 = vsub.f32 %v5201, %v5382
      %v5388 = vsub.f32 %v5204, %v5382
      %v5389 = vsub.f32 %v5209, %v5382
      %v5390 = vsub.f32 %v5212, %v5382
      %v5391 = vsub.f32 %v5217, %v5382
      %v5392 = vsub.f32 %v5220, %v5382
      %v5393 = vsub.f32 %v5225, %v5382
      %v5394 = vsub.f32 %v5228, %v5382
      %v5395 = vsub.f32 %v5233, %v5382
      %v5396 = vsub.f32 %v5236, %v5382
      %v5397 = vsub.f32 %v5241, %v5382
      %v5398 = vsub.f32 %v5244, %v5382
      %v5399 = vsub.f32 %v5249, %v5382
      %v5400 = vsub.f32 %v5252, %v5382
      %v5401 = vsub.f32 %v5257, %v5382
      %v5402 = vsub.f32 %v5260, %v5382
      %v5403 = vsub.f32 %v5265, %v5382
      %v5404 = vsub.f32 %v5268, %v5382
      %v5405 = vsub.f32 %v5273, %v5382
      %v5406 = vsub.f32 %v5276, %v5382
      %v5407 = vsub.f32 %v5281, %v5382
      %v5408 = vsub.f32 %v5284, %v5382
      %v5409 = vsub.f32 %v5289, %v5382
      %v5410 = vsub.f32 %v5292, %v5382
      %v5411 = vsub.f32 %v5297, %v5382
      %v5412 = vsub.f32 %v5300, %v5382
      %v5413 = vsub.f32 %v5305, %v5382
      %v5414 = vsub.f32 %v5308, %v5382
      %v5415 = vmul.f32 %v5383, %v5383
      %v5416 = vmul.f32 %v5384, %v5384
      %v5417 = vmul.f32 %v5385, %v5385
      %v5418 = vmul.f32 %v5386, %v5386
      %v5419 = vmul.f32 %v5387, %v5387
      %v5420 = vmul.f32 %v5388, %v5388
      %v5421 = vmul.f32 %v5389, %v5389
      %v5422 = vmul.f32 %v5390, %v5390
      %v5423 = vmul.f32 %v5391, %v5391
      %v5424 = vmul.f32 %v5392, %v5392
      %v5425 = vmul.f32 %v5393, %v5393
      %v5426 = vmul.f32 %v5394, %v5394
      %v5427 = vmul.f32 %v5395, %v5395
      %v5428 = vmul.f32 %v5396, %v5396
      %v5429 = vmul.f32 %v5397, %v5397
      %v5430 = vmul.f32 %v5398, %v5398
      %v5431 = vmul.f32 %v5399, %v5399
      %v5432 = vmul.f32 %v5400, %v5400
      %v5433 = vmul.f32 %v5401, %v5401
      %v5434 = vmul.f32 %v5402, %v5402
      %v5435 = vmul.f32 %v5403, %v5403
      %v5436 = vmul.f32 %v5404, %v5404
      %v5437 = vmul.f32 %v5405, %v5405
      %v5438 = vmul.f32 %v5406, %v5406
      %v5439 = vmul.f32 %v5407, %v5407
      %v5440 = vmul.f32 %v5408, %v5408
      %v5441 = vmul.f32 %v5409, %v5409
      %v5442 = vmul.f32 %v5410, %v5410
      %v5443 = vmul.f32 %v5411, %v5411
      %v5444 = vmul.f32 %v5412, %v5412
      %v5445 = vmul.f32 %v5413, %v5413
      %v5446 = vmul.f32 %v5414, %v5414
      %v5447 = vsel %vm2965, %v5415, 0.0
      %v5448 = vsel %vm2965, %v5416, 0.0
      %v5449 = vadd.f32 %v5447, %v5448
      %v5450 = vsel %vm2965, %v5417, 0.0
      %v5451 = vadd.f32 %v5449, %v5450
      %v5452 = vsel %vm2965, %v5418, 0.0
      %v5453 = vadd.f32 %v5451, %v5452
      %v5454 = vsel %vm2965, %v5419, 0.0
      %v5455 = vadd.f32 %v5453, %v5454
      %v5456 = vsel %vm2965, %v5420, 0.0
      %v5457 = vadd.f32 %v5455, %v5456
      %v5458 = vsel %vm2965, %v5421, 0.0
      %v5459 = vadd.f32 %v5457, %v5458
      %v5460 = vsel %vm2965, %v5422, 0.0
      %v5461 = vadd.f32 %v5459, %v5460
      %v5462 = vsel %vm2965, %v5423, 0.0
      %v5463 = vadd.f32 %v5461, %v5462
      %v5464 = vsel %vm2965, %v5424, 0.0
      %v5465 = vadd.f32 %v5463, %v5464
      %v5466 = vsel %vm2965, %v5425, 0.0
      %v5467 = vadd.f32 %v5465, %v5466
      %v5468 = vsel %vm2965, %v5426, 0.0
      %v5469 = vadd.f32 %v5467, %v5468
      %v5470 = vsel %vm2965, %v5427, 0.0
      %v5471 = vadd.f32 %v5469, %v5470
      %v5472 = vsel %vm2965, %v5428, 0.0
      %v5473 = vadd.f32 %v5471, %v5472
      %v5474 = vsel %vm2965, %v5429, 0.0
      %v5475 = vadd.f32 %v5473, %v5474
      %v5476 = vsel %vm2965, %v5430, 0.0
      %v5477 = vadd.f32 %v5475, %v5476
      %v5478 = vsel %vm2965, %v5431, 0.0
      %v5479 = vadd.f32 %v5477, %v5478
      %v5480 = vsel %vm2965, %v5432, 0.0
      %v5481 = vadd.f32 %v5479, %v5480
      %v5482 = vsel %vm2965, %v5433, 0.0
      %v5483 = vadd.f32 %v5481, %v5482
      %v5484 = vsel %vm2965, %v5434, 0.0
      %v5485 = vadd.f32 %v5483, %v5484
      %v5486 = vsel %vm2965, %v5435, 0.0
      %v5487 = vadd.f32 %v5485, %v5486
      %v5488 = vsel %vm2965, %v5436, 0.0
      %v5489 = vadd.f32 %v5487, %v5488
      %v5490 = vsel %vm2965, %v5437, 0.0
      %v5491 = vadd.f32 %v5489, %v5490
      %v5492 = vsel %vm2965, %v5438, 0.0
      %v5493 = vadd.f32 %v5491, %v5492
      %v5494 = vsel %vm2965, %v5439, 0.0
      %v5495 = vadd.f32 %v5493, %v5494
      %v5496 = vsel %vm2965, %v5440, 0.0
      %v5497 = vadd.f32 %v5495, %v5496
      %v5498 = vsel %vm2965, %v5441, 0.0
      %v5499 = vadd.f32 %v5497, %v5498
      %v5500 = vsel %vm2965, %v5442, 0.0
      %v5501 = vadd.f32 %v5499, %v5500
      %v5502 = vsel %vm2965, %v5443, 0.0
      %v5503 = vadd.f32 %v5501, %v5502
      %v5504 = vsel %vm2965, %v5444, 0.0
      %v5505 = vadd.f32 %v5503, %v5504
      %v5506 = vsel %vm2965, %v5445, 0.0
      %v5507 = vadd.f32 %v5505, %v5506
      %v5508 = vsel %vm2965, %v5446, 0.0
      %v5509 = vadd.f32 %v5507, %v5508
      %v5510 = vrot.slane %v5509, 4
      %v5511 = vadd.f32 %v5509, %v5510
      %v5512 = vrot.slane %v5511, 2
      %v5513 = vadd.f32 %v5511, %v5512
      %v5514 = vrot.slane %v5513, 1
      %v5515 = vadd.f32 %v5513, %v5514
      %v5516 = vmul.f32 %v5515, 0.00390625
      %v5517 = vadd.f32 %v5516, 1e-05
      %v5518 = vrsqrt.pop %v5517
      %v5519 = vmul.f32 %v5383, %v5518
      %v5520 = vmul.f32 %v5384, %v5518
      %v5521 = vmul.f32 %v5385, %v5518
      %v5522 = vmul.f32 %v5386, %v5518
      %v5523 = vmul.f32 %v5387, %v5518
      %v5524 = vmul.f32 %v5388, %v5518
      %v5525 = vmul.f32 %v5389, %v5518
      %v5526 = vmul.f32 %v5390, %v5518
      %v5527 = vmul.f32 %v5391, %v5518
      %v5528 = vmul.f32 %v5392, %v5518
      %v5529 = vmul.f32 %v5393, %v5518
      %v5530 = vmul.f32 %v5394, %v5518
      %v5531 = vmul.f32 %v5395, %v5518
      %v5532 = vmul.f32 %v5396, %v5518
      %v5533 = vmul.f32 %v5397, %v5518
      %v5534 = vmul.f32 %v5398, %v5518
      %v5535 = vmul.f32 %v5399, %v5518
      %v5536 = vmul.f32 %v5400, %v5518
      %v5537 = vmul.f32 %v5401, %v5518
      %v5538 = vmul.f32 %v5402, %v5518
      %v5539 = vmul.f32 %v5403, %v5518
      %v5540 = vmul.f32 %v5404, %v5518
      %v5541 = vmul.f32 %v5405, %v5518
      %v5542 = vmul.f32 %v5406, %v5518
      %v5543 = vmul.f32 %v5407, %v5518
      %v5544 = vmul.f32 %v5408, %v5518
      %v5545 = vmul.f32 %v5409, %v5518
      %v5546 = vmul.f32 %v5410, %v5518
      %v5547 = vmul.f32 %v5411, %v5518
      %v5548 = vmul.f32 %v5412, %v5518
      %v5549 = vmul.f32 %v5413, %v5518
      %v5550 = vmul.f32 %v5414, %v5518
      %v5552 = vlaneseq
      %v5553 = vshrl.u32 %v5552, 7
      %v5554 = vsub.s32 0, %v5553
      %v5555 = vrot.slane %v5311, %v5554
      %v5557 = vmul.f32 %v5519, %v5555
      %v5558 = vmul.f32 %v5520, %v5555
      %v5559 = vmul.f32 %v5521, %v5555
      %v5560 = vmul.f32 %v5522, %v5555
      %v5561 = vmul.f32 %v5523, %v5555
      %v5562 = vmul.f32 %v5524, %v5555
      %v5563 = vmul.f32 %v5525, %v5555
      %v5564 = vmul.f32 %v5526, %v5555
      %v5565 = vmul.f32 %v5527, %v5555
      %v5566 = vmul.f32 %v5528, %v5555
      %v5567 = vmul.f32 %v5529, %v5555
      %v5568 = vmul.f32 %v5530, %v5555
      %v5569 = vmul.f32 %v5531, %v5555
      %v5570 = vmul.f32 %v5532, %v5555
      %v5571 = vmul.f32 %v5533, %v5555
      %v5572 = vmul.f32 %v5534, %v5555
      %v5573 = vmul.f32 %v5535, %v5555
      %v5574 = vmul.f32 %v5536, %v5555
      %v5575 = vmul.f32 %v5537, %v5555
      %v5576 = vmul.f32 %v5538, %v5555
      %v5577 = vmul.f32 %v5539, %v5555
      %v5578 = vmul.f32 %v5540, %v5555
      %v5579 = vmul.f32 %v5541, %v5555
      %v5580 = vmul.f32 %v5542, %v5555
      %v5581 = vmul.f32 %v5543, %v5555
      %v5582 = vmul.f32 %v5544, %v5555
      %v5583 = vmul.f32 %v5545, %v5555
      %v5584 = vmul.f32 %v5546, %v5555
      %v5585 = vmul.f32 %v5547, %v5555
      %v5586 = vmul.f32 %v5548, %v5555
      %v5587 = vmul.f32 %v5549, %v5555
      %v5588 = vmul.f32 %v5550, %v5555
      %v5590 = vlaneseq
      %v5591 = vshrl.u32 %v5590, 7
      %v5592 = vsub.s32 0, %v5591
      %v5593 = vrot.slane %v5312, %v5592
      %v5595 = vadd.f32 %v5557, %v5593
      %v5596 = vadd.f32 %v5558, %v5593
      %v5597 = vadd.f32 %v5559, %v5593
      %v5598 = vadd.f32 %v5560, %v5593
      %v5599 = vadd.f32 %v5561, %v5593
      %v5600 = vadd.f32 %v5562, %v5593
      %v5601 = vadd.f32 %v5563, %v5593
      %v5602 = vadd.f32 %v5564, %v5593
      %v5603 = vadd.f32 %v5565, %v5593
      %v5604 = vadd.f32 %v5566, %v5593
      %v5605 = vadd.f32 %v5567, %v5593
      %v5606 = vadd.f32 %v5568, %v5593
      %v5607 = vadd.f32 %v5569, %v5593
      %v5608 = vadd.f32 %v5570, %v5593
      %v5609 = vadd.f32 %v5571, %v5593
      %v5610 = vadd.f32 %v5572, %v5593
      %v5611 = vadd.f32 %v5573, %v5593
      %v5612 = vadd.f32 %v5574, %v5593
      %v5613 = vadd.f32 %v5575, %v5593
      %v5614 = vadd.f32 %v5576, %v5593
      %v5615 = vadd.f32 %v5577, %v5593
      %v5616 = vadd.f32 %v5578, %v5593
      %v5617 = vadd.f32 %v5579, %v5593
      %v5618 = vadd.f32 %v5580, %v5593
      %v5619 = vadd.f32 %v5581, %v5593
      %v5620 = vadd.f32 %v5582, %v5593
      %v5621 = vadd.f32 %v5583, %v5593
      %v5622 = vadd.f32 %v5584, %v5593
      %v5623 = vadd.f32 %v5585, %v5593
      %v5624 = vadd.f32 %v5586, %v5593
      %v5625 = vadd.f32 %v5587, %v5593
      %v5626 = vadd.f32 %v5588, %v5593
      %vm5627 = vcmp.ge.f32.partialorder %v5595, 0.0
      %vm5628 = vcmp.ge.f32.partialorder %v5596, 0.0
      %vm5629 = vcmp.ge.f32.partialorder %v5597, 0.0
      %vm5630 = vcmp.ge.f32.partialorder %v5598, 0.0
      %vm5631 = vcmp.ge.f32.partialorder %v5599, 0.0
      %vm5632 = vcmp.ge.f32.partialorder %v5600, 0.0
      %vm5633 = vcmp.ge.f32.partialorder %v5601, 0.0
      %vm5634 = vcmp.ge.f32.partialorder %v5602, 0.0
      %vm5635 = vcmp.ge.f32.partialorder %v5603, 0.0
      %vm5636 = vcmp.ge.f32.partialorder %v5604, 0.0
      %vm5637 = vcmp.ge.f32.partialorder %v5605, 0.0
      %vm5638 = vcmp.ge.f32.partialorder %v5606, 0.0
      %vm5639 = vcmp.ge.f32.partialorder %v5607, 0.0
      %vm5640 = vcmp.ge.f32.partialorder %v5608, 0.0
      %vm5641 = vcmp.ge.f32.partialorder %v5609, 0.0
      %vm5642 = vcmp.ge.f32.partialorder %v5610, 0.0
      %vm5643 = vcmp.ge.f32.partialorder %v5611, 0.0
      %vm5644 = vcmp.ge.f32.partialorder %v5612, 0.0
      %vm5645 = vcmp.ge.f32.partialorder %v5613, 0.0
      %vm5646 = vcmp.ge.f32.partialorder %v5614, 0.0
      %vm5647 = vcmp.ge.f32.partialorder %v5615, 0.0
      %vm5648 = vcmp.ge.f32.partialorder %v5616, 0.0
      %vm5649 = vcmp.ge.f32.partialorder %v5617, 0.0
      %vm5650 = vcmp.ge.f32.partialorder %v5618, 0.0
      %vm5651 = vcmp.ge.f32.partialorder %v5619, 0.0
      %vm5652 = vcmp.ge.f32.partialorder %v5620, 0.0
      %vm5653 = vcmp.ge.f32.partialorder %v5621, 0.0
      %vm5654 = vcmp.ge.f32.partialorder %v5622, 0.0
      %vm5655 = vcmp.ge.f32.partialorder %v5623, 0.0
      %vm5656 = vcmp.ge.f32.partialorder %v5624, 0.0
      %vm5657 = vcmp.ge.f32.partialorder %v5625, 0.0
      %vm5658 = vcmp.ge.f32.partialorder %v5626, 0.0
      %v5659 = vmul.f32 %v5595, 0.01
      %v5660 = vmul.f32 %v5596, 0.01
      %v5661 = vmul.f32 %v5597, 0.01
      %v5662 = vmul.f32 %v5598, 0.01
      %v5663 = vmul.f32 %v5599, 0.01
      %v5664 = vmul.f32 %v5600, 0.01
      %v5665 = vmul.f32 %v5601, 0.01
      %v5666 = vmul.f32 %v5602, 0.01
      %v5667 = vmul.f32 %v5603, 0.01
      %v5668 = vmul.f32 %v5604, 0.01
      %v5669 = vmul.f32 %v5605, 0.01
      %v5670 = vmul.f32 %v5606, 0.01
      %v5671 = vmul.f32 %v5607, 0.01
      %v5672 = vmul.f32 %v5608, 0.01
      %v5673 = vmul.f32 %v5609, 0.01
      %v5674 = vmul.f32 %v5610, 0.01
      %v5675 = vmul.f32 %v5611, 0.01
      %v5676 = vmul.f32 %v5612, 0.01
      %v5677 = vmul.f32 %v5613, 0.01
      %v5678 = vmul.f32 %v5614, 0.01
      %v5679 = vmul.f32 %v5615, 0.01
      %v5680 = vmul.f32 %v5616, 0.01
      %v5681 = vmul.f32 %v5617, 0.01
      %v5682 = vmul.f32 %v5618, 0.01
      %v5683 = vmul.f32 %v5619, 0.01
      %v5684 = vmul.f32 %v5620, 0.01
      %v5685 = vmul.f32 %v5621, 0.01
      %v5686 = vmul.f32 %v5622, 0.01
      %v5687 = vmul.f32 %v5623, 0.01
      %v5688 = vmul.f32 %v5624, 0.01
      %v5689 = vmul.f32 %v5625, 0.01
      %v5690 = vmul.f32 %v5626, 0.01
      %v5691 = vsel %vm5627, %v5595, %v5659
      %v5692 = vsel %vm5628, %v5596, %v5660
      %v5693 = vsel %vm5629, %v5597, %v5661
      %v5694 = vsel %vm5630, %v5598, %v5662
      %v5695 = vsel %vm5631, %v5599, %v5663
      %v5696 = vsel %vm5632, %v5600, %v5664
      %v5697 = vsel %vm5633, %v5601, %v5665
      %v5698 = vsel %vm5634, %v5602, %v5666
      %v5699 = vsel %vm5635, %v5603, %v5667
      %v5700 = vsel %vm5636, %v5604, %v5668
      %v5701 = vsel %vm5637, %v5605, %v5669
      %v5702 = vsel %vm5638, %v5606, %v5670
      %v5703 = vsel %vm5639, %v5607, %v5671
      %v5704 = vsel %vm5640, %v5608, %v5672
      %v5705 = vsel %vm5641, %v5609, %v5673
      %v5706 = vsel %vm5642, %v5610, %v5674
      %v5707 = vsel %vm5643, %v5611, %v5675
      %v5708 = vsel %vm5644, %v5612, %v5676
      %v5709 = vsel %vm5645, %v5613, %v5677
      %v5710 = vsel %vm5646, %v5614, %v5678
      %v5711 = vsel %vm5647, %v5615, %v5679
      %v5712 = vsel %vm5648, %v5616, %v5680
      %v5713 = vsel %vm5649, %v5617, %v5681
      %v5714 = vsel %vm5650, %v5618, %v5682
      %v5715 = vsel %vm5651, %v5619, %v5683
      %v5716 = vsel %vm5652, %v5620, %v5684
      %v5717 = vsel %vm5653, %v5621, %v5685
      %v5718 = vsel %vm5654, %v5622, %v5686
      %v5719 = vsel %vm5655, %v5623, %v5687
      %v5720 = vsel %vm5656, %v5624, %v5688
      %v5721 = vsel %vm5657, %v5625, %v5689
      %v5722 = vsel %vm5658, %v5626, %v5690
      %5723 = vst.msk [vmem:[%s3421 + $0x1] sm:$0xff] %vm2965, %v5691
      %5724 = vst.msk [vmem:[%s3421 + $0x9] sm:$0xff] %vm2965, %v5692
      %5725 = vst.msk [vmem:[%s3421 + $0x19] sm:$0xff] %vm2965, %v5693
      %5726 = vst.msk [vmem:[%s3421 + $0x21] sm:$0xff] %vm2965, %v5694
      %5727 = vst.msk [vmem:[%s3421 + $0x31] sm:$0xff] %vm2965, %v5695
      %5728 = vst.msk [vmem:[%s3421 + $0x39] sm:$0xff] %vm2965, %v5696
      %5729 = vst.msk [vmem:[%s3421 + $0x49] sm:$0xff] %vm2965, %v5697
      %5730 = vst.msk [vmem:[%s3421 + $0x51] sm:$0xff] %vm2965, %v5698
      %5731 = vst.msk [vmem:[%s3421 + $0x61] sm:$0xff] %vm2965, %v5699
      %5732 = vst.msk [vmem:[%s3421 + $0x69] sm:$0xff] %vm2965, %v5700
      %5733 = vst.msk [vmem:[%s3421 + $0x79] sm:$0xff] %vm2965, %v5701
      %5734 = vst.msk [vmem:[%s3421 + $0x81] sm:$0xff] %vm2965, %v5702
      %5735 = vst.msk [vmem:[%s3421 + $0x91] sm:$0xff] %vm2965, %v5703
      %5736 = vst.msk [vmem:[%s3421 + $0x99] sm:$0xff] %vm2965, %v5704
      %5737 = vst.msk [vmem:[%s3421 + $0xa9] sm:$0xff] %vm2965, %v5705
      %5738 = vst.msk [vmem:[%s3421 + $0xb1] sm:$0xff] %vm2965, %v5706
      %5739 = vst.msk [vmem:[%s3421 + $0xc1] sm:$0xff] %vm2965, %v5707
      %5740 = vst.msk [vmem:[%s3421 + $0xc9] sm:$0xff] %vm2965, %v5708
      %5741 = vst.msk [vmem:[%s3421 + $0xd9] sm:$0xff] %vm2965, %v5709
      %5742 = vst.msk [vmem:[%s3421 + $0xe1] sm:$0xff] %vm2965, %v5710
      %5743 = vst.msk [vmem:[%s3421 + $0xf1] sm:$0xff] %vm2965, %v5711
      %5744 = vst.msk [vmem:[%s3421 + $0xf9] sm:$0xff] %vm2965, %v5712
      %5745 = vst.msk [vmem:[%s3421 + $0x109] sm:$0xff] %vm2965, %v5713
      %5746 = vst.msk [vmem:[%s3421 + $0x111] sm:$0xff] %vm2965, %v5714
      %5747 = vst.msk [vmem:[%s3421 + $0x121] sm:$0xff] %vm2965, %v5715
      %5748 = vst.msk [vmem:[%s3421 + $0x129] sm:$0xff] %vm2965, %v5716
      %5749 = vst.msk [vmem:[%s3421 + $0x139] sm:$0xff] %vm2965, %v5717
      %5750 = vst.msk [vmem:[%s3421 + $0x141] sm:$0xff] %vm2965, %v5718
      %5751 = vst.msk [vmem:[%s3421 + $0x151] sm:$0xff] %vm2965, %v5719
      %5752 = vst.msk [vmem:[%s3421 + $0x159] sm:$0xff] %vm2965, %v5720
      %5753 = vst.msk [vmem:[%s3421 + $0x169] sm:$0xff] %vm2965, %v5721
      %5754 = vst.msk [vmem:[%s3421 + $0x171] sm:$0xff] %vm2965, %v5722
      %v5755 = vld [vmem:[#allocation2] sm:$0xff]
      %v5756 = vld [vmem:[#allocation2 + $0x8] sm:$0xff]
      %v5757 = vld [vmem:[#allocation2 + $0x18] sm:$0xff]
      %v5758 = vld [vmem:[#allocation2 + $0x20] sm:$0xff]
      %v5759 = vld [vmem:[#allocation2 + $0x30] sm:$0xff]
      %v5760 = vld [vmem:[#allocation2 + $0x38] sm:$0xff]
      %v5761 = vld [vmem:[#allocation2 + $0x48] sm:$0xff]
      %v5762 = vld [vmem:[#allocation2 + $0x50] sm:$0xff]
      %v5763 = vld [vmem:[#allocation2 + $0x60] sm:$0xff]
      %v5764 = vld [vmem:[#allocation2 + $0x68] sm:$0xff]
      %v5765 = vld [vmem:[#allocation2 + $0x78] sm:$0xff]
      %v5766 = vld [vmem:[#allocation2 + $0x80] sm:$0xff]
      %v5767 = vld [vmem:[#allocation2 + $0x90] sm:$0xff]
      %v5768 = vld [vmem:[#allocation2 + $0x98] sm:$0xff]
      %v5769 = vld [vmem:[#allocation2 + $0xa8] sm:$0xff]
      %v5770 = vld [vmem:[#allocation2 + $0xb0] sm:$0xff]
      %v5771 = vld [vmem:[#allocation2 + $0xc0] sm:$0xff]
      %v5772 = vld [vmem:[#allocation2 + $0xc8] sm:$0xff]
      %v5773 = vld [vmem:[#allocation2 + $0xd8] sm:$0xff]
      %v5774 = vld [vmem:[#allocation2 + $0xe0] sm:$0xff]
      %v5775 = vld [vmem:[#allocation2 + $0xf0] sm:$0xff]
      %v5776 = vld [vmem:[#allocation2 + $0xf8] sm:$0xff]
      %v5777 = vld [vmem:[#allocation2 + $0x108] sm:$0xff]
      %v5778 = vld [vmem:[#allocation2 + $0x110] sm:$0xff]
      %v5779 = vld [vmem:[#allocation2 + $0x120] sm:$0xff]
      %v5780 = vld [vmem:[#allocation2 + $0x128] sm:$0xff]
      %v5781 = vld [vmem:[#allocation2 + $0x138] sm:$0xff]
      %v5782 = vld [vmem:[#allocation2 + $0x140] sm:$0xff]
      %v5783 = vld [vmem:[#allocation2 + $0x150] sm:$0xff]
      %v5784 = vld [vmem:[#allocation2 + $0x158] sm:$0xff]
      %v5785 = vld [vmem:[#allocation2 + $0x168] sm:$0xff]
      %v5786 = vld [vmem:[#allocation2 + $0x170] sm:$0xff]
      %5787 = vst.msk [vmem:[#allocation3] sm:$0xff] %vm2965, %v5755
      %5788 = vst.msk [vmem:[#allocation3 + $0x10] sm:$0xff] %vm2965, %v5756
      %5789 = vst.msk [vmem:[#allocation3 + $0x20] sm:$0xff] %vm2965, %v5757
      %5790 = vst.msk [vmem:[#allocation3 + $0x30] sm:$0xff] %vm2965, %v5758
      %5791 = vst.msk [vmem:[#allocation3 + $0x40] sm:$0xff] %vm2965, %v5759
      %5792 = vst.msk [vmem:[#allocation3 + $0x50] sm:$0xff] %vm2965, %v5760
      %5793 = vst.msk [vmem:[#allocation3 + $0x60] sm:$0xff] %vm2965, %v5761
      %5794 = vst.msk [vmem:[#allocation3 + $0x70] sm:$0xff] %vm2965, %v5762
      %5795 = vst.msk [vmem:[#allocation3 + $0x80] sm:$0xff] %vm2965, %v5763
      %5796 = vst.msk [vmem:[#allocation3 + $0x90] sm:$0xff] %vm2965, %v5764
      %5797 = vst.msk [vmem:[#allocation3 + $0xa0] sm:$0xff] %vm2965, %v5765
      %5798 = vst.msk [vmem:[#allocation3 + $0xb0] sm:$0xff] %vm2965, %v5766
      %5799 = vst.msk [vmem:[#allocation3 + $0xc0] sm:$0xff] %vm2965, %v5767
      %5800 = vst.msk [vmem:[#allocation3 + $0xd0] sm:$0xff] %vm2965, %v5768
      %5801 = vst.msk [vmem:[#allocation3 + $0xe0] sm:$0xff] %vm2965, %v5769
      %5802 = vst.msk [vmem:[#allocation3 + $0xf0] sm:$0xff] %vm2965, %v5770
      %5803 = vst.msk [vmem:[#allocation3 + $0x100] sm:$0xff] %vm2965, %v5771
      %5804 = vst.msk [vmem:[#allocation3 + $0x110] sm:$0xff] %vm2965, %v5772
      %5805 = vst.msk [vmem:[#allocation3 + $0x120] sm:$0xff] %vm2965, %v5773
      %5806 = vst.msk [vmem:[#allocation3 + $0x130] sm:$0xff] %vm2965, %v5774
      %5807 = vst.msk [vmem:[#allocation3 + $0x140] sm:$0xff] %vm2965, %v5775
      %5808 = vst.msk [vmem:[#allocation3 + $0x150] sm:$0xff] %vm2965, %v5776
      %5809 = vst.msk [vmem:[#allocation3 + $0x160] sm:$0xff] %vm2965, %v5777
      %5810 = vst.msk [vmem:[#allocation3 + $0x170] sm:$0xff] %vm2965, %v5778
      %5811 = vst.msk [vmem:[#allocation3 + $0x180] sm:$0xff] %vm2965, %v5779
      %5812 = vst.msk [vmem:[#allocation3 + $0x190] sm:$0xff] %vm2965, %v5780
      %5813 = vst.msk [vmem:[#allocation3 + $0x1a0] sm:$0xff] %vm2965, %v5781
      %5814 = vst.msk [vmem:[#allocation3 + $0x1b0] sm:$0xff] %vm2965, %v5782
      %5815 = vst.msk [vmem:[#allocation3 + $0x1c0] sm:$0xff] %vm2965, %v5783
      %5816 = vst.msk [vmem:[#allocation3 + $0x1d0] sm:$0xff] %vm2965, %v5784
      %5817 = vst.msk [vmem:[#allocation3 + $0x1e0] sm:$0xff] %vm2965, %v5785
      %5818 = vst.msk [vmem:[#allocation3 + $0x1f0] sm:$0xff] %vm2965, %v5786
      %v5819 = vld [vmem:[#allocation2 + $0x1] sm:$0xff]
      %v5820 = vld [vmem:[#allocation2 + $0x9] sm:$0xff]
      %v5821 = vld [vmem:[#allocation2 + $0x19] sm:$0xff]
      %v5822 = vld [vmem:[#allocation2 + $0x21] sm:$0xff]
      %v5823 = vld [vmem:[#allocation2 + $0x31] sm:$0xff]
      %v5824 = vld [vmem:[#allocation2 + $0x39] sm:$0xff]
      %v5825 = vld [vmem:[#allocation2 + $0x49] sm:$0xff]
      %v5826 = vld [vmem:[#allocation2 + $0x51] sm:$0xff]
      %v5827 = vld [vmem:[#allocation2 + $0x61] sm:$0xff]
      %v5828 = vld [vmem:[#allocation2 + $0x69] sm:$0xff]
      %v5829 = vld [vmem:[#allocation2 + $0x79] sm:$0xff]
      %v5830 = vld [vmem:[#allocation2 + $0x81] sm:$0xff]
      %v5831 = vld [vmem:[#allocation2 + $0x91] sm:$0xff]
      %v5832 = vld [vmem:[#allocation2 + $0x99] sm:$0xff]
      %v5833 = vld [vmem:[#allocation2 + $0xa9] sm:$0xff]
      %v5834 = vld [vmem:[#allocation2 + $0xb1] sm:$0xff]
      %v5835 = vld [vmem:[#allocation2 + $0xc1] sm:$0xff]
      %v5836 = vld [vmem:[#allocation2 + $0xc9] sm:$0xff]
      %v5837 = vld [vmem:[#allocation2 + $0xd9] sm:$0xff]
      %v5838 = vld [vmem:[#allocation2 + $0xe1] sm:$0xff]
      %v5839 = vld [vmem:[#allocation2 + $0xf1] sm:$0xff]
      %v5840 = vld [vmem:[#allocation2 + $0xf9] sm:$0xff]
      %v5841 = vld [vmem:[#allocation2 + $0x109] sm:$0xff]
      %v5842 = vld [vmem:[#allocation2 + $0x111] sm:$0xff]
      %v5843 = vld [vmem:[#allocation2 + $0x121] sm:$0xff]
      %v5844 = vld [vmem:[#allocation2 + $0x129] sm:$0xff]
      %v5845 = vld [vmem:[#allocation2 + $0x139] sm:$0xff]
      %v5846 = vld [vmem:[#allocation2 + $0x141] sm:$0xff]
      %v5847 = vld [vmem:[#allocation2 + $0x151] sm:$0xff]
      %v5848 = vld [vmem:[#allocation2 + $0x159] sm:$0xff]
      %v5849 = vld [vmem:[#allocation2 + $0x169] sm:$0xff]
      %v5850 = vld [vmem:[#allocation2 + $0x171] sm:$0xff]
      %5883 = vrot.lane.b32.xlu0 %v5819, 16
      %v5884 = vpop.permute.xlu0 %5883
      %5885 = vrot.lane.b32.xlu0 %v5820, 16
      %v5886 = vpop.permute.xlu0 %5885
      %5887 = vrot.lane.b32.xlu0 %v5821, 16
      %v5888 = vpop.permute.xlu0 %5887
      %5889 = vrot.lane.b32.xlu0 %v5822, 16
      %v5890 = vpop.permute.xlu0 %5889
      %5891 = vrot.lane.b32.xlu0 %v5823, 16
      %v5892 = vpop.permute.xlu0 %5891
      %5893 = vrot.lane.b32.xlu0 %v5824, 16
      %v5894 = vpop.permute.xlu0 %5893
      %5895 = vrot.lane.b32.xlu0 %v5825, 16
      %v5896 = vpop.permute.xlu0 %5895
      %5897 = vrot.lane.b32.xlu0 %v5826, 16
      %v5898 = vpop.permute.xlu0 %5897
      %5899 = vrot.lane.b32.xlu0 %v5827, 16
      %v5900 = vpop.permute.xlu0 %5899
      %5901 = vrot.lane.b32.xlu0 %v5828, 16
      %v5902 = vpop.permute.xlu0 %5901
      %5903 = vrot.lane.b32.xlu0 %v5829, 16
      %v5904 = vpop.permute.xlu0 %5903
      %5905 = vrot.lane.b32.xlu0 %v5830, 16
      %v5906 = vpop.permute.xlu0 %5905
      %5907 = vrot.lane.b32.xlu0 %v5831, 16
      %v5908 = vpop.permute.xlu0 %5907
      %5909 = vrot.lane.b32.xlu0 %v5832, 16
      %v5910 = vpop.permute.xlu0 %5909
      %5911 = vrot.lane.b32.xlu0 %v5833, 16
      %v5912 = vpop.permute.xlu0 %5911
      %5913 = vrot.lane.b32.xlu0 %v5834, 16
      %v5914 = vpop.permute.xlu0 %5913
      %5915 = vrot.lane.b32.xlu0 %v5835, 16
      %v5916 = vpop.permute.xlu0 %5915
      %5917 = vrot.lane.b32.xlu0 %v5836, 16
      %v5918 = vpop.permute.xlu0 %5917
      %5919 = vrot.lane.b32.xlu0 %v5837, 16
      %v5920 = vpop.permute.xlu0 %5919
      %5921 = vrot.lane.b32.xlu0 %v5838, 16
      %v5922 = vpop.permute.xlu0 %5921
      %5923 = vrot.lane.b32.xlu0 %v5839, 16
      %v5924 = vpop.permute.xlu0 %5923
      %5925 = vrot.lane.b32.xlu0 %v5840, 16
      %v5926 = vpop.permute.xlu0 %5925
      %5927 = vrot.lane.b32.xlu0 %v5841, 16
      %v5928 = vpop.permute.xlu0 %5927
      %5929 = vrot.lane.b32.xlu0 %v5842, 16
      %v5930 = vpop.permute.xlu0 %5929
      %5931 = vrot.lane.b32.xlu0 %v5843, 16
      %v5932 = vpop.permute.xlu0 %5931
      %5933 = vrot.lane.b32.xlu0 %v5844, 16
      %v5934 = vpop.permute.xlu0 %5933
      %5935 = vrot.lane.b32.xlu0 %v5845, 16
      %v5936 = vpop.permute.xlu0 %5935
      %5937 = vrot.lane.b32.xlu0 %v5846, 16
      %v5938 = vpop.permute.xlu0 %5937
      %5939 = vrot.lane.b32.xlu0 %v5847, 16
      %v5940 = vpop.permute.xlu0 %5939
      %5941 = vrot.lane.b32.xlu0 %v5848, 16
      %v5942 = vpop.permute.xlu0 %5941
      %5943 = vrot.lane.b32.xlu0 %v5849, 16
      %v5944 = vpop.permute.xlu0 %5943
      %5945 = vrot.lane.b32.xlu0 %v5850, 16
      %v5946 = vpop.permute.xlu0 %5945
      %5979 = vst.msk [vmem:[#allocation3] sm:$0xff] %vm3678, %v5884
      %5980 = vst.msk [vmem:[#allocation3 + $0x10] sm:$0xff] %vm3678, %v5886
      %5981 = vst.msk [vmem:[#allocation3 + $0x20] sm:$0xff] %vm3678, %v5888
      %5982 = vst.msk [vmem:[#allocation3 + $0x30] sm:$0xff] %vm3678, %v5890
      %5983 = vst.msk [vmem:[#allocation3 + $0x40] sm:$0xff] %vm3678, %v5892
      %5984 = vst.msk [vmem:[#allocation3 + $0x50] sm:$0xff] %vm3678, %v5894
      %5985 = vst.msk [vmem:[#allocation3 + $0x60] sm:$0xff] %vm3678, %v5896
      %5986 = vst.msk [vmem:[#allocation3 + $0x70] sm:$0xff] %vm3678, %v5898
      %5987 = vst.msk [vmem:[#allocation3 + $0x80] sm:$0xff] %vm3678, %v5900
      %5988 = vst.msk [vmem:[#allocation3 + $0x90] sm:$0xff] %vm3678, %v5902
      %5989 = vst.msk [vmem:[#allocation3 + $0xa0] sm:$0xff] %vm3678, %v5904
      %5990 = vst.msk [vmem:[#allocation3 + $0xb0] sm:$0xff] %vm3678, %v5906
      %5991 = vst.msk [vmem:[#allocation3 + $0xc0] sm:$0xff] %vm3678, %v5908
      %5992 = vst.msk [vmem:[#allocation3 + $0xd0] sm:$0xff] %vm3678, %v5910
      %5993 = vst.msk [vmem:[#allocation3 + $0xe0] sm:$0xff] %vm3678, %v5912
      %5994 = vst.msk [vmem:[#allocation3 + $0xf0] sm:$0xff] %vm3678, %v5914
      %5995 = vst.msk [vmem:[#allocation3 + $0x100] sm:$0xff] %vm3678, %v5916
      %5996 = vst.msk [vmem:[#allocation3 + $0x110] sm:$0xff] %vm3678, %v5918
      %5997 = vst.msk [vmem:[#allocation3 + $0x120] sm:$0xff] %vm3678, %v5920
      %5998 = vst.msk [vmem:[#allocation3 + $0x130] sm:$0xff] %vm3678, %v5922
      %5999 = vst.msk [vmem:[#allocation3 + $0x140] sm:$0xff] %vm3678, %v5924
      %6000 = vst.msk [vmem:[#allocation3 + $0x150] sm:$0xff] %vm3678, %v5926
      %6001 = vst.msk [vmem:[#allocation3 + $0x160] sm:$0xff] %vm3678, %v5928
      %6002 = vst.msk [vmem:[#allocation3 + $0x170] sm:$0xff] %vm3678, %v5930
      %6003 = vst.msk [vmem:[#allocation3 + $0x180] sm:$0xff] %vm3678, %v5932
      %6004 = vst.msk [vmem:[#allocation3 + $0x190] sm:$0xff] %vm3678, %v5934
      %6005 = vst.msk [vmem:[#allocation3 + $0x1a0] sm:$0xff] %vm3678, %v5936
      %6006 = vst.msk [vmem:[#allocation3 + $0x1b0] sm:$0xff] %vm3678, %v5938
      %6007 = vst.msk [vmem:[#allocation3 + $0x1c0] sm:$0xff] %vm3678, %v5940
      %6008 = vst.msk [vmem:[#allocation3 + $0x1d0] sm:$0xff] %vm3678, %v5942
      %6009 = vst.msk [vmem:[#allocation3 + $0x1e0] sm:$0xff] %vm3678, %v5944
      %6010 = vst.msk [vmem:[#allocation3 + $0x1f0] sm:$0xff] %vm3678, %v5946
      %v6011 = vld [vmem:[#allocation2 + $0x2] sm:$0xff]
      %v6012 = vld [vmem:[#allocation2 + $0xa] sm:$0xff]
      %v6013 = vld [vmem:[#allocation2 + $0x1a] sm:$0xff]
      %v6014 = vld [vmem:[#allocation2 + $0x22] sm:$0xff]
      %v6015 = vld [vmem:[#allocation2 + $0x32] sm:$0xff]
      %v6016 = vld [vmem:[#allocation2 + $0x3a] sm:$0xff]
      %v6017 = vld [vmem:[#allocation2 + $0x4a] sm:$0xff]
      %v6018 = vld [vmem:[#allocation2 + $0x52] sm:$0xff]
      %v6019 = vld [vmem:[#allocation2 + $0x62] sm:$0xff]
      %v6020 = vld [vmem:[#allocation2 + $0x6a] sm:$0xff]
      %v6021 = vld [vmem:[#allocation2 + $0x7a] sm:$0xff]
      %v6022 = vld [vmem:[#allocation2 + $0x82] sm:$0xff]
      %v6023 = vld [vmem:[#allocation2 + $0x92] sm:$0xff]
      %v6024 = vld [vmem:[#allocation2 + $0x9a] sm:$0xff]
      %v6025 = vld [vmem:[#allocation2 + $0xaa] sm:$0xff]
      %v6026 = vld [vmem:[#allocation2 + $0xb2] sm:$0xff]
      %v6027 = vld [vmem:[#allocation2 + $0xc2] sm:$0xff]
      %v6028 = vld [vmem:[#allocation2 + $0xca] sm:$0xff]
      %v6029 = vld [vmem:[#allocation2 + $0xda] sm:$0xff]
      %v6030 = vld [vmem:[#allocation2 + $0xe2] sm:$0xff]
      %v6031 = vld [vmem:[#allocation2 + $0xf2] sm:$0xff]
      %v6032 = vld [vmem:[#allocation2 + $0xfa] sm:$0xff]
      %v6033 = vld [vmem:[#allocation2 + $0x10a] sm:$0xff]
      %v6034 = vld [vmem:[#allocation2 + $0x112] sm:$0xff]
      %v6035 = vld [vmem:[#allocation2 + $0x122] sm:$0xff]
      %v6036 = vld [vmem:[#allocation2 + $0x12a] sm:$0xff]
      %v6037 = vld [vmem:[#allocation2 + $0x13a] sm:$0xff]
      %v6038 = vld [vmem:[#allocation2 + $0x142] sm:$0xff]
      %v6039 = vld [vmem:[#allocation2 + $0x152] sm:$0xff]
      %v6040 = vld [vmem:[#allocation2 + $0x15a] sm:$0xff]
      %v6041 = vld [vmem:[#allocation2 + $0x16a] sm:$0xff]
      %v6042 = vld [vmem:[#allocation2 + $0x172] sm:$0xff]
      %6075 = vrot.lane.b32.xlu0 %v6011, 32
      %v6076 = vpop.permute.xlu0 %6075
      %6077 = vrot.lane.b32.xlu0 %v6012, 32
      %v6078 = vpop.permute.xlu0 %6077
      %6079 = vrot.lane.b32.xlu0 %v6013, 32
      %v6080 = vpop.permute.xlu0 %6079
      %6081 = vrot.lane.b32.xlu0 %v6014, 32
      %v6082 = vpop.permute.xlu0 %6081
      %6083 = vrot.lane.b32.xlu0 %v6015, 32
      %v6084 = vpop.permute.xlu0 %6083
      %6085 = vrot.lane.b32.xlu0 %v6016, 32
      %v6086 = vpop.permute.xlu0 %6085
      %6087 = vrot.lane.b32.xlu0 %v6017, 32
      %v6088 = vpop.permute.xlu0 %6087
      %6089 = vrot.lane.b32.xlu0 %v6018, 32
      %v6090 = vpop.permute.xlu0 %6089
      %6091 = vrot.lane.b32.xlu0 %v6019, 32
      %v6092 = vpop.permute.xlu0 %6091
      %6093 = vrot.lane.b32.xlu0 %v6020, 32
      %v6094 = vpop.permute.xlu0 %6093
      %6095 = vrot.lane.b32.xlu0 %v6021, 32
      %v6096 = vpop.permute.xlu0 %6095
      %6097 = vrot.lane.b32.xlu0 %v6022, 32
      %v6098 = vpop.permute.xlu0 %6097
      %6099 = vrot.lane.b32.xlu0 %v6023, 32
      %v6100 = vpop.permute.xlu0 %6099
      %6101 = vrot.lane.b32.xlu0 %v6024, 32
      %v6102 = vpop.permute.xlu0 %6101
      %6103 = vrot.lane.b32.xlu0 %v6025, 32
      %v6104 = vpop.permute.xlu0 %6103
      %6105 = vrot.lane.b32.xlu0 %v6026, 32
      %v6106 = vpop.permute.xlu0 %6105
      %6107 = vrot.lane.b32.xlu0 %v6027, 32
      %v6108 = vpop.permute.xlu0 %6107
      %6109 = vrot.lane.b32.xlu0 %v6028, 32
      %v6110 = vpop.permute.xlu0 %6109
      %6111 = vrot.lane.b32.xlu0 %v6029, 32
      %v6112 = vpop.permute.xlu0 %6111
      %6113 = vrot.lane.b32.xlu0 %v6030, 32
      %v6114 = vpop.permute.xlu0 %6113
      %6115 = vrot.lane.b32.xlu0 %v6031, 32
      %v6116 = vpop.permute.xlu0 %6115
      %6117 = vrot.lane.b32.xlu0 %v6032, 32
      %v6118 = vpop.permute.xlu0 %6117
      %6119 = vrot.lane.b32.xlu0 %v6033, 32
      %v6120 = vpop.permute.xlu0 %6119
      %6121 = vrot.lane.b32.xlu0 %v6034, 32
      %v6122 = vpop.permute.xlu0 %6121
      %6123 = vrot.lane.b32.xlu0 %v6035, 32
      %v6124 = vpop.permute.xlu0 %6123
      %6125 = vrot.lane.b32.xlu0 %v6036, 32
      %v6126 = vpop.permute.xlu0 %6125
      %6127 = vrot.lane.b32.xlu0 %v6037, 32
      %v6128 = vpop.permute.xlu0 %6127
      %6129 = vrot.lane.b32.xlu0 %v6038, 32
      %v6130 = vpop.permute.xlu0 %6129
      %6131 = vrot.lane.b32.xlu0 %v6039, 32
      %v6132 = vpop.permute.xlu0 %6131
      %6133 = vrot.lane.b32.xlu0 %v6040, 32
      %v6134 = vpop.permute.xlu0 %6133
      %6135 = vrot.lane.b32.xlu0 %v6041, 32
      %v6136 = vpop.permute.xlu0 %6135
      %6137 = vrot.lane.b32.xlu0 %v6042, 32
      %v6138 = vpop.permute.xlu0 %6137
      %6171 = vst.msk [vmem:[#allocation3] sm:$0xff] %vm3871, %v6076
      %6172 = vst.msk [vmem:[#allocation3 + $0x10] sm:$0xff] %vm3871, %v6078
      %6173 = vst.msk [vmem:[#allocation3 + $0x20] sm:$0xff] %vm3871, %v6080
      %6174 = vst.msk [vmem:[#allocation3 + $0x30] sm:$0xff] %vm3871, %v6082
      %6175 = vst.msk [vmem:[#allocation3 + $0x40] sm:$0xff] %vm3871, %v6084
      %6176 = vst.msk [vmem:[#allocation3 + $0x50] sm:$0xff] %vm3871, %v6086
      %6177 = vst.msk [vmem:[#allocation3 + $0x60] sm:$0xff] %vm3871, %v6088
      %6178 = vst.msk [vmem:[#allocation3 + $0x70] sm:$0xff] %vm3871, %v6090
      %6179 = vst.msk [vmem:[#allocation3 + $0x80] sm:$0xff] %vm3871, %v6092
      %6180 = vst.msk [vmem:[#allocation3 + $0x90] sm:$0xff] %vm3871, %v6094
      %6181 = vst.msk [vmem:[#allocation3 + $0xa0] sm:$0xff] %vm3871, %v6096
      %6182 = vst.msk [vmem:[#allocation3 + $0xb0] sm:$0xff] %vm3871, %v6098
      %6183 = vst.msk [vmem:[#allocation3 + $0xc0] sm:$0xff] %vm3871, %v6100
      %6184 = vst.msk [vmem:[#allocation3 + $0xd0] sm:$0xff] %vm3871, %v6102
      %6185 = vst.msk [vmem:[#allocation3 + $0xe0] sm:$0xff] %vm3871, %v6104
      %6186 = vst.msk [vmem:[#allocation3 + $0xf0] sm:$0xff] %vm3871, %v6106
      %6187 = vst.msk [vmem:[#allocation3 + $0x100] sm:$0xff] %vm3871, %v6108
      %6188 = vst.msk [vmem:[#allocation3 + $0x110] sm:$0xff] %vm3871, %v6110
      %6189 = vst.msk [vmem:[#allocation3 + $0x120] sm:$0xff] %vm3871, %v6112
      %6190 = vst.msk [vmem:[#allocation3 + $0x130] sm:$0xff] %vm3871, %v6114
      %6191 = vst.msk [vmem:[#allocation3 + $0x140] sm:$0xff] %vm3871, %v6116
      %6192 = vst.msk [vmem:[#allocation3 + $0x150] sm:$0xff] %vm3871, %v6118
      %6193 = vst.msk [vmem:[#allocation3 + $0x160] sm:$0xff] %vm3871, %v6120
      %6194 = vst.msk [vmem:[#allocation3 + $0x170] sm:$0xff] %vm3871, %v6122
      %6195 = vst.msk [vmem:[#allocation3 + $0x180] sm:$0xff] %vm3871, %v6124
      %6196 = vst.msk [vmem:[#allocation3 + $0x190] sm:$0xff] %vm3871, %v6126
      %6197 = vst.msk [vmem:[#allocation3 + $0x1a0] sm:$0xff] %vm3871, %v6128
      %6198 = vst.msk [vmem:[#allocation3 + $0x1b0] sm:$0xff] %vm3871, %v6130
      %6199 = vst.msk [vmem:[#allocation3 + $0x1c0] sm:$0xff] %vm3871, %v6132
      %6200 = vst.msk [vmem:[#allocation3 + $0x1d0] sm:$0xff] %vm3871, %v6134
      %6201 = vst.msk [vmem:[#allocation3 + $0x1e0] sm:$0xff] %vm3871, %v6136
      %6202 = vst.msk [vmem:[#allocation3 + $0x1f0] sm:$0xff] %vm3871, %v6138
      %v6203 = vld [vmem:[%s3421] sm:$0xff]
      %v6204 = vld [vmem:[%s3421 + $0x8] sm:$0xff]
      %v6205 = vld [vmem:[%s3421 + $0x18] sm:$0xff]
      %v6206 = vld [vmem:[%s3421 + $0x20] sm:$0xff]
      %v6207 = vld [vmem:[%s3421 + $0x30] sm:$0xff]
      %v6208 = vld [vmem:[%s3421 + $0x38] sm:$0xff]
      %v6209 = vld [vmem:[%s3421 + $0x48] sm:$0xff]
      %v6210 = vld [vmem:[%s3421 + $0x50] sm:$0xff]
      %v6211 = vld [vmem:[%s3421 + $0x60] sm:$0xff]
      %v6212 = vld [vmem:[%s3421 + $0x68] sm:$0xff]
      %v6213 = vld [vmem:[%s3421 + $0x78] sm:$0xff]
      %v6214 = vld [vmem:[%s3421 + $0x80] sm:$0xff]
      %v6215 = vld [vmem:[%s3421 + $0x90] sm:$0xff]
      %v6216 = vld [vmem:[%s3421 + $0x98] sm:$0xff]
      %v6217 = vld [vmem:[%s3421 + $0xa8] sm:$0xff]
      %v6218 = vld [vmem:[%s3421 + $0xb0] sm:$0xff]
      %v6219 = vld [vmem:[%s3421 + $0xc0] sm:$0xff]
      %v6220 = vld [vmem:[%s3421 + $0xc8] sm:$0xff]
      %v6221 = vld [vmem:[%s3421 + $0xd8] sm:$0xff]
      %v6222 = vld [vmem:[%s3421 + $0xe0] sm:$0xff]
      %v6223 = vld [vmem:[%s3421 + $0xf0] sm:$0xff]
      %v6224 = vld [vmem:[%s3421 + $0xf8] sm:$0xff]
      %v6225 = vld [vmem:[%s3421 + $0x108] sm:$0xff]
      %v6226 = vld [vmem:[%s3421 + $0x110] sm:$0xff]
      %v6227 = vld [vmem:[%s3421 + $0x120] sm:$0xff]
      %v6228 = vld [vmem:[%s3421 + $0x128] sm:$0xff]
      %v6229 = vld [vmem:[%s3421 + $0x138] sm:$0xff]
      %v6230 = vld [vmem:[%s3421 + $0x140] sm:$0xff]
      %v6231 = vld [vmem:[%s3421 + $0x150] sm:$0xff]
      %v6232 = vld [vmem:[%s3421 + $0x158] sm:$0xff]
      %v6233 = vld [vmem:[%s3421 + $0x168] sm:$0xff]
      %v6234 = vld [vmem:[%s3421 + $0x170] sm:$0xff]
      %6267 = vrot.lane.b32.xlu0 %v6203, 48
      %v6268 = vpop.permute.xlu0 %6267
      %6269 = vrot.lane.b32.xlu0 %v6204, 48
      %v6270 = vpop.permute.xlu0 %6269
      %6271 = vrot.lane.b32.xlu0 %v6205, 48
      %v6272 = vpop.permute.xlu0 %6271
      %6273 = vrot.lane.b32.xlu0 %v6206, 48
      %v6274 = vpop.permute.xlu0 %6273
      %6275 = vrot.lane.b32.xlu0 %v6207, 48
      %v6276 = vpop.permute.xlu0 %6275
      %6277 = vrot.lane.b32.xlu0 %v6208, 48
      %v6278 = vpop.permute.xlu0 %6277
      %6279 = vrot.lane.b32.xlu0 %v6209, 48
      %v6280 = vpop.permute.xlu0 %6279
      %6281 = vrot.lane.b32.xlu0 %v6210, 48
      %v6282 = vpop.permute.xlu0 %6281
      %6283 = vrot.lane.b32.xlu0 %v6211, 48
      %v6284 = vpop.permute.xlu0 %6283
      %6285 = vrot.lane.b32.xlu0 %v6212, 48
      %v6286 = vpop.permute.xlu0 %6285
      %6287 = vrot.lane.b32.xlu0 %v6213, 48
      %v6288 = vpop.permute.xlu0 %6287
      %6289 = vrot.lane.b32.xlu0 %v6214, 48
      %v6290 = vpop.permute.xlu0 %6289
      %6291 = vrot.lane.b32.xlu0 %v6215, 48
      %v6292 = vpop.permute.xlu0 %6291
      %6293 = vrot.lane.b32.xlu0 %v6216, 48
      %v6294 = vpop.permute.xlu0 %6293
      %6295 = vrot.lane.b32.xlu0 %v6217, 48
      %v6296 = vpop.permute.xlu0 %6295
      %6297 = vrot.lane.b32.xlu0 %v6218, 48
      %v6298 = vpop.permute.xlu0 %6297
      %6299 = vrot.lane.b32.xlu0 %v6219, 48
      %v6300 = vpop.permute.xlu0 %6299
      %6301 = vrot.lane.b32.xlu0 %v6220, 48
      %v6302 = vpop.permute.xlu0 %6301
      %6303 = vrot.lane.b32.xlu0 %v6221, 48
      %v6304 = vpop.permute.xlu0 %6303
      %6305 = vrot.lane.b32.xlu0 %v6222, 48
      %v6306 = vpop.permute.xlu0 %6305
      %6307 = vrot.lane.b32.xlu0 %v6223, 48
      %v6308 = vpop.permute.xlu0 %6307
      %6309 = vrot.lane.b32.xlu0 %v6224, 48
      %v6310 = vpop.permute.xlu0 %6309
      %6311 = vrot.lane.b32.xlu0 %v6225, 48
      %v6312 = vpop.permute.xlu0 %6311
      %6313 = vrot.lane.b32.xlu0 %v6226, 48
      %v6314 = vpop.permute.xlu0 %6313
      %6315 = vrot.lane.b32.xlu0 %v6227, 48
      %v6316 = vpop.permute.xlu0 %6315
      %6317 = vrot.lane.b32.xlu0 %v6228, 48
      %v6318 = vpop.permute.xlu0 %6317
      %6319 = vrot.lane.b32.xlu0 %v6229, 48
      %v6320 = vpop.permute.xlu0 %6319
      %6321 = vrot.lane.b32.xlu0 %v6230, 48
      %v6322 = vpop.permute.xlu0 %6321
      %6323 = vrot.lane.b32.xlu0 %v6231, 48
      %v6324 = vpop.permute.xlu0 %6323
      %6325 = vrot.lane.b32.xlu0 %v6232, 48
      %v6326 = vpop.permute.xlu0 %6325
      %6327 = vrot.lane.b32.xlu0 %v6233, 48
      %v6328 = vpop.permute.xlu0 %6327
      %6329 = vrot.lane.b32.xlu0 %v6234, 48
      %v6330 = vpop.permute.xlu0 %6329
      %6363 = vst.msk [vmem:[#allocation3] sm:$0xff] %vm4064, %v6268
      %6364 = vst.msk [vmem:[#allocation3 + $0x10] sm:$0xff] %vm4064, %v6270
      %6365 = vst.msk [vmem:[#allocation3 + $0x20] sm:$0xff] %vm4064, %v6272
      %6366 = vst.msk [vmem:[#allocation3 + $0x30] sm:$0xff] %vm4064, %v6274
      %6367 = vst.msk [vmem:[#allocation3 + $0x40] sm:$0xff] %vm4064, %v6276
      %6368 = vst.msk [vmem:[#allocation3 + $0x50] sm:$0xff] %vm4064, %v6278
      %6369 = vst.msk [vmem:[#allocation3 + $0x60] sm:$0xff] %vm4064, %v6280
      %6370 = vst.msk [vmem:[#allocation3 + $0x70] sm:$0xff] %vm4064, %v6282
      %6371 = vst.msk [vmem:[#allocation3 + $0x80] sm:$0xff] %vm4064, %v6284
      %6372 = vst.msk [vmem:[#allocation3 + $0x90] sm:$0xff] %vm4064, %v6286
      %6373 = vst.msk [vmem:[#allocation3 + $0xa0] sm:$0xff] %vm4064, %v6288
      %6374 = vst.msk [vmem:[#allocation3 + $0xb0] sm:$0xff] %vm4064, %v6290
      %6375 = vst.msk [vmem:[#allocation3 + $0xc0] sm:$0xff] %vm4064, %v6292
      %6376 = vst.msk [vmem:[#allocation3 + $0xd0] sm:$0xff] %vm4064, %v6294
      %6377 = vst.msk [vmem:[#allocation3 + $0xe0] sm:$0xff] %vm4064, %v6296
      %6378 = vst.msk [vmem:[#allocation3 + $0xf0] sm:$0xff] %vm4064, %v6298
      %6379 = vst.msk [vmem:[#allocation3 + $0x100] sm:$0xff] %vm4064, %v6300
      %6380 = vst.msk [vmem:[#allocation3 + $0x110] sm:$0xff] %vm4064, %v6302
      %6381 = vst.msk [vmem:[#allocation3 + $0x120] sm:$0xff] %vm4064, %v6304
      %6382 = vst.msk [vmem:[#allocation3 + $0x130] sm:$0xff] %vm4064, %v6306
      %6383 = vst.msk [vmem:[#allocation3 + $0x140] sm:$0xff] %vm4064, %v6308
      %6384 = vst.msk [vmem:[#allocation3 + $0x150] sm:$0xff] %vm4064, %v6310
      %6385 = vst.msk [vmem:[#allocation3 + $0x160] sm:$0xff] %vm4064, %v6312
      %6386 = vst.msk [vmem:[#allocation3 + $0x170] sm:$0xff] %vm4064, %v6314
      %6387 = vst.msk [vmem:[#allocation3 + $0x180] sm:$0xff] %vm4064, %v6316
      %6388 = vst.msk [vmem:[#allocation3 + $0x190] sm:$0xff] %vm4064, %v6318
      %6389 = vst.msk [vmem:[#allocation3 + $0x1a0] sm:$0xff] %vm4064, %v6320
      %6390 = vst.msk [vmem:[#allocation3 + $0x1b0] sm:$0xff] %vm4064, %v6322
      %6391 = vst.msk [vmem:[#allocation3 + $0x1c0] sm:$0xff] %vm4064, %v6324
      %6392 = vst.msk [vmem:[#allocation3 + $0x1d0] sm:$0xff] %vm4064, %v6326
      %6393 = vst.msk [vmem:[#allocation3 + $0x1e0] sm:$0xff] %vm4064, %v6328
      %6394 = vst.msk [vmem:[#allocation3 + $0x1f0] sm:$0xff] %vm4064, %v6330
      %v6395 = vld [vmem:[%s3421 + $0x1] sm:$0xff]
      %v6396 = vld [vmem:[%s3421 + $0x9] sm:$0xff]
      %v6397 = vld [vmem:[%s3421 + $0x19] sm:$0xff]
      %v6398 = vld [vmem:[%s3421 + $0x21] sm:$0xff]
      %v6399 = vld [vmem:[%s3421 + $0x31] sm:$0xff]
      %v6400 = vld [vmem:[%s3421 + $0x39] sm:$0xff]
      %v6401 = vld [vmem:[%s3421 + $0x49] sm:$0xff]
      %v6402 = vld [vmem:[%s3421 + $0x51] sm:$0xff]
      %v6403 = vld [vmem:[%s3421 + $0x61] sm:$0xff]
      %v6404 = vld [vmem:[%s3421 + $0x69] sm:$0xff]
      %v6405 = vld [vmem:[%s3421 + $0x79] sm:$0xff]
      %v6406 = vld [vmem:[%s3421 + $0x81] sm:$0xff]
      %v6407 = vld [vmem:[%s3421 + $0x91] sm:$0xff]
      %v6408 = vld [vmem:[%s3421 + $0x99] sm:$0xff]
      %v6409 = vld [vmem:[%s3421 + $0xa9] sm:$0xff]
      %v6410 = vld [vmem:[%s3421 + $0xb1] sm:$0xff]
      %v6411 = vld [vmem:[%s3421 + $0xc1] sm:$0xff]
      %v6412 = vld [vmem:[%s3421 + $0xc9] sm:$0xff]
      %v6413 = vld [vmem:[%s3421 + $0xd9] sm:$0xff]
      %v6414 = vld [vmem:[%s3421 + $0xe1] sm:$0xff]
      %v6415 = vld [vmem:[%s3421 + $0xf1] sm:$0xff]
      %v6416 = vld [vmem:[%s3421 + $0xf9] sm:$0xff]
      %v6417 = vld [vmem:[%s3421 + $0x109] sm:$0xff]
      %v6418 = vld [vmem:[%s3421 + $0x111] sm:$0xff]
      %v6419 = vld [vmem:[%s3421 + $0x121] sm:$0xff]
      %v6420 = vld [vmem:[%s3421 + $0x129] sm:$0xff]
      %v6421 = vld [vmem:[%s3421 + $0x139] sm:$0xff]
      %v6422 = vld [vmem:[%s3421 + $0x141] sm:$0xff]
      %v6423 = vld [vmem:[%s3421 + $0x151] sm:$0xff]
      %v6424 = vld [vmem:[%s3421 + $0x159] sm:$0xff]
      %v6425 = vld [vmem:[%s3421 + $0x169] sm:$0xff]
      %v6426 = vld [vmem:[%s3421 + $0x171] sm:$0xff]
      %6459 = vrot.lane.b32.xlu0 %v6395, 64
      %v6460 = vpop.permute.xlu0 %6459
      %6461 = vrot.lane.b32.xlu0 %v6396, 64
      %v6462 = vpop.permute.xlu0 %6461
      %6463 = vrot.lane.b32.xlu0 %v6397, 64
      %v6464 = vpop.permute.xlu0 %6463
      %6465 = vrot.lane.b32.xlu0 %v6398, 64
      %v6466 = vpop.permute.xlu0 %6465
      %6467 = vrot.lane.b32.xlu0 %v6399, 64
      %v6468 = vpop.permute.xlu0 %6467
      %6469 = vrot.lane.b32.xlu0 %v6400, 64
      %v6470 = vpop.permute.xlu0 %6469
      %6471 = vrot.lane.b32.xlu0 %v6401, 64
      %v6472 = vpop.permute.xlu0 %6471
      %6473 = vrot.lane.b32.xlu0 %v6402, 64
      %v6474 = vpop.permute.xlu0 %6473
      %6475 = vrot.lane.b32.xlu0 %v6403, 64
      %v6476 = vpop.permute.xlu0 %6475
      %6477 = vrot.lane.b32.xlu0 %v6404, 64
      %v6478 = vpop.permute.xlu0 %6477
      %6479 = vrot.lane.b32.xlu0 %v6405, 64
      %v6480 = vpop.permute.xlu0 %6479
      %6481 = vrot.lane.b32.xlu0 %v6406, 64
      %v6482 = vpop.permute.xlu0 %6481
      %6483 = vrot.lane.b32.xlu0 %v6407, 64
      %v6484 = vpop.permute.xlu0 %6483
      %6485 = vrot.lane.b32.xlu0 %v6408, 64
      %v6486 = vpop.permute.xlu0 %6485
      %6487 = vrot.lane.b32.xlu0 %v6409, 64
      %v6488 = vpop.permute.xlu0 %6487
      %6489 = vrot.lane.b32.xlu0 %v6410, 64
      %v6490 = vpop.permute.xlu0 %6489
      %6491 = vrot.lane.b32.xlu0 %v6411, 64
      %v6492 = vpop.permute.xlu0 %6491
      %6493 = vrot.lane.b32.xlu0 %v6412, 64
      %v6494 = vpop.permute.xlu0 %6493
      %6495 = vrot.lane.b32.xlu0 %v6413, 64
      %v6496 = vpop.permute.xlu0 %6495
      %6497 = vrot.lane.b32.xlu0 %v6414, 64
      %v6498 = vpop.permute.xlu0 %6497
      %6499 = vrot.lane.b32.xlu0 %v6415, 64
      %v6500 = vpop.permute.xlu0 %6499
      %6501 = vrot.lane.b32.xlu0 %v6416, 64
      %v6502 = vpop.permute.xlu0 %6501
      %6503 = vrot.lane.b32.xlu0 %v6417, 64
      %v6504 = vpop.permute.xlu0 %6503
      %6505 = vrot.lane.b32.xlu0 %v6418, 64
      %v6506 = vpop.permute.xlu0 %6505
      %6507 = vrot.lane.b32.xlu0 %v6419, 64
      %v6508 = vpop.permute.xlu0 %6507
      %6509 = vrot.lane.b32.xlu0 %v6420, 64
      %v6510 = vpop.permute.xlu0 %6509
      %6511 = vrot.lane.b32.xlu0 %v6421, 64
      %v6512 = vpop.permute.xlu0 %6511
      %6513 = vrot.lane.b32.xlu0 %v6422, 64
      %v6514 = vpop.permute.xlu0 %6513
      %6515 = vrot.lane.b32.xlu0 %v6423, 64
      %v6516 = vpop.permute.xlu0 %6515
      %6517 = vrot.lane.b32.xlu0 %v6424, 64
      %v6518 = vpop.permute.xlu0 %6517
      %6519 = vrot.lane.b32.xlu0 %v6425, 64
      %v6520 = vpop.permute.xlu0 %6519
      %6521 = vrot.lane.b32.xlu0 %v6426, 64
      %v6522 = vpop.permute.xlu0 %6521
      %6555 = vst.msk [vmem:[#allocation3] sm:$0xff] %vm4257, %v6460
      %6556 = vst.msk [vmem:[#allocation3 + $0x10] sm:$0xff] %vm4257, %v6462
      %6557 = vst.msk [vmem:[#allocation3 + $0x20] sm:$0xff] %vm4257, %v6464
      %6558 = vst.msk [vmem:[#allocation3 + $0x30] sm:$0xff] %vm4257, %v6466
      %6559 = vst.msk [vmem:[#allocation3 + $0x40] sm:$0xff] %vm4257, %v6468
      %6560 = vst.msk [vmem:[#allocation3 + $0x50] sm:$0xff] %vm4257, %v6470
      %6561 = vst.msk [vmem:[#allocation3 + $0x60] sm:$0xff] %vm4257, %v6472
      %6562 = vst.msk [vmem:[#allocation3 + $0x70] sm:$0xff] %vm4257, %v6474
      %6563 = vst.msk [vmem:[#allocation3 + $0x80] sm:$0xff] %vm4257, %v6476
      %6564 = vst.msk [vmem:[#allocation3 + $0x90] sm:$0xff] %vm4257, %v6478
      %6565 = vst.msk [vmem:[#allocation3 + $0xa0] sm:$0xff] %vm4257, %v6480
      %6566 = vst.msk [vmem:[#allocation3 + $0xb0] sm:$0xff] %vm4257, %v6482
      %6567 = vst.msk [vmem:[#allocation3 + $0xc0] sm:$0xff] %vm4257, %v6484
      %6568 = vst.msk [vmem:[#allocation3 + $0xd0] sm:$0xff] %vm4257, %v6486
      %6569 = vst.msk [vmem:[#allocation3 + $0xe0] sm:$0xff] %vm4257, %v6488
      %6570 = vst.msk [vmem:[#allocation3 + $0xf0] sm:$0xff] %vm4257, %v6490
      %6571 = vst.msk [vmem:[#allocation3 + $0x100] sm:$0xff] %vm4257, %v6492
      %6572 = vst.msk [vmem:[#allocation3 + $0x110] sm:$0xff] %vm4257, %v6494
      %6573 = vst.msk [vmem:[#allocation3 + $0x120] sm:$0xff] %vm4257, %v6496
      %6574 = vst.msk [vmem:[#allocation3 + $0x130] sm:$0xff] %vm4257, %v6498
      %6575 = vst.msk [vmem:[#allocation3 + $0x140] sm:$0xff] %vm4257, %v6500
      %6576 = vst.msk [vmem:[#allocation3 + $0x150] sm:$0xff] %vm4257, %v6502
      %6577 = vst.msk [vmem:[#allocation3 + $0x160] sm:$0xff] %vm4257, %v6504
      %6578 = vst.msk [vmem:[#allocation3 + $0x170] sm:$0xff] %vm4257, %v6506
      %6579 = vst.msk [vmem:[#allocation3 + $0x180] sm:$0xff] %vm4257, %v6508
      %6580 = vst.msk [vmem:[#allocation3 + $0x190] sm:$0xff] %vm4257, %v6510
      %6581 = vst.msk [vmem:[#allocation3 + $0x1a0] sm:$0xff] %vm4257, %v6512
      %6582 = vst.msk [vmem:[#allocation3 + $0x1b0] sm:$0xff] %vm4257, %v6514
      %6583 = vst.msk [vmem:[#allocation3 + $0x1c0] sm:$0xff] %vm4257, %v6516
      %6584 = vst.msk [vmem:[#allocation3 + $0x1d0] sm:$0xff] %vm4257, %v6518
      %6585 = vst.msk [vmem:[#allocation3 + $0x1e0] sm:$0xff] %vm4257, %v6520
      %6586 = vst.msk [vmem:[#allocation3 + $0x1f0] sm:$0xff] %vm4257, %v6522
      %v6587 = vld [vmem:[%s3421 + $0x2] sm:$0xff]
      %v6588 = vld [vmem:[%s3421 + $0xa] sm:$0xff]
      %v6589 = vld [vmem:[%s3421 + $0x1a] sm:$0xff]
      %v6590 = vld [vmem:[%s3421 + $0x22] sm:$0xff]
      %v6591 = vld [vmem:[%s3421 + $0x32] sm:$0xff]
      %v6592 = vld [vmem:[%s3421 + $0x3a] sm:$0xff]
      %v6593 = vld [vmem:[%s3421 + $0x4a] sm:$0xff]
      %v6594 = vld [vmem:[%s3421 + $0x52] sm:$0xff]
      %v6595 = vld [vmem:[%s3421 + $0x62] sm:$0xff]
      %v6596 = vld [vmem:[%s3421 + $0x6a] sm:$0xff]
      %v6597 = vld [vmem:[%s3421 + $0x7a] sm:$0xff]
      %v6598 = vld [vmem:[%s3421 + $0x82] sm:$0xff]
      %v6599 = vld [vmem:[%s3421 + $0x92] sm:$0xff]
      %v6600 = vld [vmem:[%s3421 + $0x9a] sm:$0xff]
      %v6601 = vld [vmem:[%s3421 + $0xaa] sm:$0xff]
      %v6602 = vld [vmem:[%s3421 + $0xb2] sm:$0xff]
      %v6603 = vld [vmem:[%s3421 + $0xc2] sm:$0xff]
      %v6604 = vld [vmem:[%s3421 + $0xca] sm:$0xff]
      %v6605 = vld [vmem:[%s3421 + $0xda] sm:$0xff]
      %v6606 = vld [vmem:[%s3421 + $0xe2] sm:$0xff]
      %v6607 = vld [vmem:[%s3421 + $0xf2] sm:$0xff]
      %v6608 = vld [vmem:[%s3421 + $0xfa] sm:$0xff]
      %v6609 = vld [vmem:[%s3421 + $0x10a] sm:$0xff]
      %v6610 = vld [vmem:[%s3421 + $0x112] sm:$0xff]
      %v6611 = vld [vmem:[%s3421 + $0x122] sm:$0xff]
      %v6612 = vld [vmem:[%s3421 + $0x12a] sm:$0xff]
      %v6613 = vld [vmem:[%s3421 + $0x13a] sm:$0xff]
      %v6614 = vld [vmem:[%s3421 + $0x142] sm:$0xff]
      %v6615 = vld [vmem:[%s3421 + $0x152] sm:$0xff]
      %v6616 = vld [vmem:[%s3421 + $0x15a] sm:$0xff]
      %v6617 = vld [vmem:[%s3421 + $0x16a] sm:$0xff]
      %v6618 = vld [vmem:[%s3421 + $0x172] sm:$0xff]
      %6651 = vrot.lane.b32.xlu0 %v6587, 80
      %v6652 = vpop.permute.xlu0 %6651
      %6653 = vrot.lane.b32.xlu0 %v6588, 80
      %v6654 = vpop.permute.xlu0 %6653
      %6655 = vrot.lane.b32.xlu0 %v6589, 80
      %v6656 = vpop.permute.xlu0 %6655
      %6657 = vrot.lane.b32.xlu0 %v6590, 80
      %v6658 = vpop.permute.xlu0 %6657
      %6659 = vrot.lane.b32.xlu0 %v6591, 80
      %v6660 = vpop.permute.xlu0 %6659
      %6661 = vrot.lane.b32.xlu0 %v6592, 80
      %v6662 = vpop.permute.xlu0 %6661
      %6663 = vrot.lane.b32.xlu0 %v6593, 80
      %v6664 = vpop.permute.xlu0 %6663
      %6665 = vrot.lane.b32.xlu0 %v6594, 80
      %v6666 = vpop.permute.xlu0 %6665
      %6667 = vrot.lane.b32.xlu0 %v6595, 80
      %v6668 = vpop.permute.xlu0 %6667
      %6669 = vrot.lane.b32.xlu0 %v6596, 80
      %v6670 = vpop.permute.xlu0 %6669
      %6671 = vrot.lane.b32.xlu0 %v6597, 80
      %v6672 = vpop.permute.xlu0 %6671
      %6673 = vrot.lane.b32.xlu0 %v6598, 80
      %v6674 = vpop.permute.xlu0 %6673
      %6675 = vrot.lane.b32.xlu0 %v6599, 80
      %v6676 = vpop.permute.xlu0 %6675
      %6677 = vrot.lane.b32.xlu0 %v6600, 80
      %v6678 = vpop.permute.xlu0 %6677
      %6679 = vrot.lane.b32.xlu0 %v6601, 80
      %v6680 = vpop.permute.xlu0 %6679
      %6681 = vrot.lane.b32.xlu0 %v6602, 80
      %v6682 = vpop.permute.xlu0 %6681
      %6683 = vrot.lane.b32.xlu0 %v6603, 80
      %v6684 = vpop.permute.xlu0 %6683
      %6685 = vrot.lane.b32.xlu0 %v6604, 80
      %v6686 = vpop.permute.xlu0 %6685
      %6687 = vrot.lane.b32.xlu0 %v6605, 80
      %v6688 = vpop.permute.xlu0 %6687
      %6689 = vrot.lane.b32.xlu0 %v6606, 80
      %v6690 = vpop.permute.xlu0 %6689
      %6691 = vrot.lane.b32.xlu0 %v6607, 80
      %v6692 = vpop.permute.xlu0 %6691
      %6693 = vrot.lane.b32.xlu0 %v6608, 80
      %v6694 = vpop.permute.xlu0 %6693
      %6695 = vrot.lane.b32.xlu0 %v6609, 80
      %v6696 = vpop.permute.xlu0 %6695
      %6697 = vrot.lane.b32.xlu0 %v6610, 80
      %v6698 = vpop.permute.xlu0 %6697
      %6699 = vrot.lane.b32.xlu0 %v6611, 80
      %v6700 = vpop.permute.xlu0 %6699
      %6701 = vrot.lane.b32.xlu0 %v6612, 80
      %v6702 = vpop.permute.xlu0 %6701
      %6703 = vrot.lane.b32.xlu0 %v6613, 80
      %v6704 = vpop.permute.xlu0 %6703
      %6705 = vrot.lane.b32.xlu0 %v6614, 80
      %v6706 = vpop.permute.xlu0 %6705
      %6707 = vrot.lane.b32.xlu0 %v6615, 80
      %v6708 = vpop.permute.xlu0 %6707
      %6709 = vrot.lane.b32.xlu0 %v6616, 80
      %v6710 = vpop.permute.xlu0 %6709
      %6711 = vrot.lane.b32.xlu0 %v6617, 80
      %v6712 = vpop.permute.xlu0 %6711
      %6713 = vrot.lane.b32.xlu0 %v6618, 80
      %v6714 = vpop.permute.xlu0 %6713
      %6747 = vst.msk [vmem:[#allocation3] sm:$0xff] %vm4450, %v6652
      %6748 = vst.msk [vmem:[#allocation3 + $0x10] sm:$0xff] %vm4450, %v6654
      %6749 = vst.msk [vmem:[#allocation3 + $0x20] sm:$0xff] %vm4450, %v6656
      %6750 = vst.msk [vmem:[#allocation3 + $0x30] sm:$0xff] %vm4450, %v6658
      %6751 = vst.msk [vmem:[#allocation3 + $0x40] sm:$0xff] %vm4450, %v6660
      %6752 = vst.msk [vmem:[#allocation3 + $0x50] sm:$0xff] %vm4450, %v6662
      %6753 = vst.msk [vmem:[#allocation3 + $0x60] sm:$0xff] %vm4450, %v6664
      %6754 = vst.msk [vmem:[#allocation3 + $0x70] sm:$0xff] %vm4450, %v6666
      %6755 = vst.msk [vmem:[#allocation3 + $0x80] sm:$0xff] %vm4450, %v6668
      %6756 = vst.msk [vmem:[#allocation3 + $0x90] sm:$0xff] %vm4450, %v6670
      %6757 = vst.msk [vmem:[#allocation3 + $0xa0] sm:$0xff] %vm4450, %v6672
      %6758 = vst.msk [vmem:[#allocation3 + $0xb0] sm:$0xff] %vm4450, %v6674
      %6759 = vst.msk [vmem:[#allocation3 + $0xc0] sm:$0xff] %vm4450, %v6676
      %6760 = vst.msk [vmem:[#allocation3 + $0xd0] sm:$0xff] %vm4450, %v6678
      %6761 = vst.msk [vmem:[#allocation3 + $0xe0] sm:$0xff] %vm4450, %v6680
      %6762 = vst.msk [vmem:[#allocation3 + $0xf0] sm:$0xff] %vm4450, %v6682
      %6763 = vst.msk [vmem:[#allocation3 + $0x100] sm:$0xff] %vm4450, %v6684
      %6764 = vst.msk [vmem:[#allocation3 + $0x110] sm:$0xff] %vm4450, %v6686
      %6765 = vst.msk [vmem:[#allocation3 + $0x120] sm:$0xff] %vm4450, %v6688
      %6766 = vst.msk [vmem:[#allocation3 + $0x130] sm:$0xff] %vm4450, %v6690
      %6767 = vst.msk [vmem:[#allocation3 + $0x140] sm:$0xff] %vm4450, %v6692
      %6768 = vst.msk [vmem:[#allocation3 + $0x150] sm:$0xff] %vm4450, %v6694
      %6769 = vst.msk [vmem:[#allocation3 + $0x160] sm:$0xff] %vm4450, %v6696
      %6770 = vst.msk [vmem:[#allocation3 + $0x170] sm:$0xff] %vm4450, %v6698
      %6771 = vst.msk [vmem:[#allocation3 + $0x180] sm:$0xff] %vm4450, %v6700
      %6772 = vst.msk [vmem:[#allocation3 + $0x190] sm:$0xff] %vm4450, %v6702
      %6773 = vst.msk [vmem:[#allocation3 + $0x1a0] sm:$0xff] %vm4450, %v6704
      %6774 = vst.msk [vmem:[#allocation3 + $0x1b0] sm:$0xff] %vm4450, %v6706
      %6775 = vst.msk [vmem:[#allocation3 + $0x1c0] sm:$0xff] %vm4450, %v6708
      %6776 = vst.msk [vmem:[#allocation3 + $0x1d0] sm:$0xff] %vm4450, %v6710
      %6777 = vst.msk [vmem:[#allocation3 + $0x1e0] sm:$0xff] %vm4450, %v6712
      %6778 = vst.msk [vmem:[#allocation3 + $0x1f0] sm:$0xff] %vm4450, %v6714
      %v6779 = vld [vmem:[%s4483] sm:$0xff]
      %v6780 = vld [vmem:[%s4483 + $0x8] sm:$0xff]
      %v6781 = vld [vmem:[%s4483 + $0x18] sm:$0xff]
      %v6782 = vld [vmem:[%s4483 + $0x20] sm:$0xff]
      %v6783 = vld [vmem:[%s4483 + $0x30] sm:$0xff]
      %v6784 = vld [vmem:[%s4483 + $0x38] sm:$0xff]
      %v6785 = vld [vmem:[%s4483 + $0x48] sm:$0xff]
      %v6786 = vld [vmem:[%s4483 + $0x50] sm:$0xff]
      %v6787 = vld [vmem:[%s4483 + $0x60] sm:$0xff]
      %v6788 = vld [vmem:[%s4483 + $0x68] sm:$0xff]
      %v6789 = vld [vmem:[%s4483 + $0x78] sm:$0xff]
      %v6790 = vld [vmem:[%s4483 + $0x80] sm:$0xff]
      %v6791 = vld [vmem:[%s4483 + $0x90] sm:$0xff]
      %v6792 = vld [vmem:[%s4483 + $0x98] sm:$0xff]
      %v6793 = vld [vmem:[%s4483 + $0xa8] sm:$0xff]
      %v6794 = vld [vmem:[%s4483 + $0xb0] sm:$0xff]
      %v6795 = vld [vmem:[%s4483 + $0xc0] sm:$0xff]
      %v6796 = vld [vmem:[%s4483 + $0xc8] sm:$0xff]
      %v6797 = vld [vmem:[%s4483 + $0xd8] sm:$0xff]
      %v6798 = vld [vmem:[%s4483 + $0xe0] sm:$0xff]
      %v6799 = vld [vmem:[%s4483 + $0xf0] sm:$0xff]
      %v6800 = vld [vmem:[%s4483 + $0xf8] sm:$0xff]
      %v6801 = vld [vmem:[%s4483 + $0x108] sm:$0xff]
      %v6802 = vld [vmem:[%s4483 + $0x110] sm:$0xff]
      %v6803 = vld [vmem:[%s4483 + $0x120] sm:$0xff]
      %v6804 = vld [vmem:[%s4483 + $0x128] sm:$0xff]
      %v6805 = vld [vmem:[%s4483 + $0x138] sm:$0xff]
      %v6806 = vld [vmem:[%s4483 + $0x140] sm:$0xff]
      %v6807 = vld [vmem:[%s4483 + $0x150] sm:$0xff]
      %v6808 = vld [vmem:[%s4483 + $0x158] sm:$0xff]
      %v6809 = vld [vmem:[%s4483 + $0x168] sm:$0xff]
      %v6810 = vld [vmem:[%s4483 + $0x170] sm:$0xff]
      %6843 = vrot.lane.b32.xlu0 %v6779, 96
      %v6844 = vpop.permute.xlu0 %6843
      %6845 = vrot.lane.b32.xlu0 %v6780, 96
      %v6846 = vpop.permute.xlu0 %6845
      %6847 = vrot.lane.b32.xlu0 %v6781, 96
      %v6848 = vpop.permute.xlu0 %6847
      %6849 = vrot.lane.b32.xlu0 %v6782, 96
      %v6850 = vpop.permute.xlu0 %6849
      %6851 = vrot.lane.b32.xlu0 %v6783, 96
      %v6852 = vpop.permute.xlu0 %6851
      %6853 = vrot.lane.b32.xlu0 %v6784, 96
      %v6854 = vpop.permute.xlu0 %6853
      %6855 = vrot.lane.b32.xlu0 %v6785, 96
      %v6856 = vpop.permute.xlu0 %6855
      %6857 = vrot.lane.b32.xlu0 %v6786, 96
      %v6858 = vpop.permute.xlu0 %6857
      %6859 = vrot.lane.b32.xlu0 %v6787, 96
      %v6860 = vpop.permute.xlu0 %6859
      %6861 = vrot.lane.b32.xlu0 %v6788, 96
      %v6862 = vpop.permute.xlu0 %6861
      %6863 = vrot.lane.b32.xlu0 %v6789, 96
      %v6864 = vpop.permute.xlu0 %6863
      %6865 = vrot.lane.b32.xlu0 %v6790, 96
      %v6866 = vpop.permute.xlu0 %6865
      %6867 = vrot.lane.b32.xlu0 %v6791, 96
      %v6868 = vpop.permute.xlu0 %6867
      %6869 = vrot.lane.b32.xlu0 %v6792, 96
      %v6870 = vpop.permute.xlu0 %6869
      %6871 = vrot.lane.b32.xlu0 %v6793, 96
      %v6872 = vpop.permute.xlu0 %6871
      %6873 = vrot.lane.b32.xlu0 %v6794, 96
      %v6874 = vpop.permute.xlu0 %6873
      %6875 = vrot.lane.b32.xlu0 %v6795, 96
      %v6876 = vpop.permute.xlu0 %6875
      %6877 = vrot.lane.b32.xlu0 %v6796, 96
      %v6878 = vpop.permute.xlu0 %6877
      %6879 = vrot.lane.b32.xlu0 %v6797, 96
      %v6880 = vpop.permute.xlu0 %6879
      %6881 = vrot.lane.b32.xlu0 %v6798, 96
      %v6882 = vpop.permute.xlu0 %6881
      %6883 = vrot.lane.b32.xlu0 %v6799, 96
      %v6884 = vpop.permute.xlu0 %6883
      %6885 = vrot.lane.b32.xlu0 %v6800, 96
      %v6886 = vpop.permute.xlu0 %6885
      %6887 = vrot.lane.b32.xlu0 %v6801, 96
      %v6888 = vpop.permute.xlu0 %6887
      %6889 = vrot.lane.b32.xlu0 %v6802, 96
      %v6890 = vpop.permute.xlu0 %6889
      %6891 = vrot.lane.b32.xlu0 %v6803, 96
      %v6892 = vpop.permute.xlu0 %6891
      %6893 = vrot.lane.b32.xlu0 %v6804, 96
      %v6894 = vpop.permute.xlu0 %6893
      %6895 = vrot.lane.b32.xlu0 %v6805, 96
      %v6896 = vpop.permute.xlu0 %6895
      %6897 = vrot.lane.b32.xlu0 %v6806, 96
      %v6898 = vpop.permute.xlu0 %6897
      %6899 = vrot.lane.b32.xlu0 %v6807, 96
      %v6900 = vpop.permute.xlu0 %6899
      %6901 = vrot.lane.b32.xlu0 %v6808, 96
      %v6902 = vpop.permute.xlu0 %6901
      %6903 = vrot.lane.b32.xlu0 %v6809, 96
      %v6904 = vpop.permute.xlu0 %6903
      %6905 = vrot.lane.b32.xlu0 %v6810, 96
      %v6906 = vpop.permute.xlu0 %6905
      %6939 = vst.msk [vmem:[#allocation3] sm:$0xff] %vm4644, %v6844
      %6940 = vst.msk [vmem:[#allocation3 + $0x10] sm:$0xff] %vm4644, %v6846
      %6941 = vst.msk [vmem:[#allocation3 + $0x20] sm:$0xff] %vm4644, %v6848
      %6942 = vst.msk [vmem:[#allocation3 + $0x30] sm:$0xff] %vm4644, %v6850
      %6943 = vst.msk [vmem:[#allocation3 + $0x40] sm:$0xff] %vm4644, %v6852
      %6944 = vst.msk [vmem:[#allocation3 + $0x50] sm:$0xff] %vm4644, %v6854
      %6945 = vst.msk [vmem:[#allocation3 + $0x60] sm:$0xff] %vm4644, %v6856
      %6946 = vst.msk [vmem:[#allocation3 + $0x70] sm:$0xff] %vm4644, %v6858
      %6947 = vst.msk [vmem:[#allocation3 + $0x80] sm:$0xff] %vm4644, %v6860
      %6948 = vst.msk [vmem:[#allocation3 + $0x90] sm:$0xff] %vm4644, %v6862
      %6949 = vst.msk [vmem:[#allocation3 + $0xa0] sm:$0xff] %vm4644, %v6864
      %6950 = vst.msk [vmem:[#allocation3 + $0xb0] sm:$0xff] %vm4644, %v6866
      %6951 = vst.msk [vmem:[#allocation3 + $0xc0] sm:$0xff] %vm4644, %v6868
      %6952 = vst.msk [vmem:[#allocation3 + $0xd0] sm:$0xff] %vm4644, %v6870
      %6953 = vst.msk [vmem:[#allocation3 + $0xe0] sm:$0xff] %vm4644, %v6872
      %6954 = vst.msk [vmem:[#allocation3 + $0xf0] sm:$0xff] %vm4644, %v6874
      %6955 = vst.msk [vmem:[#allocation3 + $0x100] sm:$0xff] %vm4644, %v6876
      %6956 = vst.msk [vmem:[#allocation3 + $0x110] sm:$0xff] %vm4644, %v6878
      %6957 = vst.msk [vmem:[#allocation3 + $0x120] sm:$0xff] %vm4644, %v6880
      %6958 = vst.msk [vmem:[#allocation3 + $0x130] sm:$0xff] %vm4644, %v6882
      %6959 = vst.msk [vmem:[#allocation3 + $0x140] sm:$0xff] %vm4644, %v6884
      %6960 = vst.msk [vmem:[#allocation3 + $0x150] sm:$0xff] %vm4644, %v6886
      %6961 = vst.msk [vmem:[#allocation3 + $0x160] sm:$0xff] %vm4644, %v6888
      %6962 = vst.msk [vmem:[#allocation3 + $0x170] sm:$0xff] %vm4644, %v6890
      %6963 = vst.msk [vmem:[#allocation3 + $0x180] sm:$0xff] %vm4644, %v6892
      %6964 = vst.msk [vmem:[#allocation3 + $0x190] sm:$0xff] %vm4644, %v6894
      %6965 = vst.msk [vmem:[#allocation3 + $0x1a0] sm:$0xff] %vm4644, %v6896
      %6966 = vst.msk [vmem:[#allocation3 + $0x1b0] sm:$0xff] %vm4644, %v6898
      %6967 = vst.msk [vmem:[#allocation3 + $0x1c0] sm:$0xff] %vm4644, %v6900
      %6968 = vst.msk [vmem:[#allocation3 + $0x1d0] sm:$0xff] %vm4644, %v6902
      %6969 = vst.msk [vmem:[#allocation3 + $0x1e0] sm:$0xff] %vm4644, %v6904
      %6970 = vst.msk [vmem:[#allocation3 + $0x1f0] sm:$0xff] %vm4644, %v6906
      %v6971 = vld [vmem:[%s4483 + $0x1] sm:$0xff]
      %v6972 = vld [vmem:[%s4483 + $0x9] sm:$0xff]
      %v6973 = vld [vmem:[%s4483 + $0x19] sm:$0xff]
      %v6974 = vld [vmem:[%s4483 + $0x21] sm:$0xff]
      %v6975 = vld [vmem:[%s4483 + $0x31] sm:$0xff]
      %v6976 = vld [vmem:[%s4483 + $0x39] sm:$0xff]
      %v6977 = vld [vmem:[%s4483 + $0x49] sm:$0xff]
      %v6978 = vld [vmem:[%s4483 + $0x51] sm:$0xff]
      %v6979 = vld [vmem:[%s4483 + $0x61] sm:$0xff]
      %v6980 = vld [vmem:[%s4483 + $0x69] sm:$0xff]
      %v6981 = vld [vmem:[%s4483 + $0x79] sm:$0xff]
      %v6982 = vld [vmem:[%s4483 + $0x81] sm:$0xff]
      %v6983 = vld [vmem:[%s4483 + $0x91] sm:$0xff]
      %v6984 = vld [vmem:[%s4483 + $0x99] sm:$0xff]
      %v6985 = vld [vmem:[%s4483 + $0xa9] sm:$0xff]
      %v6986 = vld [vmem:[%s4483 + $0xb1] sm:$0xff]
      %v6987 = vld [vmem:[%s4483 + $0xc1] sm:$0xff]
      %v6988 = vld [vmem:[%s4483 + $0xc9] sm:$0xff]
      %v6989 = vld [vmem:[%s4483 + $0xd9] sm:$0xff]
      %v6990 = vld [vmem:[%s4483 + $0xe1] sm:$0xff]
      %v6991 = vld [vmem:[%s4483 + $0xf1] sm:$0xff]
      %v6992 = vld [vmem:[%s4483 + $0xf9] sm:$0xff]
      %v6993 = vld [vmem:[%s4483 + $0x109] sm:$0xff]
      %v6994 = vld [vmem:[%s4483 + $0x111] sm:$0xff]
      %v6995 = vld [vmem:[%s4483 + $0x121] sm:$0xff]
      %v6996 = vld [vmem:[%s4483 + $0x129] sm:$0xff]
      %v6997 = vld [vmem:[%s4483 + $0x139] sm:$0xff]
      %v6998 = vld [vmem:[%s4483 + $0x141] sm:$0xff]
      %v6999 = vld [vmem:[%s4483 + $0x151] sm:$0xff]
      %v7000 = vld [vmem:[%s4483 + $0x159] sm:$0xff]
      %v7001 = vld [vmem:[%s4483 + $0x169] sm:$0xff]
      %v7002 = vld [vmem:[%s4483 + $0x171] sm:$0xff]
      %7035 = vrot.lane.b32.xlu0 %v6971, 112
      %v7036 = vpop.permute.xlu0 %7035
      %7037 = vrot.lane.b32.xlu0 %v6972, 112
      %v7038 = vpop.permute.xlu0 %7037
      %7039 = vrot.lane.b32.xlu0 %v6973, 112
      %v7040 = vpop.permute.xlu0 %7039
      %7041 = vrot.lane.b32.xlu0 %v6974, 112
      %v7042 = vpop.permute.xlu0 %7041
      %7043 = vrot.lane.b32.xlu0 %v6975, 112
      %v7044 = vpop.permute.xlu0 %7043
      %7045 = vrot.lane.b32.xlu0 %v6976, 112
      %v7046 = vpop.permute.xlu0 %7045
      %7047 = vrot.lane.b32.xlu0 %v6977, 112
      %v7048 = vpop.permute.xlu0 %7047
      %7049 = vrot.lane.b32.xlu0 %v6978, 112
      %v7050 = vpop.permute.xlu0 %7049
      %7051 = vrot.lane.b32.xlu0 %v6979, 112
      %v7052 = vpop.permute.xlu0 %7051
      %7053 = vrot.lane.b32.xlu0 %v6980, 112
      %v7054 = vpop.permute.xlu0 %7053
      %7055 = vrot.lane.b32.xlu0 %v6981, 112
      %v7056 = vpop.permute.xlu0 %7055
      %7057 = vrot.lane.b32.xlu0 %v6982, 112
      %v7058 = vpop.permute.xlu0 %7057
      %7059 = vrot.lane.b32.xlu0 %v6983, 112
      %v7060 = vpop.permute.xlu0 %7059
      %7061 = vrot.lane.b32.xlu0 %v6984, 112
      %v7062 = vpop.permute.xlu0 %7061
      %7063 = vrot.lane.b32.xlu0 %v6985, 112
      %v7064 = vpop.permute.xlu0 %7063
      %7065 = vrot.lane.b32.xlu0 %v6986, 112
      %v7066 = vpop.permute.xlu0 %7065
      %7067 = vrot.lane.b32.xlu0 %v6987, 112
      %v7068 = vpop.permute.xlu0 %7067
      %7069 = vrot.lane.b32.xlu0 %v6988, 112
      %v7070 = vpop.permute.xlu0 %7069
      %7071 = vrot.lane.b32.xlu0 %v6989, 112
      %v7072 = vpop.permute.xlu0 %7071
      %7073 = vrot.lane.b32.xlu0 %v6990, 112
      %v7074 = vpop.permute.xlu0 %7073
      %7075 = vrot.lane.b32.xlu0 %v6991, 112
      %v7076 = vpop.permute.xlu0 %7075
      %7077 = vrot.lane.b32.xlu0 %v6992, 112
      %v7078 = vpop.permute.xlu0 %7077
      %7079 = vrot.lane.b32.xlu0 %v6993, 112
      %v7080 = vpop.permute.xlu0 %7079
      %7081 = vrot.lane.b32.xlu0 %v6994, 112
      %v7082 = vpop.permute.xlu0 %7081
      %7083 = vrot.lane.b32.xlu0 %v6995, 112
      %v7084 = vpop.permute.xlu0 %7083
      %7085 = vrot.lane.b32.xlu0 %v6996, 112
      %v7086 = vpop.permute.xlu0 %7085
      %7087 = vrot.lane.b32.xlu0 %v6997, 112
      %v7088 = vpop.permute.xlu0 %7087
      %7089 = vrot.lane.b32.xlu0 %v6998, 112
      %v7090 = vpop.permute.xlu0 %7089
      %7091 = vrot.lane.b32.xlu0 %v6999, 112
      %v7092 = vpop.permute.xlu0 %7091
      %7093 = vrot.lane.b32.xlu0 %v7000, 112
      %v7094 = vpop.permute.xlu0 %7093
      %7095 = vrot.lane.b32.xlu0 %v7001, 112
      %v7096 = vpop.permute.xlu0 %7095
      %7097 = vrot.lane.b32.xlu0 %v7002, 112
      %v7098 = vpop.permute.xlu0 %7097
      %7131 = vst.msk [vmem:[#allocation3] sm:$0xff] %vm4837, %v7036
      %7132 = vst.msk [vmem:[#allocation3 + $0x10] sm:$0xff] %vm4837, %v7038
      %7133 = vst.msk [vmem:[#allocation3 + $0x20] sm:$0xff] %vm4837, %v7040
      %7134 = vst.msk [vmem:[#allocation3 + $0x30] sm:$0xff] %vm4837, %v7042
      %7135 = vst.msk [vmem:[#allocation3 + $0x40] sm:$0xff] %vm4837, %v7044
      %7136 = vst.msk [vmem:[#allocation3 + $0x50] sm:$0xff] %vm4837, %v7046
      %7137 = vst.msk [vmem:[#allocation3 + $0x60] sm:$0xff] %vm4837, %v7048
      %7138 = vst.msk [vmem:[#allocation3 + $0x70] sm:$0xff] %vm4837, %v7050
      %7139 = vst.msk [vmem:[#allocation3 + $0x80] sm:$0xff] %vm4837, %v7052
      %7140 = vst.msk [vmem:[#allocation3 + $0x90] sm:$0xff] %vm4837, %v7054
      %7141 = vst.msk [vmem:[#allocation3 + $0xa0] sm:$0xff] %vm4837, %v7056
      %7142 = vst.msk [vmem:[#allocation3 + $0xb0] sm:$0xff] %vm4837, %v7058
      %7143 = vst.msk [vmem:[#allocation3 + $0xc0] sm:$0xff] %vm4837, %v7060
      %7144 = vst.msk [vmem:[#allocation3 + $0xd0] sm:$0xff] %vm4837, %v7062
      %7145 = vst.msk [vmem:[#allocation3 + $0xe0] sm:$0xff] %vm4837, %v7064
      %7146 = vst.msk [vmem:[#allocation3 + $0xf0] sm:$0xff] %vm4837, %v7066
      %7147 = vst.msk [vmem:[#allocation3 + $0x100] sm:$0xff] %vm4837, %v7068
      %7148 = vst.msk [vmem:[#allocation3 + $0x110] sm:$0xff] %vm4837, %v7070
      %7149 = vst.msk [vmem:[#allocation3 + $0x120] sm:$0xff] %vm4837, %v7072
      %7150 = vst.msk [vmem:[#allocation3 + $0x130] sm:$0xff] %vm4837, %v7074
      %7151 = vst.msk [vmem:[#allocation3 + $0x140] sm:$0xff] %vm4837, %v7076
      %7152 = vst.msk [vmem:[#allocation3 + $0x150] sm:$0xff] %vm4837, %v7078
      %7153 = vst.msk [vmem:[#allocation3 + $0x160] sm:$0xff] %vm4837, %v7080
      %7154 = vst.msk [vmem:[#allocation3 + $0x170] sm:$0xff] %vm4837, %v7082
      %7155 = vst.msk [vmem:[#allocation3 + $0x180] sm:$0xff] %vm4837, %v7084
      %7156 = vst.msk [vmem:[#allocation3 + $0x190] sm:$0xff] %vm4837, %v7086
      %7157 = vst.msk [vmem:[#allocation3 + $0x1a0] sm:$0xff] %vm4837, %v7088
      %7158 = vst.msk [vmem:[#allocation3 + $0x1b0] sm:$0xff] %vm4837, %v7090
      %7159 = vst.msk [vmem:[#allocation3 + $0x1c0] sm:$0xff] %vm4837, %v7092
      %7160 = vst.msk [vmem:[#allocation3 + $0x1d0] sm:$0xff] %vm4837, %v7094
      %7161 = vst.msk [vmem:[#allocation3 + $0x1e0] sm:$0xff] %vm4837, %v7096
      %7162 = vst.msk [vmem:[#allocation3 + $0x1f0] sm:$0xff] %vm4837, %v7098
      %v7163 = vld [vmem:[%s4483 + $0x2] sm:$0xff]
      %v7164 = vld [vmem:[%s4483 + $0xa] sm:$0xff]
      %v7165 = vld [vmem:[%s4483 + $0x1a] sm:$0xff]
      %v7166 = vld [vmem:[%s4483 + $0x22] sm:$0xff]
      %v7167 = vld [vmem:[%s4483 + $0x32] sm:$0xff]
      %v7168 = vld [vmem:[%s4483 + $0x3a] sm:$0xff]
      %v7169 = vld [vmem:[%s4483 + $0x4a] sm:$0xff]
      %v7170 = vld [vmem:[%s4483 + $0x52] sm:$0xff]
      %v7171 = vld [vmem:[%s4483 + $0x62] sm:$0xff]
      %v7172 = vld [vmem:[%s4483 + $0x6a] sm:$0xff]
      %v7173 = vld [vmem:[%s4483 + $0x7a] sm:$0xff]
      %v7174 = vld [vmem:[%s4483 + $0x82] sm:$0xff]
      %v7175 = vld [vmem:[%s4483 + $0x92] sm:$0xff]
      %v7176 = vld [vmem:[%s4483 + $0x9a] sm:$0xff]
      %v7177 = vld [vmem:[%s4483 + $0xaa] sm:$0xff]
      %v7178 = vld [vmem:[%s4483 + $0xb2] sm:$0xff]
      %v7179 = vld [vmem:[%s4483 + $0xc2] sm:$0xff]
      %v7180 = vld [vmem:[%s4483 + $0xca] sm:$0xff]
      %v7181 = vld [vmem:[%s4483 + $0xda] sm:$0xff]
      %v7182 = vld [vmem:[%s4483 + $0xe2] sm:$0xff]
      %v7183 = vld [vmem:[%s4483 + $0xf2] sm:$0xff]
      %v7184 = vld [vmem:[%s4483 + $0xfa] sm:$0xff]
      %v7185 = vld [vmem:[%s4483 + $0x10a] sm:$0xff]
      %v7186 = vld [vmem:[%s4483 + $0x112] sm:$0xff]
      %v7187 = vld [vmem:[%s4483 + $0x122] sm:$0xff]
      %v7188 = vld [vmem:[%s4483 + $0x12a] sm:$0xff]
      %v7189 = vld [vmem:[%s4483 + $0x13a] sm:$0xff]
      %v7190 = vld [vmem:[%s4483 + $0x142] sm:$0xff]
      %v7191 = vld [vmem:[%s4483 + $0x152] sm:$0xff]
      %v7192 = vld [vmem:[%s4483 + $0x15a] sm:$0xff]
      %v7193 = vld [vmem:[%s4483 + $0x16a] sm:$0xff]
      %v7194 = vld [vmem:[%s4483 + $0x172] sm:$0xff]
      %7195 = vst.msk [vmem:[#allocation3 + $0x8] sm:$0xff] %vm2965, %v7163
      %7196 = vst.msk [vmem:[#allocation3 + $0x18] sm:$0xff] %vm2965, %v7164
      %7197 = vst.msk [vmem:[#allocation3 + $0x28] sm:$0xff] %vm2965, %v7165
      %7198 = vst.msk [vmem:[#allocation3 + $0x38] sm:$0xff] %vm2965, %v7166
      %7199 = vst.msk [vmem:[#allocation3 + $0x48] sm:$0xff] %vm2965, %v7167
      %7200 = vst.msk [vmem:[#allocation3 + $0x58] sm:$0xff] %vm2965, %v7168
      %7201 = vst.msk [vmem:[#allocation3 + $0x68] sm:$0xff] %vm2965, %v7169
      %7202 = vst.msk [vmem:[#allocation3 + $0x78] sm:$0xff] %vm2965, %v7170
      %7203 = vst.msk [vmem:[#allocation3 + $0x88] sm:$0xff] %vm2965, %v7171
      %7204 = vst.msk [vmem:[#allocation3 + $0x98] sm:$0xff] %vm2965, %v7172
      %7205 = vst.msk [vmem:[#allocation3 + $0xa8] sm:$0xff] %vm2965, %v7173
      %7206 = vst.msk [vmem:[#allocation3 + $0xb8] sm:$0xff] %vm2965, %v7174
      %7207 = vst.msk [vmem:[#allocation3 + $0xc8] sm:$0xff] %vm2965, %v7175
      %7208 = vst.msk [vmem:[#allocation3 + $0xd8] sm:$0xff] %vm2965, %v7176
      %7209 = vst.msk [vmem:[#allocation3 + $0xe8] sm:$0xff] %vm2965, %v7177
      %7210 = vst.msk [vmem:[#allocation3 + $0xf8] sm:$0xff] %vm2965, %v7178
      %7211 = vst.msk [vmem:[#allocation3 + $0x108] sm:$0xff] %vm2965, %v7179
      %7212 = vst.msk [vmem:[#allocation3 + $0x118] sm:$0xff] %vm2965, %v7180
      %7213 = vst.msk [vmem:[#allocation3 + $0x128] sm:$0xff] %vm2965, %v7181
      %7214 = vst.msk [vmem:[#allocation3 + $0x138] sm:$0xff] %vm2965, %v7182
      %7215 = vst.msk [vmem:[#allocation3 + $0x148] sm:$0xff] %vm2965, %v7183
      %7216 = vst.msk [vmem:[#allocation3 + $0x158] sm:$0xff] %vm2965, %v7184
      %7217 = vst.msk [vmem:[#allocation3 + $0x168] sm:$0xff] %vm2965, %v7185
      %7218 = vst.msk [vmem:[#allocation3 + $0x178] sm:$0xff] %vm2965, %v7186
      %7219 = vst.msk [vmem:[#allocation3 + $0x188] sm:$0xff] %vm2965, %v7187
      %7220 = vst.msk [vmem:[#allocation3 + $0x198] sm:$0xff] %vm2965, %v7188
      %7221 = vst.msk [vmem:[#allocation3 + $0x1a8] sm:$0xff] %vm2965, %v7189
      %7222 = vst.msk [vmem:[#allocation3 + $0x1b8] sm:$0xff] %vm2965, %v7190
      %7223 = vst.msk [vmem:[#allocation3 + $0x1c8] sm:$0xff] %vm2965, %v7191
      %7224 = vst.msk [vmem:[#allocation3 + $0x1d8] sm:$0xff] %vm2965, %v7192
      %7225 = vst.msk [vmem:[#allocation3 + $0x1e8] sm:$0xff] %vm2965, %v7193
      %7226 = vst.msk [vmem:[#allocation3 + $0x1f8] sm:$0xff] %vm2965, %v7194
      %v7227 = vld [vmem:[#allocation3] sm:$0xff]
      %v7228 = vld [vmem:[#allocation3 + $0x8] sm:$0xff]
      %v7229 = vld [vmem:[#allocation3 + $0x10] sm:$0xff]
      %v7230 = vld [vmem:[#allocation3 + $0x18] sm:$0xff]
      %v7231 = vld [vmem:[#allocation3 + $0x20] sm:$0xff]
      %v7232 = vld [vmem:[#allocation3 + $0x28] sm:$0xff]
      %v7233 = vld [vmem:[#allocation3 + $0x30] sm:$0xff]
      %v7234 = vld [vmem:[#allocation3 + $0x38] sm:$0xff]
      %v7235 = vld [vmem:[#allocation3 + $0x40] sm:$0xff]
      %v7236 = vld [vmem:[#allocation3 + $0x48] sm:$0xff]
      %v7237 = vld [vmem:[#allocation3 + $0x50] sm:$0xff]
      %v7238 = vld [vmem:[#allocation3 + $0x58] sm:$0xff]
      %v7239 = vld [vmem:[#allocation3 + $0x60] sm:$0xff]
      %v7240 = vld [vmem:[#allocation3 + $0x68] sm:$0xff]
      %v7241 = vld [vmem:[#allocation3 + $0x70] sm:$0xff]
      %v7242 = vld [vmem:[#allocation3 + $0x78] sm:$0xff]
      %v7243 = vld [vmem:[#allocation3 + $0x80] sm:$0xff]
      %v7244 = vld [vmem:[#allocation3 + $0x88] sm:$0xff]
      %v7245 = vld [vmem:[#allocation3 + $0x90] sm:$0xff]
      %v7246 = vld [vmem:[#allocation3 + $0x98] sm:$0xff]
      %v7247 = vld [vmem:[#allocation3 + $0xa0] sm:$0xff]
      %v7248 = vld [vmem:[#allocation3 + $0xa8] sm:$0xff]
      %v7249 = vld [vmem:[#allocation3 + $0xb0] sm:$0xff]
      %v7250 = vld [vmem:[#allocation3 + $0xb8] sm:$0xff]
      %v7251 = vld [vmem:[#allocation3 + $0xc0] sm:$0xff]
      %v7252 = vld [vmem:[#allocation3 + $0xc8] sm:$0xff]
      %v7253 = vld [vmem:[#allocation3 + $0xd0] sm:$0xff]
      %v7254 = vld [vmem:[#allocation3 + $0xd8] sm:$0xff]
      %v7255 = vld [vmem:[#allocation3 + $0xe0] sm:$0xff]
      %v7256 = vld [vmem:[#allocation3 + $0xe8] sm:$0xff]
      %v7257 = vld [vmem:[#allocation3 + $0xf0] sm:$0xff]
      %v7258 = vld [vmem:[#allocation3 + $0xf8] sm:$0xff]
      %v7259 = vld [vmem:[#allocation3 + $0x100] sm:$0xff]
      %v7260 = vld [vmem:[#allocation3 + $0x108] sm:$0xff]
      %v7261 = vld [vmem:[#allocation3 + $0x110] sm:$0xff]
      %v7262 = vld [vmem:[#allocation3 + $0x118] sm:$0xff]
      %v7263 = vld [vmem:[#allocation3 + $0x120] sm:$0xff]
      %v7264 = vld [vmem:[#allocation3 + $0x128] sm:$0xff]
      %v7265 = vld [vmem:[#allocation3 + $0x130] sm:$0xff]
      %v7266 = vld [vmem:[#allocation3 + $0x138] sm:$0xff]
      %v7267 = vld [vmem:[#allocation3 + $0x140] sm:$0xff]
      %v7268 = vld [vmem:[#allocation3 + $0x148] sm:$0xff]
      %v7269 = vld [vmem:[#allocation3 + $0x150] sm:$0xff]
      %v7270 = vld [vmem:[#allocation3 + $0x158] sm:$0xff]
      %v7271 = vld [vmem:[#allocation3 + $0x160] sm:$0xff]
      %v7272 = vld [vmem:[#allocation3 + $0x168] sm:$0xff]
      %v7273 = vld [vmem:[#allocation3 + $0x170] sm:$0xff]
      %v7274 = vld [vmem:[#allocation3 + $0x178] sm:$0xff]
      %v7275 = vld [vmem:[#allocation3 + $0x180] sm:$0xff]
      %v7276 = vld [vmem:[#allocation3 + $0x188] sm:$0xff]
      %v7277 = vld [vmem:[#allocation3 + $0x190] sm:$0xff]
      %v7278 = vld [vmem:[#allocation3 + $0x198] sm:$0xff]
      %v7279 = vld [vmem:[#allocation3 + $0x1a0] sm:$0xff]
      %v7280 = vld [vmem:[#allocation3 + $0x1a8] sm:$0xff]
      %v7281 = vld [vmem:[#allocation3 + $0x1b0] sm:$0xff]
      %v7282 = vld [vmem:[#allocation3 + $0x1b8] sm:$0xff]
      %v7283 = vld [vmem:[#allocation3 + $0x1c0] sm:$0xff]
      %v7284 = vld [vmem:[#allocation3 + $0x1c8] sm:$0xff]
      %v7285 = vld [vmem:[#allocation3 + $0x1d0] sm:$0xff]
      %v7286 = vld [vmem:[#allocation3 + $0x1d8] sm:$0xff]
      %v7287 = vld [vmem:[#allocation3 + $0x1e0] sm:$0xff]
      %v7288 = vld [vmem:[#allocation3 + $0x1e8] sm:$0xff]
      %v7289 = vld [vmem:[#allocation3 + $0x1f0] sm:$0xff]
      %v7290 = vld [vmem:[#allocation3 + $0x1f8] sm:$0xff]
      %v7291 = vpack.c.bf16 %v7229, %v7227
      %v7292 = vpack.c.bf16 %v7230, %v7228
      %v7293 = vpack.c.bf16 %v7233, %v7231
      %v7294 = vpack.c.bf16 %v7234, %v7232
      %v7295 = vpack.c.bf16 %v7237, %v7235
      %v7296 = vpack.c.bf16 %v7238, %v7236
      %v7297 = vpack.c.bf16 %v7241, %v7239
      %v7298 = vpack.c.bf16 %v7242, %v7240
      %v7299 = vpack.c.bf16 %v7245, %v7243
      %v7300 = vpack.c.bf16 %v7246, %v7244
      %v7301 = vpack.c.bf16 %v7249, %v7247
      %v7302 = vpack.c.bf16 %v7250, %v7248
      %v7303 = vpack.c.bf16 %v7253, %v7251
      %v7304 = vpack.c.bf16 %v7254, %v7252
      %v7305 = vpack.c.bf16 %v7257, %v7255
      %v7306 = vpack.c.bf16 %v7258, %v7256
      %v7307 = vpack.c.bf16 %v7261, %v7259
      %v7308 = vpack.c.bf16 %v7262, %v7260
      %v7309 = vpack.c.bf16 %v7265, %v7263
      %v7310 = vpack.c.bf16 %v7266, %v7264
      %v7311 = vpack.c.bf16 %v7269, %v7267
      %v7312 = vpack.c.bf16 %v7270, %v7268
      %v7313 = vpack.c.bf16 %v7273, %v7271
      %v7314 = vpack.c.bf16 %v7274, %v7272
      %v7315 = vpack.c.bf16 %v7277, %v7275
      %v7316 = vpack.c.bf16 %v7278, %v7276
      %v7317 = vpack.c.bf16 %v7281, %v7279
      %v7318 = vpack.c.bf16 %v7282, %v7280
      %v7319 = vpack.c.bf16 %v7285, %v7283
      %v7320 = vpack.c.bf16 %v7286, %v7284
      %v7321 = vpack.c.bf16 %v7289, %v7287
      %v7322 = vpack.c.bf16 %v7290, %v7288
      %v7323 = vld [vmem:[%s4] sm:$0xf]
      %v7324 = vld [vmem:[%s4 + $0x4] sm:$0xf]
      %v7325 = vld [vmem:[%s4 + $0x8] sm:$0xf]
      %v7326 = vld [vmem:[%s4 + $0xc] sm:$0xf]
      %v7327 = vld [vmem:[%s4 + $0x10] sm:$0xf]
      %v7328 = vld [vmem:[%s4 + $0x14] sm:$0xf]
      %v7329 = vld [vmem:[%s4 + $0x18] sm:$0xf]
      %v7330 = vld [vmem:[%s4 + $0x1c] sm:$0xf]
      %v7331 = vld [vmem:[%s4 + $0x20] sm:$0xf]
      %v7332 = vld [vmem:[%s4 + $0x24] sm:$0xf]
      %v7333 = vld [vmem:[%s4 + $0x28] sm:$0xf]
      %v7334 = vld [vmem:[%s4 + $0x2c] sm:$0xf]
      %v7335 = vld [vmem:[%s4 + $0x30] sm:$0xf]
      %v7336 = vld [vmem:[%s4 + $0x34] sm:$0xf]
      %v7337 = vld [vmem:[%s4 + $0x38] sm:$0xf]
      %v7338 = vld [vmem:[%s4 + $0x3c] sm:$0xf]
      %v7339 = vld [vmem:[%s4 + $0x40] sm:$0xf]
      %v7340 = vld [vmem:[%s4 + $0x44] sm:$0xf]
      %v7359 = vunpack.c.l.b16 %v7323
      %v7360 = vunpack.c.l.b16 %v7324
      %v7361 = vunpack.c.l.b16 %v7325
      %v7362 = vunpack.c.l.b16 %v7326
      %v7363 = vunpack.c.l.b16 %v7327
      %v7364 = vunpack.c.l.b16 %v7328
      %v7365 = vunpack.c.l.b16 %v7329
      %v7366 = vunpack.c.l.b16 %v7330
      %v7367 = vunpack.c.l.b16 %v7331
      %v7368 = vunpack.c.l.b16 %v7332
      %v7369 = vunpack.c.l.b16 %v7333
      %v7370 = vunpack.c.l.b16 %v7334
      %v7371 = vunpack.c.l.b16 %v7335
      %v7372 = vunpack.c.l.b16 %v7336
      %v7373 = vunpack.c.l.b16 %v7337
      %v7374 = vunpack.c.l.b16 %v7338
      %v7375 = vunpack.c.l.b16 %v7339
      %v7376 = vunpack.c.l.b16 %v7340
      %v7377 = vpack.c.b16 %v7360, %v7359
      %v7378 = vpack.c.b16 %v7362, %v7361
      %v7379 = vpack.c.b16 %v7364, %v7363
      %v7380 = vpack.c.b16 %v7366, %v7365
      %v7381 = vpack.c.b16 %v7368, %v7367
      %v7382 = vpack.c.b16 %v7370, %v7369
      %v7383 = vpack.c.b16 %v7372, %v7371
      %v7384 = vpack.c.b16 %v7374, %v7373
      %v7385 = vpack.c.b16 %v7376, %v7375
      %v7396 = vsel %vm2965, %v7292, 0
      %v7399 = vsel %vm2965, %v7294, 0
      %v7402 = vsel %vm2965, %v7296, 0
      %v7405 = vsel %vm2965, %v7298, 0
      %v7408 = vsel %vm2965, %v7300, 0
      %v7411 = vsel %vm2965, %v7302, 0
      %v7414 = vsel %vm2965, %v7304, 0
      %v7417 = vsel %vm2965, %v7306, 0
      %v7420 = vsel %vm2965, %v7308, 0
      %v7423 = vsel %vm2965, %v7310, 0
      %v7426 = vsel %vm2965, %v7312, 0
      %v7429 = vsel %vm2965, %v7314, 0
      %v7432 = vsel %vm2965, %v7316, 0
      %v7435 = vsel %vm2965, %v7318, 0
      %v7438 = vsel %vm2965, %v7320, 0
      %v7441 = vsel %vm2965, %v7322, 0
      %7443 = vmatprep.subr.bf16.mxu0 0
      %7444 = vmatpush1.bf16.msra.mxu0 %v7377
      %7445 = vmatprep.subr.bf16.mxu0 0
      %7446 = vmatpush1.bf16.msra.mxu0 %v7378
      %7447 = vmatprep.subr.bf16.mxu0 0
      %7448 = vmatpush1.bf16.msra.mxu0 %v7379
      %7449 = vmatprep.subr.bf16.mxu0 0
      %7450 = vmatpush1.bf16.msra.mxu0 %v7380
      %7451 = vmatprep.subr.bf16.mxu0 0
      %7452 = vmatpush1.bf16.msra.mxu0 %v7381
      %7453 = vmatprep.subr.bf16.mxu0 0
      %7454 = vmatpush1.bf16.msra.mxu0 %v7382
      %7455 = vmatprep.subr.bf16.mxu0 0
      %7456 = vmatpush1.bf16.msra.mxu0 %v7383
      %7457 = vmatprep.subr.bf16.mxu0 0
      %7458 = vmatpush1.bf16.msra.mxu0 %v7384
      %7459 = vmatprep.subr.bf16.mxu0 0
      %7460 = vmatpush1.bf16.msra.mxu0 %v7385
      %7461 = vmatprep.subr.bf16.mxu0 0
      %7462 = vmatpush1.bf16.msra.mxu0 0
      %7463 = vmatprep.subr.bf16.mxu0 0
      %7464 = vmatpush1.bf16.msra.mxu0 0
      %7465 = vmatprep.subr.bf16.mxu0 0
      %7466 = vmatpush1.bf16.msra.mxu0 0
      %7467 = vmatprep.subr.bf16.mxu0 0
      %7468 = vmatpush1.bf16.msra.mxu0 0
      %7469 = vmatprep.subr.bf16.mxu0 0
      %7470 = vmatpush1.bf16.msra.mxu0 0
      %7471 = vmatprep.subr.bf16.mxu0 0
      %7472 = vmatpush1.bf16.msra.mxu0 0
      %7473 = vmatprep.subr.bf16.mxu0 0
      %7474 = vmatpush1.bf16.msra.mxu0 0
      %7475 = vmatprep.mubr.bf16.mxu0 %v7396
      %7476 = vmatmul.mubr.bf16.gmra.mrb[0].mxu0 %v7291
      %v7477 = vpop.f32.mrb[0].mxu0
      %v7478 = vadd.f32 0.0, %v7477
      %v7479 = vpop.f32.mrb[0].mxu0
      %v7480 = vpop.f32.mrb[0].mxu0
      %v7481 = vadd.f32 0.0, %v7480
      %v7482 = vpop.f32.mrb[0].mxu0
      %7483 = vmatprep.mubr.bf16.mxu0 %v7399
      %7484 = vmatmul.mubr.bf16.gmra.mrb[0].mxu0 %v7293
      %v7485 = vpop.f32.mrb[0].mxu0
      %v7486 = vpop.f32.mrb[0].mxu0
      %v7487 = vpop.f32.mrb[0].mxu0
      %v7488 = vpop.f32.mrb[0].mxu0
      %7489 = vmatprep.mubr.bf16.mxu0 %v7402
      %7490 = vmatmul.mubr.bf16.gmra.mrb[0].mxu0 %v7295
      %v7491 = vpop.f32.mrb[0].mxu0
      %v7492 = vadd.f32 0.0, %v7491
      %v7493 = vpop.f32.mrb[0].mxu0
      %v7494 = vpop.f32.mrb[0].mxu0
      %v7495 = vadd.f32 0.0, %v7494
      %v7496 = vpop.f32.mrb[0].mxu0
      %7497 = vmatprep.mubr.bf16.mxu0 %v7405
      %7498 = vmatmul.mubr.bf16.gmra.mrb[0].mxu0 %v7297
      %v7499 = vpop.f32.mrb[0].mxu0
      %v7500 = vpop.f32.mrb[0].mxu0
      %v7501 = vpop.f32.mrb[0].mxu0
      %v7502 = vpop.f32.mrb[0].mxu0
      %7503 = vmatprep.mubr.bf16.mxu0 %v7408
      %7504 = vmatmul.mubr.bf16.gmra.mrb[0].mxu0 %v7299
      %v7505 = vpop.f32.mrb[0].mxu0
      %v7506 = vadd.f32 0.0, %v7505
      %v7507 = vpop.f32.mrb[0].mxu0
      %v7508 = vpop.f32.mrb[0].mxu0
      %v7509 = vadd.f32 0.0, %v7508
      %v7510 = vpop.f32.mrb[0].mxu0
      %7511 = vmatprep.mubr.bf16.mxu0 %v7411
      %7512 = vmatmul.mubr.bf16.gmra.mrb[0].mxu0 %v7301
      %v7513 = vpop.f32.mrb[0].mxu0
      %v7514 = vpop.f32.mrb[0].mxu0
      %v7515 = vpop.f32.mrb[0].mxu0
      %v7516 = vpop.f32.mrb[0].mxu0
      %7517 = vmatprep.mubr.bf16.mxu0 %v7414
      %7518 = vmatmul.mubr.bf16.gmra.mrb[0].mxu0 %v7303
      %v7519 = vpop.f32.mrb[0].mxu0
      %v7520 = vadd.f32 0.0, %v7519
      %v7521 = vpop.f32.mrb[0].mxu0
      %v7522 = vpop.f32.mrb[0].mxu0
      %v7523 = vadd.f32 0.0, %v7522
      %v7524 = vpop.f32.mrb[0].mxu0
      %7525 = vmatprep.mubr.bf16.mxu0 %v7417
      %7526 = vmatmul.mubr.bf16.gmra.mrb[0].mxu0 %v7305
      %v7527 = vpop.f32.mrb[0].mxu0
      %v7528 = vpop.f32.mrb[0].mxu0
      %v7529 = vpop.f32.mrb[0].mxu0
      %v7530 = vpop.f32.mrb[0].mxu0
      %7531 = vmatprep.mubr.bf16.mxu0 %v7420
      %7532 = vmatmul.mubr.bf16.gmra.mrb[0].mxu0 %v7307
      %v7533 = vpop.f32.mrb[0].mxu0
      %v7534 = vadd.f32 0.0, %v7533
      %v7535 = vpop.f32.mrb[0].mxu0
      %v7536 = vpop.f32.mrb[0].mxu0
      %v7537 = vadd.f32 0.0, %v7536
      %v7538 = vpop.f32.mrb[0].mxu0
      %7539 = vmatprep.mubr.bf16.mxu0 %v7423
      %7540 = vmatmul.mubr.bf16.gmra.mrb[0].mxu0 %v7309
      %v7541 = vpop.f32.mrb[0].mxu0
      %v7542 = vpop.f32.mrb[0].mxu0
      %v7543 = vpop.f32.mrb[0].mxu0
      %v7544 = vpop.f32.mrb[0].mxu0
      %7545 = vmatprep.mubr.bf16.mxu0 %v7426
      %7546 = vmatmul.mubr.bf16.gmra.mrb[0].mxu0 %v7311
      %v7547 = vpop.f32.mrb[0].mxu0
      %v7548 = vadd.f32 0.0, %v7547
      %v7549 = vpop.f32.mrb[0].mxu0
      %v7550 = vpop.f32.mrb[0].mxu0
      %v7551 = vadd.f32 0.0, %v7550
      %v7552 = vpop.f32.mrb[0].mxu0
      %7553 = vmatprep.mubr.bf16.mxu0 %v7429
      %7554 = vmatmul.mubr.bf16.gmra.mrb[0].mxu0 %v7313
      %v7555 = vpop.f32.mrb[0].mxu0
      %v7556 = vpop.f32.mrb[0].mxu0
      %v7557 = vpop.f32.mrb[0].mxu0
      %v7558 = vpop.f32.mrb[0].mxu0
      %7559 = vmatprep.mubr.bf16.mxu0 %v7432
      %7560 = vmatmul.mubr.bf16.gmra.mrb[0].mxu0 %v7315
      %v7561 = vpop.f32.mrb[0].mxu0
      %v7562 = vadd.f32 0.0, %v7561
      %v7563 = vpop.f32.mrb[0].mxu0
      %v7564 = vpop.f32.mrb[0].mxu0
      %v7565 = vadd.f32 0.0, %v7564
      %v7566 = vpop.f32.mrb[0].mxu0
      %7567 = vmatprep.mubr.bf16.mxu0 %v7435
      %7568 = vmatmul.mubr.bf16.gmra.mrb[0].mxu0 %v7317
      %v7569 = vpop.f32.mrb[0].mxu0
      %v7570 = vpop.f32.mrb[0].mxu0
      %v7571 = vpop.f32.mrb[0].mxu0
      %v7572 = vpop.f32.mrb[0].mxu0
      %7573 = vmatprep.mubr.bf16.mxu0 %v7438
      %7574 = vmatmul.mubr.bf16.gmra.mrb[0].mxu0 %v7319
      %v7575 = vpop.f32.mrb[0].mxu0
      %v7576 = vadd.f32 0.0, %v7575
      %v7577 = vpop.f32.mrb[0].mxu0
      %v7578 = vpop.f32.mrb[0].mxu0
      %v7579 = vadd.f32 0.0, %v7578
      %v7580 = vpop.f32.mrb[0].mxu0
      %7581 = vmatprep.mubr.bf16.mxu0 %v7441
      %7582 = vmatmul.mubr.bf16.gmra.mrb[0].mxu0 %v7321
      %v7583 = vpop.f32.mrb[0].mxu0
      %v7584 = vpop.f32.mrb[0].mxu0
      %v7585 = vpop.f32.mrb[0].mxu0
      %v7586 = vpop.f32.mrb[0].mxu0
      %7587 = vdwg.mxu0
      %v7604 = vcombine.high %v7478, %v7478
      %v7606 = vunpack.c.l.s4 1983009808
      %v7607 = vunpack.c.0.s8 %v7606
      %v7608 = vlaneseq
      %v7609 = vshrl.u32 %v7608, 7
      %v7610 = vsub.s32 %v7607, %v7609
      %v7611 = vrot.slane %v7478, %v7610
      %v7613 = vunpack.c.l.s4 1983009808
      %v7614 = vunpack.c.0.s8 %v7613
      %v7615 = vlaneseq
      %v7616 = vshrl.u32 %v7615, 7
      %v7617 = vsub.s32 %v7614, %v7616
      %v7618 = vrot.slane %v7604, %v7617
      %v7619 = vcombine.high %v7611, %v7611
      %v7620 = vcombine.high %v7618, %v7618
      %v7621 = vcombine.high %v7481, %v7481
      %v7623 = vunpack.c.l.s4 1983009808
      %v7624 = vunpack.c.0.s8 %v7623
      %v7625 = vlaneseq
      %v7626 = vshrl.u32 %v7625, 7
      %v7627 = vsub.s32 %v7624, %v7626
      %v7628 = vrot.slane %v7481, %v7627
      %v7630 = vunpack.c.l.s4 1983009808
      %v7631 = vunpack.c.0.s8 %v7630
      %v7632 = vlaneseq
      %v7633 = vshrl.u32 %v7632, 7
      %v7634 = vsub.s32 %v7631, %v7633
      %v7635 = vrot.slane %v7621, %v7634
      %v7636 = vcombine.high %v7628, %v7628
      %v7637 = vcombine.high %v7635, %v7635
      %v7638 = vcombine.high %v7492, %v7492
      %v7640 = vunpack.c.l.s4 1983009808
      %v7641 = vunpack.c.0.s8 %v7640
      %v7642 = vlaneseq
      %v7643 = vshrl.u32 %v7642, 7
      %v7644 = vsub.s32 %v7641, %v7643
      %v7645 = vrot.slane %v7492, %v7644
      %v7647 = vunpack.c.l.s4 1983009808
      %v7648 = vunpack.c.0.s8 %v7647
      %v7649 = vlaneseq
      %v7650 = vshrl.u32 %v7649, 7
      %v7651 = vsub.s32 %v7648, %v7650
      %v7652 = vrot.slane %v7638, %v7651
      %v7653 = vcombine.high %v7645, %v7645
      %v7654 = vcombine.high %v7652, %v7652
      %v7655 = vcombine.high %v7495, %v7495
      %v7657 = vunpack.c.l.s4 1983009808
      %v7658 = vunpack.c.0.s8 %v7657
      %v7659 = vlaneseq
      %v7660 = vshrl.u32 %v7659, 7
      %v7661 = vsub.s32 %v7658, %v7660
      %v7662 = vrot.slane %v7495, %v7661
      %v7664 = vunpack.c.l.s4 1983009808
      %v7665 = vunpack.c.0.s8 %v7664
      %v7666 = vlaneseq
      %v7667 = vshrl.u32 %v7666, 7
      %v7668 = vsub.s32 %v7665, %v7667
      %v7669 = vrot.slane %v7655, %v7668
      %v7670 = vcombine.high %v7662, %v7662
      %v7671 = vcombine.high %v7669, %v7669
      %v7672 = vcombine.high %v7506, %v7506
      %v7674 = vunpack.c.l.s4 1983009808
      %v7675 = vunpack.c.0.s8 %v7674
      %v7676 = vlaneseq
      %v7677 = vshrl.u32 %v7676, 7
      %v7678 = vsub.s32 %v7675, %v7677
      %v7679 = vrot.slane %v7506, %v7678
      %v7681 = vunpack.c.l.s4 1983009808
      %v7682 = vunpack.c.0.s8 %v7681
      %v7683 = vlaneseq
      %v7684 = vshrl.u32 %v7683, 7
      %v7685 = vsub.s32 %v7682, %v7684
      %v7686 = vrot.slane %v7672, %v7685
      %v7687 = vcombine.high %v7679, %v7679
      %v7688 = vcombine.high %v7686, %v7686
      %v7689 = vcombine.high %v7509, %v7509
      %v7691 = vunpack.c.l.s4 1983009808
      %v7692 = vunpack.c.0.s8 %v7691
      %v7693 = vlaneseq
      %v7694 = vshrl.u32 %v7693, 7
      %v7695 = vsub.s32 %v7692, %v7694
      %v7696 = vrot.slane %v7509, %v7695
      %v7698 = vunpack.c.l.s4 1983009808
      %v7699 = vunpack.c.0.s8 %v7698
      %v7700 = vlaneseq
      %v7701 = vshrl.u32 %v7700, 7
      %v7702 = vsub.s32 %v7699, %v7701
      %v7703 = vrot.slane %v7689, %v7702
      %v7704 = vcombine.high %v7696, %v7696
      %v7705 = vcombine.high %v7703, %v7703
      %v7706 = vcombine.high %v7520, %v7520
      %v7708 = vunpack.c.l.s4 1983009808
      %v7709 = vunpack.c.0.s8 %v7708
      %v7710 = vlaneseq
      %v7711 = vshrl.u32 %v7710, 7
      %v7712 = vsub.s32 %v7709, %v7711
      %v7713 = vrot.slane %v7520, %v7712
      %v7715 = vunpack.c.l.s4 1983009808
      %v7716 = vunpack.c.0.s8 %v7715
      %v7717 = vlaneseq
      %v7718 = vshrl.u32 %v7717, 7
      %v7719 = vsub.s32 %v7716, %v7718
      %v7720 = vrot.slane %v7706, %v7719
      %v7721 = vcombine.high %v7713, %v7713
      %v7722 = vcombine.high %v7720, %v7720
      %v7723 = vcombine.high %v7523, %v7523
      %v7725 = vunpack.c.l.s4 1983009808
      %v7726 = vunpack.c.0.s8 %v7725
      %v7727 = vlaneseq
      %v7728 = vshrl.u32 %v7727, 7
      %v7729 = vsub.s32 %v7726, %v7728
      %v7730 = vrot.slane %v7523, %v7729
      %v7732 = vunpack.c.l.s4 1983009808
      %v7733 = vunpack.c.0.s8 %v7732
      %v7734 = vlaneseq
      %v7735 = vshrl.u32 %v7734, 7
      %v7736 = vsub.s32 %v7733, %v7735
      %v7737 = vrot.slane %v7723, %v7736
      %v7738 = vcombine.high %v7730, %v7730
      %v7739 = vcombine.high %v7737, %v7737
      %v7740 = vcombine.high %v7534, %v7534
      %v7742 = vunpack.c.l.s4 1983009808
      %v7743 = vunpack.c.0.s8 %v7742
      %v7744 = vlaneseq
      %v7745 = vshrl.u32 %v7744, 7
      %v7746 = vsub.s32 %v7743, %v7745
      %v7747 = vrot.slane %v7534, %v7746
      %v7749 = vunpack.c.l.s4 1983009808
      %v7750 = vunpack.c.0.s8 %v7749
      %v7751 = vlaneseq
      %v7752 = vshrl.u32 %v7751, 7
      %v7753 = vsub.s32 %v7750, %v7752
      %v7754 = vrot.slane %v7740, %v7753
      %v7755 = vcombine.high %v7747, %v7747
      %v7756 = vcombine.high %v7754, %v7754
      %v7757 = vcombine.high %v7537, %v7537
      %v7759 = vunpack.c.l.s4 1983009808
      %v7760 = vunpack.c.0.s8 %v7759
      %v7761 = vlaneseq
      %v7762 = vshrl.u32 %v7761, 7
      %v7763 = vsub.s32 %v7760, %v7762
      %v7764 = vrot.slane %v7537, %v7763
      %v7766 = vunpack.c.l.s4 1983009808
      %v7767 = vunpack.c.0.s8 %v7766
      %v7768 = vlaneseq
      %v7769 = vshrl.u32 %v7768, 7
      %v7770 = vsub.s32 %v7767, %v7769
      %v7771 = vrot.slane %v7757, %v7770
      %v7772 = vcombine.high %v7764, %v7764
      %v7773 = vcombine.high %v7771, %v7771
      %v7774 = vcombine.high %v7548, %v7548
      %v7776 = vunpack.c.l.s4 1983009808
      %v7777 = vunpack.c.0.s8 %v7776
      %v7778 = vlaneseq
      %v7779 = vshrl.u32 %v7778, 7
      %v7780 = vsub.s32 %v7777, %v7779
      %v7781 = vrot.slane %v7548, %v7780
      %v7783 = vunpack.c.l.s4 1983009808
      %v7784 = vunpack.c.0.s8 %v7783
      %v7785 = vlaneseq
      %v7786 = vshrl.u32 %v7785, 7
      %v7787 = vsub.s32 %v7784, %v7786
      %v7788 = vrot.slane %v7774, %v7787
      %v7789 = vcombine.high %v7781, %v7781
      %v7790 = vcombine.high %v7788, %v7788
      %v7791 = vcombine.high %v7551, %v7551
      %v7793 = vunpack.c.l.s4 1983009808
      %v7794 = vunpack.c.0.s8 %v7793
      %v7795 = vlaneseq
      %v7796 = vshrl.u32 %v7795, 7
      %v7797 = vsub.s32 %v7794, %v7796
      %v7798 = vrot.slane %v7551, %v7797
      %v7800 = vunpack.c.l.s4 1983009808
      %v7801 = vunpack.c.0.s8 %v7800
      %v7802 = vlaneseq
      %v7803 = vshrl.u32 %v7802, 7
      %v7804 = vsub.s32 %v7801, %v7803
      %v7805 = vrot.slane %v7791, %v7804
      %v7806 = vcombine.high %v7798, %v7798
      %v7807 = vcombine.high %v7805, %v7805
      %v7808 = vcombine.high %v7562, %v7562
      %v7810 = vunpack.c.l.s4 1983009808
      %v7811 = vunpack.c.0.s8 %v7810
      %v7812 = vlaneseq
      %v7813 = vshrl.u32 %v7812, 7
      %v7814 = vsub.s32 %v7811, %v7813
      %v7815 = vrot.slane %v7562, %v7814
      %v7817 = vunpack.c.l.s4 1983009808
      %v7818 = vunpack.c.0.s8 %v7817
      %v7819 = vlaneseq
      %v7820 = vshrl.u32 %v7819, 7
      %v7821 = vsub.s32 %v7818, %v7820
      %v7822 = vrot.slane %v7808, %v7821
      %v7823 = vcombine.high %v7815, %v7815
      %v7824 = vcombine.high %v7822, %v7822
      %v7825 = vcombine.high %v7565, %v7565
      %v7827 = vunpack.c.l.s4 1983009808
      %v7828 = vunpack.c.0.s8 %v7827
      %v7829 = vlaneseq
      %v7830 = vshrl.u32 %v7829, 7
      %v7831 = vsub.s32 %v7828, %v7830
      %v7832 = vrot.slane %v7565, %v7831
      %v7834 = vunpack.c.l.s4 1983009808
      %v7835 = vunpack.c.0.s8 %v7834
      %v7836 = vlaneseq
      %v7837 = vshrl.u32 %v7836, 7
      %v7838 = vsub.s32 %v7835, %v7837
      %v7839 = vrot.slane %v7825, %v7838
      %v7840 = vcombine.high %v7832, %v7832
      %v7841 = vcombine.high %v7839, %v7839
      %v7842 = vcombine.high %v7576, %v7576
      %v7844 = vunpack.c.l.s4 1983009808
      %v7845 = vunpack.c.0.s8 %v7844
      %v7846 = vlaneseq
      %v7847 = vshrl.u32 %v7846, 7
      %v7848 = vsub.s32 %v7845, %v7847
      %v7849 = vrot.slane %v7576, %v7848
      %v7851 = vunpack.c.l.s4 1983009808
      %v7852 = vunpack.c.0.s8 %v7851
      %v7853 = vlaneseq
      %v7854 = vshrl.u32 %v7853, 7
      %v7855 = vsub.s32 %v7852, %v7854
      %v7856 = vrot.slane %v7842, %v7855
      %v7857 = vcombine.high %v7849, %v7849
      %v7858 = vcombine.high %v7856, %v7856
      %v7859 = vcombine.high %v7579, %v7579
      %v7861 = vunpack.c.l.s4 1983009808
      %v7862 = vunpack.c.0.s8 %v7861
      %v7863 = vlaneseq
      %v7864 = vshrl.u32 %v7863, 7
      %v7865 = vsub.s32 %v7862, %v7864
      %v7866 = vrot.slane %v7579, %v7865
      %v7868 = vunpack.c.l.s4 1983009808
      %v7869 = vunpack.c.0.s8 %v7868
      %v7870 = vlaneseq
      %v7871 = vshrl.u32 %v7870, 7
      %v7872 = vsub.s32 %v7869, %v7871
      %v7873 = vrot.slane %v7859, %v7872
      %v7874 = vcombine.high %v7866, %v7866
      %v7875 = vcombine.high %v7873, %v7873
      %v7940 = vld [vmem:[%s589] sm:$0x1]
      %v7941 = vld [vmem:[%s594] sm:$0x1]
      %v7942 = vlaneseq
      %v7943 = vshrl.u32 %v7942, 7
      %v7944 = vsub.s32 0, %v7943
      %v7945 = vrot.slane %v7611, %v7944
      %v7946 = vlaneseq
      %v7947 = vshrl.u32 %v7946, 7
      %v7948 = vsub.s32 0, %v7947
      %v7949 = vrot.slane %v7619, %v7948
      %v7950 = vlaneseq
      %v7951 = vshrl.u32 %v7950, 7
      %v7952 = vsub.s32 0, %v7951
      %v7953 = vrot.slane %v7618, %v7952
      %v7954 = vlaneseq
      %v7955 = vshrl.u32 %v7954, 7
      %v7956 = vsub.s32 0, %v7955
      %v7957 = vrot.slane %v7620, %v7956
      %v7958 = vlaneseq
      %v7959 = vshrl.u32 %v7958, 7
      %v7960 = vsub.s32 0, %v7959
      %v7961 = vrot.slane %v7628, %v7960
      %v7962 = vlaneseq
      %v7963 = vshrl.u32 %v7962, 7
      %v7964 = vsub.s32 0, %v7963
      %v7965 = vrot.slane %v7636, %v7964
      %v7966 = vlaneseq
      %v7967 = vshrl.u32 %v7966, 7
      %v7968 = vsub.s32 0, %v7967
      %v7969 = vrot.slane %v7635, %v7968
      %v7970 = vlaneseq
      %v7971 = vshrl.u32 %v7970, 7
      %v7972 = vsub.s32 0, %v7971
      %v7973 = vrot.slane %v7637, %v7972
      %v7974 = vlaneseq
      %v7975 = vshrl.u32 %v7974, 7
      %v7976 = vsub.s32 0, %v7975
      %v7977 = vrot.slane %v7645, %v7976
      %v7978 = vlaneseq
      %v7979 = vshrl.u32 %v7978, 7
      %v7980 = vsub.s32 0, %v7979
      %v7981 = vrot.slane %v7653, %v7980
      %v7982 = vlaneseq
      %v7983 = vshrl.u32 %v7982, 7
      %v7984 = vsub.s32 0, %v7983
      %v7985 = vrot.slane %v7652, %v7984
      %v7986 = vlaneseq
      %v7987 = vshrl.u32 %v7986, 7
      %v7988 = vsub.s32 0, %v7987
      %v7989 = vrot.slane %v7654, %v7988
      %v7990 = vlaneseq
      %v7991 = vshrl.u32 %v7990, 7
      %v7992 = vsub.s32 0, %v7991
      %v7993 = vrot.slane %v7662, %v7992
      %v7994 = vlaneseq
      %v7995 = vshrl.u32 %v7994, 7
      %v7996 = vsub.s32 0, %v7995
      %v7997 = vrot.slane %v7670, %v7996
      %v7998 = vlaneseq
      %v7999 = vshrl.u32 %v7998, 7
      %v8000 = vsub.s32 0, %v7999
      %v8001 = vrot.slane %v7669, %v8000
      %v8002 = vlaneseq
      %v8003 = vshrl.u32 %v8002, 7
      %v8004 = vsub.s32 0, %v8003
      %v8005 = vrot.slane %v7671, %v8004
      %v8006 = vlaneseq
      %v8007 = vshrl.u32 %v8006, 7
      %v8008 = vsub.s32 0, %v8007
      %v8009 = vrot.slane %v7679, %v8008
      %v8010 = vlaneseq
      %v8011 = vshrl.u32 %v8010, 7
      %v8012 = vsub.s32 0, %v8011
      %v8013 = vrot.slane %v7687, %v8012
      %v8014 = vlaneseq
      %v8015 = vshrl.u32 %v8014, 7
      %v8016 = vsub.s32 0, %v8015
      %v8017 = vrot.slane %v7686, %v8016
      %v8018 = vlaneseq
      %v8019 = vshrl.u32 %v8018, 7
      %v8020 = vsub.s32 0, %v8019
      %v8021 = vrot.slane %v7688, %v8020
      %v8022 = vlaneseq
      %v8023 = vshrl.u32 %v8022, 7
      %v8024 = vsub.s32 0, %v8023
      %v8025 = vrot.slane %v7696, %v8024
      %v8026 = vlaneseq
      %v8027 = vshrl.u32 %v8026, 7
      %v8028 = vsub.s32 0, %v8027
      %v8029 = vrot.slane %v7704, %v8028
      %v8030 = vlaneseq
      %v8031 = vshrl.u32 %v8030, 7
      %v8032 = vsub.s32 0, %v8031
      %v8033 = vrot.slane %v7703, %v8032
      %v8034 = vlaneseq
      %v8035 = vshrl.u32 %v8034, 7
      %v8036 = vsub.s32 0, %v8035
      %v8037 = vrot.slane %v7705, %v8036
      %v8038 = vlaneseq
      %v8039 = vshrl.u32 %v8038, 7
      %v8040 = vsub.s32 0, %v8039
      %v8041 = vrot.slane %v7713, %v8040
      %v8042 = vlaneseq
      %v8043 = vshrl.u32 %v8042, 7
      %v8044 = vsub.s32 0, %v8043
      %v8045 = vrot.slane %v7721, %v8044
      %v8046 = vlaneseq
      %v8047 = vshrl.u32 %v8046, 7
      %v8048 = vsub.s32 0, %v8047
      %v8049 = vrot.slane %v7720, %v8048
      %v8050 = vlaneseq
      %v8051 = vshrl.u32 %v8050, 7
      %v8052 = vsub.s32 0, %v8051
      %v8053 = vrot.slane %v7722, %v8052
      %v8054 = vlaneseq
      %v8055 = vshrl.u32 %v8054, 7
      %v8056 = vsub.s32 0, %v8055
      %v8057 = vrot.slane %v7730, %v8056
      %v8058 = vlaneseq
      %v8059 = vshrl.u32 %v8058, 7
      %v8060 = vsub.s32 0, %v8059
      %v8061 = vrot.slane %v7738, %v8060
      %v8062 = vlaneseq
      %v8063 = vshrl.u32 %v8062, 7
      %v8064 = vsub.s32 0, %v8063
      %v8065 = vrot.slane %v7737, %v8064
      %v8066 = vlaneseq
      %v8067 = vshrl.u32 %v8066, 7
      %v8068 = vsub.s32 0, %v8067
      %v8069 = vrot.slane %v7739, %v8068
      %v8070 = vlaneseq
      %v8071 = vshrl.u32 %v8070, 7
      %v8072 = vsub.s32 0, %v8071
      %v8073 = vrot.slane %v7747, %v8072
      %v8074 = vlaneseq
      %v8075 = vshrl.u32 %v8074, 7
      %v8076 = vsub.s32 0, %v8075
      %v8077 = vrot.slane %v7755, %v8076
      %v8078 = vlaneseq
      %v8079 = vshrl.u32 %v8078, 7
      %v8080 = vsub.s32 0, %v8079
      %v8081 = vrot.slane %v7754, %v8080
      %v8082 = vlaneseq
      %v8083 = vshrl.u32 %v8082, 7
      %v8084 = vsub.s32 0, %v8083
      %v8085 = vrot.slane %v7756, %v8084
      %v8086 = vlaneseq
      %v8087 = vshrl.u32 %v8086, 7
      %v8088 = vsub.s32 0, %v8087
      %v8089 = vrot.slane %v7764, %v8088
      %v8090 = vlaneseq
      %v8091 = vshrl.u32 %v8090, 7
      %v8092 = vsub.s32 0, %v8091
      %v8093 = vrot.slane %v7772, %v8092
      %v8094 = vlaneseq
      %v8095 = vshrl.u32 %v8094, 7
      %v8096 = vsub.s32 0, %v8095
      %v8097 = vrot.slane %v7771, %v8096
      %v8098 = vlaneseq
      %v8099 = vshrl.u32 %v8098, 7
      %v8100 = vsub.s32 0, %v8099
      %v8101 = vrot.slane %v7773, %v8100
      %v8102 = vlaneseq
      %v8103 = vshrl.u32 %v8102, 7
      %v8104 = vsub.s32 0, %v8103
      %v8105 = vrot.slane %v7781, %v8104
      %v8106 = vlaneseq
      %v8107 = vshrl.u32 %v8106, 7
      %v8108 = vsub.s32 0, %v8107
      %v8109 = vrot.slane %v7789, %v8108
      %v8110 = vlaneseq
      %v8111 = vshrl.u32 %v8110, 7
      %v8112 = vsub.s32 0, %v8111
      %v8113 = vrot.slane %v7788, %v8112
      %v8114 = vlaneseq
      %v8115 = vshrl.u32 %v8114, 7
      %v8116 = vsub.s32 0, %v8115
      %v8117 = vrot.slane %v7790, %v8116
      %v8118 = vlaneseq
      %v8119 = vshrl.u32 %v8118, 7
      %v8120 = vsub.s32 0, %v8119
      %v8121 = vrot.slane %v7798, %v8120
      %v8122 = vlaneseq
      %v8123 = vshrl.u32 %v8122, 7
      %v8124 = vsub.s32 0, %v8123
      %v8125 = vrot.slane %v7806, %v8124
      %v8126 = vlaneseq
      %v8127 = vshrl.u32 %v8126, 7
      %v8128 = vsub.s32 0, %v8127
      %v8129 = vrot.slane %v7805, %v8128
      %v8130 = vlaneseq
      %v8131 = vshrl.u32 %v8130, 7
      %v8132 = vsub.s32 0, %v8131
      %v8133 = vrot.slane %v7807, %v8132
      %v8134 = vlaneseq
      %v8135 = vshrl.u32 %v8134, 7
      %v8136 = vsub.s32 0, %v8135
      %v8137 = vrot.slane %v7815, %v8136
      %v8138 = vlaneseq
      %v8139 = vshrl.u32 %v8138, 7
      %v8140 = vsub.s32 0, %v8139
      %v8141 = vrot.slane %v7823, %v8140
      %v8142 = vlaneseq
      %v8143 = vshrl.u32 %v8142, 7
      %v8144 = vsub.s32 0, %v8143
      %v8145 = vrot.slane %v7822, %v8144
      %v8146 = vlaneseq
      %v8147 = vshrl.u32 %v8146, 7
      %v8148 = vsub.s32 0, %v8147
      %v8149 = vrot.slane %v7824, %v8148
      %v8150 = vlaneseq
      %v8151 = vshrl.u32 %v8150, 7
      %v8152 = vsub.s32 0, %v8151
      %v8153 = vrot.slane %v7832, %v8152
      %v8154 = vlaneseq
      %v8155 = vshrl.u32 %v8154, 7
      %v8156 = vsub.s32 0, %v8155
      %v8157 = vrot.slane %v7840, %v8156
      %v8158 = vlaneseq
      %v8159 = vshrl.u32 %v8158, 7
      %v8160 = vsub.s32 0, %v8159
      %v8161 = vrot.slane %v7839, %v8160
      %v8162 = vlaneseq
      %v8163 = vshrl.u32 %v8162, 7
      %v8164 = vsub.s32 0, %v8163
      %v8165 = vrot.slane %v7841, %v8164
      %v8166 = vlaneseq
      %v8167 = vshrl.u32 %v8166, 7
      %v8168 = vsub.s32 0, %v8167
      %v8169 = vrot.slane %v7849, %v8168
      %v8170 = vlaneseq
      %v8171 = vshrl.u32 %v8170, 7
      %v8172 = vsub.s32 0, %v8171
      %v8173 = vrot.slane %v7857, %v8172
      %v8174 = vlaneseq
      %v8175 = vshrl.u32 %v8174, 7
      %v8176 = vsub.s32 0, %v8175
      %v8177 = vrot.slane %v7856, %v8176
      %v8178 = vlaneseq
      %v8179 = vshrl.u32 %v8178, 7
      %v8180 = vsub.s32 0, %v8179
      %v8181 = vrot.slane %v7858, %v8180
      %v8182 = vlaneseq
      %v8183 = vshrl.u32 %v8182, 7
      %v8184 = vsub.s32 0, %v8183
      %v8185 = vrot.slane %v7866, %v8184
      %v8186 = vlaneseq
      %v8187 = vshrl.u32 %v8186, 7
      %v8188 = vsub.s32 0, %v8187
      %v8189 = vrot.slane %v7874, %v8188
      %v8190 = vlaneseq
      %v8191 = vshrl.u32 %v8190, 7
      %v8192 = vsub.s32 0, %v8191
      %v8193 = vrot.slane %v7873, %v8192
      %v8194 = vlaneseq
      %v8195 = vshrl.u32 %v8194, 7
      %v8196 = vsub.s32 0, %v8195
      %v8197 = vrot.slane %v7875, %v8196
      %vm8198 = vcmask 1041409
      %v8199 = vsel %vm8198, %v7949, %v7945
      %vm8200 = vcmask 1042434
      %v8201 = vsel %vm8200, %v7953, %v8199
      %vm8202 = vcmask 1043459
      %v8203 = vsel %vm8202, %v7957, %v8201
      %vm8204 = vcmask 1044484
      %v8205 = vsel %vm8204, %v7961, %v8203
      %vm8206 = vcmask 1045509
      %v8207 = vsel %vm8206, %v7965, %v8205
      %vm8208 = vcmask 1046534
      %v8209 = vsel %vm8208, %v7969, %v8207
      %vm8210 = vcmask 1047559
      %v8211 = vsel %vm8210, %v7973, %v8209
      %v8212 = vsel %vm8198, %v7981, %v7977
      %v8213 = vsel %vm8200, %v7985, %v8212
      %v8214 = vsel %vm8202, %v7989, %v8213
      %v8215 = vsel %vm8204, %v7993, %v8214
      %v8216 = vsel %vm8206, %v7997, %v8215
      %v8217 = vsel %vm8208, %v8001, %v8216
      %v8218 = vsel %vm8210, %v8005, %v8217
      %v8219 = vsel %vm8198, %v8013, %v8009
      %v8220 = vsel %vm8200, %v8017, %v8219
      %v8221 = vsel %vm8202, %v8021, %v8220
      %v8222 = vsel %vm8204, %v8025, %v8221
      %v8223 = vsel %vm8206, %v8029, %v8222
      %v8224 = vsel %vm8208, %v8033, %v8223
      %v8225 = vsel %vm8210, %v8037, %v8224
      %v8226 = vsel %vm8198, %v8045, %v8041
      %v8227 = vsel %vm8200, %v8049, %v8226
      %v8228 = vsel %vm8202, %v8053, %v8227
      %v8229 = vsel %vm8204, %v8057, %v8228
      %v8230 = vsel %vm8206, %v8061, %v8229
      %v8231 = vsel %vm8208, %v8065, %v8230
      %v8232 = vsel %vm8210, %v8069, %v8231
      %v8233 = vsel %vm8198, %v8077, %v8073
      %v8234 = vsel %vm8200, %v8081, %v8233
      %v8235 = vsel %vm8202, %v8085, %v8234
      %v8236 = vsel %vm8204, %v8089, %v8235
      %v8237 = vsel %vm8206, %v8093, %v8236
      %v8238 = vsel %vm8208, %v8097, %v8237
      %v8239 = vsel %vm8210, %v8101, %v8238
      %v8240 = vsel %vm8198, %v8109, %v8105
      %v8241 = vsel %vm8200, %v8113, %v8240
      %v8242 = vsel %vm8202, %v8117, %v8241
      %v8243 = vsel %vm8204, %v8121, %v8242
      %v8244 = vsel %vm8206, %v8125, %v8243
      %v8245 = vsel %vm8208, %v8129, %v8244
      %v8246 = vsel %vm8210, %v8133, %v8245
      %v8247 = vsel %vm8198, %v8141, %v8137
      %v8248 = vsel %vm8200, %v8145, %v8247
      %v8249 = vsel %vm8202, %v8149, %v8248
      %v8250 = vsel %vm8204, %v8153, %v8249
      %v8251 = vsel %vm8206, %v8157, %v8250
      %v8252 = vsel %vm8208, %v8161, %v8251
      %v8253 = vsel %vm8210, %v8165, %v8252
      %v8254 = vsel %vm8198, %v8173, %v8169
      %v8255 = vsel %vm8200, %v8177, %v8254
      %v8256 = vsel %vm8202, %v8181, %v8255
      %v8257 = vsel %vm8204, %v8185, %v8256
      %v8258 = vsel %vm8206, %v8189, %v8257
      %v8259 = vsel %vm8208, %v8193, %v8258
      %v8260 = vsel %vm8210, %v8197, %v8259
      %vm8269 = vcmask 261120
      %v8270 = vsel %vm8269, %v8211, 0.0
      %v8271 = vsel %vm8269, %v8218, 0.0
      %v8272 = vadd.f32 %v8270, %v8271
      %v8273 = vsel %vm8269, %v8225, 0.0
      %v8274 = vadd.f32 %v8272, %v8273
      %v8275 = vsel %vm8269, %v8232, 0.0
      %v8276 = vadd.f32 %v8274, %v8275
      %v8277 = vsel %vm8269, %v8239, 0.0
      %v8278 = vadd.f32 %v8276, %v8277
      %v8279 = vsel %vm8269, %v8246, 0.0
      %v8280 = vadd.f32 %v8278, %v8279
      %v8281 = vsel %vm8269, %v8253, 0.0
      %v8282 = vadd.f32 %v8280, %v8281
      %v8283 = vsel %vm8269, %v8260, 0.0
      %v8284 = vadd.f32 %v8282, %v8283
      %v8285 = vrot.slane %v8284, 4
      %v8286 = vadd.f32 %v8284, %v8285
      %v8287 = vrot.slane %v8286, 2
      %v8288 = vadd.f32 %v8286, %v8287
      %v8289 = vrot.slane %v8288, 1
      %v8290 = vadd.f32 %v8288, %v8289
      %v8291 = vmul.f32 %v8290, 0.015625
      %v8292 = vlaneseq
      %v8293 = vshrl.u32 %v8292, 7
      %v8294 = vsub.s32 0, %v8293
      %v8295 = vrot.slane %v8291, %v8294
      %v8297 = vcombine.high %v8295, %v8295
      %v8299 = vunpack.c.l.s4 1983009808
      %v8300 = vunpack.c.0.s8 %v8299
      %v8301 = vlaneseq
      %v8302 = vshrl.u32 %v8301, 7
      %v8303 = vsub.s32 %v8300, %v8302
      %v8304 = vrot.slane %v8295, %v8303
      %v8306 = vunpack.c.l.s4 1983009808
      %v8307 = vunpack.c.0.s8 %v8306
      %v8308 = vlaneseq
      %v8309 = vshrl.u32 %v8308, 7
      %v8310 = vsub.s32 %v8307, %v8309
      %v8311 = vrot.slane %v8297, %v8310
      %v8312 = vcombine.high %v8304, %v8304
      %v8313 = vcombine.high %v8311, %v8311
      %v8314 = vrot.slane %v8304, 1
      %v8315 = vrot.slane %v8312, 1
      %v8316 = vrot.slane %v8311, 1
      %v8317 = vrot.slane %v8313, 1
      %v8326 = vsub.f32 %v7611, %v8304
      %v8327 = vsub.f32 %v7619, %v8314
      %v8328 = vsub.f32 %v7618, %v8312
      %v8329 = vsub.f32 %v7620, %v8315
      %v8330 = vsub.f32 %v7628, %v8311
      %v8331 = vsub.f32 %v7636, %v8316
      %v8332 = vsub.f32 %v7635, %v8313
      %v8333 = vsub.f32 %v7637, %v8317
      %v8334 = vsub.f32 %v7645, %v8304
      %v8335 = vsub.f32 %v7653, %v8314
      %v8336 = vsub.f32 %v7652, %v8312
      %v8337 = vsub.f32 %v7654, %v8315
      %v8338 = vsub.f32 %v7662, %v8311
      %v8339 = vsub.f32 %v7670, %v8316
      %v8340 = vsub.f32 %v7669, %v8313
      %v8341 = vsub.f32 %v7671, %v8317
      %v8342 = vsub.f32 %v7679, %v8304
      %v8343 = vsub.f32 %v7687, %v8314
      %v8344 = vsub.f32 %v7686, %v8312
      %v8345 = vsub.f32 %v7688, %v8315
      %v8346 = vsub.f32 %v7696, %v8311
      %v8347 = vsub.f32 %v7704, %v8316
      %v8348 = vsub.f32 %v7703, %v8313
      %v8349 = vsub.f32 %v7705, %v8317
      %v8350 = vsub.f32 %v7713, %v8304
      %v8351 = vsub.f32 %v7721, %v8314
      %v8352 = vsub.f32 %v7720, %v8312
      %v8353 = vsub.f32 %v7722, %v8315
      %v8354 = vsub.f32 %v7730, %v8311
      %v8355 = vsub.f32 %v7738, %v8316
      %v8356 = vsub.f32 %v7737, %v8313
      %v8357 = vsub.f32 %v7739, %v8317
      %v8358 = vsub.f32 %v7747, %v8304
      %v8359 = vsub.f32 %v7755, %v8314
      %v8360 = vsub.f32 %v7754, %v8312
      %v8361 = vsub.f32 %v7756, %v8315
      %v8362 = vsub.f32 %v7764, %v8311
      %v8363 = vsub.f32 %v7772, %v8316
      %v8364 = vsub.f32 %v7771, %v8313
      %v8365 = vsub.f32 %v7773, %v8317
      %v8366 = vsub.f32 %v7781, %v8304
      %v8367 = vsub.f32 %v7789, %v8314
      %v8368 = vsub.f32 %v7788, %v8312
      %v8369 = vsub.f32 %v7790, %v8315
      %v8370 = vsub.f32 %v7798, %v8311
      %v8371 = vsub.f32 %v7806, %v8316
      %v8372 = vsub.f32 %v7805, %v8313
      %v8373 = vsub.f32 %v7807, %v8317
      %v8374 = vsub.f32 %v7815, %v8304
      %v8375 = vsub.f32 %v7823, %v8314
      %v8376 = vsub.f32 %v7822, %v8312
      %v8377 = vsub.f32 %v7824, %v8315
      %v8378 = vsub.f32 %v7832, %v8311
      %v8379 = vsub.f32 %v7840, %v8316
      %v8380 = vsub.f32 %v7839, %v8313
      %v8381 = vsub.f32 %v7841, %v8317
      %v8382 = vsub.f32 %v7849, %v8304
      %v8383 = vsub.f32 %v7857, %v8314
      %v8384 = vsub.f32 %v7856, %v8312
      %v8385 = vsub.f32 %v7858, %v8315
      %v8386 = vsub.f32 %v7866, %v8311
      %v8387 = vsub.f32 %v7874, %v8316
      %v8388 = vsub.f32 %v7873, %v8313
      %v8389 = vsub.f32 %v7875, %v8317
      %v8390 = vmul.f32 %v8326, %v8326
      %v8391 = vmul.f32 %v8327, %v8327
      %v8392 = vmul.f32 %v8328, %v8328
      %v8393 = vmul.f32 %v8329, %v8329
      %v8394 = vmul.f32 %v8330, %v8330
      %v8395 = vmul.f32 %v8331, %v8331
      %v8396 = vmul.f32 %v8332, %v8332
      %v8397 = vmul.f32 %v8333, %v8333
      %v8398 = vmul.f32 %v8334, %v8334
      %v8399 = vmul.f32 %v8335, %v8335
      %v8400 = vmul.f32 %v8336, %v8336
      %v8401 = vmul.f32 %v8337, %v8337
      %v8402 = vmul.f32 %v8338, %v8338
      %v8403 = vmul.f32 %v8339, %v8339
      %v8404 = vmul.f32 %v8340, %v8340
      %v8405 = vmul.f32 %v8341, %v8341
      %v8406 = vmul.f32 %v8342, %v8342
      %v8407 = vmul.f32 %v8343, %v8343
      %v8408 = vmul.f32 %v8344, %v8344
      %v8409 = vmul.f32 %v8345, %v8345
      %v8410 = vmul.f32 %v8346, %v8346
      %v8411 = vmul.f32 %v8347, %v8347
      %v8412 = vmul.f32 %v8348, %v8348
      %v8413 = vmul.f32 %v8349, %v8349
      %v8414 = vmul.f32 %v8350, %v8350
      %v8415 = vmul.f32 %v8351, %v8351
      %v8416 = vmul.f32 %v8352, %v8352
      %v8417 = vmul.f32 %v8353, %v8353
      %v8418 = vmul.f32 %v8354, %v8354
      %v8419 = vmul.f32 %v8355, %v8355
      %v8420 = vmul.f32 %v8356, %v8356
      %v8421 = vmul.f32 %v8357, %v8357
      %v8422 = vmul.f32 %v8358, %v8358
      %v8423 = vmul.f32 %v8359, %v8359
      %v8424 = vmul.f32 %v8360, %v8360
      %v8425 = vmul.f32 %v8361, %v8361
      %v8426 = vmul.f32 %v8362, %v8362
      %v8427 = vmul.f32 %v8363, %v8363
      %v8428 = vmul.f32 %v8364, %v8364
      %v8429 = vmul.f32 %v8365, %v8365
      %v8430 = vmul.f32 %v8366, %v8366
      %v8431 = vmul.f32 %v8367, %v8367
      %v8432 = vmul.f32 %v8368, %v8368
      %v8433 = vmul.f32 %v8369, %v8369
      %v8434 = vmul.f32 %v8370, %v8370
      %v8435 = vmul.f32 %v8371, %v8371
      %v8436 = vmul.f32 %v8372, %v8372
      %v8437 = vmul.f32 %v8373, %v8373
      %v8438 = vmul.f32 %v8374, %v8374
      %v8439 = vmul.f32 %v8375, %v8375
      %v8440 = vmul.f32 %v8376, %v8376
      %v8441 = vmul.f32 %v8377, %v8377
      %v8442 = vmul.f32 %v8378, %v8378
      %v8443 = vmul.f32 %v8379, %v8379
      %v8444 = vmul.f32 %v8380, %v8380
      %v8445 = vmul.f32 %v8381, %v8381
      %v8446 = vmul.f32 %v8382, %v8382
      %v8447 = vmul.f32 %v8383, %v8383
      %v8448 = vmul.f32 %v8384, %v8384
      %v8449 = vmul.f32 %v8385, %v8385
      %v8450 = vmul.f32 %v8386, %v8386
      %v8451 = vmul.f32 %v8387, %v8387
      %v8452 = vmul.f32 %v8388, %v8388
      %v8453 = vmul.f32 %v8389, %v8389
      %v8518 = vlaneseq
      %v8519 = vshrl.u32 %v8518, 7
      %v8520 = vsub.s32 0, %v8519
      %v8521 = vrot.slane %v8390, %v8520
      %v8522 = vlaneseq
      %v8523 = vshrl.u32 %v8522, 7
      %v8524 = vsub.s32 0, %v8523
      %v8525 = vrot.slane %v8391, %v8524
      %v8526 = vlaneseq
      %v8527 = vshrl.u32 %v8526, 7
      %v8528 = vsub.s32 0, %v8527
      %v8529 = vrot.slane %v8392, %v8528
      %v8530 = vlaneseq
      %v8531 = vshrl.u32 %v8530, 7
      %v8532 = vsub.s32 0, %v8531
      %v8533 = vrot.slane %v8393, %v8532
      %v8534 = vlaneseq
      %v8535 = vshrl.u32 %v8534, 7
      %v8536 = vsub.s32 0, %v8535
      %v8537 = vrot.slane %v8394, %v8536
      %v8538 = vlaneseq
      %v8539 = vshrl.u32 %v8538, 7
      %v8540 = vsub.s32 0, %v8539
      %v8541 = vrot.slane %v8395, %v8540
      %v8542 = vlaneseq
      %v8543 = vshrl.u32 %v8542, 7
      %v8544 = vsub.s32 0, %v8543
      %v8545 = vrot.slane %v8396, %v8544
      %v8546 = vlaneseq
      %v8547 = vshrl.u32 %v8546, 7
      %v8548 = vsub.s32 0, %v8547
      %v8549 = vrot.slane %v8397, %v8548
      %v8550 = vlaneseq
      %v8551 = vshrl.u32 %v8550, 7
      %v8552 = vsub.s32 0, %v8551
      %v8553 = vrot.slane %v8398, %v8552
      %v8554 = vlaneseq
      %v8555 = vshrl.u32 %v8554, 7
      %v8556 = vsub.s32 0, %v8555
      %v8557 = vrot.slane %v8399, %v8556
      %v8558 = vlaneseq
      %v8559 = vshrl.u32 %v8558, 7
      %v8560 = vsub.s32 0, %v8559
      %v8561 = vrot.slane %v8400, %v8560
      %v8562 = vlaneseq
      %v8563 = vshrl.u32 %v8562, 7
      %v8564 = vsub.s32 0, %v8563
      %v8565 = vrot.slane %v8401, %v8564
      %v8566 = vlaneseq
      %v8567 = vshrl.u32 %v8566, 7
      %v8568 = vsub.s32 0, %v8567
      %v8569 = vrot.slane %v8402, %v8568
      %v8570 = vlaneseq
      %v8571 = vshrl.u32 %v8570, 7
      %v8572 = vsub.s32 0, %v8571
      %v8573 = vrot.slane %v8403, %v8572
      %v8574 = vlaneseq
      %v8575 = vshrl.u32 %v8574, 7
      %v8576 = vsub.s32 0, %v8575
      %v8577 = vrot.slane %v8404, %v8576
      %v8578 = vlaneseq
      %v8579 = vshrl.u32 %v8578, 7
      %v8580 = vsub.s32 0, %v8579
      %v8581 = vrot.slane %v8405, %v8580
      %v8582 = vlaneseq
      %v8583 = vshrl.u32 %v8582, 7
      %v8584 = vsub.s32 0, %v8583
      %v8585 = vrot.slane %v8406, %v8584
      %v8586 = vlaneseq
      %v8587 = vshrl.u32 %v8586, 7
      %v8588 = vsub.s32 0, %v8587
      %v8589 = vrot.slane %v8407, %v8588
      %v8590 = vlaneseq
      %v8591 = vshrl.u32 %v8590, 7
      %v8592 = vsub.s32 0, %v8591
      %v8593 = vrot.slane %v8408, %v8592
      %v8594 = vlaneseq
      %v8595 = vshrl.u32 %v8594, 7
      %v8596 = vsub.s32 0, %v8595
      %v8597 = vrot.slane %v8409, %v8596
      %v8598 = vlaneseq
      %v8599 = vshrl.u32 %v8598, 7
      %v8600 = vsub.s32 0, %v8599
      %v8601 = vrot.slane %v8410, %v8600
      %v8602 = vlaneseq
      %v8603 = vshrl.u32 %v8602, 7
      %v8604 = vsub.s32 0, %v8603
      %v8605 = vrot.slane %v8411, %v8604
      %v8606 = vlaneseq
      %v8607 = vshrl.u32 %v8606, 7
      %v8608 = vsub.s32 0, %v8607
      %v8609 = vrot.slane %v8412, %v8608
      %v8610 = vlaneseq
      %v8611 = vshrl.u32 %v8610, 7
      %v8612 = vsub.s32 0, %v8611
      %v8613 = vrot.slane %v8413, %v8612
      %v8614 = vlaneseq
      %v8615 = vshrl.u32 %v8614, 7
      %v8616 = vsub.s32 0, %v8615
      %v8617 = vrot.slane %v8414, %v8616
      %v8618 = vlaneseq
      %v8619 = vshrl.u32 %v8618, 7
      %v8620 = vsub.s32 0, %v8619
      %v8621 = vrot.slane %v8415, %v8620
      %v8622 = vlaneseq
      %v8623 = vshrl.u32 %v8622, 7
      %v8624 = vsub.s32 0, %v8623
      %v8625 = vrot.slane %v8416, %v8624
      %v8626 = vlaneseq
      %v8627 = vshrl.u32 %v8626, 7
      %v8628 = vsub.s32 0, %v8627
      %v8629 = vrot.slane %v8417, %v8628
      %v8630 = vlaneseq
      %v8631 = vshrl.u32 %v8630, 7
      %v8632 = vsub.s32 0, %v8631
      %v8633 = vrot.slane %v8418, %v8632
      %v8634 = vlaneseq
      %v8635 = vshrl.u32 %v8634, 7
      %v8636 = vsub.s32 0, %v8635
      %v8637 = vrot.slane %v8419, %v8636
      %v8638 = vlaneseq
      %v8639 = vshrl.u32 %v8638, 7
      %v8640 = vsub.s32 0, %v8639
      %v8641 = vrot.slane %v8420, %v8640
      %v8642 = vlaneseq
      %v8643 = vshrl.u32 %v8642, 7
      %v8644 = vsub.s32 0, %v8643
      %v8645 = vrot.slane %v8421, %v8644
      %v8646 = vlaneseq
      %v8647 = vshrl.u32 %v8646, 7
      %v8648 = vsub.s32 0, %v8647
      %v8649 = vrot.slane %v8422, %v8648
      %v8650 = vlaneseq
      %v8651 = vshrl.u32 %v8650, 7
      %v8652 = vsub.s32 0, %v8651
      %v8653 = vrot.slane %v8423, %v8652
      %v8654 = vlaneseq
      %v8655 = vshrl.u32 %v8654, 7
      %v8656 = vsub.s32 0, %v8655
      %v8657 = vrot.slane %v8424, %v8656
      %v8658 = vlaneseq
      %v8659 = vshrl.u32 %v8658, 7
      %v8660 = vsub.s32 0, %v8659
      %v8661 = vrot.slane %v8425, %v8660
      %v8662 = vlaneseq
      %v8663 = vshrl.u32 %v8662, 7
      %v8664 = vsub.s32 0, %v8663
      %v8665 = vrot.slane %v8426, %v8664
      %v8666 = vlaneseq
      %v8667 = vshrl.u32 %v8666, 7
      %v8668 = vsub.s32 0, %v8667
      %v8669 = vrot.slane %v8427, %v8668
      %v8670 = vlaneseq
      %v8671 = vshrl.u32 %v8670, 7
      %v8672 = vsub.s32 0, %v8671
      %v8673 = vrot.slane %v8428, %v8672
      %v8674 = vlaneseq
      %v8675 = vshrl.u32 %v8674, 7
      %v8676 = vsub.s32 0, %v8675
      %v8677 = vrot.slane %v8429, %v8676
      %v8678 = vlaneseq
      %v8679 = vshrl.u32 %v8678, 7
      %v8680 = vsub.s32 0, %v8679
      %v8681 = vrot.slane %v8430, %v8680
      %v8682 = vlaneseq
      %v8683 = vshrl.u32 %v8682, 7
      %v8684 = vsub.s32 0, %v8683
      %v8685 = vrot.slane %v8431, %v8684
      %v8686 = vlaneseq
      %v8687 = vshrl.u32 %v8686, 7
      %v8688 = vsub.s32 0, %v8687
      %v8689 = vrot.slane %v8432, %v8688
      %v8690 = vlaneseq
      %v8691 = vshrl.u32 %v8690, 7
      %v8692 = vsub.s32 0, %v8691
      %v8693 = vrot.slane %v8433, %v8692
      %v8694 = vlaneseq
      %v8695 = vshrl.u32 %v8694, 7
      %v8696 = vsub.s32 0, %v8695
      %v8697 = vrot.slane %v8434, %v8696
      %v8698 = vlaneseq
      %v8699 = vshrl.u32 %v8698, 7
      %v8700 = vsub.s32 0, %v8699
      %v8701 = vrot.slane %v8435, %v8700
      %v8702 = vlaneseq
      %v8703 = vshrl.u32 %v8702, 7
      %v8704 = vsub.s32 0, %v8703
      %v8705 = vrot.slane %v8436, %v8704
      %v8706 = vlaneseq
      %v8707 = vshrl.u32 %v8706, 7
      %v8708 = vsub.s32 0, %v8707
      %v8709 = vrot.slane %v8437, %v8708
      %v8710 = vlaneseq
      %v8711 = vshrl.u32 %v8710, 7
      %v8712 = vsub.s32 0, %v8711
      %v8713 = vrot.slane %v8438, %v8712
      %v8714 = vlaneseq
      %v8715 = vshrl.u32 %v8714, 7
      %v8716 = vsub.s32 0, %v8715
      %v8717 = vrot.slane %v8439, %v8716
      %v8718 = vlaneseq
      %v8719 = vshrl.u32 %v8718, 7
      %v8720 = vsub.s32 0, %v8719
      %v8721 = vrot.slane %v8440, %v8720
      %v8722 = vlaneseq
      %v8723 = vshrl.u32 %v8722, 7
      %v8724 = vsub.s32 0, %v8723
      %v8725 = vrot.slane %v8441, %v8724
      %v8726 = vlaneseq
      %v8727 = vshrl.u32 %v8726, 7
      %v8728 = vsub.s32 0, %v8727
      %v8729 = vrot.slane %v8442, %v8728
      %v8730 = vlaneseq
      %v8731 = vshrl.u32 %v8730, 7
      %v8732 = vsub.s32 0, %v8731
      %v8733 = vrot.slane %v8443, %v8732
      %v8734 = vlaneseq
      %v8735 = vshrl.u32 %v8734, 7
      %v8736 = vsub.s32 0, %v8735
      %v8737 = vrot.slane %v8444, %v8736
      %v8738 = vlaneseq
      %v8739 = vshrl.u32 %v8738, 7
      %v8740 = vsub.s32 0, %v8739
      %v8741 = vrot.slane %v8445, %v8740
      %v8742 = vlaneseq
      %v8743 = vshrl.u32 %v8742, 7
      %v8744 = vsub.s32 0, %v8743
      %v8745 = vrot.slane %v8446, %v8744
      %v8746 = vlaneseq
      %v8747 = vshrl.u32 %v8746, 7
      %v8748 = vsub.s32 0, %v8747
      %v8749 = vrot.slane %v8447, %v8748
      %v8750 = vlaneseq
      %v8751 = vshrl.u32 %v8750, 7
      %v8752 = vsub.s32 0, %v8751
      %v8753 = vrot.slane %v8448, %v8752
      %v8754 = vlaneseq
      %v8755 = vshrl.u32 %v8754, 7
      %v8756 = vsub.s32 0, %v8755
      %v8757 = vrot.slane %v8449, %v8756
      %v8758 = vlaneseq
      %v8759 = vshrl.u32 %v8758, 7
      %v8760 = vsub.s32 0, %v8759
      %v8761 = vrot.slane %v8450, %v8760
      %v8762 = vlaneseq
      %v8763 = vshrl.u32 %v8762, 7
      %v8764 = vsub.s32 0, %v8763
      %v8765 = vrot.slane %v8451, %v8764
      %v8766 = vlaneseq
      %v8767 = vshrl.u32 %v8766, 7
      %v8768 = vsub.s32 0, %v8767
      %v8769 = vrot.slane %v8452, %v8768
      %v8770 = vlaneseq
      %v8771 = vshrl.u32 %v8770, 7
      %v8772 = vsub.s32 0, %v8771
      %v8773 = vrot.slane %v8453, %v8772
      %v8774 = vsel %vm8198, %v8525, %v8521
      %v8775 = vsel %vm8200, %v8529, %v8774
      %v8776 = vsel %vm8202, %v8533, %v8775
      %v8777 = vsel %vm8204, %v8537, %v8776
      %v8778 = vsel %vm8206, %v8541, %v8777
      %v8779 = vsel %vm8208, %v8545, %v8778
      %v8780 = vsel %vm8210, %v8549, %v8779
      %v8781 = vsel %vm8198, %v8557, %v8553
      %v8782 = vsel %vm8200, %v8561, %v8781
      %v8783 = vsel %vm8202, %v8565, %v8782
      %v8784 = vsel %vm8204, %v8569, %v8783
      %v8785 = vsel %vm8206, %v8573, %v8784
      %v8786 = vsel %vm8208, %v8577, %v8785
      %v8787 = vsel %vm8210, %v8581, %v8786
      %v8788 = vsel %vm8198, %v8589, %v8585
      %v8789 = vsel %vm8200, %v8593, %v8788
      %v8790 = vsel %vm8202, %v8597, %v8789
      %v8791 = vsel %vm8204, %v8601, %v8790
      %v8792 = vsel %vm8206, %v8605, %v8791
      %v8793 = vsel %vm8208, %v8609, %v8792
      %v8794 = vsel %vm8210, %v8613, %v8793
      %v8795 = vsel %vm8198, %v8621, %v8617
      %v8796 = vsel %vm8200, %v8625, %v8795
      %v8797 = vsel %vm8202, %v8629, %v8796
      %v8798 = vsel %vm8204, %v8633, %v8797
      %v8799 = vsel %vm8206, %v8637, %v8798
      %v8800 = vsel %vm8208, %v8641, %v8799
      %v8801 = vsel %vm8210, %v8645, %v8800
      %v8802 = vsel %vm8198, %v8653, %v8649
      %v8803 = vsel %vm8200, %v8657, %v8802
      %v8804 = vsel %vm8202, %v8661, %v8803
      %v8805 = vsel %vm8204, %v8665, %v8804
      %v8806 = vsel %vm8206, %v8669, %v8805
      %v8807 = vsel %vm8208, %v8673, %v8806
      %v8808 = vsel %vm8210, %v8677, %v8807
      %v8809 = vsel %vm8198, %v8685, %v8681
      %v8810 = vsel %vm8200, %v8689, %v8809
      %v8811 = vsel %vm8202, %v8693, %v8810
      %v8812 = vsel %vm8204, %v8697, %v8811
      %v8813 = vsel %vm8206, %v8701, %v8812
      %v8814 = vsel %vm8208, %v8705, %v8813
      %v8815 = vsel %vm8210, %v8709, %v8814
      %v8816 = vsel %vm8198, %v8717, %v8713
      %v8817 = vsel %vm8200, %v8721, %v8816
      %v8818 = vsel %vm8202, %v8725, %v8817
      %v8819 = vsel %vm8204, %v8729, %v8818
      %v8820 = vsel %vm8206, %v8733, %v8819
      %v8821 = vsel %vm8208, %v8737, %v8820
      %v8822 = vsel %vm8210, %v8741, %v8821
      %v8823 = vsel %vm8198, %v8749, %v8745
      %v8824 = vsel %vm8200, %v8753, %v8823
      %v8825 = vsel %vm8202, %v8757, %v8824
      %v8826 = vsel %vm8204, %v8761, %v8825
      %v8827 = vsel %vm8206, %v8765, %v8826
      %v8828 = vsel %vm8208, %v8769, %v8827
      %v8829 = vsel %vm8210, %v8773, %v8828
      %v8838 = vsel %vm8269, %v8780, 0.0
      %v8839 = vsel %vm8269, %v8787, 0.0
      %v8840 = vadd.f32 %v8838, %v8839
      %v8841 = vsel %vm8269, %v8794, 0.0
      %v8842 = vadd.f32 %v8840, %v8841
      %v8843 = vsel %vm8269, %v8801, 0.0
      %v8844 = vadd.f32 %v8842, %v8843
      %v8845 = vsel %vm8269, %v8808, 0.0
      %v8846 = vadd.f32 %v8844, %v8845
      %v8847 = vsel %vm8269, %v8815, 0.0
      %v8848 = vadd.f32 %v8846, %v8847
      %v8849 = vsel %vm8269, %v8822, 0.0
      %v8850 = vadd.f32 %v8848, %v8849
      %v8851 = vsel %vm8269, %v8829, 0.0
      %v8852 = vadd.f32 %v8850, %v8851
      %v8853 = vrot.slane %v8852, 4
      %v8854 = vadd.f32 %v8852, %v8853
      %v8855 = vrot.slane %v8854, 2
      %v8856 = vadd.f32 %v8854, %v8855
      %v8857 = vrot.slane %v8856, 1
      %v8858 = vadd.f32 %v8856, %v8857
      %v8859 = vmul.f32 %v8858, 0.015625
      %v8860 = vadd.f32 %v8859, 1e-05
      %v8861 = vrsqrt.pop %v8860
      %v8862 = vlaneseq
      %v8863 = vshrl.u32 %v8862, 7
      %v8864 = vsub.s32 0, %v8863
      %v8865 = vrot.slane %v8861, %v8864
      %v8867 = vcombine.high %v8865, %v8865
      %v8869 = vunpack.c.l.s4 1983009808
      %v8870 = vunpack.c.0.s8 %v8869
      %v8871 = vlaneseq
      %v8872 = vshrl.u32 %v8871, 7
      %v8873 = vsub.s32 %v8870, %v8872
      %v8874 = vrot.slane %v8865, %v8873
      %v8876 = vunpack.c.l.s4 1983009808
      %v8877 = vunpack.c.0.s8 %v8876
      %v8878 = vlaneseq
      %v8879 = vshrl.u32 %v8878, 7
      %v8880 = vsub.s32 %v8877, %v8879
      %v8881 = vrot.slane %v8867, %v8880
      %v8882 = vcombine.high %v8874, %v8874
      %v8883 = vcombine.high %v8881, %v8881
      %v8884 = vrot.slane %v8874, 1
      %v8885 = vrot.slane %v8882, 1
      %v8886 = vrot.slane %v8881, 1
      %v8887 = vrot.slane %v8883, 1
      %v8896 = vmul.f32 %v8326, %v8874
      %v8897 = vmul.f32 %v8327, %v8884
      %v8898 = vmul.f32 %v8328, %v8882
      %v8899 = vmul.f32 %v8329, %v8885
      %v8900 = vmul.f32 %v8330, %v8881
      %v8901 = vmul.f32 %v8331, %v8886
      %v8902 = vmul.f32 %v8332, %v8883
      %v8903 = vmul.f32 %v8333, %v8887
      %v8904 = vmul.f32 %v8334, %v8874
      %v8905 = vmul.f32 %v8335, %v8884
      %v8906 = vmul.f32 %v8336, %v8882
      %v8907 = vmul.f32 %v8337, %v8885
      %v8908 = vmul.f32 %v8338, %v8881
      %v8909 = vmul.f32 %v8339, %v8886
      %v8910 = vmul.f32 %v8340, %v8883
      %v8911 = vmul.f32 %v8341, %v8887
      %v8912 = vmul.f32 %v8342, %v8874
      %v8913 = vmul.f32 %v8343, %v8884
      %v8914 = vmul.f32 %v8344, %v8882
      %v8915 = vmul.f32 %v8345, %v8885
      %v8916 = vmul.f32 %v8346, %v8881
      %v8917 = vmul.f32 %v8347, %v8886
      %v8918 = vmul.f32 %v8348, %v8883
      %v8919 = vmul.f32 %v8349, %v8887
      %v8920 = vmul.f32 %v8350, %v8874
      %v8921 = vmul.f32 %v8351, %v8884
      %v8922 = vmul.f32 %v8352, %v8882
      %v8923 = vmul.f32 %v8353, %v8885
      %v8924 = vmul.f32 %v8354, %v8881
      %v8925 = vmul.f32 %v8355, %v8886
      %v8926 = vmul.f32 %v8356, %v8883
      %v8927 = vmul.f32 %v8357, %v8887
      %v8928 = vmul.f32 %v8358, %v8874
      %v8929 = vmul.f32 %v8359, %v8884
      %v8930 = vmul.f32 %v8360, %v8882
      %v8931 = vmul.f32 %v8361, %v8885
      %v8932 = vmul.f32 %v8362, %v8881
      %v8933 = vmul.f32 %v8363, %v8886
      %v8934 = vmul.f32 %v8364, %v8883
      %v8935 = vmul.f32 %v8365, %v8887
      %v8936 = vmul.f32 %v8366, %v8874
      %v8937 = vmul.f32 %v8367, %v8884
      %v8938 = vmul.f32 %v8368, %v8882
      %v8939 = vmul.f32 %v8369, %v8885
      %v8940 = vmul.f32 %v8370, %v8881
      %v8941 = vmul.f32 %v8371, %v8886
      %v8942 = vmul.f32 %v8372, %v8883
      %v8943 = vmul.f32 %v8373, %v8887
      %v8944 = vmul.f32 %v8374, %v8874
      %v8945 = vmul.f32 %v8375, %v8884
      %v8946 = vmul.f32 %v8376, %v8882
      %v8947 = vmul.f32 %v8377, %v8885
      %v8948 = vmul.f32 %v8378, %v8881
      %v8949 = vmul.f32 %v8379, %v8886
      %v8950 = vmul.f32 %v8380, %v8883
      %v8951 = vmul.f32 %v8381, %v8887
      %v8952 = vmul.f32 %v8382, %v8874
      %v8953 = vmul.f32 %v8383, %v8884
      %v8954 = vmul.f32 %v8384, %v8882
      %v8955 = vmul.f32 %v8385, %v8885
      %v8956 = vmul.f32 %v8386, %v8881
      %v8957 = vmul.f32 %v8387, %v8886
      %v8958 = vmul.f32 %v8388, %v8883
      %v8959 = vmul.f32 %v8389, %v8887
      %v8961 = vlaneseq
      %v8962 = vshrl.u32 %v8961, 7
      %v8963 = vsub.s32 0, %v8962
      %v8964 = vrot.slane %v7940, %v8963
      %v8965 = vcombine.high %v8964, %v8964
      %v8967 = vunpack.c.l.s4 1983009808
      %v8968 = vunpack.c.0.s8 %v8967
      %v8969 = vlaneseq
      %v8970 = vshrl.u32 %v8969, 7
      %v8971 = vsub.s32 %v8968, %v8970
      %v8972 = vrot.slane %v8964, %v8971
      %v8974 = vunpack.c.l.s4 1983009808
      %v8975 = vunpack.c.0.s8 %v8974
      %v8976 = vlaneseq
      %v8977 = vshrl.u32 %v8976, 7
      %v8978 = vsub.s32 %v8975, %v8977
      %v8979 = vrot.slane %v8965, %v8978
      %v8980 = vcombine.high %v8972, %v8972
      %v8981 = vcombine.high %v8979, %v8979
      %v8982 = vrot.slane %v8972, 1
      %v8983 = vrot.slane %v8980, 1
      %v8984 = vrot.slane %v8979, 1
      %v8985 = vrot.slane %v8981, 1
      %v8994 = vmul.f32 %v8896, %v8972
      %v8995 = vmul.f32 %v8897, %v8982
      %v8996 = vmul.f32 %v8898, %v8980
      %v8997 = vmul.f32 %v8899, %v8983
      %v8998 = vmul.f32 %v8900, %v8979
      %v8999 = vmul.f32 %v8901, %v8984
      %v9000 = vmul.f32 %v8902, %v8981
      %v9001 = vmul.f32 %v8903, %v8985
      %v9002 = vmul.f32 %v8904, %v8972
      %v9003 = vmul.f32 %v8905, %v8982
      %v9004 = vmul.f32 %v8906, %v8980
      %v9005 = vmul.f32 %v8907, %v8983
      %v9006 = vmul.f32 %v8908, %v8979
      %v9007 = vmul.f32 %v8909, %v8984
      %v9008 = vmul.f32 %v8910, %v8981
      %v9009 = vmul.f32 %v8911, %v8985
      %v9010 = vmul.f32 %v8912, %v8972
      %v9011 = vmul.f32 %v8913, %v8982
      %v9012 = vmul.f32 %v8914, %v8980
      %v9013 = vmul.f32 %v8915, %v8983
      %v9014 = vmul.f32 %v8916, %v8979
      %v9015 = vmul.f32 %v8917, %v8984
      %v9016 = vmul.f32 %v8918, %v8981
      %v9017 = vmul.f32 %v8919, %v8985
      %v9018 = vmul.f32 %v8920, %v8972
      %v9019 = vmul.f32 %v8921, %v8982
      %v9020 = vmul.f32 %v8922, %v8980
      %v9021 = vmul.f32 %v8923, %v8983
      %v9022 = vmul.f32 %v8924, %v8979
      %v9023 = vmul.f32 %v8925, %v8984
      %v9024 = vmul.f32 %v8926, %v8981
      %v9025 = vmul.f32 %v8927, %v8985
      %v9026 = vmul.f32 %v8928, %v8972
      %v9027 = vmul.f32 %v8929, %v8982
      %v9028 = vmul.f32 %v8930, %v8980
      %v9029 = vmul.f32 %v8931, %v8983
      %v9030 = vmul.f32 %v8932, %v8979
      %v9031 = vmul.f32 %v8933, %v8984
      %v9032 = vmul.f32 %v8934, %v8981
      %v9033 = vmul.f32 %v8935, %v8985
      %v9034 = vmul.f32 %v8936, %v8972
      %v9035 = vmul.f32 %v8937, %v8982
      %v9036 = vmul.f32 %v8938, %v8980
      %v9037 = vmul.f32 %v8939, %v8983
      %v9038 = vmul.f32 %v8940, %v8979
      %v9039 = vmul.f32 %v8941, %v8984
      %v9040 = vmul.f32 %v8942, %v8981
      %v9041 = vmul.f32 %v8943, %v8985
      %v9042 = vmul.f32 %v8944, %v8972
      %v9043 = vmul.f32 %v8945, %v8982
      %v9044 = vmul.f32 %v8946, %v8980
      %v9045 = vmul.f32 %v8947, %v8983
      %v9046 = vmul.f32 %v8948, %v8979
      %v9047 = vmul.f32 %v8949, %v8984
      %v9048 = vmul.f32 %v8950, %v8981
      %v9049 = vmul.f32 %v8951, %v8985
      %v9050 = vmul.f32 %v8952, %v8972
      %v9051 = vmul.f32 %v8953, %v8982
      %v9052 = vmul.f32 %v8954, %v8980
      %v9053 = vmul.f32 %v8955, %v8983
      %v9054 = vmul.f32 %v8956, %v8979
      %v9055 = vmul.f32 %v8957, %v8984
      %v9056 = vmul.f32 %v8958, %v8981
      %v9057 = vmul.f32 %v8959, %v8985
      %v9059 = vlaneseq
      %v9060 = vshrl.u32 %v9059, 7
      %v9061 = vsub.s32 0, %v9060
      %v9062 = vrot.slane %v7941, %v9061
      %v9063 = vcombine.high %v9062, %v9062
      %v9065 = vunpack.c.l.s4 1983009808
      %v9066 = vunpack.c.0.s8 %v9065
      %v9067 = vlaneseq
      %v9068 = vshrl.u32 %v9067, 7
      %v9069 = vsub.s32 %v9066, %v9068
      %v9070 = vrot.slane %v9062, %v9069
      %v9072 = vunpack.c.l.s4 1983009808
      %v9073 = vunpack.c.0.s8 %v9072
      %v9074 = vlaneseq
      %v9075 = vshrl.u32 %v9074, 7
      %v9076 = vsub.s32 %v9073, %v9075
      %v9077 = vrot.slane %v9063, %v9076
      %v9078 = vcombine.high %v9070, %v9070
      %v9079 = vcombine.high %v9077, %v9077
      %v9080 = vrot.slane %v9070, 1
      %v9081 = vrot.slane %v9078, 1
      %v9082 = vrot.slane %v9077, 1
      %v9083 = vrot.slane %v9079, 1
      %v9092 = vadd.f32 %v8994, %v9070
      %v9093 = vadd.f32 %v8995, %v9080
      %v9094 = vadd.f32 %v8996, %v9078
      %v9095 = vadd.f32 %v8997, %v9081
      %v9096 = vadd.f32 %v8998, %v9077
      %v9097 = vadd.f32 %v8999, %v9082
      %v9098 = vadd.f32 %v9000, %v9079
      %v9099 = vadd.f32 %v9001, %v9083
      %v9100 = vadd.f32 %v9002, %v9070
      %v9101 = vadd.f32 %v9003, %v9080
      %v9102 = vadd.f32 %v9004, %v9078
      %v9103 = vadd.f32 %v9005, %v9081
      %v9104 = vadd.f32 %v9006, %v9077
      %v9105 = vadd.f32 %v9007, %v9082
      %v9106 = vadd.f32 %v9008, %v9079
      %v9107 = vadd.f32 %v9009, %v9083
      %v9108 = vadd.f32 %v9010, %v9070
      %v9109 = vadd.f32 %v9011, %v9080
      %v9110 = vadd.f32 %v9012, %v9078
      %v9111 = vadd.f32 %v9013, %v9081
      %v9112 = vadd.f32 %v9014, %v9077
      %v9113 = vadd.f32 %v9015, %v9082
      %v9114 = vadd.f32 %v9016, %v9079
      %v9115 = vadd.f32 %v9017, %v9083
      %v9116 = vadd.f32 %v9018, %v9070
      %v9117 = vadd.f32 %v9019, %v9080
      %v9118 = vadd.f32 %v9020, %v9078
      %v9119 = vadd.f32 %v9021, %v9081
      %v9120 = vadd.f32 %v9022, %v9077
      %v9121 = vadd.f32 %v9023, %v9082
      %v9122 = vadd.f32 %v9024, %v9079
      %v9123 = vadd.f32 %v9025, %v9083
      %v9124 = vadd.f32 %v9026, %v9070
      %v9125 = vadd.f32 %v9027, %v9080
      %v9126 = vadd.f32 %v9028, %v9078
      %v9127 = vadd.f32 %v9029, %v9081
      %v9128 = vadd.f32 %v9030, %v9077
      %v9129 = vadd.f32 %v9031, %v9082
      %v9130 = vadd.f32 %v9032, %v9079
      %v9131 = vadd.f32 %v9033, %v9083
      %v9132 = vadd.f32 %v9034, %v9070
      %v9133 = vadd.f32 %v9035, %v9080
      %v9134 = vadd.f32 %v9036, %v9078
      %v9135 = vadd.f32 %v9037, %v9081
      %v9136 = vadd.f32 %v9038, %v9077
      %v9137 = vadd.f32 %v9039, %v9082
      %v9138 = vadd.f32 %v9040, %v9079
      %v9139 = vadd.f32 %v9041, %v9083
      %v9140 = vadd.f32 %v9042, %v9070
      %v9141 = vadd.f32 %v9043, %v9080
      %v9142 = vadd.f32 %v9044, %v9078
      %v9143 = vadd.f32 %v9045, %v9081
      %v9144 = vadd.f32 %v9046, %v9077
      %v9145 = vadd.f32 %v9047, %v9082
      %v9146 = vadd.f32 %v9048, %v9079
      %v9147 = vadd.f32 %v9049, %v9083
      %v9148 = vadd.f32 %v9050, %v9070
      %v9149 = vadd.f32 %v9051, %v9080
      %v9150 = vadd.f32 %v9052, %v9078
      %v9151 = vadd.f32 %v9053, %v9081
      %v9152 = vadd.f32 %v9054, %v9077
      %v9153 = vadd.f32 %v9055, %v9082
      %v9154 = vadd.f32 %v9056, %v9079
      %v9155 = vadd.f32 %v9057, %v9083
      %vm9156 = vcmp.ge.f32.partialorder %v9092, 0.0
      %vm9157 = vcmp.ge.f32.partialorder %v9093, 0.0
      %vm9158 = vcmp.ge.f32.partialorder %v9094, 0.0
      %vm9159 = vcmp.ge.f32.partialorder %v9095, 0.0
      %vm9160 = vcmp.ge.f32.partialorder %v9096, 0.0
      %vm9161 = vcmp.ge.f32.partialorder %v9097, 0.0
      %vm9162 = vcmp.ge.f32.partialorder %v9098, 0.0
      %vm9163 = vcmp.ge.f32.partialorder %v9099, 0.0
      %vm9164 = vcmp.ge.f32.partialorder %v9100, 0.0
      %vm9165 = vcmp.ge.f32.partialorder %v9101, 0.0
      %vm9166 = vcmp.ge.f32.partialorder %v9102, 0.0
      %vm9167 = vcmp.ge.f32.partialorder %v9103, 0.0
      %vm9168 = vcmp.ge.f32.partialorder %v9104, 0.0
      %vm9169 = vcmp.ge.f32.partialorder %v9105, 0.0
      %vm9170 = vcmp.ge.f32.partialorder %v9106, 0.0
      %vm9171 = vcmp.ge.f32.partialorder %v9107, 0.0
      %vm9172 = vcmp.ge.f32.partialorder %v9108, 0.0
      %vm9173 = vcmp.ge.f32.partialorder %v9109, 0.0
      %vm9174 = vcmp.ge.f32.partialorder %v9110, 0.0
      %vm9175 = vcmp.ge.f32.partialorder %v9111, 0.0
      %vm9176 = vcmp.ge.f32.partialorder %v9112, 0.0
      %vm9177 = vcmp.ge.f32.partialorder %v9113, 0.0
      %vm9178 = vcmp.ge.f32.partialorder %v9114, 0.0
      %vm9179 = vcmp.ge.f32.partialorder %v9115, 0.0
      %vm9180 = vcmp.ge.f32.partialorder %v9116, 0.0
      %vm9181 = vcmp.ge.f32.partialorder %v9117, 0.0
      %vm9182 = vcmp.ge.f32.partialorder %v9118, 0.0
      %vm9183 = vcmp.ge.f32.partialorder %v9119, 0.0
      %vm9184 = vcmp.ge.f32.partialorder %v9120, 0.0
      %vm9185 = vcmp.ge.f32.partialorder %v9121, 0.0
      %vm9186 = vcmp.ge.f32.partialorder %v9122, 0.0
      %vm9187 = vcmp.ge.f32.partialorder %v9123, 0.0
      %vm9188 = vcmp.ge.f32.partialorder %v9124, 0.0
      %vm9189 = vcmp.ge.f32.partialorder %v9125, 0.0
      %vm9190 = vcmp.ge.f32.partialorder %v9126, 0.0
      %vm9191 = vcmp.ge.f32.partialorder %v9127, 0.0
      %vm9192 = vcmp.ge.f32.partialorder %v9128, 0.0
      %vm9193 = vcmp.ge.f32.partialorder %v9129, 0.0
      %vm9194 = vcmp.ge.f32.partialorder %v9130, 0.0
      %vm9195 = vcmp.ge.f32.partialorder %v9131, 0.0
      %vm9196 = vcmp.ge.f32.partialorder %v9132, 0.0
      %vm9197 = vcmp.ge.f32.partialorder %v9133, 0.0
      %vm9198 = vcmp.ge.f32.partialorder %v9134, 0.0
      %vm9199 = vcmp.ge.f32.partialorder %v9135, 0.0
      %vm9200 = vcmp.ge.f32.partialorder %v9136, 0.0
      %vm9201 = vcmp.ge.f32.partialorder %v9137, 0.0
      %vm9202 = vcmp.ge.f32.partialorder %v9138, 0.0
      %vm9203 = vcmp.ge.f32.partialorder %v9139, 0.0
      %vm9204 = vcmp.ge.f32.partialorder %v9140, 0.0
      %vm9205 = vcmp.ge.f32.partialorder %v9141, 0.0
      %vm9206 = vcmp.ge.f32.partialorder %v9142, 0.0
      %vm9207 = vcmp.ge.f32.partialorder %v9143, 0.0
      %vm9208 = vcmp.ge.f32.partialorder %v9144, 0.0
      %vm9209 = vcmp.ge.f32.partialorder %v9145, 0.0
      %vm9210 = vcmp.ge.f32.partialorder %v9146, 0.0
      %vm9211 = vcmp.ge.f32.partialorder %v9147, 0.0
      %vm9212 = vcmp.ge.f32.partialorder %v9148, 0.0
      %vm9213 = vcmp.ge.f32.partialorder %v9149, 0.0
      %vm9214 = vcmp.ge.f32.partialorder %v9150, 0.0
      %vm9215 = vcmp.ge.f32.partialorder %v9151, 0.0
      %vm9216 = vcmp.ge.f32.partialorder %v9152, 0.0
      %vm9217 = vcmp.ge.f32.partialorder %v9153, 0.0
      %vm9218 = vcmp.ge.f32.partialorder %v9154, 0.0
      %vm9219 = vcmp.ge.f32.partialorder %v9155, 0.0
      %v9220 = vmul.f32 %v9092, 0.01
      %v9221 = vmul.f32 %v9093, 0.01
      %v9222 = vmul.f32 %v9094, 0.01
      %v9223 = vmul.f32 %v9095, 0.01
      %v9224 = vmul.f32 %v9096, 0.01
      %v9225 = vmul.f32 %v9097, 0.01
      %v9226 = vmul.f32 %v9098, 0.01
      %v9227 = vmul.f32 %v9099, 0.01
      %v9228 = vmul.f32 %v9100, 0.01
      %v9229 = vmul.f32 %v9101, 0.01
      %v9230 = vmul.f32 %v9102, 0.01
      %v9231 = vmul.f32 %v9103, 0.01
      %v9232 = vmul.f32 %v9104, 0.01
      %v9233 = vmul.f32 %v9105, 0.01
      %v9234 = vmul.f32 %v9106, 0.01
      %v9235 = vmul.f32 %v9107, 0.01
      %v9236 = vmul.f32 %v9108, 0.01
      %v9237 = vmul.f32 %v9109, 0.01
      %v9238 = vmul.f32 %v9110, 0.01
      %v9239 = vmul.f32 %v9111, 0.01
      %v9240 = vmul.f32 %v9112, 0.01
      %v9241 = vmul.f32 %v9113, 0.01
      %v9242 = vmul.f32 %v9114, 0.01
      %v9243 = vmul.f32 %v9115, 0.01
      %v9244 = vmul.f32 %v9116, 0.01
      %v9245 = vmul.f32 %v9117, 0.01
      %v9246 = vmul.f32 %v9118, 0.01
      %v9247 = vmul.f32 %v9119, 0.01
      %v9248 = vmul.f32 %v9120, 0.01
      %v9249 = vmul.f32 %v9121, 0.01
      %v9250 = vmul.f32 %v9122, 0.01
      %v9251 = vmul.f32 %v9123, 0.01
      %v9252 = vmul.f32 %v9124, 0.01
      %v9253 = vmul.f32 %v9125, 0.01
      %v9254 = vmul.f32 %v9126, 0.01
      %v9255 = vmul.f32 %v9127, 0.01
      %v9256 = vmul.f32 %v9128, 0.01
      %v9257 = vmul.f32 %v9129, 0.01
      %v9258 = vmul.f32 %v9130, 0.01
      %v9259 = vmul.f32 %v9131, 0.01
      %v9260 = vmul.f32 %v9132, 0.01
      %v9261 = vmul.f32 %v9133, 0.01
      %v9262 = vmul.f32 %v9134, 0.01
      %v9263 = vmul.f32 %v9135, 0.01
      %v9264 = vmul.f32 %v9136, 0.01
      %v9265 = vmul.f32 %v9137, 0.01
      %v9266 = vmul.f32 %v9138, 0.01
      %v9267 = vmul.f32 %v9139, 0.01
      %v9268 = vmul.f32 %v9140, 0.01
      %v9269 = vmul.f32 %v9141, 0.01
      %v9270 = vmul.f32 %v9142, 0.01
      %v9271 = vmul.f32 %v9143, 0.01
      %v9272 = vmul.f32 %v9144, 0.01
      %v9273 = vmul.f32 %v9145, 0.01
      %v9274 = vmul.f32 %v9146, 0.01
      %v9275 = vmul.f32 %v9147, 0.01
      %v9276 = vmul.f32 %v9148, 0.01
      %v9277 = vmul.f32 %v9149, 0.01
      %v9278 = vmul.f32 %v9150, 0.01
      %v9279 = vmul.f32 %v9151, 0.01
      %v9280 = vmul.f32 %v9152, 0.01
      %v9281 = vmul.f32 %v9153, 0.01
      %v9282 = vmul.f32 %v9154, 0.01
      %v9283 = vmul.f32 %v9155, 0.01
      %v9284 = vsel %vm9156, %v9092, %v9220
      %v9285 = vsel %vm9157, %v9093, %v9221
      %v9286 = vsel %vm9158, %v9094, %v9222
      %v9287 = vsel %vm9159, %v9095, %v9223
      %v9288 = vsel %vm9160, %v9096, %v9224
      %v9289 = vsel %vm9161, %v9097, %v9225
      %v9290 = vsel %vm9162, %v9098, %v9226
      %v9291 = vsel %vm9163, %v9099, %v9227
      %v9292 = vsel %vm9164, %v9100, %v9228
      %v9293 = vsel %vm9165, %v9101, %v9229
      %v9294 = vsel %vm9166, %v9102, %v9230
      %v9295 = vsel %vm9167, %v9103, %v9231
      %v9296 = vsel %vm9168, %v9104, %v9232
      %v9297 = vsel %vm9169, %v9105, %v9233
      %v9298 = vsel %vm9170, %v9106, %v9234
      %v9299 = vsel %vm9171, %v9107, %v9235
      %v9300 = vsel %vm9172, %v9108, %v9236
      %v9301 = vsel %vm9173, %v9109, %v9237
      %v9302 = vsel %vm9174, %v9110, %v9238
      %v9303 = vsel %vm9175, %v9111, %v9239
      %v9304 = vsel %vm9176, %v9112, %v9240
      %v9305 = vsel %vm9177, %v9113, %v9241
      %v9306 = vsel %vm9178, %v9114, %v9242
      %v9307 = vsel %vm9179, %v9115, %v9243
      %v9308 = vsel %vm9180, %v9116, %v9244
      %v9309 = vsel %vm9181, %v9117, %v9245
      %v9310 = vsel %vm9182, %v9118, %v9246
      %v9311 = vsel %vm9183, %v9119, %v9247
      %v9312 = vsel %vm9184, %v9120, %v9248
      %v9313 = vsel %vm9185, %v9121, %v9249
      %v9314 = vsel %vm9186, %v9122, %v9250
      %v9315 = vsel %vm9187, %v9123, %v9251
      %v9316 = vsel %vm9188, %v9124, %v9252
      %v9317 = vsel %vm9189, %v9125, %v9253
      %v9318 = vsel %vm9190, %v9126, %v9254
      %v9319 = vsel %vm9191, %v9127, %v9255
      %v9320 = vsel %vm9192, %v9128, %v9256
      %v9321 = vsel %vm9193, %v9129, %v9257
      %v9322 = vsel %vm9194, %v9130, %v9258
      %v9323 = vsel %vm9195, %v9131, %v9259
      %v9324 = vsel %vm9196, %v9132, %v9260
      %v9325 = vsel %vm9197, %v9133, %v9261
      %v9326 = vsel %vm9198, %v9134, %v9262
      %v9327 = vsel %vm9199, %v9135, %v9263
      %v9328 = vsel %vm9200, %v9136, %v9264
      %v9329 = vsel %vm9201, %v9137, %v9265
      %v9330 = vsel %vm9202, %v9138, %v9266
      %v9331 = vsel %vm9203, %v9139, %v9267
      %v9332 = vsel %vm9204, %v9140, %v9268
      %v9333 = vsel %vm9205, %v9141, %v9269
      %v9334 = vsel %vm9206, %v9142, %v9270
      %v9335 = vsel %vm9207, %v9143, %v9271
      %v9336 = vsel %vm9208, %v9144, %v9272
      %v9337 = vsel %vm9209, %v9145, %v9273
      %v9338 = vsel %vm9210, %v9146, %v9274
      %v9339 = vsel %vm9211, %v9147, %v9275
      %v9340 = vsel %vm9212, %v9148, %v9276
      %v9341 = vsel %vm9213, %v9149, %v9277
      %v9342 = vsel %vm9214, %v9150, %v9278
      %v9343 = vsel %vm9215, %v9151, %v9279
      %v9344 = vsel %vm9216, %v9152, %v9280
      %v9345 = vsel %vm9217, %v9153, %v9281
      %v9346 = vsel %vm9218, %v9154, %v9282
      %v9347 = vsel %vm9219, %v9155, %v9283
      %9348 = vst.msk [vmem:[#allocation4] sm:$0xff] %vm8269, 0.0
      %vm9349 = vcmask 254976
      %9350 = vst.msk [vmem:[#allocation4 + $0x8] sm:$0x3] %vm9349, 0.0
      %s9351 = scalar_lea.vmem [#allocation4], 144
      %9352 = vst.msk [vmem:[%s9351] sm:$0xff] %vm8269, 0.0
      %9353 = vst.msk [vmem:[%s9351 + $0x8] sm:$0x3] %vm9349, 0.0
      %vm9354 = vcmask 253952
      %9355 = vst.msk [vmem:[#allocation4] sm:$0x1] %vm9354, 0.0
      %9356 = vst.msk [vmem:[#allocation4 + $0x10] sm:$0x1] %vm9354, 0.0
      %9357 = vst.msk [vmem:[#allocation4 + $0x20] sm:$0x1] %vm9354, 0.0
      %9358 = vst.msk [vmem:[#allocation4 + $0x30] sm:$0x1] %vm9354, 0.0
      %9359 = vst.msk [vmem:[#allocation4 + $0x40] sm:$0x1] %vm9354, 0.0
      %9360 = vst.msk [vmem:[#allocation4 + $0x50] sm:$0x1] %vm9354, 0.0
      %9361 = vst.msk [vmem:[#allocation4 + $0x60] sm:$0x1] %vm9354, 0.0
      %9362 = vst.msk [vmem:[#allocation4 + $0x70] sm:$0x1] %vm9354, 0.0
      %9363 = vst.msk [vmem:[#allocation4 + $0x80] sm:$0x1] %vm9354, 0.0
      %9364 = vst.msk [vmem:[#allocation4 + $0x90] sm:$0x1] %vm9354, 0.0
      %9365 = vst.msk [vmem:[#allocation4 + $0x9] sm:$0x1] %vm9354, 0.0
      %9366 = vst.msk [vmem:[#allocation4 + $0x19] sm:$0x1] %vm9354, 0.0
      %9367 = vst.msk [vmem:[#allocation4 + $0x29] sm:$0x1] %vm9354, 0.0
      %9368 = vst.msk [vmem:[#allocation4 + $0x39] sm:$0x1] %vm9354, 0.0
      %9369 = vst.msk [vmem:[#allocation4 + $0x49] sm:$0x1] %vm9354, 0.0
      %9370 = vst.msk [vmem:[#allocation4 + $0x59] sm:$0x1] %vm9354, 0.0
      %9371 = vst.msk [vmem:[#allocation4 + $0x69] sm:$0x1] %vm9354, 0.0
      %9372 = vst.msk [vmem:[#allocation4 + $0x79] sm:$0x1] %vm9354, 0.0
      %9373 = vst.msk [vmem:[#allocation4 + $0x89] sm:$0x1] %vm9354, 0.0
      %9374 = vst.msk [vmem:[#allocation4 + $0x99] sm:$0x1] %vm9354, 0.0
      %v9439 = vlaneseq
      %v9440 = vshrl.u32 %v9439, 7
      %v9441 = vsub.s32 0, %v9440
      %v9442 = vrot.slane %v9284, %v9441
      %v9443 = vlaneseq
      %v9444 = vshrl.u32 %v9443, 7
      %v9445 = vsub.s32 0, %v9444
      %v9446 = vrot.slane %v9285, %v9445
      %v9447 = vlaneseq
      %v9448 = vshrl.u32 %v9447, 7
      %v9449 = vsub.s32 0, %v9448
      %v9450 = vrot.slane %v9286, %v9449
      %v9451 = vlaneseq
      %v9452 = vshrl.u32 %v9451, 7
      %v9453 = vsub.s32 0, %v9452
      %v9454 = vrot.slane %v9287, %v9453
      %v9455 = vlaneseq
      %v9456 = vshrl.u32 %v9455, 7
      %v9457 = vsub.s32 0, %v9456
      %v9458 = vrot.slane %v9288, %v9457
      %v9459 = vlaneseq
      %v9460 = vshrl.u32 %v9459, 7
      %v9461 = vsub.s32 0, %v9460
      %v9462 = vrot.slane %v9289, %v9461
      %v9463 = vlaneseq
      %v9464 = vshrl.u32 %v9463, 7
      %v9465 = vsub.s32 0, %v9464
      %v9466 = vrot.slane %v9290, %v9465
      %v9467 = vlaneseq
      %v9468 = vshrl.u32 %v9467, 7
      %v9469 = vsub.s32 0, %v9468
      %v9470 = vrot.slane %v9291, %v9469
      %v9471 = vlaneseq
      %v9472 = vshrl.u32 %v9471, 7
      %v9473 = vsub.s32 0, %v9472
      %v9474 = vrot.slane %v9292, %v9473
      %v9475 = vlaneseq
      %v9476 = vshrl.u32 %v9475, 7
      %v9477 = vsub.s32 0, %v9476
      %v9478 = vrot.slane %v9293, %v9477
      %v9479 = vlaneseq
      %v9480 = vshrl.u32 %v9479, 7
      %v9481 = vsub.s32 0, %v9480
      %v9482 = vrot.slane %v9294, %v9481
      %v9483 = vlaneseq
      %v9484 = vshrl.u32 %v9483, 7
      %v9485 = vsub.s32 0, %v9484
      %v9486 = vrot.slane %v9295, %v9485
      %v9487 = vlaneseq
      %v9488 = vshrl.u32 %v9487, 7
      %v9489 = vsub.s32 0, %v9488
      %v9490 = vrot.slane %v9296, %v9489
      %v9491 = vlaneseq
      %v9492 = vshrl.u32 %v9491, 7
      %v9493 = vsub.s32 0, %v9492
      %v9494 = vrot.slane %v9297, %v9493
      %v9495 = vlaneseq
      %v9496 = vshrl.u32 %v9495, 7
      %v9497 = vsub.s32 0, %v9496
      %v9498 = vrot.slane %v9298, %v9497
      %v9499 = vlaneseq
      %v9500 = vshrl.u32 %v9499, 7
      %v9501 = vsub.s32 0, %v9500
      %v9502 = vrot.slane %v9299, %v9501
      %v9503 = vlaneseq
      %v9504 = vshrl.u32 %v9503, 7
      %v9505 = vsub.s32 0, %v9504
      %v9506 = vrot.slane %v9300, %v9505
      %v9507 = vlaneseq
      %v9508 = vshrl.u32 %v9507, 7
      %v9509 = vsub.s32 0, %v9508
      %v9510 = vrot.slane %v9301, %v9509
      %v9511 = vlaneseq
      %v9512 = vshrl.u32 %v9511, 7
      %v9513 = vsub.s32 0, %v9512
      %v9514 = vrot.slane %v9302, %v9513
      %v9515 = vlaneseq
      %v9516 = vshrl.u32 %v9515, 7
      %v9517 = vsub.s32 0, %v9516
      %v9518 = vrot.slane %v9303, %v9517
      %v9519 = vlaneseq
      %v9520 = vshrl.u32 %v9519, 7
      %v9521 = vsub.s32 0, %v9520
      %v9522 = vrot.slane %v9304, %v9521
      %v9523 = vlaneseq
      %v9524 = vshrl.u32 %v9523, 7
      %v9525 = vsub.s32 0, %v9524
      %v9526 = vrot.slane %v9305, %v9525
      %v9527 = vlaneseq
      %v9528 = vshrl.u32 %v9527, 7
      %v9529 = vsub.s32 0, %v9528
      %v9530 = vrot.slane %v9306, %v9529
      %v9531 = vlaneseq
      %v9532 = vshrl.u32 %v9531, 7
      %v9533 = vsub.s32 0, %v9532
      %v9534 = vrot.slane %v9307, %v9533
      %v9535 = vlaneseq
      %v9536 = vshrl.u32 %v9535, 7
      %v9537 = vsub.s32 0, %v9536
      %v9538 = vrot.slane %v9308, %v9537
      %v9539 = vlaneseq
      %v9540 = vshrl.u32 %v9539, 7
      %v9541 = vsub.s32 0, %v9540
      %v9542 = vrot.slane %v9309, %v9541
      %v9543 = vlaneseq
      %v9544 = vshrl.u32 %v9543, 7
      %v9545 = vsub.s32 0, %v9544
      %v9546 = vrot.slane %v9310, %v9545
      %v9547 = vlaneseq
      %v9548 = vshrl.u32 %v9547, 7
      %v9549 = vsub.s32 0, %v9548
      %v9550 = vrot.slane %v9311, %v9549
      %v9551 = vlaneseq
      %v9552 = vshrl.u32 %v9551, 7
      %v9553 = vsub.s32 0, %v9552
      %v9554 = vrot.slane %v9312, %v9553
      %v9555 = vlaneseq
      %v9556 = vshrl.u32 %v9555, 7
      %v9557 = vsub.s32 0, %v9556
      %v9558 = vrot.slane %v9313, %v9557
      %v9559 = vlaneseq
      %v9560 = vshrl.u32 %v9559, 7
      %v9561 = vsub.s32 0, %v9560
      %v9562 = vrot.slane %v9314, %v9561
      %v9563 = vlaneseq
      %v9564 = vshrl.u32 %v9563, 7
      %v9565 = vsub.s32 0, %v9564
      %v9566 = vrot.slane %v9315, %v9565
      %v9567 = vlaneseq
      %v9568 = vshrl.u32 %v9567, 7
      %v9569 = vsub.s32 0, %v9568
      %v9570 = vrot.slane %v9316, %v9569
      %v9571 = vlaneseq
      %v9572 = vshrl.u32 %v9571, 7
      %v9573 = vsub.s32 0, %v9572
      %v9574 = vrot.slane %v9317, %v9573
      %v9575 = vlaneseq
      %v9576 = vshrl.u32 %v9575, 7
      %v9577 = vsub.s32 0, %v9576
      %v9578 = vrot.slane %v9318, %v9577
      %v9579 = vlaneseq
      %v9580 = vshrl.u32 %v9579, 7
      %v9581 = vsub.s32 0, %v9580
      %v9582 = vrot.slane %v9319, %v9581
      %v9583 = vlaneseq
      %v9584 = vshrl.u32 %v9583, 7
      %v9585 = vsub.s32 0, %v9584
      %v9586 = vrot.slane %v9320, %v9585
      %v9587 = vlaneseq
      %v9588 = vshrl.u32 %v9587, 7
      %v9589 = vsub.s32 0, %v9588
      %v9590 = vrot.slane %v9321, %v9589
      %v9591 = vlaneseq
      %v9592 = vshrl.u32 %v9591, 7
      %v9593 = vsub.s32 0, %v9592
      %v9594 = vrot.slane %v9322, %v9593
      %v9595 = vlaneseq
      %v9596 = vshrl.u32 %v9595, 7
      %v9597 = vsub.s32 0, %v9596
      %v9598 = vrot.slane %v9323, %v9597
      %v9599 = vlaneseq
      %v9600 = vshrl.u32 %v9599, 7
      %v9601 = vsub.s32 0, %v9600
      %v9602 = vrot.slane %v9324, %v9601
      %v9603 = vlaneseq
      %v9604 = vshrl.u32 %v9603, 7
      %v9605 = vsub.s32 0, %v9604
      %v9606 = vrot.slane %v9325, %v9605
      %v9607 = vlaneseq
      %v9608 = vshrl.u32 %v9607, 7
      %v9609 = vsub.s32 0, %v9608
      %v9610 = vrot.slane %v9326, %v9609
      %v9611 = vlaneseq
      %v9612 = vshrl.u32 %v9611, 7
      %v9613 = vsub.s32 0, %v9612
      %v9614 = vrot.slane %v9327, %v9613
      %v9615 = vlaneseq
      %v9616 = vshrl.u32 %v9615, 7
      %v9617 = vsub.s32 0, %v9616
      %v9618 = vrot.slane %v9328, %v9617
      %v9619 = vlaneseq
      %v9620 = vshrl.u32 %v9619, 7
      %v9621 = vsub.s32 0, %v9620
      %v9622 = vrot.slane %v9329, %v9621
      %v9623 = vlaneseq
      %v9624 = vshrl.u32 %v9623, 7
      %v9625 = vsub.s32 0, %v9624
      %v9626 = vrot.slane %v9330, %v9625
      %v9627 = vlaneseq
      %v9628 = vshrl.u32 %v9627, 7
      %v9629 = vsub.s32 0, %v9628
      %v9630 = vrot.slane %v9331, %v9629
      %v9631 = vlaneseq
      %v9632 = vshrl.u32 %v9631, 7
      %v9633 = vsub.s32 0, %v9632
      %v9634 = vrot.slane %v9332, %v9633
      %v9635 = vlaneseq
      %v9636 = vshrl.u32 %v9635, 7
      %v9637 = vsub.s32 0, %v9636
      %v9638 = vrot.slane %v9333, %v9637
      %v9639 = vlaneseq
      %v9640 = vshrl.u32 %v9639, 7
      %v9641 = vsub.s32 0, %v9640
      %v9642 = vrot.slane %v9334, %v9641
      %v9643 = vlaneseq
      %v9644 = vshrl.u32 %v9643, 7
      %v9645 = vsub.s32 0, %v9644
      %v9646 = vrot.slane %v9335, %v9645
      %v9647 = vlaneseq
      %v9648 = vshrl.u32 %v9647, 7
      %v9649 = vsub.s32 0, %v9648
      %v9650 = vrot.slane %v9336, %v9649
      %v9651 = vlaneseq
      %v9652 = vshrl.u32 %v9651, 7
      %v9653 = vsub.s32 0, %v9652
      %v9654 = vrot.slane %v9337, %v9653
      %v9655 = vlaneseq
      %v9656 = vshrl.u32 %v9655, 7
      %v9657 = vsub.s32 0, %v9656
      %v9658 = vrot.slane %v9338, %v9657
      %v9659 = vlaneseq
      %v9660 = vshrl.u32 %v9659, 7
      %v9661 = vsub.s32 0, %v9660
      %v9662 = vrot.slane %v9339, %v9661
      %v9663 = vlaneseq
      %v9664 = vshrl.u32 %v9663, 7
      %v9665 = vsub.s32 0, %v9664
      %v9666 = vrot.slane %v9340, %v9665
      %v9667 = vlaneseq
      %v9668 = vshrl.u32 %v9667, 7
      %v9669 = vsub.s32 0, %v9668
      %v9670 = vrot.slane %v9341, %v9669
      %v9671 = vlaneseq
      %v9672 = vshrl.u32 %v9671, 7
      %v9673 = vsub.s32 0, %v9672
      %v9674 = vrot.slane %v9342, %v9673
      %v9675 = vlaneseq
      %v9676 = vshrl.u32 %v9675, 7
      %v9677 = vsub.s32 0, %v9676
      %v9678 = vrot.slane %v9343, %v9677
      %v9679 = vlaneseq
      %v9680 = vshrl.u32 %v9679, 7
      %v9681 = vsub.s32 0, %v9680
      %v9682 = vrot.slane %v9344, %v9681
      %v9683 = vlaneseq
      %v9684 = vshrl.u32 %v9683, 7
      %v9685 = vsub.s32 0, %v9684
      %v9686 = vrot.slane %v9345, %v9685
      %v9687 = vlaneseq
      %v9688 = vshrl.u32 %v9687, 7
      %v9689 = vsub.s32 0, %v9688
      %v9690 = vrot.slane %v9346, %v9689
      %v9691 = vlaneseq
      %v9692 = vshrl.u32 %v9691, 7
      %v9693 = vsub.s32 0, %v9692
      %v9694 = vrot.slane %v9347, %v9693
      %v9695 = vsel %vm8198, %v9446, %v9442
      %v9696 = vsel %vm8200, %v9450, %v9695
      %v9697 = vsel %vm8202, %v9454, %v9696
      %v9698 = vsel %vm8204, %v9458, %v9697
      %v9699 = vsel %vm8206, %v9462, %v9698
      %v9700 = vsel %vm8208, %v9466, %v9699
      %v9701 = vsel %vm8210, %v9470, %v9700
      %v9702 = vsel %vm8198, %v9478, %v9474
      %v9703 = vsel %vm8200, %v9482, %v9702
      %v9704 = vsel %vm8202, %v9486, %v9703
      %v9705 = vsel %vm8204, %v9490, %v9704
      %v9706 = vsel %vm8206, %v9494, %v9705
      %v9707 = vsel %vm8208, %v9498, %v9706
      %v9708 = vsel %vm8210, %v9502, %v9707
      %v9709 = vsel %vm8198, %v9510, %v9506
      %v9710 = vsel %vm8200, %v9514, %v9709
      %v9711 = vsel %vm8202, %v9518, %v9710
      %v9712 = vsel %vm8204, %v9522, %v9711
      %v9713 = vsel %vm8206, %v9526, %v9712
      %v9714 = vsel %vm8208, %v9530, %v9713
      %v9715 = vsel %vm8210, %v9534, %v9714
      %v9716 = vsel %vm8198, %v9542, %v9538
      %v9717 = vsel %vm8200, %v9546, %v9716
      %v9718 = vsel %vm8202, %v9550, %v9717
      %v9719 = vsel %vm8204, %v9554, %v9718
      %v9720 = vsel %vm8206, %v9558, %v9719
      %v9721 = vsel %vm8208, %v9562, %v9720
      %v9722 = vsel %vm8210, %v9566, %v9721
      %v9723 = vsel %vm8198, %v9574, %v9570
      %v9724 = vsel %vm8200, %v9578, %v9723
      %v9725 = vsel %vm8202, %v9582, %v9724
      %v9726 = vsel %vm8204, %v9586, %v9725
      %v9727 = vsel %vm8206, %v9590, %v9726
      %v9728 = vsel %vm8208, %v9594, %v9727
      %v9729 = vsel %vm8210, %v9598, %v9728
      %v9730 = vsel %vm8198, %v9606, %v9602
      %v9731 = vsel %vm8200, %v9610, %v9730
      %v9732 = vsel %vm8202, %v9614, %v9731
      %v9733 = vsel %vm8204, %v9618, %v9732
      %v9734 = vsel %vm8206, %v9622, %v9733
      %v9735 = vsel %vm8208, %v9626, %v9734
      %v9736 = vsel %vm8210, %v9630, %v9735
      %v9737 = vsel %vm8198, %v9638, %v9634
      %v9738 = vsel %vm8200, %v9642, %v9737
      %v9739 = vsel %vm8202, %v9646, %v9738
      %v9740 = vsel %vm8204, %v9650, %v9739
      %v9741 = vsel %vm8206, %v9654, %v9740
      %v9742 = vsel %vm8208, %v9658, %v9741
      %v9743 = vsel %vm8210, %v9662, %v9742
      %v9744 = vsel %vm8198, %v9670, %v9666
      %v9745 = vsel %vm8200, %v9674, %v9744
      %v9746 = vsel %vm8202, %v9678, %v9745
      %v9747 = vsel %vm8204, %v9682, %v9746
      %v9748 = vsel %vm8206, %v9686, %v9747
      %v9749 = vsel %vm8208, %v9690, %v9748
      %v9750 = vsel %vm8210, %v9694, %v9749
      %s9759 = scalar_lea.vmem [#allocation4], 16
      %9760 = vst.msk [vmem:[%s9759 + $0x1] sm:$0xff] %vm8269, %v9701
      %9761 = vst.msk [vmem:[%s9759 + $0x11] sm:$0xff] %vm8269, %v9708
      %9762 = vst.msk [vmem:[%s9759 + $0x21] sm:$0xff] %vm8269, %v9715
      %9763 = vst.msk [vmem:[%s9759 + $0x31] sm:$0xff] %vm8269, %v9722
      %9764 = vst.msk [vmem:[%s9759 + $0x41] sm:$0xff] %vm8269, %v9729
      %9765 = vst.msk [vmem:[%s9759 + $0x51] sm:$0xff] %vm8269, %v9736
      %9766 = vst.msk [vmem:[%s9759 + $0x61] sm:$0xff] %vm8269, %v9743
      %9767 = vst.msk [vmem:[%s9759 + $0x71] sm:$0xff] %vm8269, %v9750
      %v9768 = vld [vmem:[#allocation4] sm:$0xff]
      %v9769 = vld [vmem:[#allocation4 + $0x10] sm:$0xff]
      %v9770 = vld [vmem:[#allocation4 + $0x20] sm:$0xff]
      %v9771 = vld [vmem:[#allocation4 + $0x30] sm:$0xff]
      %v9772 = vld [vmem:[#allocation4 + $0x40] sm:$0xff]
      %v9773 = vld [vmem:[#allocation4 + $0x50] sm:$0xff]
      %v9774 = vld [vmem:[#allocation4 + $0x60] sm:$0xff]
      %v9775 = vld [vmem:[#allocation4 + $0x70] sm:$0xff]
      %9776 = vst.msk [vmem:[#allocation5] sm:$0xff] %vm8269, %v9768
      %9777 = vst.msk [vmem:[#allocation5 + $0x18] sm:$0xff] %vm8269, %v9769
      %9778 = vst.msk [vmem:[#allocation5 + $0x30] sm:$0xff] %vm8269, %v9770
      %9779 = vst.msk [vmem:[#allocation5 + $0x48] sm:$0xff] %vm8269, %v9771
      %9780 = vst.msk [vmem:[#allocation5 + $0x60] sm:$0xff] %vm8269, %v9772
      %9781 = vst.msk [vmem:[#allocation5 + $0x78] sm:$0xff] %vm8269, %v9773
      %9782 = vst.msk [vmem:[#allocation5 + $0x90] sm:$0xff] %vm8269, %v9774
      %9783 = vst.msk [vmem:[#allocation5 + $0xa8] sm:$0xff] %vm8269, %v9775
      %v9784 = vld [vmem:[#allocation4 + $0x1] sm:$0xff]
      %v9785 = vld [vmem:[#allocation4 + $0x11] sm:$0xff]
      %v9786 = vld [vmem:[#allocation4 + $0x21] sm:$0xff]
      %v9787 = vld [vmem:[#allocation4 + $0x31] sm:$0xff]
      %v9788 = vld [vmem:[#allocation4 + $0x41] sm:$0xff]
      %v9789 = vld [vmem:[#allocation4 + $0x51] sm:$0xff]
      %v9790 = vld [vmem:[#allocation4 + $0x61] sm:$0xff]
      %v9791 = vld [vmem:[#allocation4 + $0x71] sm:$0xff]
      %9800 = vrot.lane.b32.xlu0 %v9784, 32
      %v9801 = vpop.permute.xlu0 %9800
      %9802 = vrot.lane.b32.xlu0 %v9785, 32
      %v9803 = vpop.permute.xlu0 %9802
      %9804 = vrot.lane.b32.xlu0 %v9786, 32
      %v9805 = vpop.permute.xlu0 %9804
      %9806 = vrot.lane.b32.xlu0 %v9787, 32
      %v9807 = vpop.permute.xlu0 %9806
      %9808 = vrot.lane.b32.xlu0 %v9788, 32
      %v9809 = vpop.permute.xlu0 %9808
      %9810 = vrot.lane.b32.xlu0 %v9789, 32
      %v9811 = vpop.permute.xlu0 %9810
      %9812 = vrot.lane.b32.xlu0 %v9790, 32
      %v9813 = vpop.permute.xlu0 %9812
      %9814 = vrot.lane.b32.xlu0 %v9791, 32
      %v9815 = vpop.permute.xlu0 %9814
      %vm9824 = vcmask 523520
      %9825 = vst.msk [vmem:[#allocation5] sm:$0xff] %vm9824, %v9801
      %9826 = vst.msk [vmem:[#allocation5 + $0x18] sm:$0xff] %vm9824, %v9803
      %9827 = vst.msk [vmem:[#allocation5 + $0x30] sm:$0xff] %vm9824, %v9805
      %9828 = vst.msk [vmem:[#allocation5 + $0x48] sm:$0xff] %vm9824, %v9807
      %9829 = vst.msk [vmem:[#allocation5 + $0x60] sm:$0xff] %vm9824, %v9809
      %9830 = vst.msk [vmem:[#allocation5 + $0x78] sm:$0xff] %vm9824, %v9811
      %9831 = vst.msk [vmem:[#allocation5 + $0x90] sm:$0xff] %vm9824, %v9813
      %9832 = vst.msk [vmem:[#allocation5 + $0xa8] sm:$0xff] %vm9824, %v9815
      %v9833 = vld [vmem:[#allocation4 + $0x2] sm:$0xff]
      %v9834 = vld [vmem:[#allocation4 + $0x12] sm:$0xff]
      %v9835 = vld [vmem:[#allocation4 + $0x22] sm:$0xff]
      %v9836 = vld [vmem:[#allocation4 + $0x32] sm:$0xff]
      %v9837 = vld [vmem:[#allocation4 + $0x42] sm:$0xff]
      %v9838 = vld [vmem:[#allocation4 + $0x52] sm:$0xff]
      %v9839 = vld [vmem:[#allocation4 + $0x62] sm:$0xff]
      %v9840 = vld [vmem:[#allocation4 + $0x72] sm:$0xff]
      %9849 = vrot.lane.b32.xlu0 %v9833, 64
      %v9850 = vpop.permute.xlu0 %9849
      %9851 = vrot.lane.b32.xlu0 %v9834, 64
      %v9852 = vpop.permute.xlu0 %9851
      %9853 = vrot.lane.b32.xlu0 %v9835, 64
      %v9854 = vpop.permute.xlu0 %9853
      %9855 = vrot.lane.b32.xlu0 %v9836, 64
      %v9856 = vpop.permute.xlu0 %9855
      %9857 = vrot.lane.b32.xlu0 %v9837, 64
      %v9858 = vpop.permute.xlu0 %9857
      %9859 = vrot.lane.b32.xlu0 %v9838, 64
      %v9860 = vpop.permute.xlu0 %9859
      %9861 = vrot.lane.b32.xlu0 %v9839, 64
      %v9862 = vpop.permute.xlu0 %9861
      %9863 = vrot.lane.b32.xlu0 %v9840, 64
      %v9864 = vpop.permute.xlu0 %9863
      %vm9873 = vcmask 785920
      %9874 = vst.msk [vmem:[#allocation5] sm:$0xff] %vm9873, %v9850
      %9875 = vst.msk [vmem:[#allocation5 + $0x18] sm:$0xff] %vm9873, %v9852
      %9876 = vst.msk [vmem:[#allocation5 + $0x30] sm:$0xff] %vm9873, %v9854
      %9877 = vst.msk [vmem:[#allocation5 + $0x48] sm:$0xff] %vm9873, %v9856
      %9878 = vst.msk [vmem:[#allocation5 + $0x60] sm:$0xff] %vm9873, %v9858
      %9879 = vst.msk [vmem:[#allocation5 + $0x78] sm:$0xff] %vm9873, %v9860
      %9880 = vst.msk [vmem:[#allocation5 + $0x90] sm:$0xff] %vm9873, %v9862
      %9881 = vst.msk [vmem:[#allocation5 + $0xa8] sm:$0xff] %vm9873, %v9864
      %v9882 = vld [vmem:[%s9759] sm:$0xff]
      %v9883 = vld [vmem:[%s9759 + $0x10] sm:$0xff]
      %v9884 = vld [vmem:[%s9759 + $0x20] sm:$0xff]
      %v9885 = vld [vmem:[%s9759 + $0x30] sm:$0xff]
      %v9886 = vld [vmem:[%s9759 + $0x40] sm:$0xff]
      %v9887 = vld [vmem:[%s9759 + $0x50] sm:$0xff]
      %v9888 = vld [vmem:[%s9759 + $0x60] sm:$0xff]
      %v9889 = vld [vmem:[%s9759 + $0x70] sm:$0xff]
      %9898 = vrot.lane.b32.xlu0 %v9882, 96
      %v9899 = vpop.permute.xlu0 %9898
      %9900 = vrot.lane.b32.xlu0 %v9883, 96
      %v9901 = vpop.permute.xlu0 %9900
      %9902 = vrot.lane.b32.xlu0 %v9884, 96
      %v9903 = vpop.permute.xlu0 %9902
      %9904 = vrot.lane.b32.xlu0 %v9885, 96
      %v9905 = vpop.permute.xlu0 %9904
      %9906 = vrot.lane.b32.xlu0 %v9886, 96
      %v9907 = vpop.permute.xlu0 %9906
      %9908 = vrot.lane.b32.xlu0 %v9887, 96
      %v9909 = vpop.permute.xlu0 %9908
      %9910 = vrot.lane.b32.xlu0 %v9888, 96
      %v9911 = vpop.permute.xlu0 %9910
      %9912 = vrot.lane.b32.xlu0 %v9889, 96
      %v9913 = vpop.permute.xlu0 %9912
      %vm9922 = vcmask 1048320
      %9923 = vst.msk [vmem:[#allocation5] sm:$0xff] %vm9922, %v9899
      %9924 = vst.msk [vmem:[#allocation5 + $0x18] sm:$0xff] %vm9922, %v9901
      %9925 = vst.msk [vmem:[#allocation5 + $0x30] sm:$0xff] %vm9922, %v9903
      %9926 = vst.msk [vmem:[#allocation5 + $0x48] sm:$0xff] %vm9922, %v9905
      %9927 = vst.msk [vmem:[#allocation5 + $0x60] sm:$0xff] %vm9922, %v9907
      %9928 = vst.msk [vmem:[#allocation5 + $0x78] sm:$0xff] %vm9922, %v9909
      %9929 = vst.msk [vmem:[#allocation5 + $0x90] sm:$0xff] %vm9922, %v9911
      %9930 = vst.msk [vmem:[#allocation5 + $0xa8] sm:$0xff] %vm9922, %v9913
      %v9931 = vld [vmem:[%s9759 + $0x1] sm:$0xff]
      %v9932 = vld [vmem:[%s9759 + $0x11] sm:$0xff]
      %v9933 = vld [vmem:[%s9759 + $0x21] sm:$0xff]
      %v9934 = vld [vmem:[%s9759 + $0x31] sm:$0xff]
      %v9935 = vld [vmem:[%s9759 + $0x41] sm:$0xff]
      %v9936 = vld [vmem:[%s9759 + $0x51] sm:$0xff]
      %v9937 = vld [vmem:[%s9759 + $0x61] sm:$0xff]
      %v9938 = vld [vmem:[%s9759 + $0x71] sm:$0xff]
      %9939 = vst.msk [vmem:[#allocation5 + $0x8] sm:$0xff] %vm8269, %v9931
      %9940 = vst.msk [vmem:[#allocation5 + $0x20] sm:$0xff] %vm8269, %v9932
      %9941 = vst.msk [vmem:[#allocation5 + $0x38] sm:$0xff] %vm8269, %v9933
      %9942 = vst.msk [vmem:[#allocation5 + $0x50] sm:$0xff] %vm8269, %v9934
      %9943 = vst.msk [vmem:[#allocation5 + $0x68] sm:$0xff] %vm8269, %v9935
      %9944 = vst.msk [vmem:[#allocation5 + $0x80] sm:$0xff] %vm8269, %v9936
      %9945 = vst.msk [vmem:[#allocation5 + $0x98] sm:$0xff] %vm8269, %v9937
      %9946 = vst.msk [vmem:[#allocation5 + $0xb0] sm:$0xff] %vm8269, %v9938
      %v9947 = vld [vmem:[%s9759 + $0x2] sm:$0xff]
      %v9948 = vld [vmem:[%s9759 + $0x12] sm:$0xff]
      %v9949 = vld [vmem:[%s9759 + $0x22] sm:$0xff]
      %v9950 = vld [vmem:[%s9759 + $0x32] sm:$0xff]
      %v9951 = vld [vmem:[%s9759 + $0x42] sm:$0xff]
      %v9952 = vld [vmem:[%s9759 + $0x52] sm:$0xff]
      %v9953 = vld [vmem:[%s9759 + $0x62] sm:$0xff]
      %v9954 = vld [vmem:[%s9759 + $0x72] sm:$0xff]
      %9963 = vrot.lane.b32.xlu0 %v9947, 32
      %v9964 = vpop.permute.xlu0 %9963
      %9965 = vrot.lane.b32.xlu0 %v9948, 32
      %v9966 = vpop.permute.xlu0 %9965
      %9967 = vrot.lane.b32.xlu0 %v9949, 32
      %v9968 = vpop.permute.xlu0 %9967
      %9969 = vrot.lane.b32.xlu0 %v9950, 32
      %v9970 = vpop.permute.xlu0 %9969
      %9971 = vrot.lane.b32.xlu0 %v9951, 32
      %v9972 = vpop.permute.xlu0 %9971
      %9973 = vrot.lane.b32.xlu0 %v9952, 32
      %v9974 = vpop.permute.xlu0 %9973
      %9975 = vrot.lane.b32.xlu0 %v9953, 32
      %v9976 = vpop.permute.xlu0 %9975
      %9977 = vrot.lane.b32.xlu0 %v9954, 32
      %v9978 = vpop.permute.xlu0 %9977
      %9987 = vst.msk [vmem:[#allocation5 + $0x8] sm:$0xff] %vm9824, %v9964
      %9988 = vst.msk [vmem:[#allocation5 + $0x20] sm:$0xff] %vm9824, %v9966
      %9989 = vst.msk [vmem:[#allocation5 + $0x38] sm:$0xff] %vm9824, %v9968
      %9990 = vst.msk [vmem:[#allocation5 + $0x50] sm:$0xff] %vm9824, %v9970
      %9991 = vst.msk [vmem:[#allocation5 + $0x68] sm:$0xff] %vm9824, %v9972
      %9992 = vst.msk [vmem:[#allocation5 + $0x80] sm:$0xff] %vm9824, %v9974
      %9993 = vst.msk [vmem:[#allocation5 + $0x98] sm:$0xff] %vm9824, %v9976
      %9994 = vst.msk [vmem:[#allocation5 + $0xb0] sm:$0xff] %vm9824, %v9978
      %s9995 = scalar_lea.vmem [#allocation4], 32
      %v9996 = vld [vmem:[%s9995] sm:$0xff]
      %v9997 = vld [vmem:[%s9995 + $0x10] sm:$0xff]
      %v9998 = vld [vmem:[%s9995 + $0x20] sm:$0xff]
      %v9999 = vld [vmem:[%s9995 + $0x30] sm:$0xff]
      %v10000 = vld [vmem:[%s9995 + $0x40] sm:$0xff]
      %v10001 = vld [vmem:[%s9995 + $0x50] sm:$0xff]
      %v10002 = vld [vmem:[%s9995 + $0x60] sm:$0xff]
      %v10003 = vld [vmem:[%s9995 + $0x70] sm:$0xff]
      %10012 = vrot.lane.b32.xlu0 %v9996, 64
      %v10013 = vpop.permute.xlu0 %10012
      %10014 = vrot.lane.b32.xlu0 %v9997, 64
      %v10015 = vpop.permute.xlu0 %10014
      %10016 = vrot.lane.b32.xlu0 %v9998, 64
      %v10017 = vpop.permute.xlu0 %10016
      %10018 = vrot.lane.b32.xlu0 %v9999, 64
      %v10019 = vpop.permute.xlu0 %10018
      %10020 = vrot.lane.b32.xlu0 %v10000, 64
      %v10021 = vpop.permute.xlu0 %10020
      %10022 = vrot.lane.b32.xlu0 %v10001, 64
      %v10023 = vpop.permute.xlu0 %10022
      %10024 = vrot.lane.b32.xlu0 %v10002, 64
      %v10025 = vpop.permute.xlu0 %10024
      %10026 = vrot.lane.b32.xlu0 %v10003, 64
      %v10027 = vpop.permute.xlu0 %10026
      %10036 = vst.msk [vmem:[#allocation5 + $0x8] sm:$0xff] %vm9873, %v10013
      %10037 = vst.msk [vmem:[#allocation5 + $0x20] sm:$0xff] %vm9873, %v10015
      %10038 = vst.msk [vmem:[#allocation5 + $0x38] sm:$0xff] %vm9873, %v10017
      %10039 = vst.msk [vmem:[#allocation5 + $0x50] sm:$0xff] %vm9873, %v10019
      %10040 = vst.msk [vmem:[#allocation5 + $0x68] sm:$0xff] %vm9873, %v10021
      %10041 = vst.msk [vmem:[#allocation5 + $0x80] sm:$0xff] %vm9873, %v10023
      %10042 = vst.msk [vmem:[#allocation5 + $0x98] sm:$0xff] %vm9873, %v10025
      %10043 = vst.msk [vmem:[#allocation5 + $0xb0] sm:$0xff] %vm9873, %v10027
      %v10044 = vld [vmem:[%s9995 + $0x1] sm:$0xff]
      %v10045 = vld [vmem:[%s9995 + $0x11] sm:$0xff]
      %v10046 = vld [vmem:[%s9995 + $0x21] sm:$0xff]
      %v10047 = vld [vmem:[%s9995 + $0x31] sm:$0xff]
      %v10048 = vld [vmem:[%s9995 + $0x41] sm:$0xff]
      %v10049 = vld [vmem:[%s9995 + $0x51] sm:$0xff]
      %v10050 = vld [vmem:[%s9995 + $0x61] sm:$0xff]
      %v10051 = vld [vmem:[%s9995 + $0x71] sm:$0xff]
      %10060 = vrot.lane.b32.xlu0 %v10044, 96
      %v10061 = vpop.permute.xlu0 %10060
      %10062 = vrot.lane.b32.xlu0 %v10045, 96
      %v10063 = vpop.permute.xlu0 %10062
      %10064 = vrot.lane.b32.xlu0 %v10046, 96
      %v10065 = vpop.permute.xlu0 %10064
      %10066 = vrot.lane.b32.xlu0 %v10047, 96
      %v10067 = vpop.permute.xlu0 %10066
      %10068 = vrot.lane.b32.xlu0 %v10048, 96
      %v10069 = vpop.permute.xlu0 %10068
      %10070 = vrot.lane.b32.xlu0 %v10049, 96
      %v10071 = vpop.permute.xlu0 %10070
      %10072 = vrot.lane.b32.xlu0 %v10050, 96
      %v10073 = vpop.permute.xlu0 %10072
      %10074 = vrot.lane.b32.xlu0 %v10051, 96
      %v10075 = vpop.permute.xlu0 %10074
      %10084 = vst.msk [vmem:[#allocation5 + $0x8] sm:$0xff] %vm9922, %v10061
      %10085 = vst.msk [vmem:[#allocation5 + $0x20] sm:$0xff] %vm9922, %v10063
      %10086 = vst.msk [vmem:[#allocation5 + $0x38] sm:$0xff] %vm9922, %v10065
      %10087 = vst.msk [vmem:[#allocation5 + $0x50] sm:$0xff] %vm9922, %v10067
      %10088 = vst.msk [vmem:[#allocation5 + $0x68] sm:$0xff] %vm9922, %v10069
      %10089 = vst.msk [vmem:[#allocation5 + $0x80] sm:$0xff] %vm9922, %v10071
      %10090 = vst.msk [vmem:[#allocation5 + $0x98] sm:$0xff] %vm9922, %v10073
      %10091 = vst.msk [vmem:[#allocation5 + $0xb0] sm:$0xff] %vm9922, %v10075
      %v10092 = vld [vmem:[%s9995 + $0x2] sm:$0xff]
      %v10093 = vld [vmem:[%s9995 + $0x12] sm:$0xff]
      %v10094 = vld [vmem:[%s9995 + $0x22] sm:$0xff]
      %v10095 = vld [vmem:[%s9995 + $0x32] sm:$0xff]
      %v10096 = vld [vmem:[%s9995 + $0x42] sm:$0xff]
      %v10097 = vld [vmem:[%s9995 + $0x52] sm:$0xff]
      %v10098 = vld [vmem:[%s9995 + $0x62] sm:$0xff]
      %v10099 = vld [vmem:[%s9995 + $0x72] sm:$0xff]
      %10100 = vst.msk [vmem:[#allocation5 + $0x10] sm:$0xff] %vm8269, %v10092
      %10101 = vst.msk [vmem:[#allocation5 + $0x28] sm:$0xff] %vm8269, %v10093
      %10102 = vst.msk [vmem:[#allocation5 + $0x40] sm:$0xff] %vm8269, %v10094
      %10103 = vst.msk [vmem:[#allocation5 + $0x58] sm:$0xff] %vm8269, %v10095
      %10104 = vst.msk [vmem:[#allocation5 + $0x70] sm:$0xff] %vm8269, %v10096
      %10105 = vst.msk [vmem:[#allocation5 + $0x88] sm:$0xff] %vm8269, %v10097
      %10106 = vst.msk [vmem:[#allocation5 + $0xa0] sm:$0xff] %vm8269, %v10098
      %10107 = vst.msk [vmem:[#allocation5 + $0xb8] sm:$0xff] %vm8269, %v10099
      %v10108 = vld [vmem:[#allocation5] sm:$0xff]
      %v10109 = vld [vmem:[#allocation5 + $0x8] sm:$0xff]
      %v10110 = vld [vmem:[#allocation5 + $0x10] sm:$0xff]
      %v10111 = vld [vmem:[#allocation5 + $0x18] sm:$0xff]
      %v10112 = vld [vmem:[#allocation5 + $0x20] sm:$0xff]
      %v10113 = vld [vmem:[#allocation5 + $0x28] sm:$0xff]
      %v10114 = vld [vmem:[#allocation5 + $0x30] sm:$0xff]
      %v10115 = vld [vmem:[#allocation5 + $0x38] sm:$0xff]
      %v10116 = vld [vmem:[#allocation5 + $0x40] sm:$0xff]
      %v10117 = vld [vmem:[#allocation5 + $0x48] sm:$0xff]
      %v10118 = vld [vmem:[#allocation5 + $0x50] sm:$0xff]
      %v10119 = vld [vmem:[#allocation5 + $0x58] sm:$0xff]
      %v10120 = vld [vmem:[#allocation5 + $0x60] sm:$0xff]
      %v10121 = vld [vmem:[#allocation5 + $0x68] sm:$0xff]
      %v10122 = vld [vmem:[#allocation5 + $0x70] sm:$0xff]
      %v10123 = vld [vmem:[#allocation5 + $0x78] sm:$0xff]
      %v10124 = vld [vmem:[#allocation5 + $0x80] sm:$0xff]
      %v10125 = vld [vmem:[#allocation5 + $0x88] sm:$0xff]
      %v10126 = vld [vmem:[#allocation5 + $0x90] sm:$0xff]
      %v10127 = vld [vmem:[#allocation5 + $0x98] sm:$0xff]
      %v10128 = vld [vmem:[#allocation5 + $0xa0] sm:$0xff]
      %v10129 = vld [vmem:[#allocation5 + $0xa8] sm:$0xff]
      %v10130 = vld [vmem:[#allocation5 + $0xb0] sm:$0xff]
      %v10131 = vld [vmem:[#allocation5 + $0xb8] sm:$0xff]
      %v10132 = vpack.c.bf16 %v10111, %v10108
      %v10133 = vpack.c.bf16 %v10112, %v10109
      %v10134 = vpack.c.bf16 %v10113, %v10110
      %v10135 = vpack.c.bf16 %v10117, %v10114
      %v10136 = vpack.c.bf16 %v10118, %v10115
      %v10137 = vpack.c.bf16 %v10119, %v10116
      %v10138 = vpack.c.bf16 %v10123, %v10120
      %v10139 = vpack.c.bf16 %v10124, %v10121
      %v10140 = vpack.c.bf16 %v10125, %v10122
      %v10141 = vpack.c.bf16 %v10129, %v10126
      %v10142 = vpack.c.bf16 %v10130, %v10127
      %v10143 = vpack.c.bf16 %v10131, %v10128
      %v10144 = vld [vmem:[%s5] sm:$0xf]
      %v10145 = vld [vmem:[%s5 + $0x4] sm:$0xf]
      %v10146 = vld [vmem:[%s5 + $0x8] sm:$0xf]
      %v10147 = vld [vmem:[%s5 + $0xc] sm:$0xf]
      %v10148 = vld [vmem:[%s5 + $0x10] sm:$0xf]
      %v10149 = vld [vmem:[%s5 + $0x14] sm:$0xf]
      %v10150 = vld [vmem:[%s5 + $0x18] sm:$0xf]
      %v10151 = vld [vmem:[%s5 + $0x1c] sm:$0xf]
      %v10152 = vld [vmem:[%s5 + $0x20] sm:$0xf]
      %v10153 = vld [vmem:[%s5 + $0x24] sm:$0xf]
      %v10154 = vld [vmem:[%s5 + $0x28] sm:$0xf]
      %v10155 = vld [vmem:[%s5 + $0x2c] sm:$0xf]
      %v10156 = vld [vmem:[%s5 + $0x30] sm:$0xf]
      %v10157 = vld [vmem:[%s5 + $0x34] sm:$0xf]
      %v10158 = vld [vmem:[%s5 + $0x38] sm:$0xf]
      %v10159 = vld [vmem:[%s5 + $0x3c] sm:$0xf]
      %v10160 = vld [vmem:[%s5 + $0x40] sm:$0xf]
      %v10161 = vld [vmem:[%s5 + $0x44] sm:$0xf]
      %v10162 = vld [vmem:[%s5 + $0x48] sm:$0xf]
      %v10163 = vld [vmem:[%s5 + $0x4c] sm:$0xf]
      %v10164 = vld [vmem:[%s5 + $0x50] sm:$0xf]
      %v10165 = vld [vmem:[%s5 + $0x54] sm:$0xf]
      %v10166 = vld [vmem:[%s5 + $0x58] sm:$0xf]
      %v10167 = vld [vmem:[%s5 + $0x5c] sm:$0xf]
      %v10168 = vld [vmem:[%s5 + $0x60] sm:$0xf]
      %v10169 = vld [vmem:[%s5 + $0x64] sm:$0xf]
      %v10170 = vld [vmem:[%s5 + $0x68] sm:$0xf]
      %v10171 = vld [vmem:[%s5 + $0x6c] sm:$0xf]
      %v10172 = vld [vmem:[%s5 + $0x70] sm:$0xf]
      %v10173 = vld [vmem:[%s5 + $0x74] sm:$0xf]
      %v10174 = vld [vmem:[%s5 + $0x78] sm:$0xf]
      %v10175 = vld [vmem:[%s5 + $0x7c] sm:$0xf]
      %v10176 = vld [vmem:[%s5 + $0x80] sm:$0xf]
      %v10177 = vld [vmem:[%s5 + $0x84] sm:$0xf]
      %v10178 = vld [vmem:[%s5 + $0x88] sm:$0xf]
      %v10179 = vld [vmem:[%s5 + $0x8c] sm:$0xf]
      %v10216 = vunpack.c.l.b16 %v10144
      %v10217 = vunpack.c.l.b16 %v10145
      %v10218 = vunpack.c.l.b16 %v10146
      %v10219 = vunpack.c.l.b16 %v10147
      %v10220 = vunpack.c.l.b16 %v10148
      %v10221 = vunpack.c.l.b16 %v10149
      %v10222 = vunpack.c.l.b16 %v10150
      %v10223 = vunpack.c.l.b16 %v10151
      %v10224 = vunpack.c.l.b16 %v10152
      %v10225 = vunpack.c.l.b16 %v10153
      %v10226 = vunpack.c.l.b16 %v10154
      %v10227 = vunpack.c.l.b16 %v10155
      %v10228 = vunpack.c.l.b16 %v10156
      %v10229 = vunpack.c.l.b16 %v10157
      %v10230 = vunpack.c.l.b16 %v10158
      %v10231 = vunpack.c.l.b16 %v10159
      %v10232 = vunpack.c.l.b16 %v10160
      %v10233 = vunpack.c.l.b16 %v10161
      %v10234 = vunpack.c.l.b16 %v10162
      %v10235 = vunpack.c.l.b16 %v10163
      %v10236 = vunpack.c.l.b16 %v10164
      %v10237 = vunpack.c.l.b16 %v10165
      %v10238 = vunpack.c.l.b16 %v10166
      %v10239 = vunpack.c.l.b16 %v10167
      %v10240 = vunpack.c.l.b16 %v10168
      %v10241 = vunpack.c.l.b16 %v10169
      %v10242 = vunpack.c.l.b16 %v10170
      %v10243 = vunpack.c.l.b16 %v10171
      %v10244 = vunpack.c.l.b16 %v10172
      %v10245 = vunpack.c.l.b16 %v10173
      %v10246 = vunpack.c.l.b16 %v10174
      %v10247 = vunpack.c.l.b16 %v10175
      %v10248 = vunpack.c.l.b16 %v10176
      %v10249 = vunpack.c.l.b16 %v10177
      %v10250 = vunpack.c.l.b16 %v10178
      %v10251 = vunpack.c.l.b16 %v10179
      %v10252 = vpack.c.b16 %v10217, %v10216
      %v10253 = vpack.c.b16 %v10219, %v10218
      %v10254 = vpack.c.b16 %v10221, %v10220
      %v10255 = vpack.c.b16 %v10223, %v10222
      %v10256 = vpack.c.b16 %v10225, %v10224
      %v10257 = vpack.c.b16 %v10227, %v10226
      %v10258 = vpack.c.b16 %v10229, %v10228
      %v10259 = vpack.c.b16 %v10231, %v10230
      %v10260 = vpack.c.b16 %v10233, %v10232
      %v10261 = vpack.c.b16 %v10235, %v10234
      %v10262 = vpack.c.b16 %v10237, %v10236
      %v10263 = vpack.c.b16 %v10239, %v10238
      %v10264 = vpack.c.b16 %v10241, %v10240
      %v10265 = vpack.c.b16 %v10243, %v10242
      %v10266 = vpack.c.b16 %v10245, %v10244
      %v10267 = vpack.c.b16 %v10247, %v10246
      %v10268 = vpack.c.b16 %v10249, %v10248
      %v10269 = vpack.c.b16 %v10251, %v10250
      %v10289 = vsel %vm8269, %v10134, 0
      %v10292 = vsel %vm8269, %v10137, 0
      %v10295 = vsel %vm8269, %v10140, 0
      %v10298 = vsel %vm8269, %v10143, 0
      %10300 = vmatprep.subr.bf16.mxu0 0
      %10301 = vmatpush1.bf16.msra.mxu0 %v10252
      %10302 = vmatprep.subr.bf16.mxu0 0
      %10303 = vmatpush1.bf16.msra.mxu0 %v10253
      %10304 = vmatprep.subr.bf16.mxu0 0
      %10305 = vmatpush1.bf16.msra.mxu0 %v10254
      %10306 = vmatprep.subr.bf16.mxu0 0
      %10307 = vmatpush1.bf16.msra.mxu0 %v10255
      %10308 = vmatprep.subr.bf16.mxu0 0
      %10309 = vmatpush1.bf16.msra.mxu0 %v10256
      %10310 = vmatprep.subr.bf16.mxu0 0
      %10311 = vmatpush1.bf16.msra.mxu0 %v10257
      %10312 = vmatprep.subr.bf16.mxu0 0
      %10313 = vmatpush1.bf16.msra.mxu0 %v10258
      %10314 = vmatprep.subr.bf16.mxu0 0
      %10315 = vmatpush1.bf16.msra.mxu0 %v10259
      %10316 = vmatprep.subr.bf16.mxu0 0
      %10317 = vmatpush1.bf16.msra.mxu0 %v10260
      %10318 = vmatprep.subr.bf16.mxu0 0
      %10319 = vmatpush1.bf16.msra.mxu0 %v10261
      %10320 = vmatprep.subr.bf16.mxu0 0
      %10321 = vmatpush1.bf16.msra.mxu0 %v10262
      %10322 = vmatprep.subr.bf16.mxu0 0
      %10323 = vmatpush1.bf16.msra.mxu0 %v10263
      %10324 = vmatprep.subr.bf16.mxu0 0
      %10325 = vmatpush1.bf16.msra.mxu0 %v10264
      %10326 = vmatprep.subr.bf16.mxu0 0
      %10327 = vmatpush1.bf16.msra.mxu0 %v10265
      %10328 = vmatprep.subr.bf16.mxu0 0
      %10329 = vmatpush1.bf16.msra.mxu0 %v10266
      %10330 = vmatprep.subr.bf16.mxu0 0
      %10331 = vmatpush1.bf16.msra.mxu0 %v10267
      %10332 = vmatprep.mubr.bf16.mxu0 %v10133
      %10333 = vmatmul.mubr.bf16.gmra.mrb[0].mxu0 %v10132
      %v10334 = vpop.f32.mrb[0].mxu0
      %v10335 = vadd.f32 0.0, %v10334
      %v10336 = vpop.f32.mrb[0].mxu0
      %v10337 = vpop.f32.mrb[0].mxu0
      %v10338 = vadd.f32 0.0, %v10337
      %v10339 = vpop.f32.mrb[0].mxu0
      %10340 = vmatprep.mubr.bf16.mxu0 %v10136
      %10341 = vmatmul.mubr.bf16.gmra.mrb[0].mxu0 %v10135
      %v10342 = vpop.f32.mrb[0].mxu0
      %v10343 = vadd.f32 0.0, %v10342
      %v10344 = vpop.f32.mrb[0].mxu0
      %v10345 = vpop.f32.mrb[0].mxu0
      %v10346 = vadd.f32 0.0, %v10345
      %v10347 = vpop.f32.mrb[0].mxu0
      %10348 = vmatprep.mubr.bf16.mxu0 %v10139
      %10349 = vmatmul.mubr.bf16.gmra.mrb[0].mxu0 %v10138
      %v10350 = vpop.f32.mrb[0].mxu0
      %v10351 = vadd.f32 0.0, %v10350
      %v10352 = vpop.f32.mrb[0].mxu0
      %v10353 = vpop.f32.mrb[0].mxu0
      %v10354 = vadd.f32 0.0, %v10353
      %v10355 = vpop.f32.mrb[0].mxu0
      %10356 = vmatprep.mubr.bf16.mxu0 %v10142
      %10357 = vmatmul.mubr.bf16.gmra.mrb[0].mxu0 %v10141
      %v10358 = vpop.f32.mrb[0].mxu0
      %v10359 = vadd.f32 0.0, %v10358
      %v10360 = vpop.f32.mrb[0].mxu0
      %v10361 = vpop.f32.mrb[0].mxu0
      %v10362 = vadd.f32 0.0, %v10361
      %v10363 = vpop.f32.mrb[0].mxu0
      %10364 = vdwg.mxu0
      %10365 = vmatprep.subr.bf16.mxu0 0
      %10366 = vmatpush1.bf16.msra.mxu0 %v10268
      %10367 = vmatprep.subr.bf16.mxu0 0
      %10368 = vmatpush1.bf16.msra.mxu0 %v10269
      %10369 = vmatprep.subr.bf16.mxu0 0
      %10370 = vmatpush1.bf16.msra.mxu0 0
      %10371 = vmatprep.subr.bf16.mxu0 0
      %10372 = vmatpush1.bf16.msra.mxu0 0
      %10373 = vmatprep.subr.bf16.mxu0 0
      %10374 = vmatpush1.bf16.msra.mxu0 0
      %10375 = vmatprep.subr.bf16.mxu0 0
      %10376 = vmatpush1.bf16.msra.mxu0 0
      %10377 = vmatprep.subr.bf16.mxu0 0
      %10378 = vmatpush1.bf16.msra.mxu0 0
      %10379 = vmatprep.subr.bf16.mxu0 0
      %10380 = vmatpush1.bf16.msra.mxu0 0
      %10381 = vmatprep.subr.bf16.mxu0 0
      %10382 = vmatpush1.bf16.msra.mxu0 0
      %10383 = vmatprep.subr.bf16.mxu0 0
      %10384 = vmatpush1.bf16.msra.mxu0 0
      %10385 = vmatprep.subr.bf16.mxu0 0
      %10386 = vmatpush1.bf16.msra.mxu0 0
      %10387 = vmatprep.subr.bf16.mxu0 0
      %10388 = vmatpush1.bf16.msra.mxu0 0
      %10389 = vmatprep.subr.bf16.mxu0 0
      %10390 = vmatpush1.bf16.msra.mxu0 0
      %10391 = vmatprep.subr.bf16.mxu0 0
      %10392 = vmatpush1.bf16.msra.mxu0 0
      %10393 = vmatprep.subr.bf16.mxu0 0
      %10394 = vmatpush1.bf16.msra.mxu0 0
      %10395 = vmatprep.subr.bf16.mxu0 0
      %10396 = vmatpush1.bf16.msra.mxu0 0
      %10397 = vmatprep.mubr.bf16.mxu0 0
      %10398 = vmatmul.mubr.bf16.gmra.mrb[0].mxu0 %v10289
      %v10399 = vpop.f32.mrb[0].mxu0
      %v10400 = vadd.f32 %v10335, %v10399
      %v10401 = vpop.f32.mrb[0].mxu0
      %v10402 = vpop.f32.mrb[0].mxu0
      %v10403 = vadd.f32 %v10338, %v10402
      %v10404 = vpop.f32.mrb[0].mxu0
      %10405 = vmatprep.mubr.bf16.mxu0 0
      %10406 = vmatmul.mubr.bf16.gmra.mrb[0].mxu0 %v10292
      %v10407 = vpop.f32.mrb[0].mxu0
      %v10408 = vadd.f32 %v10343, %v10407
      %v10409 = vpop.f32.mrb[0].mxu0
      %v10410 = vpop.f32.mrb[0].mxu0
      %v10411 = vadd.f32 %v10346, %v10410
      %v10412 = vpop.f32.mrb[0].mxu0
      %10413 = vmatprep.mubr.bf16.mxu0 0
      %10414 = vmatmul.mubr.bf16.gmra.mrb[0].mxu0 %v10295
      %v10415 = vpop.f32.mrb[0].mxu0
      %v10416 = vadd.f32 %v10351, %v10415
      %v10417 = vpop.f32.mrb[0].mxu0
      %v10418 = vpop.f32.mrb[0].mxu0
      %v10419 = vadd.f32 %v10354, %v10418
      %v10420 = vpop.f32.mrb[0].mxu0
      %10421 = vmatprep.mubr.bf16.mxu0 0
      %10422 = vmatmul.mubr.bf16.gmra.mrb[0].mxu0 %v10298
      %v10423 = vpop.f32.mrb[0].mxu0
      %v10424 = vadd.f32 %v10359, %v10423
      %v10425 = vpop.f32.mrb[0].mxu0
      %v10426 = vpop.f32.mrb[0].mxu0
      %v10427 = vadd.f32 %v10362, %v10426
      %v10428 = vpop.f32.mrb[0].mxu0
      %10429 = vdwg.mxu0
      %v10430 = vld [vmem:[%s599] sm:$0x1]
      %v10431 = vld [vmem:[%s604] sm:$0x1]
      %v10432 = vsel %vm8269, %v10400, 0.0
      %v10433 = vsel %vm8269, %v10403, 0.0
      %v10434 = vadd.f32 %v10432, %v10433
      %v10435 = vsel %vm8269, %v10408, 0.0
      %v10436 = vadd.f32 %v10434, %v10435
      %v10437 = vsel %vm8269, %v10411, 0.0
      %v10438 = vadd.f32 %v10436, %v10437
      %v10439 = vsel %vm8269, %v10416, 0.0
      %v10440 = vadd.f32 %v10438, %v10439
      %v10441 = vsel %vm8269, %v10419, 0.0
      %v10442 = vadd.f32 %v10440, %v10441
      %v10443 = vsel %vm8269, %v10424, 0.0
      %v10444 = vadd.f32 %v10442, %v10443
      %v10445 = vsel %vm8269, %v10427, 0.0
      %v10446 = vadd.f32 %v10444, %v10445
      %v10447 = vrot.slane %v10446, 4
      %v10448 = vadd.f32 %v10446, %v10447
      %v10449 = vrot.slane %v10448, 2
      %v10450 = vadd.f32 %v10448, %v10449
      %v10451 = vrot.slane %v10450, 1
      %v10452 = vadd.f32 %v10450, %v10451
      %v10453 = vmul.f32 %v10452, 0.015625
      %v10454 = vsub.f32 %v10400, %v10453
      %v10455 = vsub.f32 %v10403, %v10453
      %v10456 = vsub.f32 %v10408, %v10453
      %v10457 = vsub.f32 %v10411, %v10453
      %v10458 = vsub.f32 %v10416, %v10453
      %v10459 = vsub.f32 %v10419, %v10453
      %v10460 = vsub.f32 %v10424, %v10453
      %v10461 = vsub.f32 %v10427, %v10453
      %v10462 = vmul.f32 %v10454, %v10454
      %v10463 = vmul.f32 %v10455, %v10455
      %v10464 = vmul.f32 %v10456, %v10456
      %v10465 = vmul.f32 %v10457, %v10457
      %v10466 = vmul.f32 %v10458, %v10458
      %v10467 = vmul.f32 %v10459, %v10459
      %v10468 = vmul.f32 %v10460, %v10460
      %v10469 = vmul.f32 %v10461, %v10461
      %v10470 = vsel %vm8269, %v10462, 0.0
      %v10471 = vsel %vm8269, %v10463, 0.0
      %v10472 = vadd.f32 %v10470, %v10471
      %v10473 = vsel %vm8269, %v10464, 0.0
      %v10474 = vadd.f32 %v10472, %v10473
      %v10475 = vsel %vm8269, %v10465, 0.0
      %v10476 = vadd.f32 %v10474, %v10475
      %v10477 = vsel %vm8269, %v10466, 0.0
      %v10478 = vadd.f32 %v10476, %v10477
      %v10479 = vsel %vm8269, %v10467, 0.0
      %v10480 = vadd.f32 %v10478, %v10479
      %v10481 = vsel %vm8269, %v10468, 0.0
      %v10482 = vadd.f32 %v10480, %v10481
      %v10483 = vsel %vm8269, %v10469, 0.0
      %v10484 = vadd.f32 %v10482, %v10483
      %v10485 = vrot.slane %v10484, 4
      %v10486 = vadd.f32 %v10484, %v10485
      %v10487 = vrot.slane %v10486, 2
      %v10488 = vadd.f32 %v10486, %v10487
      %v10489 = vrot.slane %v10488, 1
      %v10490 = vadd.f32 %v10488, %v10489
      %v10491 = vmul.f32 %v10490, 0.015625
      %v10492 = vadd.f32 %v10491, 1e-05
      %v10493 = vrsqrt.pop %v10492
      %v10494 = vmul.f32 %v10454, %v10493
      %v10495 = vmul.f32 %v10455, %v10493
      %v10496 = vmul.f32 %v10456, %v10493
      %v10497 = vmul.f32 %v10457, %v10493
      %v10498 = vmul.f32 %v10458, %v10493
      %v10499 = vmul.f32 %v10459, %v10493
      %v10500 = vmul.f32 %v10460, %v10493
      %v10501 = vmul.f32 %v10461, %v10493
      %v10503 = vlaneseq
      %v10504 = vshrl.u32 %v10503, 7
      %v10505 = vsub.s32 0, %v10504
      %v10506 = vrot.slane %v10430, %v10505
      %v10508 = vmul.f32 %v10494, %v10506
      %v10509 = vmul.f32 %v10495, %v10506
      %v10510 = vmul.f32 %v10496, %v10506
      %v10511 = vmul.f32 %v10497, %v10506
      %v10512 = vmul.f32 %v10498, %v10506
      %v10513 = vmul.f32 %v10499, %v10506
      %v10514 = vmul.f32 %v10500, %v10506
      %v10515 = vmul.f32 %v10501, %v10506
      %v10517 = vlaneseq
      %v10518 = vshrl.u32 %v10517, 7
      %v10519 = vsub.s32 0, %v10518
      %v10520 = vrot.slane %v10431, %v10519
      %v10522 = vadd.f32 %v10508, %v10520
      %v10523 = vadd.f32 %v10509, %v10520
      %v10524 = vadd.f32 %v10510, %v10520
      %v10525 = vadd.f32 %v10511, %v10520
      %v10526 = vadd.f32 %v10512, %v10520
      %v10527 = vadd.f32 %v10513, %v10520
      %v10528 = vadd.f32 %v10514, %v10520
      %v10529 = vadd.f32 %v10515, %v10520
      %vm10530 = vcmp.ge.f32.partialorder %v10522, 0.0
      %vm10531 = vcmp.ge.f32.partialorder %v10523, 0.0
      %vm10532 = vcmp.ge.f32.partialorder %v10524, 0.0
      %vm10533 = vcmp.ge.f32.partialorder %v10525, 0.0
      %vm10534 = vcmp.ge.f32.partialorder %v10526, 0.0
      %vm10535 = vcmp.ge.f32.partialorder %v10527, 0.0
      %vm10536 = vcmp.ge.f32.partialorder %v10528, 0.0
      %vm10537 = vcmp.ge.f32.partialorder %v10529, 0.0
      %v10538 = vmul.f32 %v10522, 0.01
      %v10539 = vmul.f32 %v10523, 0.01
      %v10540 = vmul.f32 %v10524, 0.01
      %v10541 = vmul.f32 %v10525, 0.01
      %v10542 = vmul.f32 %v10526, 0.01
      %v10543 = vmul.f32 %v10527, 0.01
      %v10544 = vmul.f32 %v10528, 0.01
      %v10545 = vmul.f32 %v10529, 0.01
      %v10546 = vsel %vm10530, %v10522, %v10538
      %v10547 = vsel %vm10531, %v10523, %v10539
      %v10548 = vsel %vm10532, %v10524, %v10540
      %v10549 = vsel %vm10533, %v10525, %v10541
      %v10550 = vsel %vm10534, %v10526, %v10542
      %v10551 = vsel %vm10535, %v10527, %v10543
      %v10552 = vsel %vm10536, %v10528, %v10544
      %v10553 = vsel %vm10537, %v10529, %v10545
      %v10562 = vrot.slane %v10547, 7
      %v10563 = vsel %vm8198, %v10562, %v10546
      %v10564 = vrot.slane %v10548, 6
      %v10565 = vsel %vm8200, %v10564, %v10563
      %v10566 = vrot.slane %v10549, 5
      %v10567 = vsel %vm8202, %v10566, %v10565
      %v10568 = vrot.slane %v10550, 4
      %v10569 = vsel %vm8204, %v10568, %v10567
      %v10570 = vrot.slane %v10551, 3
      %v10571 = vsel %vm8206, %v10570, %v10569
      %v10572 = vrot.slane %v10552, 2
      %v10573 = vsel %vm8208, %v10572, %v10571
      %v10574 = vrot.slane %v10553, 1
      %v10575 = vsel %vm8210, %v10574, %v10573
      %10577 = vst.msk [vmem:[%s610] sm:$0xff] %vm8269, %v10575
      %v10578 = vrot.slane %v10546, 1
      %v10579 = vsel %vm8198, %v10547, %v10578
      %v10580 = vrot.slane %v10548, 7
      %v10581 = vsel %vm8200, %v10580, %v10579
      %v10582 = vrot.slane %v10549, 6
      %v10583 = vsel %vm8202, %v10582, %v10581
      %v10584 = vrot.slane %v10550, 5
      %v10585 = vsel %vm8204, %v10584, %v10583
      %v10586 = vrot.slane %v10551, 4
      %v10587 = vsel %vm8206, %v10586, %v10585
      %v10588 = vrot.slane %v10552, 3
      %v10589 = vsel %vm8208, %v10588, %v10587
      %v10590 = vrot.slane %v10553, 2
      %v10591 = vsel %vm8210, %v10590, %v10589
      %10592 = vrot.lane.b32.xlu0 %v10591, 32
      %v10593 = vpop.permute.xlu0 %10592
      %10595 = vst.msk [vmem:[%s610] sm:$0xff] %vm9824, %v10593
      %v10596 = vrot.slane %v10546, 2
      %v10597 = vrot.slane %v10547, 1
      %v10598 = vsel %vm8198, %v10597, %v10596
      %v10599 = vsel %vm8200, %v10548, %v10598
      %v10600 = vrot.slane %v10549, 7
      %v10601 = vsel %vm8202, %v10600, %v10599
      %v10602 = vrot.slane %v10550, 6
      %v10603 = vsel %vm8204, %v10602, %v10601
      %v10604 = vrot.slane %v10551, 5
      %v10605 = vsel %vm8206, %v10604, %v10603
      %v10606 = vrot.slane %v10552, 4
      %v10607 = vsel %vm8208, %v10606, %v10605
      %v10608 = vrot.slane %v10553, 3
      %v10609 = vsel %vm8210, %v10608, %v10607
      %10610 = vrot.lane.b32.xlu0 %v10609, 64
      %v10611 = vpop.permute.xlu0 %10610
      %10613 = vst.msk [vmem:[%s610] sm:$0xff] %vm9873, %v10611
      %v10614 = vrot.slane %v10546, 3
      %v10615 = vrot.slane %v10547, 2
      %v10616 = vsel %vm8198, %v10615, %v10614
      %v10617 = vrot.slane %v10548, 1
      %v10618 = vsel %vm8200, %v10617, %v10616
      %v10619 = vsel %vm8202, %v10549, %v10618
      %v10620 = vrot.slane %v10550, 7
      %v10621 = vsel %vm8204, %v10620, %v10619
      %v10622 = vrot.slane %v10551, 6
      %v10623 = vsel %vm8206, %v10622, %v10621
      %v10624 = vrot.slane %v10552, 5
      %v10625 = vsel %vm8208, %v10624, %v10623
      %v10626 = vrot.slane %v10553, 4
      %v10627 = vsel %vm8210, %v10626, %v10625
      %10628 = vrot.lane.b32.xlu0 %v10627, 96
      %v10629 = vpop.permute.xlu0 %10628
      %10631 = vst.msk [vmem:[%s610] sm:$0xff] %vm9922, %v10629
      %v10632 = vrot.slane %v10546, 4
      %v10633 = vrot.slane %v10547, 3
      %v10634 = vsel %vm8198, %v10633, %v10632
      %v10635 = vrot.slane %v10548, 2
      %v10636 = vsel %vm8200, %v10635, %v10634
      %v10637 = vrot.slane %v10549, 1
      %v10638 = vsel %vm8202, %v10637, %v10636
      %v10639 = vsel %vm8204, %v10550, %v10638
      %v10640 = vrot.slane %v10551, 7
      %v10641 = vsel %vm8206, %v10640, %v10639
      %v10642 = vrot.slane %v10552, 6
      %v10643 = vsel %vm8208, %v10642, %v10641
      %v10644 = vrot.slane %v10553, 5
      %v10645 = vsel %vm8210, %v10644, %v10643
      %10647 = vst.msk [vmem:[%s610 + $0x8] sm:$0xff] %vm8269, %v10645
      %v10648 = vrot.slane %v10546, 5
      %v10649 = vrot.slane %v10547, 4
      %v10650 = vsel %vm8198, %v10649, %v10648
      %v10651 = vrot.slane %v10548, 3
      %v10652 = vsel %vm8200, %v10651, %v10650
      %v10653 = vrot.slane %v10549, 2
      %v10654 = vsel %vm8202, %v10653, %v10652
      %v10655 = vrot.slane %v10550, 1
      %v10656 = vsel %vm8204, %v10655, %v10654
      %v10657 = vsel %vm8206, %v10551, %v10656
      %v10658 = vrot.slane %v10552, 7
      %v10659 = vsel %vm8208, %v10658, %v10657
      %v10660 = vrot.slane %v10553, 6
      %v10661 = vsel %vm8210, %v10660, %v10659
      %10662 = vrot.lane.b32.xlu0 %v10661, 32
      %v10663 = vpop.permute.xlu0 %10662
      %10665 = vst.msk [vmem:[%s610 + $0x8] sm:$0xff] %vm9824, %v10663
      %v10666 = vrot.slane %v10546, 6
      %v10667 = vrot.slane %v10547, 5
      %v10668 = vsel %vm8198, %v10667, %v10666
      %v10669 = vrot.slane %v10548, 4
      %v10670 = vsel %vm8200, %v10669, %v10668
      %v10671 = vrot.slane %v10549, 3
      %v10672 = vsel %vm8202, %v10671, %v10670
      %v10673 = vrot.slane %v10550, 2
      %v10674 = vsel %vm8204, %v10673, %v10672
      %v10675 = vrot.slane %v10551, 1
      %v10676 = vsel %vm8206, %v10675, %v10674
      %v10677 = vsel %vm8208, %v10552, %v10676
      %v10678 = vrot.slane %v10553, 7
      %v10679 = vsel %vm8210, %v10678, %v10677
      %10680 = vrot.lane.b32.xlu0 %v10679, 64
      %v10681 = vpop.permute.xlu0 %10680
      %10683 = vst.msk [vmem:[%s610 + $0x8] sm:$0xff] %vm9873, %v10681
      %v10684 = vrot.slane %v10546, 7
      %v10685 = vrot.slane %v10547, 6
      %v10686 = vsel %vm8198, %v10685, %v10684
      %v10687 = vrot.slane %v10548, 5
      %v10688 = vsel %vm8200, %v10687, %v10686
      %v10689 = vrot.slane %v10549, 4
      %v10690 = vsel %vm8202, %v10689, %v10688
      %v10691 = vrot.slane %v10550, 3
      %v10692 = vsel %vm8204, %v10691, %v10690
      %v10693 = vrot.slane %v10551, 2
      %v10694 = vsel %vm8206, %v10693, %v10692
      %v10695 = vrot.slane %v10552, 1
      %v10696 = vsel %vm8208, %v10695, %v10694
      %v10697 = vsel %vm8210, %v10553, %v10696
      %10698 = vrot.lane.b32.xlu0 %v10697, 96
      %v10699 = vpop.permute.xlu0 %10698
      %10701 = vst.msk [vmem:[%s610 + $0x8] sm:$0xff] %vm9922, %v10699
      %p10702 = scmp.lt.s32.totalorder %s26, 1
      %s10703 = scalar_select %p10702, %s26, 1
      %s10704 = smul.addr %s10703, 2
      %s10705 = smul.addr %s10704, 8
      %s10706 = scalar_lea.vmem %s14, %s10705
      // Predicated region
      $region73: #{encoder_forward.1} parent=71 // pred_check
        %p10707 = pneg %p378
      $region74: #{encoder_forward.1} parent=71 // pred_check_branch
        %10709 = sbr.rel (%p10707) target = $region76
      $region75: #{encoder_forward.1} parent=71 // pred_region
        _
      $region76: #{encoder_forward.1} parent=71 // pred_fallthru
        _
    $region72: #{encoder_forward.1} parent=5 // pred_fallthru
      _
    %p10710 = scmp.le.s32.totalorder 2, %s21
    // Predicated region
    $region77: #{encoder_forward.1} parent=5 // pred_check
      %p10711 = pneg %p10710
    $region78: #{encoder_forward.1} parent=5 // pred_check_branch
      %10713 = sbr.rel (%p10711) target = $region80
    $region79: #{encoder_forward.1} parent=5 // pred_region
      %s10714 = ssub.s32 %s21, 2
      // Predicated region
      $region81: #{encoder_forward.1} parent=79 // pred_check
        %p10715 = pneg %p384
      $region82: #{encoder_forward.1} parent=79 // pred_check_branch
        %10717 = sbr.rel (%p10715) target = $region84
      $region83: #{encoder_forward.1} parent=79 // pred_region
        %p10718 = scmp.lt.s32.totalorder %s27, 1
        %s10719 = scalar_select %p10718, %s27, 1
        %s10720 = smul.addr %s10719, 2
        %s10721 = smul.addr %s10720, 8
        %s10722 = scalar_lea.vmem %s14, %s10721
      $region84: #{encoder_forward.1} parent=79 // pred_fallthru
        _
    $region80: #{encoder_forward.1} parent=5 // pred_fallthru
      _
  $region6: #{encoder_forward.1} parent=0 // loop_footer
    %s25 = sadd.s32 1, %s21
  $region7: #{encoder_forward.1} parent=0 // loop_footer_branch
    %20 = sbr.rel target = $region3
  $region8: #{encoder_forward.1} parent=0 // loop_exit
    _

</llo_original>
